<compile_context>
chip_gen: v6e
topology: v6e:2x2x1
jax: 0.10.0
libtpu: 0.0.40
codegen_flags: <defaults>
</compile_context>

<pallas_src>
import jax
import jax.numpy as jnp
import numpy as np
from jax import lax
from jax.experimental import pallas as pl
from jax.experimental.pallas import tpu as pltpu


def _strided_rows(ref, start, num):
    """Rows start, start+2, ..., start+2*(num-1) of a 2-D VMEM ref."""
    if num == 1:
        return ref[pl.ds(start, 1), :]
    return ref[pl.ds(start, num, stride=2), :]


def _emit_conv_block(xp_ref, yc_ref, w_ref, scale, bias, H, W, write_pooled):
    """conv3x3(SAME) + folded-BN affine + ReLU + maxpool2x2 for one image.

    xp_ref: (SP, Cin)  zero-padded activation, row = padded (h, w) row-major,
            SP = (H+2)*(W+2).
    yc_ref: (Rv, Cout) conv-result scratch, Rv = H*(W+2) - 2; row h*(W+2)+w is
            the conv output at (h, w) (other rows are ignored garbage).
    w_ref:  (9, Cin, Cout), tap t = dy*3 + dx.
    scale/bias: (1, Cout) folded BN scale / bias (hoisted, loaded once).
    write_pooled(i, pooled): stores the (Wo, Cout) pooled output row i.
    """
    Wp = W + 2
    Rv = H * Wp - 2
    Ho, Wo = H // 2, W // 2

    # Conv as 9 accumulated matmuls: M = Rv output pixels, K = Cin, N = Cout.
    # Tap (dy, dx) is just a constant row offset dy*Wp + dx in the flat layout.
    for t in range(9):
        dy, dx = divmod(t, 3)
        lhs = xp_ref[pl.ds(dy * Wp + dx, Rv), :]
        contrib = jnp.dot(lhs, w_ref[t], preferred_element_type=jnp.float32)
        if t == 0:
            yc_ref[...] = contrib
        else:
            yc_ref[...] += contrib

    # Folded BatchNorm affine (+ conv bias) and ReLU, one pass over the buffer.
    yc_ref[...] = jnp.maximum(yc_ref[...] * scale + bias, 0.0)

    # 2x2 max pool, stride 2: vectorized over width with stride-2 row loads.
    for i in range(Ho):
        b0 = (2 * i) * Wp        # conv row 2i
        b1 = (2 * i + 1) * Wp    # conv row 2i+1
        pooled = jnp.maximum(
            jnp.maximum(_strided_rows(yc_ref, b0, Wo),
                        _strided_rows(yc_ref, b0 + 1, Wo)),
            jnp.maximum(_strided_rows(yc_ref, b1, Wo),
                        _strided_rows(yc_ref, b1 + 1, Wo)))
        write_pooled(i, pooled)


def _make_fused_kernel(H, W, C0, F):
    H1, W1 = H, W
    H2, W2 = H // 2, W // 2
    H3, W3 = H // 4, W // 4
    H4, W4 = H // 8, W // 8
    Hf, Wf = H // 16, W // 16

    def pad_writer(dst_ref, Wn):
        """Write pooled row i into the interior of the next padded scratch."""
        Wpn = Wn + 2

        def write(i, pooled):
            dst_ref[pl.ds((i + 1) * Wpn + 1, Wn), :] = pooled
        return write

    def out_writer(dst_ref, Wn):
        def write(i, pooled):
            dst_ref[0, pl.ds(i * Wn, Wn), :] = pooled
        return write

    def kernel(x_ref, w1_ref, w2_ref, w3_ref, w4_ref, sc_ref, bs_ref, out_ref,
               xp1, xp2, xp3, xp4, yc1, yc2, yc3, yc4):
        # ---- layer-1 halo: zero the padded scratch, copy the image interior ----
        Wp1 = W1 + 2
        xp1[...] = jnp.zeros_like(xp1)
        for h in range(H1):
            xp1[pl.ds((h + 1) * Wp1 + 1, W1), :] = x_ref[0, pl.ds(h * W1, W1), :]

        # Hoisted per-layer folded-BN scale/bias, each (1, F).
        sc = [sc_ref[l] for l in range(4)]
        bs = [bs_ref[l] for l in range(4)]

        # Each block's pooled output is written directly into the interior of
        # the next block's padded scratch (halo fused with pooling).
        xp2[...] = jnp.zeros_like(xp2)
        _emit_conv_block(xp1, yc1, w1_ref, sc[0], bs[0], H1, W1, pad_writer(xp2, W2))

        xp3[...] = jnp.zeros_like(xp3)
        _emit_conv_block(xp2, yc2, w2_ref, sc[1], bs[1], H2, W2, pad_writer(xp3, W3))

        xp4[...] = jnp.zeros_like(xp4)
        _emit_conv_block(xp3, yc3, w3_ref, sc[2], bs[2], H3, W3, pad_writer(xp4, W4))

        _emit_conv_block(xp4, yc4, w4_ref, sc[3], bs[3], H4, W4, out_writer(out_ref, Wf))

    return kernel


def protonet_forward_pallas(x_nchw, params):
    """Equivalent of ProtoNetSimple.forward: returns the flattened embedding."""
    N, C0, H, W = x_nchw.shape
    F = params[0]["w"].shape[-1]
    assert H % 16 == 0 and W % 16 == 0, "spatial dims must survive 4 halvings"
    Hf, Wf = H // 16, W // 16

    # NCHW -> NHWC -> per-image flattened rows (row = h*W + w, lanes = channels).
    x_rows = jnp.transpose(x_nchw, (0, 2, 3, 1)).astype(jnp.float32)
    x_rows = x_rows.reshape(N, H * W, C0)

    w = [p["w"].reshape(9, p["w"].shape[2], F).astype(jnp.float32) for p in params]
    scales = jnp.stack([p["scale"] for p in params]).astype(jnp.float32).reshape(4, 1, F)
    biases = jnp.stack([p["bias"] for p in params]).astype(jnp.float32).reshape(4, 1, F)

    dims = [(H, W), (H // 2, W // 2), (H // 4, W // 4), (H // 8, W // 8)]
    cins = [C0, F, F, F]
    scratch = (
        [pltpu.VMEM(((h + 2) * (w_ + 2), c), jnp.float32)   # padded activations
         for (h, w_), c in zip(dims, cins)]
        + [pltpu.VMEM((h * (w_ + 2) - 2, F), jnp.float32)   # conv results
           for (h, w_) in dims])

    kernel = _make_fused_kernel(H, W, C0, F)

    out_rows = pl.pallas_call(
        kernel,
        out_shape=jax.ShapeDtypeStruct((N, Hf * Wf, F), jnp.float32),
        grid=(N,),
        in_specs=[
            pl.BlockSpec((1, H * W, C0), lambda n: (n, 0, 0)),
            pl.BlockSpec((9, C0, F), lambda n: (0, 0, 0)),
            pl.BlockSpec((9, F, F), lambda n: (0, 0, 0)),
            pl.BlockSpec((9, F, F), lambda n: (0, 0, 0)),
            pl.BlockSpec((9, F, F), lambda n: (0, 0, 0)),
            pl.BlockSpec((4, 1, F), lambda n: (0, 0, 0)),
            pl.BlockSpec((4, 1, F), lambda n: (0, 0, 0)),
        ],
        out_specs=pl.BlockSpec((1, Hf * Wf, F), lambda n: (n, 0, 0)),
        scratch_shapes=scratch,
        compiler_params=pltpu.CompilerParams(dimension_semantics=("parallel",)),
    )(x_rows, w[0], w[1], w[2], w[3], scales, biases)

    # NHWC-rows -> NCHW -> nn.Flatten(start_dim=1) ordering (C, H, W).
    y = out_rows.reshape(N, Hf, Wf, F).transpose(0, 3, 1, 2)
    return y.reshape(N, -1)


protonet_forward = jax.jit(protonet_forward_pallas)


def init_params(key, num_filters=32, in_channels=3):
    """Deterministic synthetic params for the 4 cnn blocks (conv + eval-mode BN folded)."""
    params = []
    chans = [(in_channels, num_filters)] + [(num_filters, num_filters)] * 3
    eps = 1e-5
    for i, (cin, cout) in enumerate(chans):
        k = jax.random.fold_in(key, i)
        kw, kb, kg, kbe, km, kv = jax.random.split(k, 6)
        w = jax.random.normal(kw, (3, 3, cin, cout), jnp.float32) * 0.1   # HWIO
        b = jax.random.normal(kb, (cout,), jnp.float32) * 0.1             # conv bias
        gamma = jax.random.uniform(kg, (cout,), jnp.float32, minval=0.5, maxval=1.5)
        beta = jax.random.normal(kbe, (cout,), jnp.float32) * 0.1
        rmean = jax.random.normal(km, (cout,), jnp.float32) * 0.1
        rvar = jax.random.uniform(kv, (cout,), jnp.float32, minval=0.5, maxval=1.5)
        scale = gamma / jnp.sqrt(rvar + eps)
        bias = beta + scale * (b - rmean)
        params.append({"w": w, "scale": scale, "bias": bias})
    return params


# ---------------- pure-JAX reference (for correctness check) ----------------
def _ref_block(x_nhwc, w_hwio, scale, bias):
    y = lax.conv_general_dilated(
        x_nhwc.astype(jnp.float32), w_hwio.astype(jnp.float32),
        window_strides=(1, 1), padding="SAME",
        dimension_numbers=("NHWC", "HWIO", "NHWC"))
    y = y * scale.reshape(1, 1, 1, -1) + bias.reshape(1, 1, 1, -1)
    y = jnp.maximum(y, 0.0)
    return lax.reduce_window(y, -jnp.inf, lax.max,
                             (1, 2, 2, 1), (1, 2, 2, 1), "VALID")


def protonet_forward_ref(x_nchw, params):
    x = jnp.transpose(x_nchw, (0, 2, 3, 1)).astype(jnp.float32)
    for p in params:
        x = _ref_block(x, p["w"], p["scale"], p["bias"])
    x = jnp.transpose(x, (0, 3, 1, 2))
    return x.reshape(x.shape[0], -1)


if __name__ == "__main__":
    # NCHW input, 3 input channels, 16x16 spatial (halved 4x -> 1x1), 32 filters.
    key = jax.random.PRNGKey(0)
    kx, kp = jax.random.split(key)
    N, C, HW = 2, 3, 16
    num_filters = 32

    x = jax.random.normal(kx, (N, C, HW, HW), jnp.float32)
    params = init_params(kp, num_filters=num_filters, in_channels=C)

    out = jax.block_until_ready(protonet_forward(x, params))
    ref = jax.block_until_ready(protonet_forward_ref(x, params))

    assert out.shape == (N, num_filters * (HW // 16) * (HW // 16)), out.shape
    np.testing.assert_allclose(np.asarray(out), np.asarray(ref), rtol=1e-4, atol=1e-4)

    print("KERNEL_OK")
</pallas_src>

<mosaic_0001>
module attributes {stable_mosaic.version = 11 : i64} {
  func.func @kernel(%arg0: i32, %arg1: memref<1x256x3xf32, #tpu.memory_space<vmem>>, %arg2: memref<9x3x32xf32, #tpu.memory_space<vmem>>, %arg3: memref<9x32x32xf32, #tpu.memory_space<vmem>>, %arg4: memref<9x32x32xf32, #tpu.memory_space<vmem>>, %arg5: memref<9x32x32xf32, #tpu.memory_space<vmem>>, %arg6: memref<4x1x32xf32, #tpu.memory_space<vmem>>, %arg7: memref<4x1x32xf32, #tpu.memory_space<vmem>>, %arg8: memref<1x1x32xf32, #tpu.memory_space<vmem>>, %arg9: memref<324x3xf32, #tpu.memory_space<vmem>>, %arg10: memref<100x32xf32, #tpu.memory_space<vmem>>, %arg11: memref<36x32xf32, #tpu.memory_space<vmem>>, %arg12: memref<16x32xf32, #tpu.memory_space<vmem>>, %arg13: memref<286x32xf32, #tpu.memory_space<vmem>>, %arg14: memref<78x32xf32, #tpu.memory_space<vmem>>, %arg15: memref<22x32xf32, #tpu.memory_space<vmem>>, %arg16: memref<6x32xf32, #tpu.memory_space<vmem>>) attributes {dimension_semantics = [#tpu.dimension_semantics<parallel>], iteration_bounds = array<i64: 2>, scalar_prefetch = 0 : i64, scratch_operands = 8 : i64, tpu.core_type = #tpu.core_type<tc>, window_params = [{transform_indices = @transform_0, window_bounds = array<i64: 1, 256, 3>}, {pipeline_mode = #tpu.pipeline_mode<synchronous>, transform_indices = @transform_1, window_bounds = array<i64: 9, 3, 32>}, {pipeline_mode = #tpu.pipeline_mode<synchronous>, transform_indices = @transform_2, window_bounds = array<i64: 9, 32, 32>}, {pipeline_mode = #tpu.pipeline_mode<synchronous>, transform_indices = @transform_3, window_bounds = array<i64: 9, 32, 32>}, {pipeline_mode = #tpu.pipeline_mode<synchronous>, transform_indices = @transform_4, window_bounds = array<i64: 9, 32, 32>}, {pipeline_mode = #tpu.pipeline_mode<synchronous>, transform_indices = @transform_5, window_bounds = array<i64: 4, 1, 32>}, {pipeline_mode = #tpu.pipeline_mode<synchronous>, transform_indices = @transform_6, window_bounds = array<i64: 4, 1, 32>}, {transform_indices = @transform_7, window_bounds = array<i64: 1, 1, 32>}]} {
    %cst = arith.constant 0.000000e+00 : f32
    %0 = vector.broadcast %cst : f32 to vector<324x3xf32>
    %c0 = arith.constant 0 : index
    %c0_0 = arith.constant 0 : index
    %1 = vector.load %arg9[%c0, %c0_0] : memref<324x3xf32, #tpu.memory_space<vmem>>, vector<324x3xf32>
    tpu.vector_store %arg9[%c0, %c0_0], %0 {strides = array<i32>} : memref<324x3xf32, #tpu.memory_space<vmem>>, vector<324x3xf32>,
    %c0_1 = arith.constant 0 : index
    %c0_2 = arith.constant 0 : index
    %c0_3 = arith.constant 0 : index
    %2 = vector.load %arg1[%c0_1, %c0_2, %c0_3] : memref<1x256x3xf32, #tpu.memory_space<vmem>>, vector<1x16x3xf32>
    %3 = vector.shape_cast %2 : vector<1x16x3xf32> to vector<16x3xf32>
    %c19 = arith.constant 19 : index
    %c0_4 = arith.constant 0 : index
    %4 = vector.load %arg9[%c19, %c0_4] : memref<324x3xf32, #tpu.memory_space<vmem>>, vector<16x3xf32>
    tpu.vector_store %arg9[%c19, %c0_4], %3 {strides = array<i32>} : memref<324x3xf32, #tpu.memory_space<vmem>>, vector<16x3xf32>,
    %c0_5 = arith.constant 0 : index
    %c16 = arith.constant 16 : index
    %c0_6 = arith.constant 0 : index
    %5 = vector.load %arg1[%c0_5, %c16, %c0_6] : memref<1x256x3xf32, #tpu.memory_space<vmem>>, vector<1x16x3xf32>
    %6 = vector.shape_cast %5 : vector<1x16x3xf32> to vector<16x3xf32>
    %c37 = arith.constant 37 : index
    %c0_7 = arith.constant 0 : index
    %7 = vector.load %arg9[%c37, %c0_7] : memref<324x3xf32, #tpu.memory_space<vmem>>, vector<16x3xf32>
    tpu.vector_store %arg9[%c37, %c0_7], %6 {strides = array<i32>} : memref<324x3xf32, #tpu.memory_space<vmem>>, vector<16x3xf32>,
    %c0_8 = arith.constant 0 : index
    %c32 = arith.constant 32 : index
    %c0_9 = arith.constant 0 : index
    %8 = vector.load %arg1[%c0_8, %c32, %c0_9] : memref<1x256x3xf32, #tpu.memory_space<vmem>>, vector<1x16x3xf32>
    %9 = vector.shape_cast %8 : vector<1x16x3xf32> to vector<16x3xf32>
    %c55 = arith.constant 55 : index
    %c0_10 = arith.constant 0 : index
    %10 = vector.load %arg9[%c55, %c0_10] : memref<324x3xf32, #tpu.memory_space<vmem>>, vector<16x3xf32>
    tpu.vector_store %arg9[%c55, %c0_10], %9 {strides = array<i32>} : memref<324x3xf32, #tpu.memory_space<vmem>>, vector<16x3xf32>,
    %c0_11 = arith.constant 0 : index
    %c48 = arith.constant 48 : index
    %c0_12 = arith.constant 0 : index
    %11 = vector.load %arg1[%c0_11, %c48, %c0_12] : memref<1x256x3xf32, #tpu.memory_space<vmem>>, vector<1x16x3xf32>
    %12 = vector.shape_cast %11 : vector<1x16x3xf32> to vector<16x3xf32>
    %c73 = arith.constant 73 : index
    %c0_13 = arith.constant 0 : index
    %13 = vector.load %arg9[%c73, %c0_13] : memref<324x3xf32, #tpu.memory_space<vmem>>, vector<16x3xf32>
    tpu.vector_store %arg9[%c73, %c0_13], %12 {strides = array<i32>} : memref<324x3xf32, #tpu.memory_space<vmem>>, vector<16x3xf32>,
    %c0_14 = arith.constant 0 : index
    %c64 = arith.constant 64 : index
    %c0_15 = arith.constant 0 : index
    %14 = vector.load %arg1[%c0_14, %c64, %c0_15] : memref<1x256x3xf32, #tpu.memory_space<vmem>>, vector<1x16x3xf32>
    %15 = vector.shape_cast %14 : vector<1x16x3xf32> to vector<16x3xf32>
    %c91 = arith.constant 91 : index
    %c0_16 = arith.constant 0 : index
    %16 = vector.load %arg9[%c91, %c0_16] : memref<324x3xf32, #tpu.memory_space<vmem>>, vector<16x3xf32>
    tpu.vector_store %arg9[%c91, %c0_16], %15 {strides = array<i32>} : memref<324x3xf32, #tpu.memory_space<vmem>>, vector<16x3xf32>,
    %c0_17 = arith.constant 0 : index
    %c80 = arith.constant 80 : index
    %c0_18 = arith.constant 0 : index
    %17 = vector.load %arg1[%c0_17, %c80, %c0_18] : memref<1x256x3xf32, #tpu.memory_space<vmem>>, vector<1x16x3xf32>
    %18 = vector.shape_cast %17 : vector<1x16x3xf32> to vector<16x3xf32>
    %c109 = arith.constant 109 : index
    %c0_19 = arith.constant 0 : index
    %19 = vector.load %arg9[%c109, %c0_19] : memref<324x3xf32, #tpu.memory_space<vmem>>, vector<16x3xf32>
    tpu.vector_store %arg9[%c109, %c0_19], %18 {strides = array<i32>} : memref<324x3xf32, #tpu.memory_space<vmem>>, vector<16x3xf32>,
    %c0_20 = arith.constant 0 : index
    %c96 = arith.constant 96 : index
    %c0_21 = arith.constant 0 : index
    %20 = vector.load %arg1[%c0_20, %c96, %c0_21] : memref<1x256x3xf32, #tpu.memory_space<vmem>>, vector<1x16x3xf32>
    %21 = vector.shape_cast %20 : vector<1x16x3xf32> to vector<16x3xf32>
    %c127 = arith.constant 127 : index
    %c0_22 = arith.constant 0 : index
    %22 = vector.load %arg9[%c127, %c0_22] : memref<324x3xf32, #tpu.memory_space<vmem>>, vector<16x3xf32>
    tpu.vector_store %arg9[%c127, %c0_22], %21 {strides = array<i32>} : memref<324x3xf32, #tpu.memory_space<vmem>>, vector<16x3xf32>,
    %c0_23 = arith.constant 0 : index
    %c112 = arith.constant 112 : index
    %c0_24 = arith.constant 0 : index
    %23 = vector.load %arg1[%c0_23, %c112, %c0_24] : memref<1x256x3xf32, #tpu.memory_space<vmem>>, vector<1x16x3xf32>
    %24 = vector.shape_cast %23 : vector<1x16x3xf32> to vector<16x3xf32>
    %c145 = arith.constant 145 : index
    %c0_25 = arith.constant 0 : index
    %25 = vector.load %arg9[%c145, %c0_25] : memref<324x3xf32, #tpu.memory_space<vmem>>, vector<16x3xf32>
    tpu.vector_store %arg9[%c145, %c0_25], %24 {strides = array<i32>} : memref<324x3xf32, #tpu.memory_space<vmem>>, vector<16x3xf32>,
    %c0_26 = arith.constant 0 : index
    %c128 = arith.constant 128 : index
    %c0_27 = arith.constant 0 : index
    %26 = vector.load %arg1[%c0_26, %c128, %c0_27] : memref<1x256x3xf32, #tpu.memory_space<vmem>>, vector<1x16x3xf32>
    %27 = vector.shape_cast %26 : vector<1x16x3xf32> to vector<16x3xf32>
    %c163 = arith.constant 163 : index
    %c0_28 = arith.constant 0 : index
    %28 = vector.load %arg9[%c163, %c0_28] : memref<324x3xf32, #tpu.memory_space<vmem>>, vector<16x3xf32>
    tpu.vector_store %arg9[%c163, %c0_28], %27 {strides = array<i32>} : memref<324x3xf32, #tpu.memory_space<vmem>>, vector<16x3xf32>,
    %c0_29 = arith.constant 0 : index
    %c144 = arith.constant 144 : index
    %c0_30 = arith.constant 0 : index
    %29 = vector.load %arg1[%c0_29, %c144, %c0_30] : memref<1x256x3xf32, #tpu.memory_space<vmem>>, vector<1x16x3xf32>
    %30 = vector.shape_cast %29 : vector<1x16x3xf32> to vector<16x3xf32>
    %c181 = arith.constant 181 : index
    %c0_31 = arith.constant 0 : index
    %31 = vector.load %arg9[%c181, %c0_31] : memref<324x3xf32, #tpu.memory_space<vmem>>, vector<16x3xf32>
    tpu.vector_store %arg9[%c181, %c0_31], %30 {strides = array<i32>} : memref<324x3xf32, #tpu.memory_space<vmem>>, vector<16x3xf32>,
    %c0_32 = arith.constant 0 : index
    %c160 = arith.constant 160 : index
    %c0_33 = arith.constant 0 : index
    %32 = vector.load %arg1[%c0_32, %c160, %c0_33] : memref<1x256x3xf32, #tpu.memory_space<vmem>>, vector<1x16x3xf32>
    %33 = vector.shape_cast %32 : vector<1x16x3xf32> to vector<16x3xf32>
    %c199 = arith.constant 199 : index
    %c0_34 = arith.constant 0 : index
    %34 = vector.load %arg9[%c199, %c0_34] : memref<324x3xf32, #tpu.memory_space<vmem>>, vector<16x3xf32>
    tpu.vector_store %arg9[%c199, %c0_34], %33 {strides = array<i32>} : memref<324x3xf32, #tpu.memory_space<vmem>>, vector<16x3xf32>,
    %c0_35 = arith.constant 0 : index
    %c176 = arith.constant 176 : index
    %c0_36 = arith.constant 0 : index
    %35 = vector.load %arg1[%c0_35, %c176, %c0_36] : memref<1x256x3xf32, #tpu.memory_space<vmem>>, vector<1x16x3xf32>
    %36 = vector.shape_cast %35 : vector<1x16x3xf32> to vector<16x3xf32>
    %c217 = arith.constant 217 : index
    %c0_37 = arith.constant 0 : index
    %37 = vector.load %arg9[%c217, %c0_37] : memref<324x3xf32, #tpu.memory_space<vmem>>, vector<16x3xf32>
    tpu.vector_store %arg9[%c217, %c0_37], %36 {strides = array<i32>} : memref<324x3xf32, #tpu.memory_space<vmem>>, vector<16x3xf32>,
    %c0_38 = arith.constant 0 : index
    %c192 = arith.constant 192 : index
    %c0_39 = arith.constant 0 : index
    %38 = vector.load %arg1[%c0_38, %c192, %c0_39] : memref<1x256x3xf32, #tpu.memory_space<vmem>>, vector<1x16x3xf32>
    %39 = vector.shape_cast %38 : vector<1x16x3xf32> to vector<16x3xf32>
    %c235 = arith.constant 235 : index
    %c0_40 = arith.constant 0 : index
    %40 = vector.load %arg9[%c235, %c0_40] : memref<324x3xf32, #tpu.memory_space<vmem>>, vector<16x3xf32>
    tpu.vector_store %arg9[%c235, %c0_40], %39 {strides = array<i32>} : memref<324x3xf32, #tpu.memory_space<vmem>>, vector<16x3xf32>,
    %c0_41 = arith.constant 0 : index
    %c208 = arith.constant 208 : index
    %c0_42 = arith.constant 0 : index
    %41 = vector.load %arg1[%c0_41, %c208, %c0_42] : memref<1x256x3xf32, #tpu.memory_space<vmem>>, vector<1x16x3xf32>
    %42 = vector.shape_cast %41 : vector<1x16x3xf32> to vector<16x3xf32>
    %c253 = arith.constant 253 : index
    %c0_43 = arith.constant 0 : index
    %43 = vector.load %arg9[%c253, %c0_43] : memref<324x3xf32, #tpu.memory_space<vmem>>, vector<16x3xf32>
    tpu.vector_store %arg9[%c253, %c0_43], %42 {strides = array<i32>} : memref<324x3xf32, #tpu.memory_space<vmem>>, vector<16x3xf32>,
    %c0_44 = arith.constant 0 : index
    %c224 = arith.constant 224 : index
    %c0_45 = arith.constant 0 : index
    %44 = vector.load %arg1[%c0_44, %c224, %c0_45] : memref<1x256x3xf32, #tpu.memory_space<vmem>>, vector<1x16x3xf32>
    %45 = vector.shape_cast %44 : vector<1x16x3xf32> to vector<16x3xf32>
    %c271 = arith.constant 271 : index
    %c0_46 = arith.constant 0 : index
    %46 = vector.load %arg9[%c271, %c0_46] : memref<324x3xf32, #tpu.memory_space<vmem>>, vector<16x3xf32>
    tpu.vector_store %arg9[%c271, %c0_46], %45 {strides = array<i32>} : memref<324x3xf32, #tpu.memory_space<vmem>>, vector<16x3xf32>,
    %c0_47 = arith.constant 0 : index
    %c240 = arith.constant 240 : index
    %c0_48 = arith.constant 0 : index
    %47 = vector.load %arg1[%c0_47, %c240, %c0_48] : memref<1x256x3xf32, #tpu.memory_space<vmem>>, vector<1x16x3xf32>
    %48 = vector.shape_cast %47 : vector<1x16x3xf32> to vector<16x3xf32>
    %c289 = arith.constant 289 : index
    %c0_49 = arith.constant 0 : index
    %49 = vector.load %arg9[%c289, %c0_49] : memref<324x3xf32, #tpu.memory_space<vmem>>, vector<16x3xf32>
    tpu.vector_store %arg9[%c289, %c0_49], %48 {strides = array<i32>} : memref<324x3xf32, #tpu.memory_space<vmem>>, vector<16x3xf32>,
    %c0_50 = arith.constant 0 : index
    %c0_51 = arith.constant 0 : index
    %c0_52 = arith.constant 0 : index
    %50 = vector.load %arg6[%c0_50, %c0_51, %c0_52] : memref<4x1x32xf32, #tpu.memory_space<vmem>>, vector<1x1x32xf32>
    %51 = vector.shape_cast %50 : vector<1x1x32xf32> to vector<1x32xf32>
    %c1 = arith.constant 1 : index
    %c0_53 = arith.constant 0 : index
    %c0_54 = arith.constant 0 : index
    %52 = vector.load %arg6[%c1, %c0_53, %c0_54] : memref<4x1x32xf32, #tpu.memory_space<vmem>>, vector<1x1x32xf32>
    %53 = vector.shape_cast %52 : vector<1x1x32xf32> to vector<1x32xf32>
    %c2 = arith.constant 2 : index
    %c0_55 = arith.constant 0 : index
    %c0_56 = arith.constant 0 : index
    %54 = vector.load %arg6[%c2, %c0_55, %c0_56] : memref<4x1x32xf32, #tpu.memory_space<vmem>>, vector<1x1x32xf32>
    %55 = vector.shape_cast %54 : vector<1x1x32xf32> to vector<1x32xf32>
    %c3 = arith.constant 3 : index
    %c0_57 = arith.constant 0 : index
    %c0_58 = arith.constant 0 : index
    %56 = vector.load %arg6[%c3, %c0_57, %c0_58] : memref<4x1x32xf32, #tpu.memory_space<vmem>>, vector<1x1x32xf32>
    %57 = vector.shape_cast %56 : vector<1x1x32xf32> to vector<1x32xf32>
    %c0_59 = arith.constant 0 : index
    %c0_60 = arith.constant 0 : index
    %c0_61 = arith.constant 0 : index
    %58 = vector.load %arg7[%c0_59, %c0_60, %c0_61] : memref<4x1x32xf32, #tpu.memory_space<vmem>>, vector<1x1x32xf32>
    %59 = vector.shape_cast %58 : vector<1x1x32xf32> to vector<1x32xf32>
    %c1_62 = arith.constant 1 : index
    %c0_63 = arith.constant 0 : index
    %c0_64 = arith.constant 0 : index
    %60 = vector.load %arg7[%c1_62, %c0_63, %c0_64] : memref<4x1x32xf32, #tpu.memory_space<vmem>>, vector<1x1x32xf32>
    %61 = vector.shape_cast %60 : vector<1x1x32xf32> to vector<1x32xf32>
    %c2_65 = arith.constant 2 : index
    %c0_66 = arith.constant 0 : index
    %c0_67 = arith.constant 0 : index
    %62 = vector.load %arg7[%c2_65, %c0_66, %c0_67] : memref<4x1x32xf32, #tpu.memory_space<vmem>>, vector<1x1x32xf32>
    %63 = vector.shape_cast %62 : vector<1x1x32xf32> to vector<1x32xf32>
    %c3_68 = arith.constant 3 : index
    %c0_69 = arith.constant 0 : index
    %c0_70 = arith.constant 0 : index
    %64 = vector.load %arg7[%c3_68, %c0_69, %c0_70] : memref<4x1x32xf32, #tpu.memory_space<vmem>>, vector<1x1x32xf32>
    %65 = vector.shape_cast %64 : vector<1x1x32xf32> to vector<1x32xf32>
    %cst_71 = arith.constant 0.000000e+00 : f32
    %66 = vector.broadcast %cst_71 : f32 to vector<100x32xf32>
    %c0_72 = arith.constant 0 : index
    %c0_73 = arith.constant 0 : index
    %67 = vector.load %arg10[%c0_72, %c0_73] : memref<100x32xf32, #tpu.memory_space<vmem>>, vector<100x32xf32>
    tpu.vector_store %arg10[%c0_72, %c0_73], %66 {strides = array<i32>} : memref<100x32xf32, #tpu.memory_space<vmem>>, vector<100x32xf32>,
    %c0_74 = arith.constant 0 : index
    %c0_75 = arith.constant 0 : index
    %68 = vector.load %arg9[%c0_74, %c0_75] : memref<324x3xf32, #tpu.memory_space<vmem>>, vector<286x3xf32>
    %c0_76 = arith.constant 0 : index
    %c0_77 = arith.constant 0 : index
    %c0_78 = arith.constant 0 : index
    %69 = vector.load %arg2[%c0_76, %c0_77, %c0_78] : memref<9x3x32xf32, #tpu.memory_space<vmem>>, vector<1x3x32xf32>
    %70 = vector.shape_cast %69 : vector<1x3x32xf32> to vector<3x32xf32>
    %cst_79 = arith.constant dense<0.000000e+00> : vector<286x32xf32>
    %71 = tpu.matmul %68, %70, %cst_79 {dimension_numbers = #tpu.dot_dimension_numbers<[1], [0], [0], [1], [0, 0, 1, 1], [], []>} : vector<286x3xf32>, vector<3x32xf32>, vector<286x32xf32> -> vector<286x32xf32>
    %c0_80 = arith.constant 0 : index
    %c0_81 = arith.constant 0 : index
    %72 = vector.load %arg13[%c0_80, %c0_81] : memref<286x32xf32, #tpu.memory_space<vmem>>, vector<286x32xf32>
    tpu.vector_store %arg13[%c0_80, %c0_81], %71 {strides = array<i32>} : memref<286x32xf32, #tpu.memory_space<vmem>>, vector<286x32xf32>,
    %c1_82 = arith.constant 1 : index
    %c0_83 = arith.constant 0 : index
    %73 = vector.load %arg9[%c1_82, %c0_83] : memref<324x3xf32, #tpu.memory_space<vmem>>, vector<286x3xf32>
    %c1_84 = arith.constant 1 : index
    %c0_85 = arith.constant 0 : index
    %c0_86 = arith.constant 0 : index
    %74 = vector.load %arg2[%c1_84, %c0_85, %c0_86] : memref<9x3x32xf32, #tpu.memory_space<vmem>>, vector<1x3x32xf32>
    %75 = vector.shape_cast %74 : vector<1x3x32xf32> to vector<3x32xf32>
    %cst_87 = arith.constant dense<0.000000e+00> : vector<286x32xf32>
    %76 = tpu.matmul %73, %75, %cst_87 {dimension_numbers = #tpu.dot_dimension_numbers<[1], [0], [0], [1], [0, 0, 1, 1], [], []>} : vector<286x3xf32>, vector<3x32xf32>, vector<286x32xf32> -> vector<286x32xf32>
    %c0_88 = arith.constant 0 : index
    %c0_89 = arith.constant 0 : index
    %77 = vector.load %arg13[%c0_88, %c0_89] : memref<286x32xf32, #tpu.memory_space<vmem>>, vector<286x32xf32>
    %78 = arith.addf %77, %76 : vector<286x32xf32>
    %c0_90 = arith.constant 0 : index
    %c0_91 = arith.constant 0 : index
    %79 = vector.load %arg13[%c0_90, %c0_91] : memref<286x32xf32, #tpu.memory_space<vmem>>, vector<286x32xf32>
    tpu.vector_store %arg13[%c0_90, %c0_91], %78 {strides = array<i32>} : memref<286x32xf32, #tpu.memory_space<vmem>>, vector<286x32xf32>,
    %c2_92 = arith.constant 2 : index
    %c0_93 = arith.constant 0 : index
    %80 = vector.load %arg9[%c2_92, %c0_93] : memref<324x3xf32, #tpu.memory_space<vmem>>, vector<286x3xf32>
    %c2_94 = arith.constant 2 : index
    %c0_95 = arith.constant 0 : index
    %c0_96 = arith.constant 0 : index
    %81 = vector.load %arg2[%c2_94, %c0_95, %c0_96] : memref<9x3x32xf32, #tpu.memory_space<vmem>>, vector<1x3x32xf32>
    %82 = vector.shape_cast %81 : vector<1x3x32xf32> to vector<3x32xf32>
    %cst_97 = arith.constant dense<0.000000e+00> : vector<286x32xf32>
    %83 = tpu.matmul %80, %82, %cst_97 {dimension_numbers = #tpu.dot_dimension_numbers<[1], [0], [0], [1], [0, 0, 1, 1], [], []>} : vector<286x3xf32>, vector<3x32xf32>, vector<286x32xf32> -> vector<286x32xf32>
    %c0_98 = arith.constant 0 : index
    %c0_99 = arith.constant 0 : index
    %84 = vector.load %arg13[%c0_98, %c0_99] : memref<286x32xf32, #tpu.memory_space<vmem>>, vector<286x32xf32>
    %85 = arith.addf %84, %83 : vector<286x32xf32>
    %c0_100 = arith.constant 0 : index
    %c0_101 = arith.constant 0 : index
    %86 = vector.load %arg13[%c0_100, %c0_101] : memref<286x32xf32, #tpu.memory_space<vmem>>, vector<286x32xf32>
    tpu.vector_store %arg13[%c0_100, %c0_101], %85 {strides = array<i32>} : memref<286x32xf32, #tpu.memory_space<vmem>>, vector<286x32xf32>,
    %c18 = arith.constant 18 : index
    %c0_102 = arith.constant 0 : index
    %87 = vector.load %arg9[%c18, %c0_102] : memref<324x3xf32, #tpu.memory_space<vmem>>, vector<286x3xf32>
    %c3_103 = arith.constant 3 : index
    %c0_104 = arith.constant 0 : index
    %c0_105 = arith.constant 0 : index
    %88 = vector.load %arg2[%c3_103, %c0_104, %c0_105] : memref<9x3x32xf32, #tpu.memory_space<vmem>>, vector<1x3x32xf32>
    %89 = vector.shape_cast %88 : vector<1x3x32xf32> to vector<3x32xf32>
    %cst_106 = arith.constant dense<0.000000e+00> : vector<286x32xf32>
    %90 = tpu.matmul %87, %89, %cst_106 {dimension_numbers = #tpu.dot_dimension_numbers<[1], [0], [0], [1], [0, 0, 1, 1], [], []>} : vector<286x3xf32>, vector<3x32xf32>, vector<286x32xf32> -> vector<286x32xf32>
    %c0_107 = arith.constant 0 : index
    %c0_108 = arith.constant 0 : index
    %91 = vector.load %arg13[%c0_107, %c0_108] : memref<286x32xf32, #tpu.memory_space<vmem>>, vector<286x32xf32>
    %92 = arith.addf %91, %90 : vector<286x32xf32>
    %c0_109 = arith.constant 0 : index
    %c0_110 = arith.constant 0 : index
    %93 = vector.load %arg13[%c0_109, %c0_110] : memref<286x32xf32, #tpu.memory_space<vmem>>, vector<286x32xf32>
    tpu.vector_store %arg13[%c0_109, %c0_110], %92 {strides = array<i32>} : memref<286x32xf32, #tpu.memory_space<vmem>>, vector<286x32xf32>,
    %c19_111 = arith.constant 19 : index
    %c0_112 = arith.constant 0 : index
    %94 = vector.load %arg9[%c19_111, %c0_112] : memref<324x3xf32, #tpu.memory_space<vmem>>, vector<286x3xf32>
    %c4 = arith.constant 4 : index
    %c0_113 = arith.constant 0 : index
    %c0_114 = arith.constant 0 : index
    %95 = vector.load %arg2[%c4, %c0_113, %c0_114] : memref<9x3x32xf32, #tpu.memory_space<vmem>>, vector<1x3x32xf32>
    %96 = vector.shape_cast %95 : vector<1x3x32xf32> to vector<3x32xf32>
    %cst_115 = arith.constant dense<0.000000e+00> : vector<286x32xf32>
    %97 = tpu.matmul %94, %96, %cst_115 {dimension_numbers = #tpu.dot_dimension_numbers<[1], [0], [0], [1], [0, 0, 1, 1], [], []>} : vector<286x3xf32>, vector<3x32xf32>, vector<286x32xf32> -> vector<286x32xf32>
    %c0_116 = arith.constant 0 : index
    %c0_117 = arith.constant 0 : index
    %98 = vector.load %arg13[%c0_116, %c0_117] : memref<286x32xf32, #tpu.memory_space<vmem>>, vector<286x32xf32>
    %99 = arith.addf %98, %97 : vector<286x32xf32>
    %c0_118 = arith.constant 0 : index
    %c0_119 = arith.constant 0 : index
    %100 = vector.load %arg13[%c0_118, %c0_119] : memref<286x32xf32, #tpu.memory_space<vmem>>, vector<286x32xf32>
    tpu.vector_store %arg13[%c0_118, %c0_119], %99 {strides = array<i32>} : memref<286x32xf32, #tpu.memory_space<vmem>>, vector<286x32xf32>,
    %c20 = arith.constant 20 : index
    %c0_120 = arith.constant 0 : index
    %101 = vector.load %arg9[%c20, %c0_120] : memref<324x3xf32, #tpu.memory_space<vmem>>, vector<286x3xf32>
    %c5 = arith.constant 5 : index
    %c0_121 = arith.constant 0 : index
    %c0_122 = arith.constant 0 : index
    %102 = vector.load %arg2[%c5, %c0_121, %c0_122] : memref<9x3x32xf32, #tpu.memory_space<vmem>>, vector<1x3x32xf32>
    %103 = vector.shape_cast %102 : vector<1x3x32xf32> to vector<3x32xf32>
    %cst_123 = arith.constant dense<0.000000e+00> : vector<286x32xf32>
    %104 = tpu.matmul %101, %103, %cst_123 {dimension_numbers = #tpu.dot_dimension_numbers<[1], [0], [0], [1], [0, 0, 1, 1], [], []>} : vector<286x3xf32>, vector<3x32xf32>, vector<286x32xf32> -> vector<286x32xf32>
    %c0_124 = arith.constant 0 : index
    %c0_125 = arith.constant 0 : index
    %105 = vector.load %arg13[%c0_124, %c0_125] : memref<286x32xf32, #tpu.memory_space<vmem>>, vector<286x32xf32>
    %106 = arith.addf %105, %104 : vector<286x32xf32>
    %c0_126 = arith.constant 0 : index
    %c0_127 = arith.constant 0 : index
    %107 = vector.load %arg13[%c0_126, %c0_127] : memref<286x32xf32, #tpu.memory_space<vmem>>, vector<286x32xf32>
    tpu.vector_store %arg13[%c0_126, %c0_127], %106 {strides = array<i32>} : memref<286x32xf32, #tpu.memory_space<vmem>>, vector<286x32xf32>,
    %c36 = arith.constant 36 : index
    %c0_128 = arith.constant 0 : index
    %108 = vector.load %arg9[%c36, %c0_128] : memref<324x3xf32, #tpu.memory_space<vmem>>, vector<286x3xf32>
    %c6 = arith.constant 6 : index
    %c0_129 = arith.constant 0 : index
    %c0_130 = arith.constant 0 : index
    %109 = vector.load %arg2[%c6, %c0_129, %c0_130] : memref<9x3x32xf32, #tpu.memory_space<vmem>>, vector<1x3x32xf32>
    %110 = vector.shape_cast %109 : vector<1x3x32xf32> to vector<3x32xf32>
    %cst_131 = arith.constant dense<0.000000e+00> : vector<286x32xf32>
    %111 = tpu.matmul %108, %110, %cst_131 {dimension_numbers = #tpu.dot_dimension_numbers<[1], [0], [0], [1], [0, 0, 1, 1], [], []>} : vector<286x3xf32>, vector<3x32xf32>, vector<286x32xf32> -> vector<286x32xf32>
    %c0_132 = arith.constant 0 : index
    %c0_133 = arith.constant 0 : index
    %112 = vector.load %arg13[%c0_132, %c0_133] : memref<286x32xf32, #tpu.memory_space<vmem>>, vector<286x32xf32>
    %113 = arith.addf %112, %111 : vector<286x32xf32>
    %c0_134 = arith.constant 0 : index
    %c0_135 = arith.constant 0 : index
    %114 = vector.load %arg13[%c0_134, %c0_135] : memref<286x32xf32, #tpu.memory_space<vmem>>, vector<286x32xf32>
    tpu.vector_store %arg13[%c0_134, %c0_135], %113 {strides = array<i32>} : memref<286x32xf32, #tpu.memory_space<vmem>>, vector<286x32xf32>,
    %c37_136 = arith.constant 37 : index
    %c0_137 = arith.constant 0 : index
    %115 = vector.load %arg9[%c37_136, %c0_137] : memref<324x3xf32, #tpu.memory_space<vmem>>, vector<286x3xf32>
    %c7 = arith.constant 7 : index
    %c0_138 = arith.constant 0 : index
    %c0_139 = arith.constant 0 : index
    %116 = vector.load %arg2[%c7, %c0_138, %c0_139] : memref<9x3x32xf32, #tpu.memory_space<vmem>>, vector<1x3x32xf32>
    %117 = vector.shape_cast %116 : vector<1x3x32xf32> to vector<3x32xf32>
    %cst_140 = arith.constant dense<0.000000e+00> : vector<286x32xf32>
    %118 = tpu.matmul %115, %117, %cst_140 {dimension_numbers = #tpu.dot_dimension_numbers<[1], [0], [0], [1], [0, 0, 1, 1], [], []>} : vector<286x3xf32>, vector<3x32xf32>, vector<286x32xf32> -> vector<286x32xf32>
    %c0_141 = arith.constant 0 : index
    %c0_142 = arith.constant 0 : index
    %119 = vector.load %arg13[%c0_141, %c0_142] : memref<286x32xf32, #tpu.memory_space<vmem>>, vector<286x32xf32>
    %120 = arith.addf %119, %118 : vector<286x32xf32>
    %c0_143 = arith.constant 0 : index
    %c0_144 = arith.constant 0 : index
    %121 = vector.load %arg13[%c0_143, %c0_144] : memref<286x32xf32, #tpu.memory_space<vmem>>, vector<286x32xf32>
    tpu.vector_store %arg13[%c0_143, %c0_144], %120 {strides = array<i32>} : memref<286x32xf32, #tpu.memory_space<vmem>>, vector<286x32xf32>,
    %c38 = arith.constant 38 : index
    %c0_145 = arith.constant 0 : index
    %122 = vector.load %arg9[%c38, %c0_145] : memref<324x3xf32, #tpu.memory_space<vmem>>, vector<286x3xf32>
    %c8 = arith.constant 8 : index
    %c0_146 = arith.constant 0 : index
    %c0_147 = arith.constant 0 : index
    %123 = vector.load %arg2[%c8, %c0_146, %c0_147] : memref<9x3x32xf32, #tpu.memory_space<vmem>>, vector<1x3x32xf32>
    %124 = vector.shape_cast %123 : vector<1x3x32xf32> to vector<3x32xf32>
    %cst_148 = arith.constant dense<0.000000e+00> : vector<286x32xf32>
    %125 = tpu.matmul %122, %124, %cst_148 {dimension_numbers = #tpu.dot_dimension_numbers<[1], [0], [0], [1], [0, 0, 1, 1], [], []>} : vector<286x3xf32>, vector<3x32xf32>, vector<286x32xf32> -> vector<286x32xf32>
    %c0_149 = arith.constant 0 : index
    %c0_150 = arith.constant 0 : index
    %126 = vector.load %arg13[%c0_149, %c0_150] : memref<286x32xf32, #tpu.memory_space<vmem>>, vector<286x32xf32>
    %127 = arith.addf %126, %125 : vector<286x32xf32>
    %c0_151 = arith.constant 0 : index
    %c0_152 = arith.constant 0 : index
    %128 = vector.load %arg13[%c0_151, %c0_152] : memref<286x32xf32, #tpu.memory_space<vmem>>, vector<286x32xf32>
    tpu.vector_store %arg13[%c0_151, %c0_152], %127 {strides = array<i32>} : memref<286x32xf32, #tpu.memory_space<vmem>>, vector<286x32xf32>,
    %c0_153 = arith.constant 0 : index
    %c0_154 = arith.constant 0 : index
    %129 = vector.load %arg13[%c0_153, %c0_154] : memref<286x32xf32, #tpu.memory_space<vmem>>, vector<286x32xf32>
    %130 = vector.broadcast %51 : vector<1x32xf32> to vector<286x32xf32>
    %131 = arith.mulf %129, %130 : vector<286x32xf32>
    %132 = vector.broadcast %59 : vector<1x32xf32> to vector<286x32xf32>
    %133 = arith.addf %131, %132 : vector<286x32xf32>
    %cst_155 = arith.constant 0.000000e+00 : f32
    %134 = vector.broadcast %cst_155 : f32 to vector<286x32xf32>
    %135 = arith.maximumf %133, %134 : vector<286x32xf32>
    %c0_156 = arith.constant 0 : index
    %c0_157 = arith.constant 0 : index
    %136 = vector.load %arg13[%c0_156, %c0_157] : memref<286x32xf32, #tpu.memory_space<vmem>>, vector<286x32xf32>
    tpu.vector_store %arg13[%c0_156, %c0_157], %135 {strides = array<i32>} : memref<286x32xf32, #tpu.memory_space<vmem>>, vector<286x32xf32>,
    %c0_158 = arith.constant 0 : index
    %c0_159 = arith.constant 0 : index
    %137 = tpu.strided_load %arg13[%c0_158, %c0_159] {strides = array<i32: 2, 1>} : memref<286x32xf32, #tpu.memory_space<vmem>>, vector<8x32xf32>
    %c1_160 = arith.constant 1 : index
    %c0_161 = arith.constant 0 : index
    %138 = tpu.strided_load %arg13[%c1_160, %c0_161] {strides = array<i32: 2, 1>} : memref<286x32xf32, #tpu.memory_space<vmem>>, vector<8x32xf32>
    %139 = arith.maximumf %137, %138 : vector<8x32xf32>
    %c18_162 = arith.constant 18 : index
    %c0_163 = arith.constant 0 : index
    %140 = tpu.strided_load %arg13[%c18_162, %c0_163] {strides = array<i32: 2, 1>} : memref<286x32xf32, #tpu.memory_space<vmem>>, vector<8x32xf32>
    %c19_164 = arith.constant 19 : index
    %c0_165 = arith.constant 0 : index
    %141 = tpu.strided_load %arg13[%c19_164, %c0_165] {strides = array<i32: 2, 1>} : memref<286x32xf32, #tpu.memory_space<vmem>>, vector<8x32xf32>
    %142 = arith.maximumf %140, %141 : vector<8x32xf32>
    %143 = arith.maximumf %139, %142 : vector<8x32xf32>
    %c11 = arith.constant 11 : index
    %c0_166 = arith.constant 0 : index
    %144 = vector.load %arg10[%c11, %c0_166] : memref<100x32xf32, #tpu.memory_space<vmem>>, vector<8x32xf32>
    tpu.vector_store %arg10[%c11, %c0_166], %143 {strides = array<i32>} : memref<100x32xf32, #tpu.memory_space<vmem>>, vector<8x32xf32>,
    %c36_167 = arith.constant 36 : index
    %c0_168 = arith.constant 0 : index
    %145 = tpu.strided_load %arg13[%c36_167, %c0_168] {strides = array<i32: 2, 1>} : memref<286x32xf32, #tpu.memory_space<vmem>>, vector<8x32xf32>
    %c37_169 = arith.constant 37 : index
    %c0_170 = arith.constant 0 : index
    %146 = tpu.strided_load %arg13[%c37_169, %c0_170] {strides = array<i32: 2, 1>} : memref<286x32xf32, #tpu.memory_space<vmem>>, vector<8x32xf32>
    %147 = arith.maximumf %145, %146 : vector<8x32xf32>
    %c54 = arith.constant 54 : index
    %c0_171 = arith.constant 0 : index
    %148 = tpu.strided_load %arg13[%c54, %c0_171] {strides = array<i32: 2, 1>} : memref<286x32xf32, #tpu.memory_space<vmem>>, vector<8x32xf32>
    %c55_172 = arith.constant 55 : index
    %c0_173 = arith.constant 0 : index
    %149 = tpu.strided_load %arg13[%c55_172, %c0_173] {strides = array<i32: 2, 1>} : memref<286x32xf32, #tpu.memory_space<vmem>>, vector<8x32xf32>
    %150 = arith.maximumf %148, %149 : vector<8x32xf32>
    %151 = arith.maximumf %147, %150 : vector<8x32xf32>
    %c21 = arith.constant 21 : index
    %c0_174 = arith.constant 0 : index
    %152 = vector.load %arg10[%c21, %c0_174] : memref<100x32xf32, #tpu.memory_space<vmem>>, vector<8x32xf32>
    tpu.vector_store %arg10[%c21, %c0_174], %151 {strides = array<i32>} : memref<100x32xf32, #tpu.memory_space<vmem>>, vector<8x32xf32>,
    %c72 = arith.constant 72 : index
    %c0_175 = arith.constant 0 : index
    %153 = tpu.strided_load %arg13[%c72, %c0_175] {strides = array<i32: 2, 1>} : memref<286x32xf32, #tpu.memory_space<vmem>>, vector<8x32xf32>
    %c73_176 = arith.constant 73 : index
    %c0_177 = arith.constant 0 : index
    %154 = tpu.strided_load %arg13[%c73_176, %c0_177] {strides = array<i32: 2, 1>} : memref<286x32xf32, #tpu.memory_space<vmem>>, vector<8x32xf32>
    %155 = arith.maximumf %153, %154 : vector<8x32xf32>
    %c90 = arith.constant 90 : index
    %c0_178 = arith.constant 0 : index
    %156 = tpu.strided_load %arg13[%c90, %c0_178] {strides = array<i32: 2, 1>} : memref<286x32xf32, #tpu.memory_space<vmem>>, vector<8x32xf32>
    %c91_179 = arith.constant 91 : index
    %c0_180 = arith.constant 0 : index
    %157 = tpu.strided_load %arg13[%c91_179, %c0_180] {strides = array<i32: 2, 1>} : memref<286x32xf32, #tpu.memory_space<vmem>>, vector<8x32xf32>
    %158 = arith.maximumf %156, %157 : vector<8x32xf32>
    %159 = arith.maximumf %155, %158 : vector<8x32xf32>
    %c31 = arith.constant 31 : index
    %c0_181 = arith.constant 0 : index
    %160 = vector.load %arg10[%c31, %c0_181] : memref<100x32xf32, #tpu.memory_space<vmem>>, vector<8x32xf32>
    tpu.vector_store %arg10[%c31, %c0_181], %159 {strides = array<i32>} : memref<100x32xf32, #tpu.memory_space<vmem>>, vector<8x32xf32>,
    %c108 = arith.constant 108 : index
    %c0_182 = arith.constant 0 : index
    %161 = tpu.strided_load %arg13[%c108, %c0_182] {strides = array<i32: 2, 1>} : memref<286x32xf32, #tpu.memory_space<vmem>>, vector<8x32xf32>
    %c109_183 = arith.constant 109 : index
    %c0_184 = arith.constant 0 : index
    %162 = tpu.strided_load %arg13[%c109_183, %c0_184] {strides = array<i32: 2, 1>} : memref<286x32xf32, #tpu.memory_space<vmem>>, vector<8x32xf32>
    %163 = arith.maximumf %161, %162 : vector<8x32xf32>
    %c126 = arith.constant 126 : index
    %c0_185 = arith.constant 0 : index
    %164 = tpu.strided_load %arg13[%c126, %c0_185] {strides = array<i32: 2, 1>} : memref<286x32xf32, #tpu.memory_space<vmem>>, vector<8x32xf32>
    %c127_186 = arith.constant 127 : index
    %c0_187 = arith.constant 0 : index
    %165 = tpu.strided_load %arg13[%c127_186, %c0_187] {strides = array<i32: 2, 1>} : memref<286x32xf32, #tpu.memory_space<vmem>>, vector<8x32xf32>
    %166 = arith.maximumf %164, %165 : vector<8x32xf32>
    %167 = arith.maximumf %163, %166 : vector<8x32xf32>
    %c41 = arith.constant 41 : index
    %c0_188 = arith.constant 0 : index
    %168 = vector.load %arg10[%c41, %c0_188] : memref<100x32xf32, #tpu.memory_space<vmem>>, vector<8x32xf32>
    tpu.vector_store %arg10[%c41, %c0_188], %167 {strides = array<i32>} : memref<100x32xf32, #tpu.memory_space<vmem>>, vector<8x32xf32>,
    %c144_189 = arith.constant 144 : index
    %c0_190 = arith.constant 0 : index
    %169 = tpu.strided_load %arg13[%c144_189, %c0_190] {strides = array<i32: 2, 1>} : memref<286x32xf32, #tpu.memory_space<vmem>>, vector<8x32xf32>
    %c145_191 = arith.constant 145 : index
    %c0_192 = arith.constant 0 : index
    %170 = tpu.strided_load %arg13[%c145_191, %c0_192] {strides = array<i32: 2, 1>} : memref<286x32xf32, #tpu.memory_space<vmem>>, vector<8x32xf32>
    %171 = arith.maximumf %169, %170 : vector<8x32xf32>
    %c162 = arith.constant 162 : index
    %c0_193 = arith.constant 0 : index
    %172 = tpu.strided_load %arg13[%c162, %c0_193] {strides = array<i32: 2, 1>} : memref<286x32xf32, #tpu.memory_space<vmem>>, vector<8x32xf32>
    %c163_194 = arith.constant 163 : index
    %c0_195 = arith.constant 0 : index
    %173 = tpu.strided_load %arg13[%c163_194, %c0_195] {strides = array<i32: 2, 1>} : memref<286x32xf32, #tpu.memory_space<vmem>>, vector<8x32xf32>
    %174 = arith.maximumf %172, %173 : vector<8x32xf32>
    %175 = arith.maximumf %171, %174 : vector<8x32xf32>
    %c51 = arith.constant 51 : index
    %c0_196 = arith.constant 0 : index
    %176 = vector.load %arg10[%c51, %c0_196] : memref<100x32xf32, #tpu.memory_space<vmem>>, vector<8x32xf32>
    tpu.vector_store %arg10[%c51, %c0_196], %175 {strides = array<i32>} : memref<100x32xf32, #tpu.memory_space<vmem>>, vector<8x32xf32>,
    %c180 = arith.constant 180 : index
    %c0_197 = arith.constant 0 : index
    %177 = tpu.strided_load %arg13[%c180, %c0_197] {strides = array<i32: 2, 1>} : memref<286x32xf32, #tpu.memory_space<vmem>>, vector<8x32xf32>
    %c181_198 = arith.constant 181 : index
    %c0_199 = arith.constant 0 : index
    %178 = tpu.strided_load %arg13[%c181_198, %c0_199] {strides = array<i32: 2, 1>} : memref<286x32xf32, #tpu.memory_space<vmem>>, vector<8x32xf32>
    %179 = arith.maximumf %177, %178 : vector<8x32xf32>
    %c198 = arith.constant 198 : index
    %c0_200 = arith.constant 0 : index
    %180 = tpu.strided_load %arg13[%c198, %c0_200] {strides = array<i32: 2, 1>} : memref<286x32xf32, #tpu.memory_space<vmem>>, vector<8x32xf32>
    %c199_201 = arith.constant 199 : index
    %c0_202 = arith.constant 0 : index
    %181 = tpu.strided_load %arg13[%c199_201, %c0_202] {strides = array<i32: 2, 1>} : memref<286x32xf32, #tpu.memory_space<vmem>>, vector<8x32xf32>
    %182 = arith.maximumf %180, %181 : vector<8x32xf32>
    %183 = arith.maximumf %179, %182 : vector<8x32xf32>
    %c61 = arith.constant 61 : index
    %c0_203 = arith.constant 0 : index
    %184 = vector.load %arg10[%c61, %c0_203] : memref<100x32xf32, #tpu.memory_space<vmem>>, vector<8x32xf32>
    tpu.vector_store %arg10[%c61, %c0_203], %183 {strides = array<i32>} : memref<100x32xf32, #tpu.memory_space<vmem>>, vector<8x32xf32>,
    %c216 = arith.constant 216 : index
    %c0_204 = arith.constant 0 : index
    %185 = tpu.strided_load %arg13[%c216, %c0_204] {strides = array<i32: 2, 1>} : memref<286x32xf32, #tpu.memory_space<vmem>>, vector<8x32xf32>
    %c217_205 = arith.constant 217 : index
    %c0_206 = arith.constant 0 : index
    %186 = tpu.strided_load %arg13[%c217_205, %c0_206] {strides = array<i32: 2, 1>} : memref<286x32xf32, #tpu.memory_space<vmem>>, vector<8x32xf32>
    %187 = arith.maximumf %185, %186 : vector<8x32xf32>
    %c234 = arith.constant 234 : index
    %c0_207 = arith.constant 0 : index
    %188 = tpu.strided_load %arg13[%c234, %c0_207] {strides = array<i32: 2, 1>} : memref<286x32xf32, #tpu.memory_space<vmem>>, vector<8x32xf32>
    %c235_208 = arith.constant 235 : index
    %c0_209 = arith.constant 0 : index
    %189 = tpu.strided_load %arg13[%c235_208, %c0_209] {strides = array<i32: 2, 1>} : memref<286x32xf32, #tpu.memory_space<vmem>>, vector<8x32xf32>
    %190 = arith.maximumf %188, %189 : vector<8x32xf32>
    %191 = arith.maximumf %187, %190 : vector<8x32xf32>
    %c71 = arith.constant 71 : index
    %c0_210 = arith.constant 0 : index
    %192 = vector.load %arg10[%c71, %c0_210] : memref<100x32xf32, #tpu.memory_space<vmem>>, vector<8x32xf32>
    tpu.vector_store %arg10[%c71, %c0_210], %191 {strides = array<i32>} : memref<100x32xf32, #tpu.memory_space<vmem>>, vector<8x32xf32>,
    %c252 = arith.constant 252 : index
    %c0_211 = arith.constant 0 : index
    %193 = tpu.strided_load %arg13[%c252, %c0_211] {strides = array<i32: 2, 1>} : memref<286x32xf32, #tpu.memory_space<vmem>>, vector<8x32xf32>
    %c253_212 = arith.constant 253 : index
    %c0_213 = arith.constant 0 : index
    %194 = tpu.strided_load %arg13[%c253_212, %c0_213] {strides = array<i32: 2, 1>} : memref<286x32xf32, #tpu.memory_space<vmem>>, vector<8x32xf32>
    %195 = arith.maximumf %193, %194 : vector<8x32xf32>
    %c270 = arith.constant 270 : index
    %c0_214 = arith.constant 0 : index
    %196 = tpu.strided_load %arg13[%c270, %c0_214] {strides = array<i32: 2, 1>} : memref<286x32xf32, #tpu.memory_space<vmem>>, vector<8x32xf32>
    %c271_215 = arith.constant 271 : index
    %c0_216 = arith.constant 0 : index
    %197 = tpu.strided_load %arg13[%c271_215, %c0_216] {strides = array<i32: 2, 1>} : memref<286x32xf32, #tpu.memory_space<vmem>>, vector<8x32xf32>
    %198 = arith.maximumf %196, %197 : vector<8x32xf32>
    %199 = arith.maximumf %195, %198 : vector<8x32xf32>
    %c81 = arith.constant 81 : index
    %c0_217 = arith.constant 0 : index
    %200 = vector.load %arg10[%c81, %c0_217] : memref<100x32xf32, #tpu.memory_space<vmem>>, vector<8x32xf32>
    tpu.vector_store %arg10[%c81, %c0_217], %199 {strides = array<i32>} : memref<100x32xf32, #tpu.memory_space<vmem>>, vector<8x32xf32>,
    %cst_218 = arith.constant 0.000000e+00 : f32
    %201 = vector.broadcast %cst_218 : f32 to vector<36x32xf32>
    %c0_219 = arith.constant 0 : index
    %c0_220 = arith.constant 0 : index
    %202 = vector.load %arg11[%c0_219, %c0_220] : memref<36x32xf32, #tpu.memory_space<vmem>>, vector<36x32xf32>
    tpu.vector_store %arg11[%c0_219, %c0_220], %201 {strides = array<i32>} : memref<36x32xf32, #tpu.memory_space<vmem>>, vector<36x32xf32>,
    %c0_221 = arith.constant 0 : index
    %c0_222 = arith.constant 0 : index
    %203 = vector.load %arg10[%c0_221, %c0_222] : memref<100x32xf32, #tpu.memory_space<vmem>>, vector<78x32xf32>
    %c0_223 = arith.constant 0 : index
    %c0_224 = arith.constant 0 : index
    %c0_225 = arith.constant 0 : index
    %204 = vector.load %arg3[%c0_223, %c0_224, %c0_225] : memref<9x32x32xf32, #tpu.memory_space<vmem>>, vector<1x32x32xf32>
    %205 = vector.shape_cast %204 : vector<1x32x32xf32> to vector<32x32xf32>
    %cst_226 = arith.constant dense<0.000000e+00> : vector<78x32xf32>
    %206 = tpu.matmul %203, %205, %cst_226 {dimension_numbers = #tpu.dot_dimension_numbers<[1], [0], [0], [1], [0, 0, 1, 1], [], []>} : vector<78x32xf32>, vector<32x32xf32>, vector<78x32xf32> -> vector<78x32xf32>
    %c0_227 = arith.constant 0 : index
    %c0_228 = arith.constant 0 : index
    %207 = vector.load %arg14[%c0_227, %c0_228] : memref<78x32xf32, #tpu.memory_space<vmem>>, vector<78x32xf32>
    tpu.vector_store %arg14[%c0_227, %c0_228], %206 {strides = array<i32>} : memref<78x32xf32, #tpu.memory_space<vmem>>, vector<78x32xf32>,
    %c1_229 = arith.constant 1 : index
    %c0_230 = arith.constant 0 : index
    %208 = vector.load %arg10[%c1_229, %c0_230] : memref<100x32xf32, #tpu.memory_space<vmem>>, vector<78x32xf32>
    %c1_231 = arith.constant 1 : index
    %c0_232 = arith.constant 0 : index
    %c0_233 = arith.constant 0 : index
    %209 = vector.load %arg3[%c1_231, %c0_232, %c0_233] : memref<9x32x32xf32, #tpu.memory_space<vmem>>, vector<1x32x32xf32>
    %210 = vector.shape_cast %209 : vector<1x32x32xf32> to vector<32x32xf32>
    %cst_234 = arith.constant dense<0.000000e+00> : vector<78x32xf32>
    %211 = tpu.matmul %208, %210, %cst_234 {dimension_numbers = #tpu.dot_dimension_numbers<[1], [0], [0], [1], [0, 0, 1, 1], [], []>} : vector<78x32xf32>, vector<32x32xf32>, vector<78x32xf32> -> vector<78x32xf32>
    %c0_235 = arith.constant 0 : index
    %c0_236 = arith.constant 0 : index
    %212 = vector.load %arg14[%c0_235, %c0_236] : memref<78x32xf32, #tpu.memory_space<vmem>>, vector<78x32xf32>
    %213 = arith.addf %212, %211 : vector<78x32xf32>
    %c0_237 = arith.constant 0 : index
    %c0_238 = arith.constant 0 : index
    %214 = vector.load %arg14[%c0_237, %c0_238] : memref<78x32xf32, #tpu.memory_space<vmem>>, vector<78x32xf32>
    tpu.vector_store %arg14[%c0_237, %c0_238], %213 {strides = array<i32>} : memref<78x32xf32, #tpu.memory_space<vmem>>, vector<78x32xf32>,
    %c2_239 = arith.constant 2 : index
    %c0_240 = arith.constant 0 : index
    %215 = vector.load %arg10[%c2_239, %c0_240] : memref<100x32xf32, #tpu.memory_space<vmem>>, vector<78x32xf32>
    %c2_241 = arith.constant 2 : index
    %c0_242 = arith.constant 0 : index
    %c0_243 = arith.constant 0 : index
    %216 = vector.load %arg3[%c2_241, %c0_242, %c0_243] : memref<9x32x32xf32, #tpu.memory_space<vmem>>, vector<1x32x32xf32>
    %217 = vector.shape_cast %216 : vector<1x32x32xf32> to vector<32x32xf32>
    %cst_244 = arith.constant dense<0.000000e+00> : vector<78x32xf32>
    %218 = tpu.matmul %215, %217, %cst_244 {dimension_numbers = #tpu.dot_dimension_numbers<[1], [0], [0], [1], [0, 0, 1, 1], [], []>} : vector<78x32xf32>, vector<32x32xf32>, vector<78x32xf32> -> vector<78x32xf32>
    %c0_245 = arith.constant 0 : index
    %c0_246 = arith.constant 0 : index
    %219 = vector.load %arg14[%c0_245, %c0_246] : memref<78x32xf32, #tpu.memory_space<vmem>>, vector<78x32xf32>
    %220 = arith.addf %219, %218 : vector<78x32xf32>
    %c0_247 = arith.constant 0 : index
    %c0_248 = arith.constant 0 : index
    %221 = vector.load %arg14[%c0_247, %c0_248] : memref<78x32xf32, #tpu.memory_space<vmem>>, vector<78x32xf32>
    tpu.vector_store %arg14[%c0_247, %c0_248], %220 {strides = array<i32>} : memref<78x32xf32, #tpu.memory_space<vmem>>, vector<78x32xf32>,
    %c10 = arith.constant 10 : index
    %c0_249 = arith.constant 0 : index
    %222 = vector.load %arg10[%c10, %c0_249] : memref<100x32xf32, #tpu.memory_space<vmem>>, vector<78x32xf32>
    %c3_250 = arith.constant 3 : index
    %c0_251 = arith.constant 0 : index
    %c0_252 = arith.constant 0 : index
    %223 = vector.load %arg3[%c3_250, %c0_251, %c0_252] : memref<9x32x32xf32, #tpu.memory_space<vmem>>, vector<1x32x32xf32>
    %224 = vector.shape_cast %223 : vector<1x32x32xf32> to vector<32x32xf32>
    %cst_253 = arith.constant dense<0.000000e+00> : vector<78x32xf32>
    %225 = tpu.matmul %222, %224, %cst_253 {dimension_numbers = #tpu.dot_dimension_numbers<[1], [0], [0], [1], [0, 0, 1, 1], [], []>} : vector<78x32xf32>, vector<32x32xf32>, vector<78x32xf32> -> vector<78x32xf32>
    %c0_254 = arith.constant 0 : index
    %c0_255 = arith.constant 0 : index
    %226 = vector.load %arg14[%c0_254, %c0_255] : memref<78x32xf32, #tpu.memory_space<vmem>>, vector<78x32xf32>
    %227 = arith.addf %226, %225 : vector<78x32xf32>
    %c0_256 = arith.constant 0 : index
    %c0_257 = arith.constant 0 : index
    %228 = vector.load %arg14[%c0_256, %c0_257] : memref<78x32xf32, #tpu.memory_space<vmem>>, vector<78x32xf32>
    tpu.vector_store %arg14[%c0_256, %c0_257], %227 {strides = array<i32>} : memref<78x32xf32, #tpu.memory_space<vmem>>, vector<78x32xf32>,
    %c11_258 = arith.constant 11 : index
    %c0_259 = arith.constant 0 : index
    %229 = vector.load %arg10[%c11_258, %c0_259] : memref<100x32xf32, #tpu.memory_space<vmem>>, vector<78x32xf32>
    %c4_260 = arith.constant 4 : index
    %c0_261 = arith.constant 0 : index
    %c0_262 = arith.constant 0 : index
    %230 = vector.load %arg3[%c4_260, %c0_261, %c0_262] : memref<9x32x32xf32, #tpu.memory_space<vmem>>, vector<1x32x32xf32>
    %231 = vector.shape_cast %230 : vector<1x32x32xf32> to vector<32x32xf32>
    %cst_263 = arith.constant dense<0.000000e+00> : vector<78x32xf32>
    %232 = tpu.matmul %229, %231, %cst_263 {dimension_numbers = #tpu.dot_dimension_numbers<[1], [0], [0], [1], [0, 0, 1, 1], [], []>} : vector<78x32xf32>, vector<32x32xf32>, vector<78x32xf32> -> vector<78x32xf32>
    %c0_264 = arith.constant 0 : index
    %c0_265 = arith.constant 0 : index
    %233 = vector.load %arg14[%c0_264, %c0_265] : memref<78x32xf32, #tpu.memory_space<vmem>>, vector<78x32xf32>
    %234 = arith.addf %233, %232 : vector<78x32xf32>
    %c0_266 = arith.constant 0 : index
    %c0_267 = arith.constant 0 : index
    %235 = vector.load %arg14[%c0_266, %c0_267] : memref<78x32xf32, #tpu.memory_space<vmem>>, vector<78x32xf32>
    tpu.vector_store %arg14[%c0_266, %c0_267], %234 {strides = array<i32>} : memref<78x32xf32, #tpu.memory_space<vmem>>, vector<78x32xf32>,
    %c12 = arith.constant 12 : index
    %c0_268 = arith.constant 0 : index
    %236 = vector.load %arg10[%c12, %c0_268] : memref<100x32xf32, #tpu.memory_space<vmem>>, vector<78x32xf32>
    %c5_269 = arith.constant 5 : index
    %c0_270 = arith.constant 0 : index
    %c0_271 = arith.constant 0 : index
    %237 = vector.load %arg3[%c5_269, %c0_270, %c0_271] : memref<9x32x32xf32, #tpu.memory_space<vmem>>, vector<1x32x32xf32>
    %238 = vector.shape_cast %237 : vector<1x32x32xf32> to vector<32x32xf32>
    %cst_272 = arith.constant dense<0.000000e+00> : vector<78x32xf32>
    %239 = tpu.matmul %236, %238, %cst_272 {dimension_numbers = #tpu.dot_dimension_numbers<[1], [0], [0], [1], [0, 0, 1, 1], [], []>} : vector<78x32xf32>, vector<32x32xf32>, vector<78x32xf32> -> vector<78x32xf32>
    %c0_273 = arith.constant 0 : index
    %c0_274 = arith.constant 0 : index
    %240 = vector.load %arg14[%c0_273, %c0_274] : memref<78x32xf32, #tpu.memory_space<vmem>>, vector<78x32xf32>
    %241 = arith.addf %240, %239 : vector<78x32xf32>
    %c0_275 = arith.constant 0 : index
    %c0_276 = arith.constant 0 : index
    %242 = vector.load %arg14[%c0_275, %c0_276] : memref<78x32xf32, #tpu.memory_space<vmem>>, vector<78x32xf32>
    tpu.vector_store %arg14[%c0_275, %c0_276], %241 {strides = array<i32>} : memref<78x32xf32, #tpu.memory_space<vmem>>, vector<78x32xf32>,
    %c20_277 = arith.constant 20 : index
    %c0_278 = arith.constant 0 : index
    %243 = vector.load %arg10[%c20_277, %c0_278] : memref<100x32xf32, #tpu.memory_space<vmem>>, vector<78x32xf32>
    %c6_279 = arith.constant 6 : index
    %c0_280 = arith.constant 0 : index
    %c0_281 = arith.constant 0 : index
    %244 = vector.load %arg3[%c6_279, %c0_280, %c0_281] : memref<9x32x32xf32, #tpu.memory_space<vmem>>, vector<1x32x32xf32>
    %245 = vector.shape_cast %244 : vector<1x32x32xf32> to vector<32x32xf32>
    %cst_282 = arith.constant dense<0.000000e+00> : vector<78x32xf32>
    %246 = tpu.matmul %243, %245, %cst_282 {dimension_numbers = #tpu.dot_dimension_numbers<[1], [0], [0], [1], [0, 0, 1, 1], [], []>} : vector<78x32xf32>, vector<32x32xf32>, vector<78x32xf32> -> vector<78x32xf32>
    %c0_283 = arith.constant 0 : index
    %c0_284 = arith.constant 0 : index
    %247 = vector.load %arg14[%c0_283, %c0_284] : memref<78x32xf32, #tpu.memory_space<vmem>>, vector<78x32xf32>
    %248 = arith.addf %247, %246 : vector<78x32xf32>
    %c0_285 = arith.constant 0 : index
    %c0_286 = arith.constant 0 : index
    %249 = vector.load %arg14[%c0_285, %c0_286] : memref<78x32xf32, #tpu.memory_space<vmem>>, vector<78x32xf32>
    tpu.vector_store %arg14[%c0_285, %c0_286], %248 {strides = array<i32>} : memref<78x32xf32, #tpu.memory_space<vmem>>, vector<78x32xf32>,
    %c21_287 = arith.constant 21 : index
    %c0_288 = arith.constant 0 : index
    %250 = vector.load %arg10[%c21_287, %c0_288] : memref<100x32xf32, #tpu.memory_space<vmem>>, vector<78x32xf32>
    %c7_289 = arith.constant 7 : index
    %c0_290 = arith.constant 0 : index
    %c0_291 = arith.constant 0 : index
    %251 = vector.load %arg3[%c7_289, %c0_290, %c0_291] : memref<9x32x32xf32, #tpu.memory_space<vmem>>, vector<1x32x32xf32>
    %252 = vector.shape_cast %251 : vector<1x32x32xf32> to vector<32x32xf32>
    %cst_292 = arith.constant dense<0.000000e+00> : vector<78x32xf32>
    %253 = tpu.matmul %250, %252, %cst_292 {dimension_numbers = #tpu.dot_dimension_numbers<[1], [0], [0], [1], [0, 0, 1, 1], [], []>} : vector<78x32xf32>, vector<32x32xf32>, vector<78x32xf32> -> vector<78x32xf32>
    %c0_293 = arith.constant 0 : index
    %c0_294 = arith.constant 0 : index
    %254 = vector.load %arg14[%c0_293, %c0_294] : memref<78x32xf32, #tpu.memory_space<vmem>>, vector<78x32xf32>
    %255 = arith.addf %254, %253 : vector<78x32xf32>
    %c0_295 = arith.constant 0 : index
    %c0_296 = arith.constant 0 : index
    %256 = vector.load %arg14[%c0_295, %c0_296] : memref<78x32xf32, #tpu.memory_space<vmem>>, vector<78x32xf32>
    tpu.vector_store %arg14[%c0_295, %c0_296], %255 {strides = array<i32>} : memref<78x32xf32, #tpu.memory_space<vmem>>, vector<78x32xf32>,
    %c22 = arith.constant 22 : index
    %c0_297 = arith.constant 0 : index
    %257 = vector.load %arg10[%c22, %c0_297] : memref<100x32xf32, #tpu.memory_space<vmem>>, vector<78x32xf32>
    %c8_298 = arith.constant 8 : index
    %c0_299 = arith.constant 0 : index
    %c0_300 = arith.constant 0 : index
    %258 = vector.load %arg3[%c8_298, %c0_299, %c0_300] : memref<9x32x32xf32, #tpu.memory_space<vmem>>, vector<1x32x32xf32>
    %259 = vector.shape_cast %258 : vector<1x32x32xf32> to vector<32x32xf32>
    %cst_301 = arith.constant dense<0.000000e+00> : vector<78x32xf32>
    %260 = tpu.matmul %257, %259, %cst_301 {dimension_numbers = #tpu.dot_dimension_numbers<[1], [0], [0], [1], [0, 0, 1, 1], [], []>} : vector<78x32xf32>, vector<32x32xf32>, vector<78x32xf32> -> vector<78x32xf32>
    %c0_302 = arith.constant 0 : index
    %c0_303 = arith.constant 0 : index
    %261 = vector.load %arg14[%c0_302, %c0_303] : memref<78x32xf32, #tpu.memory_space<vmem>>, vector<78x32xf32>
    %262 = arith.addf %261, %260 : vector<78x32xf32>
    %c0_304 = arith.constant 0 : index
    %c0_305 = arith.constant 0 : index
    %263 = vector.load %arg14[%c0_304, %c0_305] : memref<78x32xf32, #tpu.memory_space<vmem>>, vector<78x32xf32>
    tpu.vector_store %arg14[%c0_304, %c0_305], %262 {strides = array<i32>} : memref<78x32xf32, #tpu.memory_space<vmem>>, vector<78x32xf32>,
    %c0_306 = arith.constant 0 : index
    %c0_307 = arith.constant 0 : index
    %264 = vector.load %arg14[%c0_306, %c0_307] : memref<78x32xf32, #tpu.memory_space<vmem>>, vector<78x32xf32>
    %265 = vector.broadcast %53 : vector<1x32xf32> to vector<78x32xf32>
    %266 = arith.mulf %264, %265 : vector<78x32xf32>
    %267 = vector.broadcast %61 : vector<1x32xf32> to vector<78x32xf32>
    %268 = arith.addf %266, %267 : vector<78x32xf32>
    %cst_308 = arith.constant 0.000000e+00 : f32
    %269 = vector.broadcast %cst_308 : f32 to vector<78x32xf32>
    %270 = arith.maximumf %268, %269 : vector<78x32xf32>
    %c0_309 = arith.constant 0 : index
    %c0_310 = arith.constant 0 : index
    %271 = vector.load %arg14[%c0_309, %c0_310] : memref<78x32xf32, #tpu.memory_space<vmem>>, vector<78x32xf32>
    tpu.vector_store %arg14[%c0_309, %c0_310], %270 {strides = array<i32>} : memref<78x32xf32, #tpu.memory_space<vmem>>, vector<78x32xf32>,
    %c0_311 = arith.constant 0 : index
    %c0_312 = arith.constant 0 : index
    %272 = tpu.strided_load %arg14[%c0_311, %c0_312] {strides = array<i32: 2, 1>} : memref<78x32xf32, #tpu.memory_space<vmem>>, vector<4x32xf32>
    %c1_313 = arith.constant 1 : index
    %c0_314 = arith.constant 0 : index
    %273 = tpu.strided_load %arg14[%c1_313, %c0_314] {strides = array<i32: 2, 1>} : memref<78x32xf32, #tpu.memory_space<vmem>>, vector<4x32xf32>
    %274 = arith.maximumf %272, %273 : vector<4x32xf32>
    %c10_315 = arith.constant 10 : index
    %c0_316 = arith.constant 0 : index
    %275 = tpu.strided_load %arg14[%c10_315, %c0_316] {strides = array<i32: 2, 1>} : memref<78x32xf32, #tpu.memory_space<vmem>>, vector<4x32xf32>
    %c11_317 = arith.constant 11 : index
    %c0_318 = arith.constant 0 : index
    %276 = tpu.strided_load %arg14[%c11_317, %c0_318] {strides = array<i32: 2, 1>} : memref<78x32xf32, #tpu.memory_space<vmem>>, vector<4x32xf32>
    %277 = arith.maximumf %275, %276 : vector<4x32xf32>
    %278 = arith.maximumf %274, %277 : vector<4x32xf32>
    %c7_319 = arith.constant 7 : index
    %c0_320 = arith.constant 0 : index
    %279 = vector.load %arg11[%c7_319, %c0_320] : memref<36x32xf32, #tpu.memory_space<vmem>>, vector<4x32xf32>
    tpu.vector_store %arg11[%c7_319, %c0_320], %278 {strides = array<i32>} : memref<36x32xf32, #tpu.memory_space<vmem>>, vector<4x32xf32>,
    %c20_321 = arith.constant 20 : index
    %c0_322 = arith.constant 0 : index
    %280 = tpu.strided_load %arg14[%c20_321, %c0_322] {strides = array<i32: 2, 1>} : memref<78x32xf32, #tpu.memory_space<vmem>>, vector<4x32xf32>
    %c21_323 = arith.constant 21 : index
    %c0_324 = arith.constant 0 : index
    %281 = tpu.strided_load %arg14[%c21_323, %c0_324] {strides = array<i32: 2, 1>} : memref<78x32xf32, #tpu.memory_space<vmem>>, vector<4x32xf32>
    %282 = arith.maximumf %280, %281 : vector<4x32xf32>
    %c30 = arith.constant 30 : index
    %c0_325 = arith.constant 0 : index
    %283 = tpu.strided_load %arg14[%c30, %c0_325] {strides = array<i32: 2, 1>} : memref<78x32xf32, #tpu.memory_space<vmem>>, vector<4x32xf32>
    %c31_326 = arith.constant 31 : index
    %c0_327 = arith.constant 0 : index
    %284 = tpu.strided_load %arg14[%c31_326, %c0_327] {strides = array<i32: 2, 1>} : memref<78x32xf32, #tpu.memory_space<vmem>>, vector<4x32xf32>
    %285 = arith.maximumf %283, %284 : vector<4x32xf32>
    %286 = arith.maximumf %282, %285 : vector<4x32xf32>
    %c13 = arith.constant 13 : index
    %c0_328 = arith.constant 0 : index
    %287 = vector.load %arg11[%c13, %c0_328] : memref<36x32xf32, #tpu.memory_space<vmem>>, vector<4x32xf32>
    tpu.vector_store %arg11[%c13, %c0_328], %286 {strides = array<i32>} : memref<36x32xf32, #tpu.memory_space<vmem>>, vector<4x32xf32>,
    %c40 = arith.constant 40 : index
    %c0_329 = arith.constant 0 : index
    %288 = tpu.strided_load %arg14[%c40, %c0_329] {strides = array<i32: 2, 1>} : memref<78x32xf32, #tpu.memory_space<vmem>>, vector<4x32xf32>
    %c41_330 = arith.constant 41 : index
    %c0_331 = arith.constant 0 : index
    %289 = tpu.strided_load %arg14[%c41_330, %c0_331] {strides = array<i32: 2, 1>} : memref<78x32xf32, #tpu.memory_space<vmem>>, vector<4x32xf32>
    %290 = arith.maximumf %288, %289 : vector<4x32xf32>
    %c50 = arith.constant 50 : index
    %c0_332 = arith.constant 0 : index
    %291 = tpu.strided_load %arg14[%c50, %c0_332] {strides = array<i32: 2, 1>} : memref<78x32xf32, #tpu.memory_space<vmem>>, vector<4x32xf32>
    %c51_333 = arith.constant 51 : index
    %c0_334 = arith.constant 0 : index
    %292 = tpu.strided_load %arg14[%c51_333, %c0_334] {strides = array<i32: 2, 1>} : memref<78x32xf32, #tpu.memory_space<vmem>>, vector<4x32xf32>
    %293 = arith.maximumf %291, %292 : vector<4x32xf32>
    %294 = arith.maximumf %290, %293 : vector<4x32xf32>
    %c19_335 = arith.constant 19 : index
    %c0_336 = arith.constant 0 : index
    %295 = vector.load %arg11[%c19_335, %c0_336] : memref<36x32xf32, #tpu.memory_space<vmem>>, vector<4x32xf32>
    tpu.vector_store %arg11[%c19_335, %c0_336], %294 {strides = array<i32>} : memref<36x32xf32, #tpu.memory_space<vmem>>, vector<4x32xf32>,
    %c60 = arith.constant 60 : index
    %c0_337 = arith.constant 0 : index
    %296 = tpu.strided_load %arg14[%c60, %c0_337] {strides = array<i32: 2, 1>} : memref<78x32xf32, #tpu.memory_space<vmem>>, vector<4x32xf32>
    %c61_338 = arith.constant 61 : index
    %c0_339 = arith.constant 0 : index
    %297 = tpu.strided_load %arg14[%c61_338, %c0_339] {strides = array<i32: 2, 1>} : memref<78x32xf32, #tpu.memory_space<vmem>>, vector<4x32xf32>
    %298 = arith.maximumf %296, %297 : vector<4x32xf32>
    %c70 = arith.constant 70 : index
    %c0_340 = arith.constant 0 : index
    %299 = tpu.strided_load %arg14[%c70, %c0_340] {strides = array<i32: 2, 1>} : memref<78x32xf32, #tpu.memory_space<vmem>>, vector<4x32xf32>
    %c71_341 = arith.constant 71 : index
    %c0_342 = arith.constant 0 : index
    %300 = tpu.strided_load %arg14[%c71_341, %c0_342] {strides = array<i32: 2, 1>} : memref<78x32xf32, #tpu.memory_space<vmem>>, vector<4x32xf32>
    %301 = arith.maximumf %299, %300 : vector<4x32xf32>
    %302 = arith.maximumf %298, %301 : vector<4x32xf32>
    %c25 = arith.constant 25 : index
    %c0_343 = arith.constant 0 : index
    %303 = vector.load %arg11[%c25, %c0_343] : memref<36x32xf32, #tpu.memory_space<vmem>>, vector<4x32xf32>
    tpu.vector_store %arg11[%c25, %c0_343], %302 {strides = array<i32>} : memref<36x32xf32, #tpu.memory_space<vmem>>, vector<4x32xf32>,
    %cst_344 = arith.constant 0.000000e+00 : f32
    %304 = vector.broadcast %cst_344 : f32 to vector<16x32xf32>
    %c0_345 = arith.constant 0 : index
    %c0_346 = arith.constant 0 : index
    %305 = vector.load %arg12[%c0_345, %c0_346] : memref<16x32xf32, #tpu.memory_space<vmem>>, vector<16x32xf32>
    tpu.vector_store %arg12[%c0_345, %c0_346], %304 {strides = array<i32>} : memref<16x32xf32, #tpu.memory_space<vmem>>, vector<16x32xf32>,
    %c0_347 = arith.constant 0 : index
    %c0_348 = arith.constant 0 : index
    %306 = vector.load %arg11[%c0_347, %c0_348] : memref<36x32xf32, #tpu.memory_space<vmem>>, vector<22x32xf32>
    %c0_349 = arith.constant 0 : index
    %c0_350 = arith.constant 0 : index
    %c0_351 = arith.constant 0 : index
    %307 = vector.load %arg4[%c0_349, %c0_350, %c0_351] : memref<9x32x32xf32, #tpu.memory_space<vmem>>, vector<1x32x32xf32>
    %308 = vector.shape_cast %307 : vector<1x32x32xf32> to vector<32x32xf32>
    %cst_352 = arith.constant dense<0.000000e+00> : vector<22x32xf32>
    %309 = tpu.matmul %306, %308, %cst_352 {dimension_numbers = #tpu.dot_dimension_numbers<[1], [0], [0], [1], [0, 0, 1, 1], [], []>} : vector<22x32xf32>, vector<32x32xf32>, vector<22x32xf32> -> vector<22x32xf32>
    %c0_353 = arith.constant 0 : index
    %c0_354 = arith.constant 0 : index
    %310 = vector.load %arg15[%c0_353, %c0_354] : memref<22x32xf32, #tpu.memory_space<vmem>>, vector<22x32xf32>
    tpu.vector_store %arg15[%c0_353, %c0_354], %309 {strides = array<i32>} : memref<22x32xf32, #tpu.memory_space<vmem>>, vector<22x32xf32>,
    %c1_355 = arith.constant 1 : index
    %c0_356 = arith.constant 0 : index
    %311 = vector.load %arg11[%c1_355, %c0_356] : memref<36x32xf32, #tpu.memory_space<vmem>>, vector<22x32xf32>
    %c1_357 = arith.constant 1 : index
    %c0_358 = arith.constant 0 : index
    %c0_359 = arith.constant 0 : index
    %312 = vector.load %arg4[%c1_357, %c0_358, %c0_359] : memref<9x32x32xf32, #tpu.memory_space<vmem>>, vector<1x32x32xf32>
    %313 = vector.shape_cast %312 : vector<1x32x32xf32> to vector<32x32xf32>
    %cst_360 = arith.constant dense<0.000000e+00> : vector<22x32xf32>
    %314 = tpu.matmul %311, %313, %cst_360 {dimension_numbers = #tpu.dot_dimension_numbers<[1], [0], [0], [1], [0, 0, 1, 1], [], []>} : vector<22x32xf32>, vector<32x32xf32>, vector<22x32xf32> -> vector<22x32xf32>
    %c0_361 = arith.constant 0 : index
    %c0_362 = arith.constant 0 : index
    %315 = vector.load %arg15[%c0_361, %c0_362] : memref<22x32xf32, #tpu.memory_space<vmem>>, vector<22x32xf32>
    %316 = arith.addf %315, %314 : vector<22x32xf32>
    %c0_363 = arith.constant 0 : index
    %c0_364 = arith.constant 0 : index
    %317 = vector.load %arg15[%c0_363, %c0_364] : memref<22x32xf32, #tpu.memory_space<vmem>>, vector<22x32xf32>
    tpu.vector_store %arg15[%c0_363, %c0_364], %316 {strides = array<i32>} : memref<22x32xf32, #tpu.memory_space<vmem>>, vector<22x32xf32>,
    %c2_365 = arith.constant 2 : index
    %c0_366 = arith.constant 0 : index
    %318 = vector.load %arg11[%c2_365, %c0_366] : memref<36x32xf32, #tpu.memory_space<vmem>>, vector<22x32xf32>
    %c2_367 = arith.constant 2 : index
    %c0_368 = arith.constant 0 : index
    %c0_369 = arith.constant 0 : index
    %319 = vector.load %arg4[%c2_367, %c0_368, %c0_369] : memref<9x32x32xf32, #tpu.memory_space<vmem>>, vector<1x32x32xf32>
    %320 = vector.shape_cast %319 : vector<1x32x32xf32> to vector<32x32xf32>
    %cst_370 = arith.constant dense<0.000000e+00> : vector<22x32xf32>
    %321 = tpu.matmul %318, %320, %cst_370 {dimension_numbers = #tpu.dot_dimension_numbers<[1], [0], [0], [1], [0, 0, 1, 1], [], []>} : vector<22x32xf32>, vector<32x32xf32>, vector<22x32xf32> -> vector<22x32xf32>
    %c0_371 = arith.constant 0 : index
    %c0_372 = arith.constant 0 : index
    %322 = vector.load %arg15[%c0_371, %c0_372] : memref<22x32xf32, #tpu.memory_space<vmem>>, vector<22x32xf32>
    %323 = arith.addf %322, %321 : vector<22x32xf32>
    %c0_373 = arith.constant 0 : index
    %c0_374 = arith.constant 0 : index
    %324 = vector.load %arg15[%c0_373, %c0_374] : memref<22x32xf32, #tpu.memory_space<vmem>>, vector<22x32xf32>
    tpu.vector_store %arg15[%c0_373, %c0_374], %323 {strides = array<i32>} : memref<22x32xf32, #tpu.memory_space<vmem>>, vector<22x32xf32>,
    %c6_375 = arith.constant 6 : index
    %c0_376 = arith.constant 0 : index
    %325 = vector.load %arg11[%c6_375, %c0_376] : memref<36x32xf32, #tpu.memory_space<vmem>>, vector<22x32xf32>
    %c3_377 = arith.constant 3 : index
    %c0_378 = arith.constant 0 : index
    %c0_379 = arith.constant 0 : index
    %326 = vector.load %arg4[%c3_377, %c0_378, %c0_379] : memref<9x32x32xf32, #tpu.memory_space<vmem>>, vector<1x32x32xf32>
    %327 = vector.shape_cast %326 : vector<1x32x32xf32> to vector<32x32xf32>
    %cst_380 = arith.constant dense<0.000000e+00> : vector<22x32xf32>
    %328 = tpu.matmul %325, %327, %cst_380 {dimension_numbers = #tpu.dot_dimension_numbers<[1], [0], [0], [1], [0, 0, 1, 1], [], []>} : vector<22x32xf32>, vector<32x32xf32>, vector<22x32xf32> -> vector<22x32xf32>
    %c0_381 = arith.constant 0 : index
    %c0_382 = arith.constant 0 : index
    %329 = vector.load %arg15[%c0_381, %c0_382] : memref<22x32xf32, #tpu.memory_space<vmem>>, vector<22x32xf32>
    %330 = arith.addf %329, %328 : vector<22x32xf32>
    %c0_383 = arith.constant 0 : index
    %c0_384 = arith.constant 0 : index
    %331 = vector.load %arg15[%c0_383, %c0_384] : memref<22x32xf32, #tpu.memory_space<vmem>>, vector<22x32xf32>
    tpu.vector_store %arg15[%c0_383, %c0_384], %330 {strides = array<i32>} : memref<22x32xf32, #tpu.memory_space<vmem>>, vector<22x32xf32>,
    %c7_385 = arith.constant 7 : index
    %c0_386 = arith.constant 0 : index
    %332 = vector.load %arg11[%c7_385, %c0_386] : memref<36x32xf32, #tpu.memory_space<vmem>>, vector<22x32xf32>
    %c4_387 = arith.constant 4 : index
    %c0_388 = arith.constant 0 : index
    %c0_389 = arith.constant 0 : index
    %333 = vector.load %arg4[%c4_387, %c0_388, %c0_389] : memref<9x32x32xf32, #tpu.memory_space<vmem>>, vector<1x32x32xf32>
    %334 = vector.shape_cast %333 : vector<1x32x32xf32> to vector<32x32xf32>
    %cst_390 = arith.constant dense<0.000000e+00> : vector<22x32xf32>
    %335 = tpu.matmul %332, %334, %cst_390 {dimension_numbers = #tpu.dot_dimension_numbers<[1], [0], [0], [1], [0, 0, 1, 1], [], []>} : vector<22x32xf32>, vector<32x32xf32>, vector<22x32xf32> -> vector<22x32xf32>
    %c0_391 = arith.constant 0 : index
    %c0_392 = arith.constant 0 : index
    %336 = vector.load %arg15[%c0_391, %c0_392] : memref<22x32xf32, #tpu.memory_space<vmem>>, vector<22x32xf32>
    %337 = arith.addf %336, %335 : vector<22x32xf32>
    %c0_393 = arith.constant 0 : index
    %c0_394 = arith.constant 0 : index
    %338 = vector.load %arg15[%c0_393, %c0_394] : memref<22x32xf32, #tpu.memory_space<vmem>>, vector<22x32xf32>
    tpu.vector_store %arg15[%c0_393, %c0_394], %337 {strides = array<i32>} : memref<22x32xf32, #tpu.memory_space<vmem>>, vector<22x32xf32>,
    %c8_395 = arith.constant 8 : index
    %c0_396 = arith.constant 0 : index
    %339 = vector.load %arg11[%c8_395, %c0_396] : memref<36x32xf32, #tpu.memory_space<vmem>>, vector<22x32xf32>
    %c5_397 = arith.constant 5 : index
    %c0_398 = arith.constant 0 : index
    %c0_399 = arith.constant 0 : index
    %340 = vector.load %arg4[%c5_397, %c0_398, %c0_399] : memref<9x32x32xf32, #tpu.memory_space<vmem>>, vector<1x32x32xf32>
    %341 = vector.shape_cast %340 : vector<1x32x32xf32> to vector<32x32xf32>
    %cst_400 = arith.constant dense<0.000000e+00> : vector<22x32xf32>
    %342 = tpu.matmul %339, %341, %cst_400 {dimension_numbers = #tpu.dot_dimension_numbers<[1], [0], [0], [1], [0, 0, 1, 1], [], []>} : vector<22x32xf32>, vector<32x32xf32>, vector<22x32xf32> -> vector<22x32xf32>
    %c0_401 = arith.constant 0 : index
    %c0_402 = arith.constant 0 : index
    %343 = vector.load %arg15[%c0_401, %c0_402] : memref<22x32xf32, #tpu.memory_space<vmem>>, vector<22x32xf32>
    %344 = arith.addf %343, %342 : vector<22x32xf32>
    %c0_403 = arith.constant 0 : index
    %c0_404 = arith.constant 0 : index
    %345 = vector.load %arg15[%c0_403, %c0_404] : memref<22x32xf32, #tpu.memory_space<vmem>>, vector<22x32xf32>
    tpu.vector_store %arg15[%c0_403, %c0_404], %344 {strides = array<i32>} : memref<22x32xf32, #tpu.memory_space<vmem>>, vector<22x32xf32>,
    %c12_405 = arith.constant 12 : index
    %c0_406 = arith.constant 0 : index
    %346 = vector.load %arg11[%c12_405, %c0_406] : memref<36x32xf32, #tpu.memory_space<vmem>>, vector<22x32xf32>
    %c6_407 = arith.constant 6 : index
    %c0_408 = arith.constant 0 : index
    %c0_409 = arith.constant 0 : index
    %347 = vector.load %arg4[%c6_407, %c0_408, %c0_409] : memref<9x32x32xf32, #tpu.memory_space<vmem>>, vector<1x32x32xf32>
    %348 = vector.shape_cast %347 : vector<1x32x32xf32> to vector<32x32xf32>
    %cst_410 = arith.constant dense<0.000000e+00> : vector<22x32xf32>
    %349 = tpu.matmul %346, %348, %cst_410 {dimension_numbers = #tpu.dot_dimension_numbers<[1], [0], [0], [1], [0, 0, 1, 1], [], []>} : vector<22x32xf32>, vector<32x32xf32>, vector<22x32xf32> -> vector<22x32xf32>
    %c0_411 = arith.constant 0 : index
    %c0_412 = arith.constant 0 : index
    %350 = vector.load %arg15[%c0_411, %c0_412] : memref<22x32xf32, #tpu.memory_space<vmem>>, vector<22x32xf32>
    %351 = arith.addf %350, %349 : vector<22x32xf32>
    %c0_413 = arith.constant 0 : index
    %c0_414 = arith.constant 0 : index
    %352 = vector.load %arg15[%c0_413, %c0_414] : memref<22x32xf32, #tpu.memory_space<vmem>>, vector<22x32xf32>
    tpu.vector_store %arg15[%c0_413, %c0_414], %351 {strides = array<i32>} : memref<22x32xf32, #tpu.memory_space<vmem>>, vector<22x32xf32>,
    %c13_415 = arith.constant 13 : index
    %c0_416 = arith.constant 0 : index
    %353 = vector.load %arg11[%c13_415, %c0_416] : memref<36x32xf32, #tpu.memory_space<vmem>>, vector<22x32xf32>
    %c7_417 = arith.constant 7 : index
    %c0_418 = arith.constant 0 : index
    %c0_419 = arith.constant 0 : index
    %354 = vector.load %arg4[%c7_417, %c0_418, %c0_419] : memref<9x32x32xf32, #tpu.memory_space<vmem>>, vector<1x32x32xf32>
    %355 = vector.shape_cast %354 : vector<1x32x32xf32> to vector<32x32xf32>
    %cst_420 = arith.constant dense<0.000000e+00> : vector<22x32xf32>
    %356 = tpu.matmul %353, %355, %cst_420 {dimension_numbers = #tpu.dot_dimension_numbers<[1], [0], [0], [1], [0, 0, 1, 1], [], []>} : vector<22x32xf32>, vector<32x32xf32>, vector<22x32xf32> -> vector<22x32xf32>
    %c0_421 = arith.constant 0 : index
    %c0_422 = arith.constant 0 : index
    %357 = vector.load %arg15[%c0_421, %c0_422] : memref<22x32xf32, #tpu.memory_space<vmem>>, vector<22x32xf32>
    %358 = arith.addf %357, %356 : vector<22x32xf32>
    %c0_423 = arith.constant 0 : index
    %c0_424 = arith.constant 0 : index
    %359 = vector.load %arg15[%c0_423, %c0_424] : memref<22x32xf32, #tpu.memory_space<vmem>>, vector<22x32xf32>
    tpu.vector_store %arg15[%c0_423, %c0_424], %358 {strides = array<i32>} : memref<22x32xf32, #tpu.memory_space<vmem>>, vector<22x32xf32>,
    %c14 = arith.constant 14 : index
    %c0_425 = arith.constant 0 : index
    %360 = vector.load %arg11[%c14, %c0_425] : memref<36x32xf32, #tpu.memory_space<vmem>>, vector<22x32xf32>
    %c8_426 = arith.constant 8 : index
    %c0_427 = arith.constant 0 : index
    %c0_428 = arith.constant 0 : index
    %361 = vector.load %arg4[%c8_426, %c0_427, %c0_428] : memref<9x32x32xf32, #tpu.memory_space<vmem>>, vector<1x32x32xf32>
    %362 = vector.shape_cast %361 : vector<1x32x32xf32> to vector<32x32xf32>
    %cst_429 = arith.constant dense<0.000000e+00> : vector<22x32xf32>
    %363 = tpu.matmul %360, %362, %cst_429 {dimension_numbers = #tpu.dot_dimension_numbers<[1], [0], [0], [1], [0, 0, 1, 1], [], []>} : vector<22x32xf32>, vector<32x32xf32>, vector<22x32xf32> -> vector<22x32xf32>
    %c0_430 = arith.constant 0 : index
    %c0_431 = arith.constant 0 : index
    %364 = vector.load %arg15[%c0_430, %c0_431] : memref<22x32xf32, #tpu.memory_space<vmem>>, vector<22x32xf32>
    %365 = arith.addf %364, %363 : vector<22x32xf32>
    %c0_432 = arith.constant 0 : index
    %c0_433 = arith.constant 0 : index
    %366 = vector.load %arg15[%c0_432, %c0_433] : memref<22x32xf32, #tpu.memory_space<vmem>>, vector<22x32xf32>
    tpu.vector_store %arg15[%c0_432, %c0_433], %365 {strides = array<i32>} : memref<22x32xf32, #tpu.memory_space<vmem>>, vector<22x32xf32>,
    %c0_434 = arith.constant 0 : index
    %c0_435 = arith.constant 0 : index
    %367 = vector.load %arg15[%c0_434, %c0_435] : memref<22x32xf32, #tpu.memory_space<vmem>>, vector<22x32xf32>
    %368 = vector.broadcast %55 : vector<1x32xf32> to vector<22x32xf32>
    %369 = arith.mulf %367, %368 : vector<22x32xf32>
    %370 = vector.broadcast %63 : vector<1x32xf32> to vector<22x32xf32>
    %371 = arith.addf %369, %370 : vector<22x32xf32>
    %cst_436 = arith.constant 0.000000e+00 : f32
    %372 = vector.broadcast %cst_436 : f32 to vector<22x32xf32>
    %373 = arith.maximumf %371, %372 : vector<22x32xf32>
    %c0_437 = arith.constant 0 : index
    %c0_438 = arith.constant 0 : index
    %374 = vector.load %arg15[%c0_437, %c0_438] : memref<22x32xf32, #tpu.memory_space<vmem>>, vector<22x32xf32>
    tpu.vector_store %arg15[%c0_437, %c0_438], %373 {strides = array<i32>} : memref<22x32xf32, #tpu.memory_space<vmem>>, vector<22x32xf32>,
    %c0_439 = arith.constant 0 : index
    %c0_440 = arith.constant 0 : index
    %375 = tpu.strided_load %arg15[%c0_439, %c0_440] {strides = array<i32: 2, 1>} : memref<22x32xf32, #tpu.memory_space<vmem>>, vector<2x32xf32>
    %c1_441 = arith.constant 1 : index
    %c0_442 = arith.constant 0 : index
    %376 = tpu.strided_load %arg15[%c1_441, %c0_442] {strides = array<i32: 2, 1>} : memref<22x32xf32, #tpu.memory_space<vmem>>, vector<2x32xf32>
    %377 = arith.maximumf %375, %376 : vector<2x32xf32>
    %c6_443 = arith.constant 6 : index
    %c0_444 = arith.constant 0 : index
    %378 = tpu.strided_load %arg15[%c6_443, %c0_444] {strides = array<i32: 2, 1>} : memref<22x32xf32, #tpu.memory_space<vmem>>, vector<2x32xf32>
    %c7_445 = arith.constant 7 : index
    %c0_446 = arith.constant 0 : index
    %379 = tpu.strided_load %arg15[%c7_445, %c0_446] {strides = array<i32: 2, 1>} : memref<22x32xf32, #tpu.memory_space<vmem>>, vector<2x32xf32>
    %380 = arith.maximumf %378, %379 : vector<2x32xf32>
    %381 = arith.maximumf %377, %380 : vector<2x32xf32>
    %c5_447 = arith.constant 5 : index
    %c0_448 = arith.constant 0 : index
    %382 = vector.load %arg12[%c5_447, %c0_448] : memref<16x32xf32, #tpu.memory_space<vmem>>, vector<2x32xf32>
    tpu.vector_store %arg12[%c5_447, %c0_448], %381 {strides = array<i32>} : memref<16x32xf32, #tpu.memory_space<vmem>>, vector<2x32xf32>,
    %c12_449 = arith.constant 12 : index
    %c0_450 = arith.constant 0 : index
    %383 = tpu.strided_load %arg15[%c12_449, %c0_450] {strides = array<i32: 2, 1>} : memref<22x32xf32, #tpu.memory_space<vmem>>, vector<2x32xf32>
    %c13_451 = arith.constant 13 : index
    %c0_452 = arith.constant 0 : index
    %384 = tpu.strided_load %arg15[%c13_451, %c0_452] {strides = array<i32: 2, 1>} : memref<22x32xf32, #tpu.memory_space<vmem>>, vector<2x32xf32>
    %385 = arith.maximumf %383, %384 : vector<2x32xf32>
    %c18_453 = arith.constant 18 : index
    %c0_454 = arith.constant 0 : index
    %386 = tpu.strided_load %arg15[%c18_453, %c0_454] {strides = array<i32: 2, 1>} : memref<22x32xf32, #tpu.memory_space<vmem>>, vector<2x32xf32>
    %c19_455 = arith.constant 19 : index
    %c0_456 = arith.constant 0 : index
    %387 = tpu.strided_load %arg15[%c19_455, %c0_456] {strides = array<i32: 2, 1>} : memref<22x32xf32, #tpu.memory_space<vmem>>, vector<2x32xf32>
    %388 = arith.maximumf %386, %387 : vector<2x32xf32>
    %389 = arith.maximumf %385, %388 : vector<2x32xf32>
    %c9 = arith.constant 9 : index
    %c0_457 = arith.constant 0 : index
    %390 = vector.load %arg12[%c9, %c0_457] : memref<16x32xf32, #tpu.memory_space<vmem>>, vector<2x32xf32>
    tpu.vector_store %arg12[%c9, %c0_457], %389 {strides = array<i32>} : memref<16x32xf32, #tpu.memory_space<vmem>>, vector<2x32xf32>,
    %c0_458 = arith.constant 0 : index
    %c0_459 = arith.constant 0 : index
    %391 = vector.load %arg12[%c0_458, %c0_459] : memref<16x32xf32, #tpu.memory_space<vmem>>, vector<6x32xf32>
    %c0_460 = arith.constant 0 : index
    %c0_461 = arith.constant 0 : index
    %c0_462 = arith.constant 0 : index
    %392 = vector.load %arg5[%c0_460, %c0_461, %c0_462] : memref<9x32x32xf32, #tpu.memory_space<vmem>>, vector<1x32x32xf32>
    %393 = vector.shape_cast %392 : vector<1x32x32xf32> to vector<32x32xf32>
    %cst_463 = arith.constant dense<0.000000e+00> : vector<6x32xf32>
    %394 = tpu.matmul %391, %393, %cst_463 {dimension_numbers = #tpu.dot_dimension_numbers<[1], [0], [0], [1], [0, 0, 1, 1], [], []>} : vector<6x32xf32>, vector<32x32xf32>, vector<6x32xf32> -> vector<6x32xf32>
    %c0_464 = arith.constant 0 : index
    %c0_465 = arith.constant 0 : index
    %395 = vector.load %arg16[%c0_464, %c0_465] : memref<6x32xf32, #tpu.memory_space<vmem>>, vector<6x32xf32>
    tpu.vector_store %arg16[%c0_464, %c0_465], %394 {strides = array<i32>} : memref<6x32xf32, #tpu.memory_space<vmem>>, vector<6x32xf32>,
    %c1_466 = arith.constant 1 : index
    %c0_467 = arith.constant 0 : index
    %396 = vector.load %arg12[%c1_466, %c0_467] : memref<16x32xf32, #tpu.memory_space<vmem>>, vector<6x32xf32>
    %c1_468 = arith.constant 1 : index
    %c0_469 = arith.constant 0 : index
    %c0_470 = arith.constant 0 : index
    %397 = vector.load %arg5[%c1_468, %c0_469, %c0_470] : memref<9x32x32xf32, #tpu.memory_space<vmem>>, vector<1x32x32xf32>
    %398 = vector.shape_cast %397 : vector<1x32x32xf32> to vector<32x32xf32>
    %cst_471 = arith.constant dense<0.000000e+00> : vector<6x32xf32>
    %399 = tpu.matmul %396, %398, %cst_471 {dimension_numbers = #tpu.dot_dimension_numbers<[1], [0], [0], [1], [0, 0, 1, 1], [], []>} : vector<6x32xf32>, vector<32x32xf32>, vector<6x32xf32> -> vector<6x32xf32>
    %c0_472 = arith.constant 0 : index
    %c0_473 = arith.constant 0 : index
    %400 = vector.load %arg16[%c0_472, %c0_473] : memref<6x32xf32, #tpu.memory_space<vmem>>, vector<6x32xf32>
    %401 = arith.addf %400, %399 : vector<6x32xf32>
    %c0_474 = arith.constant 0 : index
    %c0_475 = arith.constant 0 : index
    %402 = vector.load %arg16[%c0_474, %c0_475] : memref<6x32xf32, #tpu.memory_space<vmem>>, vector<6x32xf32>
    tpu.vector_store %arg16[%c0_474, %c0_475], %401 {strides = array<i32>} : memref<6x32xf32, #tpu.memory_space<vmem>>, vector<6x32xf32>,
    %c2_476 = arith.constant 2 : index
    %c0_477 = arith.constant 0 : index
    %403 = vector.load %arg12[%c2_476, %c0_477] : memref<16x32xf32, #tpu.memory_space<vmem>>, vector<6x32xf32>
    %c2_478 = arith.constant 2 : index
    %c0_479 = arith.constant 0 : index
    %c0_480 = arith.constant 0 : index
    %404 = vector.load %arg5[%c2_478, %c0_479, %c0_480] : memref<9x32x32xf32, #tpu.memory_space<vmem>>, vector<1x32x32xf32>
    %405 = vector.shape_cast %404 : vector<1x32x32xf32> to vector<32x32xf32>
    %cst_481 = arith.constant dense<0.000000e+00> : vector<6x32xf32>
    %406 = tpu.matmul %403, %405, %cst_481 {dimension_numbers = #tpu.dot_dimension_numbers<[1], [0], [0], [1], [0, 0, 1, 1], [], []>} : vector<6x32xf32>, vector<32x32xf32>, vector<6x32xf32> -> vector<6x32xf32>
    %c0_482 = arith.constant 0 : index
    %c0_483 = arith.constant 0 : index
    %407 = vector.load %arg16[%c0_482, %c0_483] : memref<6x32xf32, #tpu.memory_space<vmem>>, vector<6x32xf32>
    %408 = arith.addf %407, %406 : vector<6x32xf32>
    %c0_484 = arith.constant 0 : index
    %c0_485 = arith.constant 0 : index
    %409 = vector.load %arg16[%c0_484, %c0_485] : memref<6x32xf32, #tpu.memory_space<vmem>>, vector<6x32xf32>
    tpu.vector_store %arg16[%c0_484, %c0_485], %408 {strides = array<i32>} : memref<6x32xf32, #tpu.memory_space<vmem>>, vector<6x32xf32>,
    %c4_486 = arith.constant 4 : index
    %c0_487 = arith.constant 0 : index
    %410 = vector.load %arg12[%c4_486, %c0_487] : memref<16x32xf32, #tpu.memory_space<vmem>>, vector<6x32xf32>
    %c3_488 = arith.constant 3 : index
    %c0_489 = arith.constant 0 : index
    %c0_490 = arith.constant 0 : index
    %411 = vector.load %arg5[%c3_488, %c0_489, %c0_490] : memref<9x32x32xf32, #tpu.memory_space<vmem>>, vector<1x32x32xf32>
    %412 = vector.shape_cast %411 : vector<1x32x32xf32> to vector<32x32xf32>
    %cst_491 = arith.constant dense<0.000000e+00> : vector<6x32xf32>
    %413 = tpu.matmul %410, %412, %cst_491 {dimension_numbers = #tpu.dot_dimension_numbers<[1], [0], [0], [1], [0, 0, 1, 1], [], []>} : vector<6x32xf32>, vector<32x32xf32>, vector<6x32xf32> -> vector<6x32xf32>
    %c0_492 = arith.constant 0 : index
    %c0_493 = arith.constant 0 : index
    %414 = vector.load %arg16[%c0_492, %c0_493] : memref<6x32xf32, #tpu.memory_space<vmem>>, vector<6x32xf32>
    %415 = arith.addf %414, %413 : vector<6x32xf32>
    %c0_494 = arith.constant 0 : index
    %c0_495 = arith.constant 0 : index
    %416 = vector.load %arg16[%c0_494, %c0_495] : memref<6x32xf32, #tpu.memory_space<vmem>>, vector<6x32xf32>
    tpu.vector_store %arg16[%c0_494, %c0_495], %415 {strides = array<i32>} : memref<6x32xf32, #tpu.memory_space<vmem>>, vector<6x32xf32>,
    %c5_496 = arith.constant 5 : index
    %c0_497 = arith.constant 0 : index
    %417 = vector.load %arg12[%c5_496, %c0_497] : memref<16x32xf32, #tpu.memory_space<vmem>>, vector<6x32xf32>
    %c4_498 = arith.constant 4 : index
    %c0_499 = arith.constant 0 : index
    %c0_500 = arith.constant 0 : index
    %418 = vector.load %arg5[%c4_498, %c0_499, %c0_500] : memref<9x32x32xf32, #tpu.memory_space<vmem>>, vector<1x32x32xf32>
    %419 = vector.shape_cast %418 : vector<1x32x32xf32> to vector<32x32xf32>
    %cst_501 = arith.constant dense<0.000000e+00> : vector<6x32xf32>
    %420 = tpu.matmul %417, %419, %cst_501 {dimension_numbers = #tpu.dot_dimension_numbers<[1], [0], [0], [1], [0, 0, 1, 1], [], []>} : vector<6x32xf32>, vector<32x32xf32>, vector<6x32xf32> -> vector<6x32xf32>
    %c0_502 = arith.constant 0 : index
    %c0_503 = arith.constant 0 : index
    %421 = vector.load %arg16[%c0_502, %c0_503] : memref<6x32xf32, #tpu.memory_space<vmem>>, vector<6x32xf32>
    %422 = arith.addf %421, %420 : vector<6x32xf32>
    %c0_504 = arith.constant 0 : index
    %c0_505 = arith.constant 0 : index
    %423 = vector.load %arg16[%c0_504, %c0_505] : memref<6x32xf32, #tpu.memory_space<vmem>>, vector<6x32xf32>
    tpu.vector_store %arg16[%c0_504, %c0_505], %422 {strides = array<i32>} : memref<6x32xf32, #tpu.memory_space<vmem>>, vector<6x32xf32>,
    %c6_506 = arith.constant 6 : index
    %c0_507 = arith.constant 0 : index
    %424 = vector.load %arg12[%c6_506, %c0_507] : memref<16x32xf32, #tpu.memory_space<vmem>>, vector<6x32xf32>
    %c5_508 = arith.constant 5 : index
    %c0_509 = arith.constant 0 : index
    %c0_510 = arith.constant 0 : index
    %425 = vector.load %arg5[%c5_508, %c0_509, %c0_510] : memref<9x32x32xf32, #tpu.memory_space<vmem>>, vector<1x32x32xf32>
    %426 = vector.shape_cast %425 : vector<1x32x32xf32> to vector<32x32xf32>
    %cst_511 = arith.constant dense<0.000000e+00> : vector<6x32xf32>
    %427 = tpu.matmul %424, %426, %cst_511 {dimension_numbers = #tpu.dot_dimension_numbers<[1], [0], [0], [1], [0, 0, 1, 1], [], []>} : vector<6x32xf32>, vector<32x32xf32>, vector<6x32xf32> -> vector<6x32xf32>
    %c0_512 = arith.constant 0 : index
    %c0_513 = arith.constant 0 : index
    %428 = vector.load %arg16[%c0_512, %c0_513] : memref<6x32xf32, #tpu.memory_space<vmem>>, vector<6x32xf32>
    %429 = arith.addf %428, %427 : vector<6x32xf32>
    %c0_514 = arith.constant 0 : index
    %c0_515 = arith.constant 0 : index
    %430 = vector.load %arg16[%c0_514, %c0_515] : memref<6x32xf32, #tpu.memory_space<vmem>>, vector<6x32xf32>
    tpu.vector_store %arg16[%c0_514, %c0_515], %429 {strides = array<i32>} : memref<6x32xf32, #tpu.memory_space<vmem>>, vector<6x32xf32>,
    %c8_516 = arith.constant 8 : index
    %c0_517 = arith.constant 0 : index
    %431 = vector.load %arg12[%c8_516, %c0_517] : memref<16x32xf32, #tpu.memory_space<vmem>>, vector<6x32xf32>
    %c6_518 = arith.constant 6 : index
    %c0_519 = arith.constant 0 : index
    %c0_520 = arith.constant 0 : index
    %432 = vector.load %arg5[%c6_518, %c0_519, %c0_520] : memref<9x32x32xf32, #tpu.memory_space<vmem>>, vector<1x32x32xf32>
    %433 = vector.shape_cast %432 : vector<1x32x32xf32> to vector<32x32xf32>
    %cst_521 = arith.constant dense<0.000000e+00> : vector<6x32xf32>
    %434 = tpu.matmul %431, %433, %cst_521 {dimension_numbers = #tpu.dot_dimension_numbers<[1], [0], [0], [1], [0, 0, 1, 1], [], []>} : vector<6x32xf32>, vector<32x32xf32>, vector<6x32xf32> -> vector<6x32xf32>
    %c0_522 = arith.constant 0 : index
    %c0_523 = arith.constant 0 : index
    %435 = vector.load %arg16[%c0_522, %c0_523] : memref<6x32xf32, #tpu.memory_space<vmem>>, vector<6x32xf32>
    %436 = arith.addf %435, %434 : vector<6x32xf32>
    %c0_524 = arith.constant 0 : index
    %c0_525 = arith.constant 0 : index
    %437 = vector.load %arg16[%c0_524, %c0_525] : memref<6x32xf32, #tpu.memory_space<vmem>>, vector<6x32xf32>
    tpu.vector_store %arg16[%c0_524, %c0_525], %436 {strides = array<i32>} : memref<6x32xf32, #tpu.memory_space<vmem>>, vector<6x32xf32>,
    %c9_526 = arith.constant 9 : index
    %c0_527 = arith.constant 0 : index
    %438 = vector.load %arg12[%c9_526, %c0_527] : memref<16x32xf32, #tpu.memory_space<vmem>>, vector<6x32xf32>
    %c7_528 = arith.constant 7 : index
    %c0_529 = arith.constant 0 : index
    %c0_530 = arith.constant 0 : index
    %439 = vector.load %arg5[%c7_528, %c0_529, %c0_530] : memref<9x32x32xf32, #tpu.memory_space<vmem>>, vector<1x32x32xf32>
    %440 = vector.shape_cast %439 : vector<1x32x32xf32> to vector<32x32xf32>
    %cst_531 = arith.constant dense<0.000000e+00> : vector<6x32xf32>
    %441 = tpu.matmul %438, %440, %cst_531 {dimension_numbers = #tpu.dot_dimension_numbers<[1], [0], [0], [1], [0, 0, 1, 1], [], []>} : vector<6x32xf32>, vector<32x32xf32>, vector<6x32xf32> -> vector<6x32xf32>
    %c0_532 = arith.constant 0 : index
    %c0_533 = arith.constant 0 : index
    %442 = vector.load %arg16[%c0_532, %c0_533] : memref<6x32xf32, #tpu.memory_space<vmem>>, vector<6x32xf32>
    %443 = arith.addf %442, %441 : vector<6x32xf32>
    %c0_534 = arith.constant 0 : index
    %c0_535 = arith.constant 0 : index
    %444 = vector.load %arg16[%c0_534, %c0_535] : memref<6x32xf32, #tpu.memory_space<vmem>>, vector<6x32xf32>
    tpu.vector_store %arg16[%c0_534, %c0_535], %443 {strides = array<i32>} : memref<6x32xf32, #tpu.memory_space<vmem>>, vector<6x32xf32>,
    %c10_536 = arith.constant 10 : index
    %c0_537 = arith.constant 0 : index
    %445 = vector.load %arg12[%c10_536, %c0_537] : memref<16x32xf32, #tpu.memory_space<vmem>>, vector<6x32xf32>
    %c8_538 = arith.constant 8 : index
    %c0_539 = arith.constant 0 : index
    %c0_540 = arith.constant 0 : index
    %446 = vector.load %arg5[%c8_538, %c0_539, %c0_540] : memref<9x32x32xf32, #tpu.memory_space<vmem>>, vector<1x32x32xf32>
    %447 = vector.shape_cast %446 : vector<1x32x32xf32> to vector<32x32xf32>
    %cst_541 = arith.constant dense<0.000000e+00> : vector<6x32xf32>
    %448 = tpu.matmul %445, %447, %cst_541 {dimension_numbers = #tpu.dot_dimension_numbers<[1], [0], [0], [1], [0, 0, 1, 1], [], []>} : vector<6x32xf32>, vector<32x32xf32>, vector<6x32xf32> -> vector<6x32xf32>
    %c0_542 = arith.constant 0 : index
    %c0_543 = arith.constant 0 : index
    %449 = vector.load %arg16[%c0_542, %c0_543] : memref<6x32xf32, #tpu.memory_space<vmem>>, vector<6x32xf32>
    %450 = arith.addf %449, %448 : vector<6x32xf32>
    %c0_544 = arith.constant 0 : index
    %c0_545 = arith.constant 0 : index
    %451 = vector.load %arg16[%c0_544, %c0_545] : memref<6x32xf32, #tpu.memory_space<vmem>>, vector<6x32xf32>
    tpu.vector_store %arg16[%c0_544, %c0_545], %450 {strides = array<i32>} : memref<6x32xf32, #tpu.memory_space<vmem>>, vector<6x32xf32>,
    %c0_546 = arith.constant 0 : index
    %c0_547 = arith.constant 0 : index
    %452 = vector.load %arg16[%c0_546, %c0_547] : memref<6x32xf32, #tpu.memory_space<vmem>>, vector<6x32xf32>
    %453 = vector.broadcast %57 : vector<1x32xf32> to vector<6x32xf32>
    %454 = arith.mulf %452, %453 : vector<6x32xf32>
    %455 = vector.broadcast %65 : vector<1x32xf32> to vector<6x32xf32>
    %456 = arith.addf %454, %455 : vector<6x32xf32>
    %cst_548 = arith.constant 0.000000e+00 : f32
    %457 = vector.broadcast %cst_548 : f32 to vector<6x32xf32>
    %458 = arith.maximumf %456, %457 : vector<6x32xf32>
    %c0_549 = arith.constant 0 : index
    %c0_550 = arith.constant 0 : index
    %459 = vector.load %arg16[%c0_549, %c0_550] : memref<6x32xf32, #tpu.memory_space<vmem>>, vector<6x32xf32>
    tpu.vector_store %arg16[%c0_549, %c0_550], %458 {strides = array<i32>} : memref<6x32xf32, #tpu.memory_space<vmem>>, vector<6x32xf32>,
    %c0_551 = arith.constant 0 : index
    %c0_552 = arith.constant 0 : index
    %460 = vector.load %arg16[%c0_551, %c0_552] : memref<6x32xf32, #tpu.memory_space<vmem>>, vector<1x32xf32>
    %c1_553 = arith.constant 1 : index
    %c0_554 = arith.constant 0 : index
    %461 = vector.load %arg16[%c1_553, %c0_554] : memref<6x32xf32, #tpu.memory_space<vmem>>, vector<1x32xf32>
    %462 = arith.maximumf %460, %461 : vector<1x32xf32>
    %c4_555 = arith.constant 4 : index
    %c0_556 = arith.constant 0 : index
    %463 = vector.load %arg16[%c4_555, %c0_556] : memref<6x32xf32, #tpu.memory_space<vmem>>, vector<1x32xf32>
    %c5_557 = arith.constant 5 : index
    %c0_558 = arith.constant 0 : index
    %464 = vector.load %arg16[%c5_557, %c0_558] : memref<6x32xf32, #tpu.memory_space<vmem>>, vector<1x32xf32>
    %465 = arith.maximumf %463, %464 : vector<1x32xf32>
    %466 = arith.maximumf %462, %465 : vector<1x32xf32>
    %c0_559 = arith.constant 0 : index
    %c0_560 = arith.constant 0 : index
    %c0_561 = arith.constant 0 : index
    %467 = vector.load %arg8[%c0_559, %c0_560, %c0_561] : memref<1x1x32xf32, #tpu.memory_space<vmem>>, vector<1x1x32xf32>
    %468 = vector.shape_cast %467 : vector<1x1x32xf32> to vector<1x32xf32>
    %469 = vector.shape_cast %466 : vector<1x32xf32> to vector<1x1x32xf32>
    tpu.vector_store %arg8[%c0_559, %c0_560, %c0_561], %469 {strides = array<i32>} : memref<1x1x32xf32, #tpu.memory_space<vmem>>, vector<1x1x32xf32>,
    return
  }
  func.func @transform_0(%arg0: i32) -> (i32, i32, i32) {
    %c0_i32 = arith.constant 0 : i32
    %c0_i32_0 = arith.constant 0 : i32
    %c0_i32_1 = arith.constant 0 : i32
    return %arg0, %c0_i32, %c0_i32_0 : i32, i32, i32
  }
  func.func @transform_1(%arg0: i32) -> (i32, i32, i32) {
    %c0_i32 = arith.constant 0 : i32
    %c0_i32_0 = arith.constant 0 : i32
    %c0_i32_1 = arith.constant 0 : i32
    %c0_i32_2 = arith.constant 0 : i32
    return %c0_i32, %c0_i32_0, %c0_i32_1 : i32, i32, i32
  }
  func.func @transform_2(%arg0: i32) -> (i32, i32, i32) {
    %c0_i32 = arith.constant 0 : i32
    %c0_i32_0 = arith.constant 0 : i32
    %c0_i32_1 = arith.constant 0 : i32
    %c0_i32_2 = arith.constant 0 : i32
    return %c0_i32, %c0_i32_0, %c0_i32_1 : i32, i32, i32
  }
  func.func @transform_3(%arg0: i32) -> (i32, i32, i32) {
    %c0_i32 = arith.constant 0 : i32
    %c0_i32_0 = arith.constant 0 : i32
    %c0_i32_1 = arith.constant 0 : i32
    %c0_i32_2 = arith.constant 0 : i32
    return %c0_i32, %c0_i32_0, %c0_i32_1 : i32, i32, i32
  }
  func.func @transform_4(%arg0: i32) -> (i32, i32, i32) {
    %c0_i32 = arith.constant 0 : i32
    %c0_i32_0 = arith.constant 0 : i32
    %c0_i32_1 = arith.constant 0 : i32
    %c0_i32_2 = arith.constant 0 : i32
    return %c0_i32, %c0_i32_0, %c0_i32_1 : i32, i32, i32
  }
  func.func @transform_5(%arg0: i32) -> (i32, i32, i32) {
    %c0_i32 = arith.constant 0 : i32
    %c0_i32_0 = arith.constant 0 : i32
    %c0_i32_1 = arith.constant 0 : i32
    %c0_i32_2 = arith.constant 0 : i32
    return %c0_i32, %c0_i32_0, %c0_i32_1 : i32, i32, i32
  }
  func.func @transform_6(%arg0: i32) -> (i32, i32, i32) {
    %c0_i32 = arith.constant 0 : i32
    %c0_i32_0 = arith.constant 0 : i32
    %c0_i32_1 = arith.constant 0 : i32
    %c0_i32_2 = arith.constant 0 : i32
    return %c0_i32, %c0_i32_0, %c0_i32_1 : i32, i32, i32
  }
  func.func @transform_7(%arg0: i32) -> (i32, i32, i32) {
    %c0_i32 = arith.constant 0 : i32
    %c0_i32_0 = arith.constant 0 : i32
    %c0_i32_1 = arith.constant 0 : i32
    return %arg0, %c0_i32, %c0_i32_0 : i32, i32, i32
  }
}

</mosaic_0001>

<llo_original>
// kernel: protonet_forward_pallas.1
$region0: #{protonet_forward_pallas.1}
  #allocation0 [shape = 'u32[]', space=smem, size = 0x4, offset = 0x4, fixed_abs, tag = 'smem constant byte address 0x4 - core index']
  #allocation1 [shape = 'u32[144,128]{1,0:T(1,128)}', space=vmem, size = 0x12000, scoped, tag = 'internal scratch']
  #allocation2 [shape = 'f32[324,3]{1,0:T(8,128)}', space=vmem, size = 0x29000, scoped, tag = 'scratch operand']
  #allocation3 [shape = 'f32[100,32]{1,0:T(8,128)}', space=vmem, size = 0xd000, scoped, tag = 'scratch operand']
  #allocation4 [shape = 'f32[36,32]{1,0:T(8,128)}', space=vmem, size = 0x5000, scoped, tag = 'scratch operand']
  #allocation5 [shape = 'f32[16,32]{1,0:T(8,128)}', space=vmem, size = 0x2000, scoped, tag = 'scratch operand']
  #allocation6 [shape = 'f32[286,32]{1,0:T(8,128)}', space=vmem, size = 0x24000, scoped, tag = 'scratch operand']
  #allocation7 [shape = 'f32[78,32]{1,0:T(8,128)}', space=vmem, size = 0xa000, scoped, tag = 'scratch operand']
  #allocation8 [shape = 'f32[22,32]{1,0:T(8,128)}', space=vmem, size = 0x3000, scoped, tag = 'scratch operand']
  #allocation9 [shape = 'f32[6,32]{1,0:T(8,128)}', space=vmem, size = 0x1000, scoped, tag = 'scratch operand']
  %s0 = inlined_call_operand.vmem [shape: f32[2,256,3], index: 0, kind: input, shape index: {}]
  %s1 = inlined_call_operand.vmem [shape: f32[9,3,32], index: 1, kind: input, shape index: {}]
  %s2 = inlined_call_operand.vmem [shape: f32[9,32,32], index: 2, kind: input, shape index: {}]
  %s3 = inlined_call_operand.vmem [shape: f32[9,32,32], index: 3, kind: input, shape index: {}]
  %s4 = inlined_call_operand.hbm [shape: f32[9,32,32], index: 4, kind: input, shape index: {}]
  %s5 = inlined_call_operand.vmem [shape: f32[4,1,32], index: 5, kind: input, shape index: {}]
  %s6 = inlined_call_operand.vmem [shape: f32[4,1,32], index: 6, kind: input, shape index: {}]
  %s7 = inlined_call_operand.hbm [shape: f32[2,1,32], index: 7, kind: output, shape index: {}]
  %s8 = sld [smem:[#allocation0]]
  $region65: #{protonet_forward_pallas.1} parent=0
    _
  %s10 = ssub.s32 1, %s8
  %s11 = scalar_select 0, %s10, %s8
  $region1: #{protonet_forward_pallas.1} parent=0
    #allocation10 [shape = 'u8[147456]{0}', space=vmem, size = 0x24000, scoped, tag = 'input window, operand 4, single buffered']
    #allocation11 [shape = 's32[2]{0}', space=sflag, size = 0x8, scoped, tag = 'scoped memory for protonet_forward_pallas.1']
    #allocation12 [shape = 's32[2]{0}', space=sflag, size = 0x8, scoped, tag = 'scoped memory for protonet_forward_pallas.1']
    #allocation13 [shape = 'u8[1024]{0}', space=vmem, size = 0x400, scoped, tag = 'output window, operand 0']
    %12 = vsyncpa [#allocation11], 0
    %13 = vsyncpa [#allocation12], 0
    %s14 = scalar_lea.sflag [#allocation12], 1
    %15 = vsyncpa %s14, 0
    loop: start=0, step=1, limit=4
    $region2: #{protonet_forward_pallas.1} parent=1 // loop_pre_header
      _
    $region3: #{protonet_forward_pallas.1} parent=1 // loop_header
      %s17 = sphi 0, %s21
      %p18 = scmp.ge.s32.totalorder %s17, 4
      %s27 = sphi 0, %s29
      %s30 = sphi 0, %s27
      %s31 = sphi 0, %s30
      %s47 = sphi 0, %s31
      %s51 = sphi 0, %s51
      %s53 = sphi 0, %s51
      %s54 = sphi 0, %s53
      %s68 = sphi 0, %s54
      %s72 = sphi 0, %s72
      %s74 = sphi 0, %s72
      %s75 = sphi 0, %s74
      %s89 = sphi 0, %s75
      %s93 = sphi 0, %s93
      %s95 = sphi 0, %s93
      %s96 = sphi 0, %s95
      %s110 = sphi 0, %s96
      %s114 = sphi 0, %s114
      %s116 = sphi 0, %s114
      %s117 = sphi 0, %s116
      %s131 = sphi 0, %s117
      %s135 = sphi 0, %s135
      %s137 = sphi 0, %s135
      %s138 = sphi 0, %s137
      %s152 = sphi 0, %s138
      %s156 = sphi 0, %s156
      %s158 = sphi 0, %s156
      %s159 = sphi 0, %s158
      %s173 = sphi 0, %s159
      %s179 = sphi 0, %s181
      %s182 = sphi 0, %s179
      %s183 = sphi 0, %s182
      %s199 = sphi 0, %s183
    $region4: #{protonet_forward_pallas.1} parent=1 // loop_header_branch
      %20 = sbr.rel (%p18) target = $region8
    $region5: #{protonet_forward_pallas.1} parent=1 // loop_body
      %s22 = ssub.s32 %s17, 1
      %s23 = ssub.s32 %s17, 2
      %s24 = sadd.s32 %s17, 1
      %s25 = ssub.s32 %s17, %s24
      %p26 = scmp.eq.s32.totalorder %s25, 0
      %s28 = sadd.s32 %s27, 1
      %s29 = scalar_select %p26, %s27, %s28
      %p32 = pneg %p26
      %p33 = scmp.eq.s32.totalorder %s17, 1
      %p34 = por %p32, %p33
      %p35 = scmp.ne.s32.totalorder %s27, %s30
      %p36 = scmp.eq.s32.totalorder %s17, 0
      %p37 = por %p35, %p36
      %p38 = scmp.ne.s32.totalorder %s27, %s30
      %p39 = scmp.eq.s32.totalorder %s22, 1
      %p40 = por %p38, %p39
      %p41 = scmp.ne.s32.totalorder %s30, %s31
      %p42 = scmp.eq.s32.totalorder %s22, 0
      %p43 = por %p41, %p42
      %p44 = scmp.ne.s32.totalorder %s30, %s31
      %p45 = scmp.eq.s32.totalorder %s23, 1
      %p46 = por %p44, %p45
      %p48 = scmp.ne.s32.totalorder %s31, %s47
      %p49 = scmp.eq.s32.totalorder %s23, 0
      %p50 = por %p48, %p49
      %s52 = sadd.s32 %s51, 1
      %p55 = scmp.eq.s32.totalorder %s17, 1
      %p56 = scmp.ne.s32.totalorder %s51, %s53
      %p57 = scmp.eq.s32.totalorder %s17, 0
      %p58 = por %p56, %p57
      %p59 = scmp.ne.s32.totalorder %s51, %s53
      %p60 = scmp.eq.s32.totalorder %s22, 1
      %p61 = por %p59, %p60
      %p62 = scmp.ne.s32.totalorder %s53, %s54
      %p63 = scmp.eq.s32.totalorder %s22, 0
      %p64 = por %p62, %p63
      %p65 = scmp.ne.s32.totalorder %s53, %s54
      %p66 = scmp.eq.s32.totalorder %s23, 1
      %p67 = por %p65, %p66
      %p69 = scmp.ne.s32.totalorder %s54, %s68
      %p70 = scmp.eq.s32.totalorder %s23, 0
      %p71 = por %p69, %p70
      %s73 = sadd.s32 %s72, 1
      %p76 = scmp.eq.s32.totalorder %s17, 1
      %p77 = scmp.ne.s32.totalorder %s72, %s74
      %p78 = scmp.eq.s32.totalorder %s17, 0
      %p79 = por %p77, %p78
      %p80 = scmp.ne.s32.totalorder %s72, %s74
      %p81 = scmp.eq.s32.totalorder %s22, 1
      %p82 = por %p80, %p81
      %p83 = scmp.ne.s32.totalorder %s74, %s75
      %p84 = scmp.eq.s32.totalorder %s22, 0
      %p85 = por %p83, %p84
      %p86 = scmp.ne.s32.totalorder %s74, %s75
      %p87 = scmp.eq.s32.totalorder %s23, 1
      %p88 = por %p86, %p87
      %p90 = scmp.ne.s32.totalorder %s75, %s89
      %p91 = scmp.eq.s32.totalorder %s23, 0
      %p92 = por %p90, %p91
      %s94 = sadd.s32 %s93, 1
      %p97 = scmp.eq.s32.totalorder %s17, 1
      %p98 = scmp.ne.s32.totalorder %s93, %s95
      %p99 = scmp.eq.s32.totalorder %s17, 0
      %p100 = por %p98, %p99
      %p101 = scmp.ne.s32.totalorder %s93, %s95
      %p102 = scmp.eq.s32.totalorder %s22, 1
      %p103 = por %p101, %p102
      %p104 = scmp.ne.s32.totalorder %s95, %s96
      %p105 = scmp.eq.s32.totalorder %s22, 0
      %p106 = por %p104, %p105
      %p107 = scmp.ne.s32.totalorder %s95, %s96
      %p108 = scmp.eq.s32.totalorder %s23, 1
      %p109 = por %p107, %p108
      %p111 = scmp.ne.s32.totalorder %s96, %s110
      %p112 = scmp.eq.s32.totalorder %s23, 0
      %p113 = por %p111, %p112
      %s115 = sadd.s32 %s114, 1
      %p118 = scmp.eq.s32.totalorder %s17, 1
      %p119 = scmp.ne.s32.totalorder %s114, %s116
      %p120 = scmp.eq.s32.totalorder %s17, 0
      %p121 = por %p119, %p120
      %p122 = scmp.ne.s32.totalorder %s114, %s116
      %p123 = scmp.eq.s32.totalorder %s22, 1
      %p124 = por %p122, %p123
      %p125 = scmp.ne.s32.totalorder %s116, %s117
      %p126 = scmp.eq.s32.totalorder %s22, 0
      %p127 = por %p125, %p126
      %p128 = scmp.ne.s32.totalorder %s116, %s117
      %p129 = scmp.eq.s32.totalorder %s23, 1
      %p130 = por %p128, %p129
      %p132 = scmp.ne.s32.totalorder %s117, %s131
      %p133 = scmp.eq.s32.totalorder %s23, 0
      %p134 = por %p132, %p133
      %s136 = sadd.s32 %s135, 1
      %p139 = scmp.eq.s32.totalorder %s17, 1
      %p140 = scmp.ne.s32.totalorder %s135, %s137
      %p141 = scmp.eq.s32.totalorder %s17, 0
      %p142 = por %p140, %p141
      %p143 = scmp.ne.s32.totalorder %s135, %s137
      %p144 = scmp.eq.s32.totalorder %s22, 1
      %p145 = por %p143, %p144
      %p146 = scmp.ne.s32.totalorder %s137, %s138
      %p147 = scmp.eq.s32.totalorder %s22, 0
      %p148 = por %p146, %p147
      %p149 = scmp.ne.s32.totalorder %s137, %s138
      %p150 = scmp.eq.s32.totalorder %s23, 1
      %p151 = por %p149, %p150
      %p153 = scmp.ne.s32.totalorder %s138, %s152
      %p154 = scmp.eq.s32.totalorder %s23, 0
      %p155 = por %p153, %p154
      %s157 = sadd.s32 %s156, 1
      %p160 = scmp.eq.s32.totalorder %s17, 1
      %p161 = scmp.ne.s32.totalorder %s156, %s158
      %p162 = scmp.eq.s32.totalorder %s17, 0
      %p163 = por %p161, %p162
      %p164 = scmp.ne.s32.totalorder %s156, %s158
      %p165 = scmp.eq.s32.totalorder %s22, 1
      %p166 = por %p164, %p165
      %p167 = scmp.ne.s32.totalorder %s158, %s159
      %p168 = scmp.eq.s32.totalorder %s22, 0
      %p169 = por %p167, %p168
      %p170 = scmp.ne.s32.totalorder %s158, %s159
      %p171 = scmp.eq.s32.totalorder %s23, 1
      %p172 = por %p170, %p171
      %p174 = scmp.ne.s32.totalorder %s159, %s173
      %p175 = scmp.eq.s32.totalorder %s23, 0
      %p176 = por %p174, %p175
      %s177 = ssub.s32 %s17, %s24
      %p178 = scmp.eq.s32.totalorder %s177, 0
      %s180 = sadd.s32 %s179, 1
      %s181 = scalar_select %p178, %s179, %s180
      %p184 = pneg %p178
      %p185 = scmp.eq.s32.totalorder %s17, 1
      %p186 = por %p184, %p185
      %p187 = scmp.ne.s32.totalorder %s179, %s182
      %p188 = scmp.eq.s32.totalorder %s17, 0
      %p189 = por %p187, %p188
      %p190 = scmp.ne.s32.totalorder %s179, %s182
      %p191 = scmp.eq.s32.totalorder %s22, 1
      %p192 = por %p190, %p191
      %p193 = scmp.ne.s32.totalorder %s182, %s183
      %p194 = scmp.eq.s32.totalorder %s22, 0
      %p195 = por %p193, %p194
      %p196 = scmp.ne.s32.totalorder %s182, %s183
      %p197 = scmp.eq.s32.totalorder %s23, 1
      %p198 = por %p196, %p197
      %p200 = scmp.ne.s32.totalorder %s183, %s199
      %p201 = scmp.eq.s32.totalorder %s23, 0
      %p202 = por %p200, %p201
      %p203 = scmp.le.s32.totalorder 1, %s17
      %p204 = scmp.lt.s32.totalorder %s17, 3
      %p205 = pnand %p203, %p204
      %p206 = pneg %p205
      // Predicated region
      $region9: #{protonet_forward_pallas.1} parent=5 // pred_check
        _
      $region10: #{protonet_forward_pallas.1} parent=5 // pred_check_branch
        %208 = sbr.rel (%p205) target = $region12
      $region11: #{protonet_forward_pallas.1} parent=5 // pred_region
        %s209 = ssub.s32 %s17, 1
        // Predicated region
        $region13: #{protonet_forward_pallas.1} parent=11 // pred_check
          %p210 = pneg %p64
        $region14: #{protonet_forward_pallas.1} parent=11 // pred_check_branch
          %212 = sbr.rel (%p210) target = $region16
        $region15: #{protonet_forward_pallas.1} parent=11 // pred_region
          _
        $region16: #{protonet_forward_pallas.1} parent=11 // pred_fallthru
          _
        // Predicated region
        $region17: #{protonet_forward_pallas.1} parent=11 // pred_check
          %p213 = pneg %p85
        $region18: #{protonet_forward_pallas.1} parent=11 // pred_check_branch
          %215 = sbr.rel (%p213) target = $region20
        $region19: #{protonet_forward_pallas.1} parent=11 // pred_region
          _
        $region20: #{protonet_forward_pallas.1} parent=11 // pred_fallthru
          _
        // Predicated region
        $region21: #{protonet_forward_pallas.1} parent=11 // pred_check
          %p216 = pneg %p106
        $region22: #{protonet_forward_pallas.1} parent=11 // pred_check_branch
          %218 = sbr.rel (%p216) target = $region24
        $region23: #{protonet_forward_pallas.1} parent=11 // pred_region
          _
        $region24: #{protonet_forward_pallas.1} parent=11 // pred_fallthru
          _
        // Predicated region
        $region25: #{protonet_forward_pallas.1} parent=11 // pred_check
          %p219 = pneg %p127
        $region26: #{protonet_forward_pallas.1} parent=11 // pred_check_branch
          %221 = sbr.rel (%p219) target = $region28
        $region27: #{protonet_forward_pallas.1} parent=11 // pred_region
          %s223 = ssub.s32 4608, 4608
          %224 = vsyncadd [#allocation11], %s223
          %s225 = sshll.u32 [#allocation10], 4
          %s226 = int_to_ptr.vmem [resolvable:$true] %s225
          %231 = dma.hbm_to_vmem [thread:$0]  %s4, 4608, %s226, [#allocation11], 128, 128, 8
        $region28: #{protonet_forward_pallas.1} parent=11 // pred_fallthru
          _
        // Predicated region
        $region29: #{protonet_forward_pallas.1} parent=11 // pred_check
          %p232 = pneg %p148
        $region30: #{protonet_forward_pallas.1} parent=11 // pred_check_branch
          %234 = sbr.rel (%p232) target = $region32
        $region31: #{protonet_forward_pallas.1} parent=11 // pred_region
          _
        $region32: #{protonet_forward_pallas.1} parent=11 // pred_fallthru
          _
        // Predicated region
        $region33: #{protonet_forward_pallas.1} parent=11 // pred_check
          %p235 = pneg %p169
        $region34: #{protonet_forward_pallas.1} parent=11 // pred_check_branch
          %237 = sbr.rel (%p235) target = $region36
        $region35: #{protonet_forward_pallas.1} parent=11 // pred_region
          _
        $region36: #{protonet_forward_pallas.1} parent=11 // pred_fallthru
          _
      $region12: #{protonet_forward_pallas.1} parent=5 // pred_fallthru
        _
      %p238 = scmp.lt.s32.totalorder %s17, 2
      // Predicated region
      $region37: #{protonet_forward_pallas.1} parent=5 // pred_check
        %p239 = pneg %p238
      $region38: #{protonet_forward_pallas.1} parent=5 // pred_check_branch
        %241 = sbr.rel (%p239) target = $region40
      $region39: #{protonet_forward_pallas.1} parent=5 // pred_region
        // Predicated region
        $region41: #{protonet_forward_pallas.1} parent=39 // pred_check
          %p242 = pneg %p37
        $region42: #{protonet_forward_pallas.1} parent=39 // pred_check_branch
          %244 = sbr.rel (%p242) target = $region44
        $region43: #{protonet_forward_pallas.1} parent=39 // pred_region
          %p245 = scmp.lt.s32.totalorder %s17, 1
          %s246 = scalar_select %p245, %s17, 1
          %s247 = smul.addr %s246, 32
          %s248 = smul.addr %s247, 8
          %s249 = scalar_lea.vmem %s0, %s248
        $region44: #{protonet_forward_pallas.1} parent=39 // pred_fallthru
          _
      $region40: #{protonet_forward_pallas.1} parent=5 // pred_fallthru
        _
      %p250 = scmp.le.s32.totalorder 1, %s17
      %p251 = scmp.lt.s32.totalorder %s17, 3
      %p252 = pnand %p250, %p251
      %p253 = pneg %p252
      // Predicated region
      $region45: #{protonet_forward_pallas.1} parent=5 // pred_check
        _
      $region46: #{protonet_forward_pallas.1} parent=5 // pred_check_branch
        %255 = sbr.rel (%p252) target = $region48
      $region47: #{protonet_forward_pallas.1} parent=5 // pred_region
        %s256 = ssub.s32 %s17, 1
        // Predicated region
        $region49: #{protonet_forward_pallas.1} parent=47 // pred_check
          %p257 = pneg %p127
        $region50: #{protonet_forward_pallas.1} parent=47 // pred_check_branch
          %259 = sbr.rel (%p257) target = $region52
        $region51: #{protonet_forward_pallas.1} parent=47 // pred_region
          %260 = dma.done [#allocation11], 4608
        $region52: #{protonet_forward_pallas.1} parent=47 // pred_fallthru
          _
        %p261 = scmp.lt.s32.totalorder %s22, 1
        %s262 = scalar_select %p261, %s22, 1
        %s263 = smul.addr %s262, 32
        %s264 = smul.addr %s263, 8
        %s265 = scalar_lea.vmem %s0, %s264
        %p266 = pneg %p43
        %p267 = pneg %p40
        %p268 = pneg %p64
        %p269 = pneg %p61
        %p270 = pneg %p85
        %p271 = pneg %p82
        %p272 = pneg %p106
        %p273 = pneg %p103
        %p274 = pneg %p127
        %p275 = pneg %p124
        %p276 = pneg %p148
        %p277 = pneg %p145
        %p278 = pneg %p169
        %p279 = pneg %p166
        %p280 = pneg %p195
        %p281 = pneg %p192
        %s282 = sand.u32 %s182, 1
        %s283 = scalar_lea.sflag [#allocation12], %s282
        %s284 = sand.u32 %s182, 1
        %s285 = scalar_lea.vmem [#allocation13], %s284
        %p286 = scmp.lt.s32.totalorder %s22, 1
        %s287 = scalar_select %p286, %s22, 1
        %s288 = smul.addr %s287, 32
        %s289 = smul.addr %s288, 8
        %s290 = scalar_lea.vmem %s0, %s289
        %vm291 = vcmask 23552
        %292 = vst.msk [vmem:[#allocation2] sm:$0xff] %vm291, 0.0
        %293 = vst.msk [vmem:[#allocation2 + $0x8] sm:$0xff] %vm291, 0.0
        %294 = vst.msk [vmem:[#allocation2 + $0x10] sm:$0xff] %vm291, 0.0
        %295 = vst.msk [vmem:[#allocation2 + $0x18] sm:$0xff] %vm291, 0.0
        %296 = vst.msk [vmem:[#allocation2 + $0x20] sm:$0xff] %vm291, 0.0
        %297 = vst.msk [vmem:[#allocation2 + $0x28] sm:$0xff] %vm291, 0.0
        %298 = vst.msk [vmem:[#allocation2 + $0x30] sm:$0xff] %vm291, 0.0
        %299 = vst.msk [vmem:[#allocation2 + $0x38] sm:$0xff] %vm291, 0.0
        %300 = vst.msk [vmem:[#allocation2 + $0x40] sm:$0xff] %vm291, 0.0
        %301 = vst.msk [vmem:[#allocation2 + $0x48] sm:$0xff] %vm291, 0.0
        %302 = vst.msk [vmem:[#allocation2 + $0x50] sm:$0xff] %vm291, 0.0
        %303 = vst.msk [vmem:[#allocation2 + $0x58] sm:$0xff] %vm291, 0.0
        %304 = vst.msk [vmem:[#allocation2 + $0x60] sm:$0xff] %vm291, 0.0
        %305 = vst.msk [vmem:[#allocation2 + $0x68] sm:$0xff] %vm291, 0.0
        %306 = vst.msk [vmem:[#allocation2 + $0x70] sm:$0xff] %vm291, 0.0
        %307 = vst.msk [vmem:[#allocation2 + $0x78] sm:$0xff] %vm291, 0.0
        %308 = vst.msk [vmem:[#allocation2 + $0x80] sm:$0xff] %vm291, 0.0
        %309 = vst.msk [vmem:[#allocation2 + $0x88] sm:$0xff] %vm291, 0.0
        %310 = vst.msk [vmem:[#allocation2 + $0x90] sm:$0xff] %vm291, 0.0
        %311 = vst.msk [vmem:[#allocation2 + $0x98] sm:$0xff] %vm291, 0.0
        %312 = vst.msk [vmem:[#allocation2 + $0xa0] sm:$0xff] %vm291, 0.0
        %313 = vst.msk [vmem:[#allocation2 + $0xa8] sm:$0xff] %vm291, 0.0
        %314 = vst.msk [vmem:[#allocation2 + $0xb0] sm:$0xff] %vm291, 0.0
        %315 = vst.msk [vmem:[#allocation2 + $0xb8] sm:$0xff] %vm291, 0.0
        %316 = vst.msk [vmem:[#allocation2 + $0xc0] sm:$0xff] %vm291, 0.0
        %317 = vst.msk [vmem:[#allocation2 + $0xc8] sm:$0xff] %vm291, 0.0
        %318 = vst.msk [vmem:[#allocation2 + $0xd0] sm:$0xff] %vm291, 0.0
        %319 = vst.msk [vmem:[#allocation2 + $0xd8] sm:$0xff] %vm291, 0.0
        %320 = vst.msk [vmem:[#allocation2 + $0xe0] sm:$0xff] %vm291, 0.0
        %321 = vst.msk [vmem:[#allocation2 + $0xe8] sm:$0xff] %vm291, 0.0
        %322 = vst.msk [vmem:[#allocation2 + $0xf0] sm:$0xff] %vm291, 0.0
        %323 = vst.msk [vmem:[#allocation2 + $0xf8] sm:$0xff] %vm291, 0.0
        %324 = vst.msk [vmem:[#allocation2 + $0x100] sm:$0xff] %vm291, 0.0
        %325 = vst.msk [vmem:[#allocation2 + $0x108] sm:$0xff] %vm291, 0.0
        %326 = vst.msk [vmem:[#allocation2 + $0x110] sm:$0xff] %vm291, 0.0
        %327 = vst.msk [vmem:[#allocation2 + $0x118] sm:$0xff] %vm291, 0.0
        %328 = vst.msk [vmem:[#allocation2 + $0x120] sm:$0xff] %vm291, 0.0
        %329 = vst.msk [vmem:[#allocation2 + $0x128] sm:$0xff] %vm291, 0.0
        %330 = vst.msk [vmem:[#allocation2 + $0x130] sm:$0xff] %vm291, 0.0
        %331 = vst.msk [vmem:[#allocation2 + $0x138] sm:$0xff] %vm291, 0.0
        %vm332 = vcmask 19456
        %333 = vst.msk [vmem:[#allocation2 + $0x140] sm:$0xf] %vm332, 0.0
        %v334 = vld [vmem:[%s290] sm:$0xff]
        %v335 = vld [vmem:[%s290 + $0x8] sm:$0xff]
        %336 = vst.msk [vmem:[#allocation2 + $0x13] sm:$0xff] %vm291, %v334
        %337 = vst.msk [vmem:[#allocation2 + $0x1b] sm:$0xff] %vm291, %v335
        %v338 = vld [vmem:[%s290 + $0x10] sm:$0xff]
        %v339 = vld [vmem:[%s290 + $0x18] sm:$0xff]
        %340 = vst.msk [vmem:[#allocation2 + $0x25] sm:$0xff] %vm291, %v338
        %341 = vst.msk [vmem:[#allocation2 + $0x2d] sm:$0xff] %vm291, %v339
        %v342 = vld [vmem:[%s290 + $0x20] sm:$0xff]
        %v343 = vld [vmem:[%s290 + $0x28] sm:$0xff]
        %344 = vst.msk [vmem:[#allocation2 + $0x37] sm:$0xff] %vm291, %v342
        %345 = vst.msk [vmem:[#allocation2 + $0x3f] sm:$0xff] %vm291, %v343
        %v346 = vld [vmem:[%s290 + $0x30] sm:$0xff]
        %v347 = vld [vmem:[%s290 + $0x38] sm:$0xff]
        %348 = vst.msk [vmem:[#allocation2 + $0x49] sm:$0xff] %vm291, %v346
        %349 = vst.msk [vmem:[#allocation2 + $0x51] sm:$0xff] %vm291, %v347
        %v350 = vld [vmem:[%s290 + $0x40] sm:$0xff]
        %v351 = vld [vmem:[%s290 + $0x48] sm:$0xff]
        %352 = vst.msk [vmem:[#allocation2 + $0x5b] sm:$0xff] %vm291, %v350
        %353 = vst.msk [vmem:[#allocation2 + $0x63] sm:$0xff] %vm291, %v351
        %v354 = vld [vmem:[%s290 + $0x50] sm:$0xff]
        %v355 = vld [vmem:[%s290 + $0x58] sm:$0xff]
        %356 = vst.msk [vmem:[#allocation2 + $0x6d] sm:$0xff] %vm291, %v354
        %357 = vst.msk [vmem:[#allocation2 + $0x75] sm:$0xff] %vm291, %v355
        %v358 = vld [vmem:[%s290 + $0x60] sm:$0xff]
        %v359 = vld [vmem:[%s290 + $0x68] sm:$0xff]
        %360 = vst.msk [vmem:[#allocation2 + $0x7f] sm:$0xff] %vm291, %v358
        %361 = vst.msk [vmem:[#allocation2 + $0x87] sm:$0xff] %vm291, %v359
        %v362 = vld [vmem:[%s290 + $0x70] sm:$0xff]
        %v363 = vld [vmem:[%s290 + $0x78] sm:$0xff]
        %364 = vst.msk [vmem:[#allocation2 + $0x91] sm:$0xff] %vm291, %v362
        %365 = vst.msk [vmem:[#allocation2 + $0x99] sm:$0xff] %vm291, %v363
        %v366 = vld [vmem:[%s290 + $0x80] sm:$0xff]
        %v367 = vld [vmem:[%s290 + $0x88] sm:$0xff]
        %368 = vst.msk [vmem:[#allocation2 + $0xa3] sm:$0xff] %vm291, %v366
        %369 = vst.msk [vmem:[#allocation2 + $0xab] sm:$0xff] %vm291, %v367
        %v370 = vld [vmem:[%s290 + $0x90] sm:$0xff]
        %v371 = vld [vmem:[%s290 + $0x98] sm:$0xff]
        %372 = vst.msk [vmem:[#allocation2 + $0xb5] sm:$0xff] %vm291, %v370
        %373 = vst.msk [vmem:[#allocation2 + $0xbd] sm:$0xff] %vm291, %v371
        %v374 = vld [vmem:[%s290 + $0xa0] sm:$0xff]
        %v375 = vld [vmem:[%s290 + $0xa8] sm:$0xff]
        %376 = vst.msk [vmem:[#allocation2 + $0xc7] sm:$0xff] %vm291, %v374
        %377 = vst.msk [vmem:[#allocation2 + $0xcf] sm:$0xff] %vm291, %v375
        %v378 = vld [vmem:[%s290 + $0xb0] sm:$0xff]
        %v379 = vld [vmem:[%s290 + $0xb8] sm:$0xff]
        %380 = vst.msk [vmem:[#allocation2 + $0xd9] sm:$0xff] %vm291, %v378
        %381 = vst.msk [vmem:[#allocation2 + $0xe1] sm:$0xff] %vm291, %v379
        %v382 = vld [vmem:[%s290 + $0xc0] sm:$0xff]
        %v383 = vld [vmem:[%s290 + $0xc8] sm:$0xff]
        %384 = vst.msk [vmem:[#allocation2 + $0xeb] sm:$0xff] %vm291, %v382
        %385 = vst.msk [vmem:[#allocation2 + $0xf3] sm:$0xff] %vm291, %v383
        %v386 = vld [vmem:[%s290 + $0xd0] sm:$0xff]
        %v387 = vld [vmem:[%s290 + $0xd8] sm:$0xff]
        %388 = vst.msk [vmem:[#allocation2 + $0xfd] sm:$0xff] %vm291, %v386
        %389 = vst.msk [vmem:[#allocation2 + $0x105] sm:$0xff] %vm291, %v387
        %v390 = vld [vmem:[%s290 + $0xe0] sm:$0xff]
        %v391 = vld [vmem:[%s290 + $0xe8] sm:$0xff]
        %392 = vst.msk [vmem:[#allocation2 + $0x10f] sm:$0xff] %vm291, %v390
        %393 = vst.msk [vmem:[#allocation2 + $0x117] sm:$0xff] %vm291, %v391
        %v394 = vld [vmem:[%s290 + $0xf0] sm:$0xff]
        %v395 = vld [vmem:[%s290 + $0xf8] sm:$0xff]
        %396 = vst.msk [vmem:[#allocation2 + $0x121] sm:$0xff] %vm291, %v394
        %397 = vst.msk [vmem:[#allocation2 + $0x129] sm:$0xff] %vm291, %v395
        %v398 = vld [vmem:[%s5] sm:$0x1]
        %s399 = scalar_lea.vmem %s5, 1
        %v400 = vld [vmem:[%s399] sm:$0x1]
        %s401 = scalar_lea.vmem %s5, 2
        %v402 = vld [vmem:[%s401] sm:$0x1]
        %s403 = scalar_lea.vmem %s5, 3
        %v404 = vld [vmem:[%s403] sm:$0x1]
        %v405 = vld [vmem:[%s6] sm:$0x1]
        %s406 = scalar_lea.vmem %s6, 1
        %v407 = vld [vmem:[%s406] sm:$0x1]
        %s408 = scalar_lea.vmem %s6, 2
        %v409 = vld [vmem:[%s408] sm:$0x1]
        %s410 = scalar_lea.vmem %s6, 3
        %v411 = vld [vmem:[%s410] sm:$0x1]
        %vm412 = vcmask 261120
        %413 = vst.msk [vmem:[#allocation3] sm:$0xff] %vm412, 0.0
        %414 = vst.msk [vmem:[#allocation3 + $0x8] sm:$0xff] %vm412, 0.0
        %415 = vst.msk [vmem:[#allocation3 + $0x10] sm:$0xff] %vm412, 0.0
        %416 = vst.msk [vmem:[#allocation3 + $0x18] sm:$0xff] %vm412, 0.0
        %417 = vst.msk [vmem:[#allocation3 + $0x20] sm:$0xff] %vm412, 0.0
        %418 = vst.msk [vmem:[#allocation3 + $0x28] sm:$0xff] %vm412, 0.0
        %419 = vst.msk [vmem:[#allocation3 + $0x30] sm:$0xff] %vm412, 0.0
        %420 = vst.msk [vmem:[#allocation3 + $0x38] sm:$0xff] %vm412, 0.0
        %421 = vst.msk [vmem:[#allocation3 + $0x40] sm:$0xff] %vm412, 0.0
        %422 = vst.msk [vmem:[#allocation3 + $0x48] sm:$0xff] %vm412, 0.0
        %423 = vst.msk [vmem:[#allocation3 + $0x50] sm:$0xff] %vm412, 0.0
        %424 = vst.msk [vmem:[#allocation3 + $0x58] sm:$0xff] %vm412, 0.0
        %vm425 = vcmask 257024
        %426 = vst.msk [vmem:[#allocation3 + $0x60] sm:$0xf] %vm425, 0.0
        %v427 = vld [vmem:[#allocation2] sm:$0xff]
        %v428 = vld [vmem:[#allocation2 + $0x8] sm:$0xff]
        %v429 = vld [vmem:[#allocation2 + $0x10] sm:$0xff]
        %v430 = vld [vmem:[#allocation2 + $0x18] sm:$0xff]
        %v431 = vld [vmem:[#allocation2 + $0x20] sm:$0xff]
        %v432 = vld [vmem:[#allocation2 + $0x28] sm:$0xff]
        %v433 = vld [vmem:[#allocation2 + $0x30] sm:$0xff]
        %v434 = vld [vmem:[#allocation2 + $0x38] sm:$0xff]
        %v435 = vld [vmem:[#allocation2 + $0x40] sm:$0xff]
        %v436 = vld [vmem:[#allocation2 + $0x48] sm:$0xff]
        %v437 = vld [vmem:[#allocation2 + $0x50] sm:$0xff]
        %v438 = vld [vmem:[#allocation2 + $0x58] sm:$0xff]
        %v439 = vld [vmem:[#allocation2 + $0x60] sm:$0xff]
        %v440 = vld [vmem:[#allocation2 + $0x68] sm:$0xff]
        %v441 = vld [vmem:[#allocation2 + $0x70] sm:$0xff]
        %v442 = vld [vmem:[#allocation2 + $0x78] sm:$0xff]
        %v443 = vld [vmem:[#allocation2 + $0x80] sm:$0xff]
        %v444 = vld [vmem:[#allocation2 + $0x88] sm:$0xff]
        %v445 = vld [vmem:[#allocation2 + $0x90] sm:$0xff]
        %v446 = vld [vmem:[#allocation2 + $0x98] sm:$0xff]
        %v447 = vld [vmem:[#allocation2 + $0xa0] sm:$0xff]
        %v448 = vld [vmem:[#allocation2 + $0xa8] sm:$0xff]
        %v449 = vld [vmem:[#allocation2 + $0xb0] sm:$0xff]
        %v450 = vld [vmem:[#allocation2 + $0xb8] sm:$0xff]
        %v451 = vld [vmem:[#allocation2 + $0xc0] sm:$0xff]
        %v452 = vld [vmem:[#allocation2 + $0xc8] sm:$0xff]
        %v453 = vld [vmem:[#allocation2 + $0xd0] sm:$0xff]
        %v454 = vld [vmem:[#allocation2 + $0xd8] sm:$0xff]
        %v455 = vld [vmem:[#allocation2 + $0xe0] sm:$0xff]
        %v456 = vld [vmem:[#allocation2 + $0xe8] sm:$0xff]
        %v457 = vld [vmem:[#allocation2 + $0xf0] sm:$0xff]
        %v458 = vld [vmem:[#allocation2 + $0xf8] sm:$0xff]
        %v459 = vld [vmem:[#allocation2 + $0x100] sm:$0xff]
        %v460 = vld [vmem:[#allocation2 + $0x108] sm:$0xff]
        %v461 = vld [vmem:[#allocation2 + $0x110] sm:$0xff]
        %v462 = vld [vmem:[#allocation2 + $0x118] sm:$0x3f]
        %v463 = vld [vmem:[%s1] sm:$0x7]
        %v465 = vsel %vm291, %v427, 0
        %v468 = vsel %vm291, %v428, 0
        %v471 = vsel %vm291, %v429, 0
        %v474 = vsel %vm291, %v430, 0
        %v477 = vsel %vm291, %v431, 0
        %v480 = vsel %vm291, %v432, 0
        %v483 = vsel %vm291, %v433, 0
        %v486 = vsel %vm291, %v434, 0
        %v489 = vsel %vm291, %v435, 0
        %v492 = vsel %vm291, %v436, 0
        %v495 = vsel %vm291, %v437, 0
        %v498 = vsel %vm291, %v438, 0
        %v501 = vsel %vm291, %v439, 0
        %v504 = vsel %vm291, %v440, 0
        %v507 = vsel %vm291, %v441, 0
        %v510 = vsel %vm291, %v442, 0
        %v513 = vsel %vm291, %v443, 0
        %v516 = vsel %vm291, %v444, 0
        %v519 = vsel %vm291, %v445, 0
        %v522 = vsel %vm291, %v446, 0
        %v525 = vsel %vm291, %v447, 0
        %v528 = vsel %vm291, %v448, 0
        %v531 = vsel %vm291, %v449, 0
        %v534 = vsel %vm291, %v450, 0
        %v537 = vsel %vm291, %v451, 0
        %v540 = vsel %vm291, %v452, 0
        %v543 = vsel %vm291, %v453, 0
        %v546 = vsel %vm291, %v454, 0
        %v549 = vsel %vm291, %v455, 0
        %v552 = vsel %vm291, %v456, 0
        %v555 = vsel %vm291, %v457, 0
        %v558 = vsel %vm291, %v458, 0
        %v561 = vsel %vm291, %v459, 0
        %v564 = vsel %vm291, %v460, 0
        %v567 = vsel %vm291, %v461, 0
        %v570 = vsel %vm291, %v462, 0
        %vm572 = vcmask 1042432
        %v574 = vsel %vm572, %v463, 0
        %576 = vmatprep.subr.mxu0 0.0
        %577 = vmatpush1.msra.mxu0 0.0
        %578 = vmatprep.subr.mxu0 0.0
        %579 = vmatpush1.msra.mxu0 0.0
        %580 = vmatprep.subr.mxu0 0.0
        %581 = vmatpush1.msra.mxu0 0.0
        %582 = vmatprep.subr.mxu0 0.0
        %583 = vmatpush1.msra.mxu0 0.0
        %584 = vmatprep.subr.mxu0 0.0
        %585 = vmatpush1.msra.mxu0 0.0
        %586 = vmatprep.subr.mxu0 0.0
        %587 = vmatpush1.msra.mxu0 0.0
        %588 = vmatprep.subr.mxu0 0.0
        %589 = vmatpush1.msra.mxu0 0.0
        %590 = vmatprep.subr.mxu0 0.0
        %591 = vmatpush1.msra.mxu0 0.0
        %592 = vmatprep.subr.mxu0 0.0
        %593 = vmatpush1.msra.mxu0 0.0
        %594 = vmatprep.subr.mxu0 0.0
        %595 = vmatpush1.msra.mxu0 0.0
        %596 = vmatprep.subr.mxu0 0.0
        %597 = vmatpush1.msra.mxu0 0.0
        %598 = vmatprep.subr.mxu0 0.0
        %599 = vmatpush1.msra.mxu0 0.0
        %600 = vmatprep.subr.mxu0 0.0
        %601 = vmatpush1.msra.mxu0 0.0
        %602 = vmatprep.subr.mxu0 0.0
        %603 = vmatpush1.msra.mxu0 0.0
        %604 = vmatprep.subr.mxu0 0.0
        %605 = vmatpush1.msra.mxu0 0.0
        %606 = vmatprep.subr.mxu0 0.0
        %607 = vmatpush1.msra.mxu0 %v574
        %608 = vmatprep.subr.mxu0 0.0
        %609 = vmatpush2.msra.mxu0 0.0
        %610 = vmatprep.subr.mxu0 0.0
        %611 = vmatpush2.msra.mxu0 0.0
        %612 = vmatprep.subr.mxu0 0.0
        %613 = vmatpush2.msra.mxu0 0.0
        %614 = vmatprep.subr.mxu0 0.0
        %615 = vmatpush2.msra.mxu0 0.0
        %616 = vmatprep.subr.mxu0 0.0
        %617 = vmatpush2.msra.mxu0 0.0
        %618 = vmatprep.subr.mxu0 0.0
        %619 = vmatpush2.msra.mxu0 0.0
        %620 = vmatprep.subr.mxu0 0.0
        %621 = vmatpush2.msra.mxu0 0.0
        %622 = vmatprep.subr.mxu0 0.0
        %623 = vmatpush2.msra.mxu0 0.0
        %624 = vmatprep.subr.mxu0 0.0
        %625 = vmatpush2.msra.mxu0 0.0
        %626 = vmatprep.subr.mxu0 0.0
        %627 = vmatpush2.msra.mxu0 0.0
        %628 = vmatprep.subr.mxu0 0.0
        %629 = vmatpush2.msra.mxu0 0.0
        %630 = vmatprep.subr.mxu0 0.0
        %631 = vmatpush2.msra.mxu0 0.0
        %632 = vmatprep.subr.mxu0 0.0
        %633 = vmatpush2.msra.mxu0 0.0
        %634 = vmatprep.subr.mxu0 0.0
        %635 = vmatpush2.msra.mxu0 0.0
        %636 = vmatprep.subr.mxu0 0.0
        %637 = vmatpush2.msra.mxu0 0.0
        %638 = vmatprep.subr.mxu0 0.0
        %639 = vmatpush2.msra.mxu0 0.0
        %640 = vmatprep.mubr.f32.mxu0 0.0
        %641 = vmatmul.mubr.f32.gmra.mxu0 %v465
        %v642 = vpop.f32.mrf.mxu0
        %v643 = vadd.f32 0.0, %v642
        %v644 = vpop.f32.mrf.mxu0
        %645 = vmatprep.mubr.f32.mxu0 0.0
        %646 = vmatmul.mubr.f32.gmra.mxu0 %v468
        %v647 = vpop.f32.mrf.mxu0
        %v648 = vadd.f32 0.0, %v647
        %v649 = vpop.f32.mrf.mxu0
        %650 = vmatprep.mubr.f32.mxu0 0.0
        %651 = vmatmul.mubr.f32.gmra.mxu0 %v471
        %v652 = vpop.f32.mrf.mxu0
        %v653 = vadd.f32 0.0, %v652
        %v654 = vpop.f32.mrf.mxu0
        %655 = vmatprep.mubr.f32.mxu0 0.0
        %656 = vmatmul.mubr.f32.gmra.mxu0 %v474
        %v657 = vpop.f32.mrf.mxu0
        %v658 = vadd.f32 0.0, %v657
        %v659 = vpop.f32.mrf.mxu0
        %660 = vmatprep.mubr.f32.mxu0 0.0
        %661 = vmatmul.mubr.f32.gmra.mxu0 %v477
        %v662 = vpop.f32.mrf.mxu0
        %v663 = vadd.f32 0.0, %v662
        %v664 = vpop.f32.mrf.mxu0
        %665 = vmatprep.mubr.f32.mxu0 0.0
        %666 = vmatmul.mubr.f32.gmra.mxu0 %v480
        %v667 = vpop.f32.mrf.mxu0
        %v668 = vadd.f32 0.0, %v667
        %v669 = vpop.f32.mrf.mxu0
        %670 = vmatprep.mubr.f32.mxu0 0.0
        %671 = vmatmul.mubr.f32.gmra.mxu0 %v483
        %v672 = vpop.f32.mrf.mxu0
        %v673 = vadd.f32 0.0, %v672
        %v674 = vpop.f32.mrf.mxu0
        %675 = vmatprep.mubr.f32.mxu0 0.0
        %676 = vmatmul.mubr.f32.gmra.mxu0 %v486
        %v677 = vpop.f32.mrf.mxu0
        %v678 = vadd.f32 0.0, %v677
        %v679 = vpop.f32.mrf.mxu0
        %680 = vmatprep.mubr.f32.mxu0 0.0
        %681 = vmatmul.mubr.f32.gmra.mxu0 %v489
        %v682 = vpop.f32.mrf.mxu0
        %v683 = vadd.f32 0.0, %v682
        %v684 = vpop.f32.mrf.mxu0
        %685 = vmatprep.mubr.f32.mxu0 0.0
        %686 = vmatmul.mubr.f32.gmra.mxu0 %v492
        %v687 = vpop.f32.mrf.mxu0
        %v688 = vadd.f32 0.0, %v687
        %v689 = vpop.f32.mrf.mxu0
        %690 = vmatprep.mubr.f32.mxu0 0.0
        %691 = vmatmul.mubr.f32.gmra.mxu0 %v495
        %v692 = vpop.f32.mrf.mxu0
        %v693 = vadd.f32 0.0, %v692
        %v694 = vpop.f32.mrf.mxu0
        %695 = vmatprep.mubr.f32.mxu0 0.0
        %696 = vmatmul.mubr.f32.gmra.mxu0 %v498
        %v697 = vpop.f32.mrf.mxu0
        %v698 = vadd.f32 0.0, %v697
        %v699 = vpop.f32.mrf.mxu0
        %700 = vmatprep.mubr.f32.mxu0 0.0
        %701 = vmatmul.mubr.f32.gmra.mxu0 %v501
        %v702 = vpop.f32.mrf.mxu0
        %v703 = vadd.f32 0.0, %v702
        %v704 = vpop.f32.mrf.mxu0
        %705 = vmatprep.mubr.f32.mxu0 0.0
        %706 = vmatmul.mubr.f32.gmra.mxu0 %v504
        %v707 = vpop.f32.mrf.mxu0
        %v708 = vadd.f32 0.0, %v707
        %v709 = vpop.f32.mrf.mxu0
        %710 = vmatprep.mubr.f32.mxu0 0.0
        %711 = vmatmul.mubr.f32.gmra.mxu0 %v507
        %v712 = vpop.f32.mrf.mxu0
        %v713 = vadd.f32 0.0, %v712
        %v714 = vpop.f32.mrf.mxu0
        %715 = vmatprep.mubr.f32.mxu0 0.0
        %716 = vmatmul.mubr.f32.gmra.mxu0 %v510
        %v717 = vpop.f32.mrf.mxu0
        %v718 = vadd.f32 0.0, %v717
        %v719 = vpop.f32.mrf.mxu0
        %720 = vmatprep.mubr.f32.mxu0 0.0
        %721 = vmatmul.mubr.f32.gmra.mxu0 %v513
        %v722 = vpop.f32.mrf.mxu0
        %v723 = vadd.f32 0.0, %v722
        %v724 = vpop.f32.mrf.mxu0
        %725 = vmatprep.mubr.f32.mxu0 0.0
        %726 = vmatmul.mubr.f32.gmra.mxu0 %v516
        %v727 = vpop.f32.mrf.mxu0
        %v728 = vadd.f32 0.0, %v727
        %v729 = vpop.f32.mrf.mxu0
        %730 = vmatprep.mubr.f32.mxu0 0.0
        %731 = vmatmul.mubr.f32.gmra.mxu0 %v519
        %v732 = vpop.f32.mrf.mxu0
        %v733 = vadd.f32 0.0, %v732
        %v734 = vpop.f32.mrf.mxu0
        %735 = vmatprep.mubr.f32.mxu0 0.0
        %736 = vmatmul.mubr.f32.gmra.mxu0 %v522
        %v737 = vpop.f32.mrf.mxu0
        %v738 = vadd.f32 0.0, %v737
        %v739 = vpop.f32.mrf.mxu0
        %740 = vmatprep.mubr.f32.mxu0 0.0
        %741 = vmatmul.mubr.f32.gmra.mxu0 %v525
        %v742 = vpop.f32.mrf.mxu0
        %v743 = vadd.f32 0.0, %v742
        %v744 = vpop.f32.mrf.mxu0
        %745 = vmatprep.mubr.f32.mxu0 0.0
        %746 = vmatmul.mubr.f32.gmra.mxu0 %v528
        %v747 = vpop.f32.mrf.mxu0
        %v748 = vadd.f32 0.0, %v747
        %v749 = vpop.f32.mrf.mxu0
        %750 = vmatprep.mubr.f32.mxu0 0.0
        %751 = vmatmul.mubr.f32.gmra.mxu0 %v531
        %v752 = vpop.f32.mrf.mxu0
        %v753 = vadd.f32 0.0, %v752
        %v754 = vpop.f32.mrf.mxu0
        %755 = vmatprep.mubr.f32.mxu0 0.0
        %756 = vmatmul.mubr.f32.gmra.mxu0 %v534
        %v757 = vpop.f32.mrf.mxu0
        %v758 = vadd.f32 0.0, %v757
        %v759 = vpop.f32.mrf.mxu0
        %760 = vmatprep.mubr.f32.mxu0 0.0
        %761 = vmatmul.mubr.f32.gmra.mxu0 %v537
        %v762 = vpop.f32.mrf.mxu0
        %v763 = vadd.f32 0.0, %v762
        %v764 = vpop.f32.mrf.mxu0
        %765 = vmatprep.mubr.f32.mxu0 0.0
        %766 = vmatmul.mubr.f32.gmra.mxu0 %v540
        %v767 = vpop.f32.mrf.mxu0
        %v768 = vadd.f32 0.0, %v767
        %v769 = vpop.f32.mrf.mxu0
        %770 = vmatprep.mubr.f32.mxu0 0.0
        %771 = vmatmul.mubr.f32.gmra.mxu0 %v543
        %v772 = vpop.f32.mrf.mxu0
        %v773 = vadd.f32 0.0, %v772
        %v774 = vpop.f32.mrf.mxu0
        %775 = vmatprep.mubr.f32.mxu0 0.0
        %776 = vmatmul.mubr.f32.gmra.mxu0 %v546
        %v777 = vpop.f32.mrf.mxu0
        %v778 = vadd.f32 0.0, %v777
        %v779 = vpop.f32.mrf.mxu0
        %780 = vmatprep.mubr.f32.mxu0 0.0
        %781 = vmatmul.mubr.f32.gmra.mxu0 %v549
        %v782 = vpop.f32.mrf.mxu0
        %v783 = vadd.f32 0.0, %v782
        %v784 = vpop.f32.mrf.mxu0
        %785 = vmatprep.mubr.f32.mxu0 0.0
        %786 = vmatmul.mubr.f32.gmra.mxu0 %v552
        %v787 = vpop.f32.mrf.mxu0
        %v788 = vadd.f32 0.0, %v787
        %v789 = vpop.f32.mrf.mxu0
        %790 = vmatprep.mubr.f32.mxu0 0.0
        %791 = vmatmul.mubr.f32.gmra.mxu0 %v555
        %v792 = vpop.f32.mrf.mxu0
        %v793 = vadd.f32 0.0, %v792
        %v794 = vpop.f32.mrf.mxu0
        %795 = vmatprep.mubr.f32.mxu0 0.0
        %796 = vmatmul.mubr.f32.gmra.mxu0 %v558
        %v797 = vpop.f32.mrf.mxu0
        %v798 = vadd.f32 0.0, %v797
        %v799 = vpop.f32.mrf.mxu0
        %800 = vmatprep.mubr.f32.mxu0 0.0
        %801 = vmatmul.mubr.f32.gmra.mxu0 %v561
        %v802 = vpop.f32.mrf.mxu0
        %v803 = vadd.f32 0.0, %v802
        %v804 = vpop.f32.mrf.mxu0
        %805 = vmatprep.mubr.f32.mxu0 0.0
        %806 = vmatmul.mubr.f32.gmra.mxu0 %v564
        %v807 = vpop.f32.mrf.mxu0
        %v808 = vadd.f32 0.0, %v807
        %v809 = vpop.f32.mrf.mxu0
        %810 = vmatprep.mubr.f32.mxu0 0.0
        %811 = vmatmul.mubr.f32.gmra.mxu0 %v567
        %v812 = vpop.f32.mrf.mxu0
        %v813 = vadd.f32 0.0, %v812
        %v814 = vpop.f32.mrf.mxu0
        %815 = vmatprep.mubr.f32.mxu0 0.0
        %816 = vmatmul.mubr.f32.gmra.mxu0 %v570
        %v817 = vpop.f32.mrf.mxu0
        %v818 = vadd.f32 0.0, %v817
        %v819 = vpop.f32.mrf.mxu0
        %820 = vdwg.mxu0
        %821 = vst.msk [vmem:[#allocation6] sm:$0xff] %vm412, %v643
        %822 = vst.msk [vmem:[#allocation6 + $0x8] sm:$0xff] %vm412, %v648
        %823 = vst.msk [vmem:[#allocation6 + $0x10] sm:$0xff] %vm412, %v653
        %824 = vst.msk [vmem:[#allocation6 + $0x18] sm:$0xff] %vm412, %v658
        %825 = vst.msk [vmem:[#allocation6 + $0x20] sm:$0xff] %vm412, %v663
        %826 = vst.msk [vmem:[#allocation6 + $0x28] sm:$0xff] %vm412, %v668
        %827 = vst.msk [vmem:[#allocation6 + $0x30] sm:$0xff] %vm412, %v673
        %828 = vst.msk [vmem:[#allocation6 + $0x38] sm:$0xff] %vm412, %v678
        %829 = vst.msk [vmem:[#allocation6 + $0x40] sm:$0xff] %vm412, %v683
        %830 = vst.msk [vmem:[#allocation6 + $0x48] sm:$0xff] %vm412, %v688
        %831 = vst.msk [vmem:[#allocation6 + $0x50] sm:$0xff] %vm412, %v693
        %832 = vst.msk [vmem:[#allocation6 + $0x58] sm:$0xff] %vm412, %v698
        %833 = vst.msk [vmem:[#allocation6 + $0x60] sm:$0xff] %vm412, %v703
        %834 = vst.msk [vmem:[#allocation6 + $0x68] sm:$0xff] %vm412, %v708
        %835 = vst.msk [vmem:[#allocation6 + $0x70] sm:$0xff] %vm412, %v713
        %836 = vst.msk [vmem:[#allocation6 + $0x78] sm:$0xff] %vm412, %v718
        %837 = vst.msk [vmem:[#allocation6 + $0x80] sm:$0xff] %vm412, %v723
        %838 = vst.msk [vmem:[#allocation6 + $0x88] sm:$0xff] %vm412, %v728
        %839 = vst.msk [vmem:[#allocation6 + $0x90] sm:$0xff] %vm412, %v733
        %840 = vst.msk [vmem:[#allocation6 + $0x98] sm:$0xff] %vm412, %v738
        %841 = vst.msk [vmem:[#allocation6 + $0xa0] sm:$0xff] %vm412, %v743
        %842 = vst.msk [vmem:[#allocation6 + $0xa8] sm:$0xff] %vm412, %v748
        %843 = vst.msk [vmem:[#allocation6 + $0xb0] sm:$0xff] %vm412, %v753
        %844 = vst.msk [vmem:[#allocation6 + $0xb8] sm:$0xff] %vm412, %v758
        %845 = vst.msk [vmem:[#allocation6 + $0xc0] sm:$0xff] %vm412, %v763
        %846 = vst.msk [vmem:[#allocation6 + $0xc8] sm:$0xff] %vm412, %v768
        %847 = vst.msk [vmem:[#allocation6 + $0xd0] sm:$0xff] %vm412, %v773
        %848 = vst.msk [vmem:[#allocation6 + $0xd8] sm:$0xff] %vm412, %v778
        %849 = vst.msk [vmem:[#allocation6 + $0xe0] sm:$0xff] %vm412, %v783
        %850 = vst.msk [vmem:[#allocation6 + $0xe8] sm:$0xff] %vm412, %v788
        %851 = vst.msk [vmem:[#allocation6 + $0xf0] sm:$0xff] %vm412, %v793
        %852 = vst.msk [vmem:[#allocation6 + $0xf8] sm:$0xff] %vm412, %v798
        %853 = vst.msk [vmem:[#allocation6 + $0x100] sm:$0xff] %vm412, %v803
        %854 = vst.msk [vmem:[#allocation6 + $0x108] sm:$0xff] %vm412, %v808
        %855 = vst.msk [vmem:[#allocation6 + $0x110] sm:$0xff] %vm412, %v813
        %vm856 = vcmask 259072
        %857 = vst.msk [vmem:[#allocation6 + $0x118] sm:$0x3f] %vm856, %v818
        %v858 = vld [vmem:[#allocation2 + $0x1] sm:$0xff]
        %v859 = vld [vmem:[#allocation2 + $0x9] sm:$0xff]
        %v860 = vld [vmem:[#allocation2 + $0x11] sm:$0xff]
        %v861 = vld [vmem:[#allocation2 + $0x19] sm:$0xff]
        %v862 = vld [vmem:[#allocation2 + $0x21] sm:$0xff]
        %v863 = vld [vmem:[#allocation2 + $0x29] sm:$0xff]
        %v864 = vld [vmem:[#allocation2 + $0x31] sm:$0xff]
        %v865 = vld [vmem:[#allocation2 + $0x39] sm:$0xff]
        %v866 = vld [vmem:[#allocation2 + $0x41] sm:$0xff]
        %v867 = vld [vmem:[#allocation2 + $0x49] sm:$0xff]
        %v868 = vld [vmem:[#allocation2 + $0x51] sm:$0xff]
        %v869 = vld [vmem:[#allocation2 + $0x59] sm:$0xff]
        %v870 = vld [vmem:[#allocation2 + $0x61] sm:$0xff]
        %v871 = vld [vmem:[#allocation2 + $0x69] sm:$0xff]
        %v872 = vld [vmem:[#allocation2 + $0x71] sm:$0xff]
        %v873 = vld [vmem:[#allocation2 + $0x79] sm:$0xff]
        %v874 = vld [vmem:[#allocation2 + $0x81] sm:$0xff]
        %v875 = vld [vmem:[#allocation2 + $0x89] sm:$0xff]
        %v876 = vld [vmem:[#allocation2 + $0x91] sm:$0xff]
        %v877 = vld [vmem:[#allocation2 + $0x99] sm:$0xff]
        %v878 = vld [vmem:[#allocation2 + $0xa1] sm:$0xff]
        %v879 = vld [vmem:[#allocation2 + $0xa9] sm:$0xff]
        %v880 = vld [vmem:[#allocation2 + $0xb1] sm:$0xff]
        %v881 = vld [vmem:[#allocation2 + $0xb9] sm:$0xff]
        %v882 = vld [vmem:[#allocation2 + $0xc1] sm:$0xff]
        %v883 = vld [vmem:[#allocation2 + $0xc9] sm:$0xff]
        %v884 = vld [vmem:[#allocation2 + $0xd1] sm:$0xff]
        %v885 = vld [vmem:[#allocation2 + $0xd9] sm:$0xff]
        %v886 = vld [vmem:[#allocation2 + $0xe1] sm:$0xff]
        %v887 = vld [vmem:[#allocation2 + $0xe9] sm:$0xff]
        %v888 = vld [vmem:[#allocation2 + $0xf1] sm:$0xff]
        %v889 = vld [vmem:[#allocation2 + $0xf9] sm:$0xff]
        %v890 = vld [vmem:[#allocation2 + $0x101] sm:$0xff]
        %v891 = vld [vmem:[#allocation2 + $0x109] sm:$0xff]
        %v892 = vld [vmem:[#allocation2 + $0x111] sm:$0xff]
        %v893 = vld [vmem:[#allocation2 + $0x119] sm:$0x3f]
        %s894 = scalar_lea.vmem %s1, 4
        %v895 = vld [vmem:[%s894] sm:$0x7]
        %v897 = vsel %vm291, %v858, 0
        %v900 = vsel %vm291, %v859, 0
        %v903 = vsel %vm291, %v860, 0
        %v906 = vsel %vm291, %v861, 0
        %v909 = vsel %vm291, %v862, 0
        %v912 = vsel %vm291, %v863, 0
        %v915 = vsel %vm291, %v864, 0
        %v918 = vsel %vm291, %v865, 0
        %v921 = vsel %vm291, %v866, 0
        %v924 = vsel %vm291, %v867, 0
        %v927 = vsel %vm291, %v868, 0
        %v930 = vsel %vm291, %v869, 0
        %v933 = vsel %vm291, %v870, 0
        %v936 = vsel %vm291, %v871, 0
        %v939 = vsel %vm291, %v872, 0
        %v942 = vsel %vm291, %v873, 0
        %v945 = vsel %vm291, %v874, 0
        %v948 = vsel %vm291, %v875, 0
        %v951 = vsel %vm291, %v876, 0
        %v954 = vsel %vm291, %v877, 0
        %v957 = vsel %vm291, %v878, 0
        %v960 = vsel %vm291, %v879, 0
        %v963 = vsel %vm291, %v880, 0
        %v966 = vsel %vm291, %v881, 0
        %v969 = vsel %vm291, %v882, 0
        %v972 = vsel %vm291, %v883, 0
        %v975 = vsel %vm291, %v884, 0
        %v978 = vsel %vm291, %v885, 0
        %v981 = vsel %vm291, %v886, 0
        %v984 = vsel %vm291, %v887, 0
        %v987 = vsel %vm291, %v888, 0
        %v990 = vsel %vm291, %v889, 0
        %v993 = vsel %vm291, %v890, 0
        %v996 = vsel %vm291, %v891, 0
        %v999 = vsel %vm291, %v892, 0
        %v1002 = vsel %vm291, %v893, 0
        %v1005 = vsel %vm572, %v895, 0
        %1007 = vmatprep.subr.mxu0 0.0
        %1008 = vmatpush1.msra.mxu0 0.0
        %1009 = vmatprep.subr.mxu0 0.0
        %1010 = vmatpush1.msra.mxu0 0.0
        %1011 = vmatprep.subr.mxu0 0.0
        %1012 = vmatpush1.msra.mxu0 0.0
        %1013 = vmatprep.subr.mxu0 0.0
        %1014 = vmatpush1.msra.mxu0 0.0
        %1015 = vmatprep.subr.mxu0 0.0
        %1016 = vmatpush1.msra.mxu0 0.0
        %1017 = vmatprep.subr.mxu0 0.0
        %1018 = vmatpush1.msra.mxu0 0.0
        %1019 = vmatprep.subr.mxu0 0.0
        %1020 = vmatpush1.msra.mxu0 0.0
        %1021 = vmatprep.subr.mxu0 0.0
        %1022 = vmatpush1.msra.mxu0 0.0
        %1023 = vmatprep.subr.mxu0 0.0
        %1024 = vmatpush1.msra.mxu0 0.0
        %1025 = vmatprep.subr.mxu0 0.0
        %1026 = vmatpush1.msra.mxu0 0.0
        %1027 = vmatprep.subr.mxu0 0.0
        %1028 = vmatpush1.msra.mxu0 0.0
        %1029 = vmatprep.subr.mxu0 0.0
        %1030 = vmatpush1.msra.mxu0 0.0
        %1031 = vmatprep.subr.mxu0 0.0
        %1032 = vmatpush1.msra.mxu0 0.0
        %1033 = vmatprep.subr.mxu0 0.0
        %1034 = vmatpush1.msra.mxu0 0.0
        %1035 = vmatprep.subr.mxu0 0.0
        %1036 = vmatpush1.msra.mxu0 0.0
        %1037 = vmatprep.subr.mxu0 0.0
        %1038 = vmatpush1.msra.mxu0 %v1005
        %1039 = vmatprep.subr.mxu0 0.0
        %1040 = vmatpush2.msra.mxu0 0.0
        %1041 = vmatprep.subr.mxu0 0.0
        %1042 = vmatpush2.msra.mxu0 0.0
        %1043 = vmatprep.subr.mxu0 0.0
        %1044 = vmatpush2.msra.mxu0 0.0
        %1045 = vmatprep.subr.mxu0 0.0
        %1046 = vmatpush2.msra.mxu0 0.0
        %1047 = vmatprep.subr.mxu0 0.0
        %1048 = vmatpush2.msra.mxu0 0.0
        %1049 = vmatprep.subr.mxu0 0.0
        %1050 = vmatpush2.msra.mxu0 0.0
        %1051 = vmatprep.subr.mxu0 0.0
        %1052 = vmatpush2.msra.mxu0 0.0
        %1053 = vmatprep.subr.mxu0 0.0
        %1054 = vmatpush2.msra.mxu0 0.0
        %1055 = vmatprep.subr.mxu0 0.0
        %1056 = vmatpush2.msra.mxu0 0.0
        %1057 = vmatprep.subr.mxu0 0.0
        %1058 = vmatpush2.msra.mxu0 0.0
        %1059 = vmatprep.subr.mxu0 0.0
        %1060 = vmatpush2.msra.mxu0 0.0
        %1061 = vmatprep.subr.mxu0 0.0
        %1062 = vmatpush2.msra.mxu0 0.0
        %1063 = vmatprep.subr.mxu0 0.0
        %1064 = vmatpush2.msra.mxu0 0.0
        %1065 = vmatprep.subr.mxu0 0.0
        %1066 = vmatpush2.msra.mxu0 0.0
        %1067 = vmatprep.subr.mxu0 0.0
        %1068 = vmatpush2.msra.mxu0 0.0
        %1069 = vmatprep.subr.mxu0 0.0
        %1070 = vmatpush2.msra.mxu0 0.0
        %1071 = vmatprep.mubr.f32.mxu0 0.0
        %1072 = vmatmul.mubr.f32.gmra.mxu0 %v897
        %v1073 = vpop.f32.mrf.mxu0
        %v1074 = vadd.f32 0.0, %v1073
        %v1075 = vpop.f32.mrf.mxu0
        %1076 = vmatprep.mubr.f32.mxu0 0.0
        %1077 = vmatmul.mubr.f32.gmra.mxu0 %v900
        %v1078 = vpop.f32.mrf.mxu0
        %v1079 = vadd.f32 0.0, %v1078
        %v1080 = vpop.f32.mrf.mxu0
        %1081 = vmatprep.mubr.f32.mxu0 0.0
        %1082 = vmatmul.mubr.f32.gmra.mxu0 %v903
        %v1083 = vpop.f32.mrf.mxu0
        %v1084 = vadd.f32 0.0, %v1083
        %v1085 = vpop.f32.mrf.mxu0
        %1086 = vmatprep.mubr.f32.mxu0 0.0
        %1087 = vmatmul.mubr.f32.gmra.mxu0 %v906
        %v1088 = vpop.f32.mrf.mxu0
        %v1089 = vadd.f32 0.0, %v1088
        %v1090 = vpop.f32.mrf.mxu0
        %1091 = vmatprep.mubr.f32.mxu0 0.0
        %1092 = vmatmul.mubr.f32.gmra.mxu0 %v909
        %v1093 = vpop.f32.mrf.mxu0
        %v1094 = vadd.f32 0.0, %v1093
        %v1095 = vpop.f32.mrf.mxu0
        %1096 = vmatprep.mubr.f32.mxu0 0.0
        %1097 = vmatmul.mubr.f32.gmra.mxu0 %v912
        %v1098 = vpop.f32.mrf.mxu0
        %v1099 = vadd.f32 0.0, %v1098
        %v1100 = vpop.f32.mrf.mxu0
        %1101 = vmatprep.mubr.f32.mxu0 0.0
        %1102 = vmatmul.mubr.f32.gmra.mxu0 %v915
        %v1103 = vpop.f32.mrf.mxu0
        %v1104 = vadd.f32 0.0, %v1103
        %v1105 = vpop.f32.mrf.mxu0
        %1106 = vmatprep.mubr.f32.mxu0 0.0
        %1107 = vmatmul.mubr.f32.gmra.mxu0 %v918
        %v1108 = vpop.f32.mrf.mxu0
        %v1109 = vadd.f32 0.0, %v1108
        %v1110 = vpop.f32.mrf.mxu0
        %1111 = vmatprep.mubr.f32.mxu0 0.0
        %1112 = vmatmul.mubr.f32.gmra.mxu0 %v921
        %v1113 = vpop.f32.mrf.mxu0
        %v1114 = vadd.f32 0.0, %v1113
        %v1115 = vpop.f32.mrf.mxu0
        %1116 = vmatprep.mubr.f32.mxu0 0.0
        %1117 = vmatmul.mubr.f32.gmra.mxu0 %v924
        %v1118 = vpop.f32.mrf.mxu0
        %v1119 = vadd.f32 0.0, %v1118
        %v1120 = vpop.f32.mrf.mxu0
        %1121 = vmatprep.mubr.f32.mxu0 0.0
        %1122 = vmatmul.mubr.f32.gmra.mxu0 %v927
        %v1123 = vpop.f32.mrf.mxu0
        %v1124 = vadd.f32 0.0, %v1123
        %v1125 = vpop.f32.mrf.mxu0
        %1126 = vmatprep.mubr.f32.mxu0 0.0
        %1127 = vmatmul.mubr.f32.gmra.mxu0 %v930
        %v1128 = vpop.f32.mrf.mxu0
        %v1129 = vadd.f32 0.0, %v1128
        %v1130 = vpop.f32.mrf.mxu0
        %1131 = vmatprep.mubr.f32.mxu0 0.0
        %1132 = vmatmul.mubr.f32.gmra.mxu0 %v933
        %v1133 = vpop.f32.mrf.mxu0
        %v1134 = vadd.f32 0.0, %v1133
        %v1135 = vpop.f32.mrf.mxu0
        %1136 = vmatprep.mubr.f32.mxu0 0.0
        %1137 = vmatmul.mubr.f32.gmra.mxu0 %v936
        %v1138 = vpop.f32.mrf.mxu0
        %v1139 = vadd.f32 0.0, %v1138
        %v1140 = vpop.f32.mrf.mxu0
        %1141 = vmatprep.mubr.f32.mxu0 0.0
        %1142 = vmatmul.mubr.f32.gmra.mxu0 %v939
        %v1143 = vpop.f32.mrf.mxu0
        %v1144 = vadd.f32 0.0, %v1143
        %v1145 = vpop.f32.mrf.mxu0
        %1146 = vmatprep.mubr.f32.mxu0 0.0
        %1147 = vmatmul.mubr.f32.gmra.mxu0 %v942
        %v1148 = vpop.f32.mrf.mxu0
        %v1149 = vadd.f32 0.0, %v1148
        %v1150 = vpop.f32.mrf.mxu0
        %1151 = vmatprep.mubr.f32.mxu0 0.0
        %1152 = vmatmul.mubr.f32.gmra.mxu0 %v945
        %v1153 = vpop.f32.mrf.mxu0
        %v1154 = vadd.f32 0.0, %v1153
        %v1155 = vpop.f32.mrf.mxu0
        %1156 = vmatprep.mubr.f32.mxu0 0.0
        %1157 = vmatmul.mubr.f32.gmra.mxu0 %v948
        %v1158 = vpop.f32.mrf.mxu0
        %v1159 = vadd.f32 0.0, %v1158
        %v1160 = vpop.f32.mrf.mxu0
        %1161 = vmatprep.mubr.f32.mxu0 0.0
        %1162 = vmatmul.mubr.f32.gmra.mxu0 %v951
        %v1163 = vpop.f32.mrf.mxu0
        %v1164 = vadd.f32 0.0, %v1163
        %v1165 = vpop.f32.mrf.mxu0
        %1166 = vmatprep.mubr.f32.mxu0 0.0
        %1167 = vmatmul.mubr.f32.gmra.mxu0 %v954
        %v1168 = vpop.f32.mrf.mxu0
        %v1169 = vadd.f32 0.0, %v1168
        %v1170 = vpop.f32.mrf.mxu0
        %1171 = vmatprep.mubr.f32.mxu0 0.0
        %1172 = vmatmul.mubr.f32.gmra.mxu0 %v957
        %v1173 = vpop.f32.mrf.mxu0
        %v1174 = vadd.f32 0.0, %v1173
        %v1175 = vpop.f32.mrf.mxu0
        %1176 = vmatprep.mubr.f32.mxu0 0.0
        %1177 = vmatmul.mubr.f32.gmra.mxu0 %v960
        %v1178 = vpop.f32.mrf.mxu0
        %v1179 = vadd.f32 0.0, %v1178
        %v1180 = vpop.f32.mrf.mxu0
        %1181 = vmatprep.mubr.f32.mxu0 0.0
        %1182 = vmatmul.mubr.f32.gmra.mxu0 %v963
        %v1183 = vpop.f32.mrf.mxu0
        %v1184 = vadd.f32 0.0, %v1183
        %v1185 = vpop.f32.mrf.mxu0
        %1186 = vmatprep.mubr.f32.mxu0 0.0
        %1187 = vmatmul.mubr.f32.gmra.mxu0 %v966
        %v1188 = vpop.f32.mrf.mxu0
        %v1189 = vadd.f32 0.0, %v1188
        %v1190 = vpop.f32.mrf.mxu0
        %1191 = vmatprep.mubr.f32.mxu0 0.0
        %1192 = vmatmul.mubr.f32.gmra.mxu0 %v969
        %v1193 = vpop.f32.mrf.mxu0
        %v1194 = vadd.f32 0.0, %v1193
        %v1195 = vpop.f32.mrf.mxu0
        %1196 = vmatprep.mubr.f32.mxu0 0.0
        %1197 = vmatmul.mubr.f32.gmra.mxu0 %v972
        %v1198 = vpop.f32.mrf.mxu0
        %v1199 = vadd.f32 0.0, %v1198
        %v1200 = vpop.f32.mrf.mxu0
        %1201 = vmatprep.mubr.f32.mxu0 0.0
        %1202 = vmatmul.mubr.f32.gmra.mxu0 %v975
        %v1203 = vpop.f32.mrf.mxu0
        %v1204 = vadd.f32 0.0, %v1203
        %v1205 = vpop.f32.mrf.mxu0
        %1206 = vmatprep.mubr.f32.mxu0 0.0
        %1207 = vmatmul.mubr.f32.gmra.mxu0 %v978
        %v1208 = vpop.f32.mrf.mxu0
        %v1209 = vadd.f32 0.0, %v1208
        %v1210 = vpop.f32.mrf.mxu0
        %1211 = vmatprep.mubr.f32.mxu0 0.0
        %1212 = vmatmul.mubr.f32.gmra.mxu0 %v981
        %v1213 = vpop.f32.mrf.mxu0
        %v1214 = vadd.f32 0.0, %v1213
        %v1215 = vpop.f32.mrf.mxu0
        %1216 = vmatprep.mubr.f32.mxu0 0.0
        %1217 = vmatmul.mubr.f32.gmra.mxu0 %v984
        %v1218 = vpop.f32.mrf.mxu0
        %v1219 = vadd.f32 0.0, %v1218
        %v1220 = vpop.f32.mrf.mxu0
        %1221 = vmatprep.mubr.f32.mxu0 0.0
        %1222 = vmatmul.mubr.f32.gmra.mxu0 %v987
        %v1223 = vpop.f32.mrf.mxu0
        %v1224 = vadd.f32 0.0, %v1223
        %v1225 = vpop.f32.mrf.mxu0
        %1226 = vmatprep.mubr.f32.mxu0 0.0
        %1227 = vmatmul.mubr.f32.gmra.mxu0 %v990
        %v1228 = vpop.f32.mrf.mxu0
        %v1229 = vadd.f32 0.0, %v1228
        %v1230 = vpop.f32.mrf.mxu0
        %1231 = vmatprep.mubr.f32.mxu0 0.0
        %1232 = vmatmul.mubr.f32.gmra.mxu0 %v993
        %v1233 = vpop.f32.mrf.mxu0
        %v1234 = vadd.f32 0.0, %v1233
        %v1235 = vpop.f32.mrf.mxu0
        %1236 = vmatprep.mubr.f32.mxu0 0.0
        %1237 = vmatmul.mubr.f32.gmra.mxu0 %v996
        %v1238 = vpop.f32.mrf.mxu0
        %v1239 = vadd.f32 0.0, %v1238
        %v1240 = vpop.f32.mrf.mxu0
        %1241 = vmatprep.mubr.f32.mxu0 0.0
        %1242 = vmatmul.mubr.f32.gmra.mxu0 %v999
        %v1243 = vpop.f32.mrf.mxu0
        %v1244 = vadd.f32 0.0, %v1243
        %v1245 = vpop.f32.mrf.mxu0
        %1246 = vmatprep.mubr.f32.mxu0 0.0
        %1247 = vmatmul.mubr.f32.gmra.mxu0 %v1002
        %v1248 = vpop.f32.mrf.mxu0
        %v1249 = vadd.f32 0.0, %v1248
        %v1250 = vpop.f32.mrf.mxu0
        %1251 = vdwg.mxu0
        %v1252 = vld [vmem:[#allocation6] sm:$0xff]
        %v1253 = vld [vmem:[#allocation6 + $0x8] sm:$0xff]
        %v1254 = vld [vmem:[#allocation6 + $0x10] sm:$0xff]
        %v1255 = vld [vmem:[#allocation6 + $0x18] sm:$0xff]
        %v1256 = vld [vmem:[#allocation6 + $0x20] sm:$0xff]
        %v1257 = vld [vmem:[#allocation6 + $0x28] sm:$0xff]
        %v1258 = vld [vmem:[#allocation6 + $0x30] sm:$0xff]
        %v1259 = vld [vmem:[#allocation6 + $0x38] sm:$0xff]
        %v1260 = vld [vmem:[#allocation6 + $0x40] sm:$0xff]
        %v1261 = vld [vmem:[#allocation6 + $0x48] sm:$0xff]
        %v1262 = vld [vmem:[#allocation6 + $0x50] sm:$0xff]
        %v1263 = vld [vmem:[#allocation6 + $0x58] sm:$0xff]
        %v1264 = vld [vmem:[#allocation6 + $0x60] sm:$0xff]
        %v1265 = vld [vmem:[#allocation6 + $0x68] sm:$0xff]
        %v1266 = vld [vmem:[#allocation6 + $0x70] sm:$0xff]
        %v1267 = vld [vmem:[#allocation6 + $0x78] sm:$0xff]
        %v1268 = vld [vmem:[#allocation6 + $0x80] sm:$0xff]
        %v1269 = vld [vmem:[#allocation6 + $0x88] sm:$0xff]
        %v1270 = vld [vmem:[#allocation6 + $0x90] sm:$0xff]
        %v1271 = vld [vmem:[#allocation6 + $0x98] sm:$0xff]
        %v1272 = vld [vmem:[#allocation6 + $0xa0] sm:$0xff]
        %v1273 = vld [vmem:[#allocation6 + $0xa8] sm:$0xff]
        %v1274 = vld [vmem:[#allocation6 + $0xb0] sm:$0xff]
        %v1275 = vld [vmem:[#allocation6 + $0xb8] sm:$0xff]
        %v1276 = vld [vmem:[#allocation6 + $0xc0] sm:$0xff]
        %v1277 = vld [vmem:[#allocation6 + $0xc8] sm:$0xff]
        %v1278 = vld [vmem:[#allocation6 + $0xd0] sm:$0xff]
        %v1279 = vld [vmem:[#allocation6 + $0xd8] sm:$0xff]
        %v1280 = vld [vmem:[#allocation6 + $0xe0] sm:$0xff]
        %v1281 = vld [vmem:[#allocation6 + $0xe8] sm:$0xff]
        %v1282 = vld [vmem:[#allocation6 + $0xf0] sm:$0xff]
        %v1283 = vld [vmem:[#allocation6 + $0xf8] sm:$0xff]
        %v1284 = vld [vmem:[#allocation6 + $0x100] sm:$0xff]
        %v1285 = vld [vmem:[#allocation6 + $0x108] sm:$0xff]
        %v1286 = vld [vmem:[#allocation6 + $0x110] sm:$0xff]
        %v1287 = vld [vmem:[#allocation6 + $0x118] sm:$0x3f]
        %v1288 = vadd.f32 %v1252, %v1074
        %v1289 = vadd.f32 %v1253, %v1079
        %v1290 = vadd.f32 %v1254, %v1084
        %v1291 = vadd.f32 %v1255, %v1089
        %v1292 = vadd.f32 %v1256, %v1094
        %v1293 = vadd.f32 %v1257, %v1099
        %v1294 = vadd.f32 %v1258, %v1104
        %v1295 = vadd.f32 %v1259, %v1109
        %v1296 = vadd.f32 %v1260, %v1114
        %v1297 = vadd.f32 %v1261, %v1119
        %v1298 = vadd.f32 %v1262, %v1124
        %v1299 = vadd.f32 %v1263, %v1129
        %v1300 = vadd.f32 %v1264, %v1134
        %v1301 = vadd.f32 %v1265, %v1139
        %v1302 = vadd.f32 %v1266, %v1144
        %v1303 = vadd.f32 %v1267, %v1149
        %v1304 = vadd.f32 %v1268, %v1154
        %v1305 = vadd.f32 %v1269, %v1159
        %v1306 = vadd.f32 %v1270, %v1164
        %v1307 = vadd.f32 %v1271, %v1169
        %v1308 = vadd.f32 %v1272, %v1174
        %v1309 = vadd.f32 %v1273, %v1179
        %v1310 = vadd.f32 %v1274, %v1184
        %v1311 = vadd.f32 %v1275, %v1189
        %v1312 = vadd.f32 %v1276, %v1194
        %v1313 = vadd.f32 %v1277, %v1199
        %v1314 = vadd.f32 %v1278, %v1204
        %v1315 = vadd.f32 %v1279, %v1209
        %v1316 = vadd.f32 %v1280, %v1214
        %v1317 = vadd.f32 %v1281, %v1219
        %v1318 = vadd.f32 %v1282, %v1224
        %v1319 = vadd.f32 %v1283, %v1229
        %v1320 = vadd.f32 %v1284, %v1234
        %v1321 = vadd.f32 %v1285, %v1239
        %v1322 = vadd.f32 %v1286, %v1244
        %v1323 = vadd.f32 %v1287, %v1249
        %1324 = vst.msk [vmem:[#allocation6] sm:$0xff] %vm412, %v1288
        %1325 = vst.msk [vmem:[#allocation6 + $0x8] sm:$0xff] %vm412, %v1289
        %1326 = vst.msk [vmem:[#allocation6 + $0x10] sm:$0xff] %vm412, %v1290
        %1327 = vst.msk [vmem:[#allocation6 + $0x18] sm:$0xff] %vm412, %v1291
        %1328 = vst.msk [vmem:[#allocation6 + $0x20] sm:$0xff] %vm412, %v1292
        %1329 = vst.msk [vmem:[#allocation6 + $0x28] sm:$0xff] %vm412, %v1293
        %1330 = vst.msk [vmem:[#allocation6 + $0x30] sm:$0xff] %vm412, %v1294
        %1331 = vst.msk [vmem:[#allocation6 + $0x38] sm:$0xff] %vm412, %v1295
        %1332 = vst.msk [vmem:[#allocation6 + $0x40] sm:$0xff] %vm412, %v1296
        %1333 = vst.msk [vmem:[#allocation6 + $0x48] sm:$0xff] %vm412, %v1297
        %1334 = vst.msk [vmem:[#allocation6 + $0x50] sm:$0xff] %vm412, %v1298
        %1335 = vst.msk [vmem:[#allocation6 + $0x58] sm:$0xff] %vm412, %v1299
        %1336 = vst.msk [vmem:[#allocation6 + $0x60] sm:$0xff] %vm412, %v1300
        %1337 = vst.msk [vmem:[#allocation6 + $0x68] sm:$0xff] %vm412, %v1301
        %1338 = vst.msk [vmem:[#allocation6 + $0x70] sm:$0xff] %vm412, %v1302
        %1339 = vst.msk [vmem:[#allocation6 + $0x78] sm:$0xff] %vm412, %v1303
        %1340 = vst.msk [vmem:[#allocation6 + $0x80] sm:$0xff] %vm412, %v1304
        %1341 = vst.msk [vmem:[#allocation6 + $0x88] sm:$0xff] %vm412, %v1305
        %1342 = vst.msk [vmem:[#allocation6 + $0x90] sm:$0xff] %vm412, %v1306
        %1343 = vst.msk [vmem:[#allocation6 + $0x98] sm:$0xff] %vm412, %v1307
        %1344 = vst.msk [vmem:[#allocation6 + $0xa0] sm:$0xff] %vm412, %v1308
        %1345 = vst.msk [vmem:[#allocation6 + $0xa8] sm:$0xff] %vm412, %v1309
        %1346 = vst.msk [vmem:[#allocation6 + $0xb0] sm:$0xff] %vm412, %v1310
        %1347 = vst.msk [vmem:[#allocation6 + $0xb8] sm:$0xff] %vm412, %v1311
        %1348 = vst.msk [vmem:[#allocation6 + $0xc0] sm:$0xff] %vm412, %v1312
        %1349 = vst.msk [vmem:[#allocation6 + $0xc8] sm:$0xff] %vm412, %v1313
        %1350 = vst.msk [vmem:[#allocation6 + $0xd0] sm:$0xff] %vm412, %v1314
        %1351 = vst.msk [vmem:[#allocation6 + $0xd8] sm:$0xff] %vm412, %v1315
        %1352 = vst.msk [vmem:[#allocation6 + $0xe0] sm:$0xff] %vm412, %v1316
        %1353 = vst.msk [vmem:[#allocation6 + $0xe8] sm:$0xff] %vm412, %v1317
        %1354 = vst.msk [vmem:[#allocation6 + $0xf0] sm:$0xff] %vm412, %v1318
        %1355 = vst.msk [vmem:[#allocation6 + $0xf8] sm:$0xff] %vm412, %v1319
        %1356 = vst.msk [vmem:[#allocation6 + $0x100] sm:$0xff] %vm412, %v1320
        %1357 = vst.msk [vmem:[#allocation6 + $0x108] sm:$0xff] %vm412, %v1321
        %1358 = vst.msk [vmem:[#allocation6 + $0x110] sm:$0xff] %vm412, %v1322
        %1359 = vst.msk [vmem:[#allocation6 + $0x118] sm:$0x3f] %vm856, %v1323
        %v1360 = vld [vmem:[#allocation2 + $0x2] sm:$0xff]
        %v1361 = vld [vmem:[#allocation2 + $0xa] sm:$0xff]
        %v1362 = vld [vmem:[#allocation2 + $0x12] sm:$0xff]
        %v1363 = vld [vmem:[#allocation2 + $0x1a] sm:$0xff]
        %v1364 = vld [vmem:[#allocation2 + $0x22] sm:$0xff]
        %v1365 = vld [vmem:[#allocation2 + $0x2a] sm:$0xff]
        %v1366 = vld [vmem:[#allocation2 + $0x32] sm:$0xff]
        %v1367 = vld [vmem:[#allocation2 + $0x3a] sm:$0xff]
        %v1368 = vld [vmem:[#allocation2 + $0x42] sm:$0xff]
        %v1369 = vld [vmem:[#allocation2 + $0x4a] sm:$0xff]
        %v1370 = vld [vmem:[#allocation2 + $0x52] sm:$0xff]
        %v1371 = vld [vmem:[#allocation2 + $0x5a] sm:$0xff]
        %v1372 = vld [vmem:[#allocation2 + $0x62] sm:$0xff]
        %v1373 = vld [vmem:[#allocation2 + $0x6a] sm:$0xff]
        %v1374 = vld [vmem:[#allocation2 + $0x72] sm:$0xff]
        %v1375 = vld [vmem:[#allocation2 + $0x7a] sm:$0xff]
        %v1376 = vld [vmem:[#allocation2 + $0x82] sm:$0xff]
        %v1377 = vld [vmem:[#allocation2 + $0x8a] sm:$0xff]
        %v1378 = vld [vmem:[#allocation2 + $0x92] sm:$0xff]
        %v1379 = vld [vmem:[#allocation2 + $0x9a] sm:$0xff]
        %v1380 = vld [vmem:[#allocation2 + $0xa2] sm:$0xff]
        %v1381 = vld [vmem:[#allocation2 + $0xaa] sm:$0xff]
        %v1382 = vld [vmem:[#allocation2 + $0xb2] sm:$0xff]
        %v1383 = vld [vmem:[#allocation2 + $0xba] sm:$0xff]
        %v1384 = vld [vmem:[#allocation2 + $0xc2] sm:$0xff]
        %v1385 = vld [vmem:[#allocation2 + $0xca] sm:$0xff]
        %v1386 = vld [vmem:[#allocation2 + $0xd2] sm:$0xff]
        %v1387 = vld [vmem:[#allocation2 + $0xda] sm:$0xff]
        %v1388 = vld [vmem:[#allocation2 + $0xe2] sm:$0xff]
        %v1389 = vld [vmem:[#allocation2 + $0xea] sm:$0xff]
        %v1390 = vld [vmem:[#allocation2 + $0xf2] sm:$0xff]
        %v1391 = vld [vmem:[#allocation2 + $0xfa] sm:$0xff]
        %v1392 = vld [vmem:[#allocation2 + $0x102] sm:$0xff]
        %v1393 = vld [vmem:[#allocation2 + $0x10a] sm:$0xff]
        %v1394 = vld [vmem:[#allocation2 + $0x112] sm:$0xff]
        %v1395 = vld [vmem:[#allocation2 + $0x11a] sm:$0x3f]
        %s1396 = scalar_lea.vmem %s1, 8
        %v1397 = vld [vmem:[%s1396] sm:$0x7]
        %v1399 = vsel %vm291, %v1360, 0
        %v1402 = vsel %vm291, %v1361, 0
        %v1405 = vsel %vm291, %v1362, 0
        %v1408 = vsel %vm291, %v1363, 0
        %v1411 = vsel %vm291, %v1364, 0
        %v1414 = vsel %vm291, %v1365, 0
        %v1417 = vsel %vm291, %v1366, 0
        %v1420 = vsel %vm291, %v1367, 0
        %v1423 = vsel %vm291, %v1368, 0
        %v1426 = vsel %vm291, %v1369, 0
        %v1429 = vsel %vm291, %v1370, 0
        %v1432 = vsel %vm291, %v1371, 0
        %v1435 = vsel %vm291, %v1372, 0
        %v1438 = vsel %vm291, %v1373, 0
        %v1441 = vsel %vm291, %v1374, 0
        %v1444 = vsel %vm291, %v1375, 0
        %v1447 = vsel %vm291, %v1376, 0
        %v1450 = vsel %vm291, %v1377, 0
        %v1453 = vsel %vm291, %v1378, 0
        %v1456 = vsel %vm291, %v1379, 0
        %v1459 = vsel %vm291, %v1380, 0
        %v1462 = vsel %vm291, %v1381, 0
        %v1465 = vsel %vm291, %v1382, 0
        %v1468 = vsel %vm291, %v1383, 0
        %v1471 = vsel %vm291, %v1384, 0
        %v1474 = vsel %vm291, %v1385, 0
        %v1477 = vsel %vm291, %v1386, 0
        %v1480 = vsel %vm291, %v1387, 0
        %v1483 = vsel %vm291, %v1388, 0
        %v1486 = vsel %vm291, %v1389, 0
        %v1489 = vsel %vm291, %v1390, 0
        %v1492 = vsel %vm291, %v1391, 0
        %v1495 = vsel %vm291, %v1392, 0
        %v1498 = vsel %vm291, %v1393, 0
        %v1501 = vsel %vm291, %v1394, 0
        %v1504 = vsel %vm291, %v1395, 0
        %v1507 = vsel %vm572, %v1397, 0
        %1509 = vmatprep.subr.mxu0 0.0
        %1510 = vmatpush1.msra.mxu0 0.0
        %1511 = vmatprep.subr.mxu0 0.0
        %1512 = vmatpush1.msra.mxu0 0.0
        %1513 = vmatprep.subr.mxu0 0.0
        %1514 = vmatpush1.msra.mxu0 0.0
        %1515 = vmatprep.subr.mxu0 0.0
        %1516 = vmatpush1.msra.mxu0 0.0
        %1517 = vmatprep.subr.mxu0 0.0
        %1518 = vmatpush1.msra.mxu0 0.0
        %1519 = vmatprep.subr.mxu0 0.0
        %1520 = vmatpush1.msra.mxu0 0.0
        %1521 = vmatprep.subr.mxu0 0.0
        %1522 = vmatpush1.msra.mxu0 0.0
        %1523 = vmatprep.subr.mxu0 0.0
        %1524 = vmatpush1.msra.mxu0 0.0
        %1525 = vmatprep.subr.mxu0 0.0
        %1526 = vmatpush1.msra.mxu0 0.0
        %1527 = vmatprep.subr.mxu0 0.0
        %1528 = vmatpush1.msra.mxu0 0.0
        %1529 = vmatprep.subr.mxu0 0.0
        %1530 = vmatpush1.msra.mxu0 0.0
        %1531 = vmatprep.subr.mxu0 0.0
        %1532 = vmatpush1.msra.mxu0 0.0
        %1533 = vmatprep.subr.mxu0 0.0
        %1534 = vmatpush1.msra.mxu0 0.0
        %1535 = vmatprep.subr.mxu0 0.0
        %1536 = vmatpush1.msra.mxu0 0.0
        %1537 = vmatprep.subr.mxu0 0.0
        %1538 = vmatpush1.msra.mxu0 0.0
        %1539 = vmatprep.subr.mxu0 0.0
        %1540 = vmatpush1.msra.mxu0 %v1507
        %1541 = vmatprep.subr.mxu0 0.0
        %1542 = vmatpush2.msra.mxu0 0.0
        %1543 = vmatprep.subr.mxu0 0.0
        %1544 = vmatpush2.msra.mxu0 0.0
        %1545 = vmatprep.subr.mxu0 0.0
        %1546 = vmatpush2.msra.mxu0 0.0
        %1547 = vmatprep.subr.mxu0 0.0
        %1548 = vmatpush2.msra.mxu0 0.0
        %1549 = vmatprep.subr.mxu0 0.0
        %1550 = vmatpush2.msra.mxu0 0.0
        %1551 = vmatprep.subr.mxu0 0.0
        %1552 = vmatpush2.msra.mxu0 0.0
        %1553 = vmatprep.subr.mxu0 0.0
        %1554 = vmatpush2.msra.mxu0 0.0
        %1555 = vmatprep.subr.mxu0 0.0
        %1556 = vmatpush2.msra.mxu0 0.0
        %1557 = vmatprep.subr.mxu0 0.0
        %1558 = vmatpush2.msra.mxu0 0.0
        %1559 = vmatprep.subr.mxu0 0.0
        %1560 = vmatpush2.msra.mxu0 0.0
        %1561 = vmatprep.subr.mxu0 0.0
        %1562 = vmatpush2.msra.mxu0 0.0
        %1563 = vmatprep.subr.mxu0 0.0
        %1564 = vmatpush2.msra.mxu0 0.0
        %1565 = vmatprep.subr.mxu0 0.0
        %1566 = vmatpush2.msra.mxu0 0.0
        %1567 = vmatprep.subr.mxu0 0.0
        %1568 = vmatpush2.msra.mxu0 0.0
        %1569 = vmatprep.subr.mxu0 0.0
        %1570 = vmatpush2.msra.mxu0 0.0
        %1571 = vmatprep.subr.mxu0 0.0
        %1572 = vmatpush2.msra.mxu0 0.0
        %1573 = vmatprep.mubr.f32.mxu0 0.0
        %1574 = vmatmul.mubr.f32.gmra.mxu0 %v1399
        %v1575 = vpop.f32.mrf.mxu0
        %v1576 = vadd.f32 0.0, %v1575
        %v1577 = vpop.f32.mrf.mxu0
        %1578 = vmatprep.mubr.f32.mxu0 0.0
        %1579 = vmatmul.mubr.f32.gmra.mxu0 %v1402
        %v1580 = vpop.f32.mrf.mxu0
        %v1581 = vadd.f32 0.0, %v1580
        %v1582 = vpop.f32.mrf.mxu0
        %1583 = vmatprep.mubr.f32.mxu0 0.0
        %1584 = vmatmul.mubr.f32.gmra.mxu0 %v1405
        %v1585 = vpop.f32.mrf.mxu0
        %v1586 = vadd.f32 0.0, %v1585
        %v1587 = vpop.f32.mrf.mxu0
        %1588 = vmatprep.mubr.f32.mxu0 0.0
        %1589 = vmatmul.mubr.f32.gmra.mxu0 %v1408
        %v1590 = vpop.f32.mrf.mxu0
        %v1591 = vadd.f32 0.0, %v1590
        %v1592 = vpop.f32.mrf.mxu0
        %1593 = vmatprep.mubr.f32.mxu0 0.0
        %1594 = vmatmul.mubr.f32.gmra.mxu0 %v1411
        %v1595 = vpop.f32.mrf.mxu0
        %v1596 = vadd.f32 0.0, %v1595
        %v1597 = vpop.f32.mrf.mxu0
        %1598 = vmatprep.mubr.f32.mxu0 0.0
        %1599 = vmatmul.mubr.f32.gmra.mxu0 %v1414
        %v1600 = vpop.f32.mrf.mxu0
        %v1601 = vadd.f32 0.0, %v1600
        %v1602 = vpop.f32.mrf.mxu0
        %1603 = vmatprep.mubr.f32.mxu0 0.0
        %1604 = vmatmul.mubr.f32.gmra.mxu0 %v1417
        %v1605 = vpop.f32.mrf.mxu0
        %v1606 = vadd.f32 0.0, %v1605
        %v1607 = vpop.f32.mrf.mxu0
        %1608 = vmatprep.mubr.f32.mxu0 0.0
        %1609 = vmatmul.mubr.f32.gmra.mxu0 %v1420
        %v1610 = vpop.f32.mrf.mxu0
        %v1611 = vadd.f32 0.0, %v1610
        %v1612 = vpop.f32.mrf.mxu0
        %1613 = vmatprep.mubr.f32.mxu0 0.0
        %1614 = vmatmul.mubr.f32.gmra.mxu0 %v1423
        %v1615 = vpop.f32.mrf.mxu0
        %v1616 = vadd.f32 0.0, %v1615
        %v1617 = vpop.f32.mrf.mxu0
        %1618 = vmatprep.mubr.f32.mxu0 0.0
        %1619 = vmatmul.mubr.f32.gmra.mxu0 %v1426
        %v1620 = vpop.f32.mrf.mxu0
        %v1621 = vadd.f32 0.0, %v1620
        %v1622 = vpop.f32.mrf.mxu0
        %1623 = vmatprep.mubr.f32.mxu0 0.0
        %1624 = vmatmul.mubr.f32.gmra.mxu0 %v1429
        %v1625 = vpop.f32.mrf.mxu0
        %v1626 = vadd.f32 0.0, %v1625
        %v1627 = vpop.f32.mrf.mxu0
        %1628 = vmatprep.mubr.f32.mxu0 0.0
        %1629 = vmatmul.mubr.f32.gmra.mxu0 %v1432
        %v1630 = vpop.f32.mrf.mxu0
        %v1631 = vadd.f32 0.0, %v1630
        %v1632 = vpop.f32.mrf.mxu0
        %1633 = vmatprep.mubr.f32.mxu0 0.0
        %1634 = vmatmul.mubr.f32.gmra.mxu0 %v1435
        %v1635 = vpop.f32.mrf.mxu0
        %v1636 = vadd.f32 0.0, %v1635
        %v1637 = vpop.f32.mrf.mxu0
        %1638 = vmatprep.mubr.f32.mxu0 0.0
        %1639 = vmatmul.mubr.f32.gmra.mxu0 %v1438
        %v1640 = vpop.f32.mrf.mxu0
        %v1641 = vadd.f32 0.0, %v1640
        %v1642 = vpop.f32.mrf.mxu0
        %1643 = vmatprep.mubr.f32.mxu0 0.0
        %1644 = vmatmul.mubr.f32.gmra.mxu0 %v1441
        %v1645 = vpop.f32.mrf.mxu0
        %v1646 = vadd.f32 0.0, %v1645
        %v1647 = vpop.f32.mrf.mxu0
        %1648 = vmatprep.mubr.f32.mxu0 0.0
        %1649 = vmatmul.mubr.f32.gmra.mxu0 %v1444
        %v1650 = vpop.f32.mrf.mxu0
        %v1651 = vadd.f32 0.0, %v1650
        %v1652 = vpop.f32.mrf.mxu0
        %1653 = vmatprep.mubr.f32.mxu0 0.0
        %1654 = vmatmul.mubr.f32.gmra.mxu0 %v1447
        %v1655 = vpop.f32.mrf.mxu0
        %v1656 = vadd.f32 0.0, %v1655
        %v1657 = vpop.f32.mrf.mxu0
        %1658 = vmatprep.mubr.f32.mxu0 0.0
        %1659 = vmatmul.mubr.f32.gmra.mxu0 %v1450
        %v1660 = vpop.f32.mrf.mxu0
        %v1661 = vadd.f32 0.0, %v1660
        %v1662 = vpop.f32.mrf.mxu0
        %1663 = vmatprep.mubr.f32.mxu0 0.0
        %1664 = vmatmul.mubr.f32.gmra.mxu0 %v1453
        %v1665 = vpop.f32.mrf.mxu0
        %v1666 = vadd.f32 0.0, %v1665
        %v1667 = vpop.f32.mrf.mxu0
        %1668 = vmatprep.mubr.f32.mxu0 0.0
        %1669 = vmatmul.mubr.f32.gmra.mxu0 %v1456
        %v1670 = vpop.f32.mrf.mxu0
        %v1671 = vadd.f32 0.0, %v1670
        %v1672 = vpop.f32.mrf.mxu0
        %1673 = vmatprep.mubr.f32.mxu0 0.0
        %1674 = vmatmul.mubr.f32.gmra.mxu0 %v1459
        %v1675 = vpop.f32.mrf.mxu0
        %v1676 = vadd.f32 0.0, %v1675
        %v1677 = vpop.f32.mrf.mxu0
        %1678 = vmatprep.mubr.f32.mxu0 0.0
        %1679 = vmatmul.mubr.f32.gmra.mxu0 %v1462
        %v1680 = vpop.f32.mrf.mxu0
        %v1681 = vadd.f32 0.0, %v1680
        %v1682 = vpop.f32.mrf.mxu0
        %1683 = vmatprep.mubr.f32.mxu0 0.0
        %1684 = vmatmul.mubr.f32.gmra.mxu0 %v1465
        %v1685 = vpop.f32.mrf.mxu0
        %v1686 = vadd.f32 0.0, %v1685
        %v1687 = vpop.f32.mrf.mxu0
        %1688 = vmatprep.mubr.f32.mxu0 0.0
        %1689 = vmatmul.mubr.f32.gmra.mxu0 %v1468
        %v1690 = vpop.f32.mrf.mxu0
        %v1691 = vadd.f32 0.0, %v1690
        %v1692 = vpop.f32.mrf.mxu0
        %1693 = vmatprep.mubr.f32.mxu0 0.0
        %1694 = vmatmul.mubr.f32.gmra.mxu0 %v1471
        %v1695 = vpop.f32.mrf.mxu0
        %v1696 = vadd.f32 0.0, %v1695
        %v1697 = vpop.f32.mrf.mxu0
        %1698 = vmatprep.mubr.f32.mxu0 0.0
        %1699 = vmatmul.mubr.f32.gmra.mxu0 %v1474
        %v1700 = vpop.f32.mrf.mxu0
        %v1701 = vadd.f32 0.0, %v1700
        %v1702 = vpop.f32.mrf.mxu0
        %1703 = vmatprep.mubr.f32.mxu0 0.0
        %1704 = vmatmul.mubr.f32.gmra.mxu0 %v1477
        %v1705 = vpop.f32.mrf.mxu0
        %v1706 = vadd.f32 0.0, %v1705
        %v1707 = vpop.f32.mrf.mxu0
        %1708 = vmatprep.mubr.f32.mxu0 0.0
        %1709 = vmatmul.mubr.f32.gmra.mxu0 %v1480
        %v1710 = vpop.f32.mrf.mxu0
        %v1711 = vadd.f32 0.0, %v1710
        %v1712 = vpop.f32.mrf.mxu0
        %1713 = vmatprep.mubr.f32.mxu0 0.0
        %1714 = vmatmul.mubr.f32.gmra.mxu0 %v1483
        %v1715 = vpop.f32.mrf.mxu0
        %v1716 = vadd.f32 0.0, %v1715
        %v1717 = vpop.f32.mrf.mxu0
        %1718 = vmatprep.mubr.f32.mxu0 0.0
        %1719 = vmatmul.mubr.f32.gmra.mxu0 %v1486
        %v1720 = vpop.f32.mrf.mxu0
        %v1721 = vadd.f32 0.0, %v1720
        %v1722 = vpop.f32.mrf.mxu0
        %1723 = vmatprep.mubr.f32.mxu0 0.0
        %1724 = vmatmul.mubr.f32.gmra.mxu0 %v1489
        %v1725 = vpop.f32.mrf.mxu0
        %v1726 = vadd.f32 0.0, %v1725
        %v1727 = vpop.f32.mrf.mxu0
        %1728 = vmatprep.mubr.f32.mxu0 0.0
        %1729 = vmatmul.mubr.f32.gmra.mxu0 %v1492
        %v1730 = vpop.f32.mrf.mxu0
        %v1731 = vadd.f32 0.0, %v1730
        %v1732 = vpop.f32.mrf.mxu0
        %1733 = vmatprep.mubr.f32.mxu0 0.0
        %1734 = vmatmul.mubr.f32.gmra.mxu0 %v1495
        %v1735 = vpop.f32.mrf.mxu0
        %v1736 = vadd.f32 0.0, %v1735
        %v1737 = vpop.f32.mrf.mxu0
        %1738 = vmatprep.mubr.f32.mxu0 0.0
        %1739 = vmatmul.mubr.f32.gmra.mxu0 %v1498
        %v1740 = vpop.f32.mrf.mxu0
        %v1741 = vadd.f32 0.0, %v1740
        %v1742 = vpop.f32.mrf.mxu0
        %1743 = vmatprep.mubr.f32.mxu0 0.0
        %1744 = vmatmul.mubr.f32.gmra.mxu0 %v1501
        %v1745 = vpop.f32.mrf.mxu0
        %v1746 = vadd.f32 0.0, %v1745
        %v1747 = vpop.f32.mrf.mxu0
        %1748 = vmatprep.mubr.f32.mxu0 0.0
        %1749 = vmatmul.mubr.f32.gmra.mxu0 %v1504
        %v1750 = vpop.f32.mrf.mxu0
        %v1751 = vadd.f32 0.0, %v1750
        %v1752 = vpop.f32.mrf.mxu0
        %1753 = vdwg.mxu0
        %v1754 = vld [vmem:[#allocation6] sm:$0xff]
        %v1755 = vld [vmem:[#allocation6 + $0x8] sm:$0xff]
        %v1756 = vld [vmem:[#allocation6 + $0x10] sm:$0xff]
        %v1757 = vld [vmem:[#allocation6 + $0x18] sm:$0xff]
        %v1758 = vld [vmem:[#allocation6 + $0x20] sm:$0xff]
        %v1759 = vld [vmem:[#allocation6 + $0x28] sm:$0xff]
        %v1760 = vld [vmem:[#allocation6 + $0x30] sm:$0xff]
        %v1761 = vld [vmem:[#allocation6 + $0x38] sm:$0xff]
        %v1762 = vld [vmem:[#allocation6 + $0x40] sm:$0xff]
        %v1763 = vld [vmem:[#allocation6 + $0x48] sm:$0xff]
        %v1764 = vld [vmem:[#allocation6 + $0x50] sm:$0xff]
        %v1765 = vld [vmem:[#allocation6 + $0x58] sm:$0xff]
        %v1766 = vld [vmem:[#allocation6 + $0x60] sm:$0xff]
        %v1767 = vld [vmem:[#allocation6 + $0x68] sm:$0xff]
        %v1768 = vld [vmem:[#allocation6 + $0x70] sm:$0xff]
        %v1769 = vld [vmem:[#allocation6 + $0x78] sm:$0xff]
        %v1770 = vld [vmem:[#allocation6 + $0x80] sm:$0xff]
        %v1771 = vld [vmem:[#allocation6 + $0x88] sm:$0xff]
        %v1772 = vld [vmem:[#allocation6 + $0x90] sm:$0xff]
        %v1773 = vld [vmem:[#allocation6 + $0x98] sm:$0xff]
        %v1774 = vld [vmem:[#allocation6 + $0xa0] sm:$0xff]
        %v1775 = vld [vmem:[#allocation6 + $0xa8] sm:$0xff]
        %v1776 = vld [vmem:[#allocation6 + $0xb0] sm:$0xff]
        %v1777 = vld [vmem:[#allocation6 + $0xb8] sm:$0xff]
        %v1778 = vld [vmem:[#allocation6 + $0xc0] sm:$0xff]
        %v1779 = vld [vmem:[#allocation6 + $0xc8] sm:$0xff]
        %v1780 = vld [vmem:[#allocation6 + $0xd0] sm:$0xff]
        %v1781 = vld [vmem:[#allocation6 + $0xd8] sm:$0xff]
        %v1782 = vld [vmem:[#allocation6 + $0xe0] sm:$0xff]
        %v1783 = vld [vmem:[#allocation6 + $0xe8] sm:$0xff]
        %v1784 = vld [vmem:[#allocation6 + $0xf0] sm:$0xff]
        %v1785 = vld [vmem:[#allocation6 + $0xf8] sm:$0xff]
        %v1786 = vld [vmem:[#allocation6 + $0x100] sm:$0xff]
        %v1787 = vld [vmem:[#allocation6 + $0x108] sm:$0xff]
        %v1788 = vld [vmem:[#allocation6 + $0x110] sm:$0xff]
        %v1789 = vld [vmem:[#allocation6 + $0x118] sm:$0x3f]
        %v1790 = vadd.f32 %v1754, %v1576
        %v1791 = vadd.f32 %v1755, %v1581
        %v1792 = vadd.f32 %v1756, %v1586
        %v1793 = vadd.f32 %v1757, %v1591
        %v1794 = vadd.f32 %v1758, %v1596
        %v1795 = vadd.f32 %v1759, %v1601
        %v1796 = vadd.f32 %v1760, %v1606
        %v1797 = vadd.f32 %v1761, %v1611
        %v1798 = vadd.f32 %v1762, %v1616
        %v1799 = vadd.f32 %v1763, %v1621
        %v1800 = vadd.f32 %v1764, %v1626
        %v1801 = vadd.f32 %v1765, %v1631
        %v1802 = vadd.f32 %v1766, %v1636
        %v1803 = vadd.f32 %v1767, %v1641
        %v1804 = vadd.f32 %v1768, %v1646
        %v1805 = vadd.f32 %v1769, %v1651
        %v1806 = vadd.f32 %v1770, %v1656
        %v1807 = vadd.f32 %v1771, %v1661
        %v1808 = vadd.f32 %v1772, %v1666
        %v1809 = vadd.f32 %v1773, %v1671
        %v1810 = vadd.f32 %v1774, %v1676
        %v1811 = vadd.f32 %v1775, %v1681
        %v1812 = vadd.f32 %v1776, %v1686
        %v1813 = vadd.f32 %v1777, %v1691
        %v1814 = vadd.f32 %v1778, %v1696
        %v1815 = vadd.f32 %v1779, %v1701
        %v1816 = vadd.f32 %v1780, %v1706
        %v1817 = vadd.f32 %v1781, %v1711
        %v1818 = vadd.f32 %v1782, %v1716
        %v1819 = vadd.f32 %v1783, %v1721
        %v1820 = vadd.f32 %v1784, %v1726
        %v1821 = vadd.f32 %v1785, %v1731
        %v1822 = vadd.f32 %v1786, %v1736
        %v1823 = vadd.f32 %v1787, %v1741
        %v1824 = vadd.f32 %v1788, %v1746
        %v1825 = vadd.f32 %v1789, %v1751
        %1826 = vst.msk [vmem:[#allocation6] sm:$0xff] %vm412, %v1790
        %1827 = vst.msk [vmem:[#allocation6 + $0x8] sm:$0xff] %vm412, %v1791
        %1828 = vst.msk [vmem:[#allocation6 + $0x10] sm:$0xff] %vm412, %v1792
        %1829 = vst.msk [vmem:[#allocation6 + $0x18] sm:$0xff] %vm412, %v1793
        %1830 = vst.msk [vmem:[#allocation6 + $0x20] sm:$0xff] %vm412, %v1794
        %1831 = vst.msk [vmem:[#allocation6 + $0x28] sm:$0xff] %vm412, %v1795
        %1832 = vst.msk [vmem:[#allocation6 + $0x30] sm:$0xff] %vm412, %v1796
        %1833 = vst.msk [vmem:[#allocation6 + $0x38] sm:$0xff] %vm412, %v1797
        %1834 = vst.msk [vmem:[#allocation6 + $0x40] sm:$0xff] %vm412, %v1798
        %1835 = vst.msk [vmem:[#allocation6 + $0x48] sm:$0xff] %vm412, %v1799
        %1836 = vst.msk [vmem:[#allocation6 + $0x50] sm:$0xff] %vm412, %v1800
        %1837 = vst.msk [vmem:[#allocation6 + $0x58] sm:$0xff] %vm412, %v1801
        %1838 = vst.msk [vmem:[#allocation6 + $0x60] sm:$0xff] %vm412, %v1802
        %1839 = vst.msk [vmem:[#allocation6 + $0x68] sm:$0xff] %vm412, %v1803
        %1840 = vst.msk [vmem:[#allocation6 + $0x70] sm:$0xff] %vm412, %v1804
        %1841 = vst.msk [vmem:[#allocation6 + $0x78] sm:$0xff] %vm412, %v1805
        %1842 = vst.msk [vmem:[#allocation6 + $0x80] sm:$0xff] %vm412, %v1806
        %1843 = vst.msk [vmem:[#allocation6 + $0x88] sm:$0xff] %vm412, %v1807
        %1844 = vst.msk [vmem:[#allocation6 + $0x90] sm:$0xff] %vm412, %v1808
        %1845 = vst.msk [vmem:[#allocation6 + $0x98] sm:$0xff] %vm412, %v1809
        %1846 = vst.msk [vmem:[#allocation6 + $0xa0] sm:$0xff] %vm412, %v1810
        %1847 = vst.msk [vmem:[#allocation6 + $0xa8] sm:$0xff] %vm412, %v1811
        %1848 = vst.msk [vmem:[#allocation6 + $0xb0] sm:$0xff] %vm412, %v1812
        %1849 = vst.msk [vmem:[#allocation6 + $0xb8] sm:$0xff] %vm412, %v1813
        %1850 = vst.msk [vmem:[#allocation6 + $0xc0] sm:$0xff] %vm412, %v1814
        %1851 = vst.msk [vmem:[#allocation6 + $0xc8] sm:$0xff] %vm412, %v1815
        %1852 = vst.msk [vmem:[#allocation6 + $0xd0] sm:$0xff] %vm412, %v1816
        %1853 = vst.msk [vmem:[#allocation6 + $0xd8] sm:$0xff] %vm412, %v1817
        %1854 = vst.msk [vmem:[#allocation6 + $0xe0] sm:$0xff] %vm412, %v1818
        %1855 = vst.msk [vmem:[#allocation6 + $0xe8] sm:$0xff] %vm412, %v1819
        %1856 = vst.msk [vmem:[#allocation6 + $0xf0] sm:$0xff] %vm412, %v1820
        %1857 = vst.msk [vmem:[#allocation6 + $0xf8] sm:$0xff] %vm412, %v1821
        %1858 = vst.msk [vmem:[#allocation6 + $0x100] sm:$0xff] %vm412, %v1822
        %1859 = vst.msk [vmem:[#allocation6 + $0x108] sm:$0xff] %vm412, %v1823
        %1860 = vst.msk [vmem:[#allocation6 + $0x110] sm:$0xff] %vm412, %v1824
        %1861 = vst.msk [vmem:[#allocation6 + $0x118] sm:$0x3f] %vm856, %v1825
        %v1862 = vld [vmem:[#allocation2 + $0x12] sm:$0xff]
        %v1863 = vld [vmem:[#allocation2 + $0x1a] sm:$0xff]
        %v1864 = vld [vmem:[#allocation2 + $0x22] sm:$0xff]
        %v1865 = vld [vmem:[#allocation2 + $0x2a] sm:$0xff]
        %v1866 = vld [vmem:[#allocation2 + $0x32] sm:$0xff]
        %v1867 = vld [vmem:[#allocation2 + $0x3a] sm:$0xff]
        %v1868 = vld [vmem:[#allocation2 + $0x42] sm:$0xff]
        %v1869 = vld [vmem:[#allocation2 + $0x4a] sm:$0xff]
        %v1870 = vld [vmem:[#allocation2 + $0x52] sm:$0xff]
        %v1871 = vld [vmem:[#allocation2 + $0x5a] sm:$0xff]
        %v1872 = vld [vmem:[#allocation2 + $0x62] sm:$0xff]
        %v1873 = vld [vmem:[#allocation2 + $0x6a] sm:$0xff]
        %v1874 = vld [vmem:[#allocation2 + $0x72] sm:$0xff]
        %v1875 = vld [vmem:[#allocation2 + $0x7a] sm:$0xff]
        %v1876 = vld [vmem:[#allocation2 + $0x82] sm:$0xff]
        %v1877 = vld [vmem:[#allocation2 + $0x8a] sm:$0xff]
        %v1878 = vld [vmem:[#allocation2 + $0x92] sm:$0xff]
        %v1879 = vld [vmem:[#allocation2 + $0x9a] sm:$0xff]
        %v1880 = vld [vmem:[#allocation2 + $0xa2] sm:$0xff]
        %v1881 = vld [vmem:[#allocation2 + $0xaa] sm:$0xff]
        %v1882 = vld [vmem:[#allocation2 + $0xb2] sm:$0xff]
        %v1883 = vld [vmem:[#allocation2 + $0xba] sm:$0xff]
        %v1884 = vld [vmem:[#allocation2 + $0xc2] sm:$0xff]
        %v1885 = vld [vmem:[#allocation2 + $0xca] sm:$0xff]
        %v1886 = vld [vmem:[#allocation2 + $0xd2] sm:$0xff]
        %v1887 = vld [vmem:[#allocation2 + $0xda] sm:$0xff]
        %v1888 = vld [vmem:[#allocation2 + $0xe2] sm:$0xff]
        %v1889 = vld [vmem:[#allocation2 + $0xea] sm:$0xff]
        %v1890 = vld [vmem:[#allocation2 + $0xf2] sm:$0xff]
        %v1891 = vld [vmem:[#allocation2 + $0xfa] sm:$0xff]
        %v1892 = vld [vmem:[#allocation2 + $0x102] sm:$0xff]
        %v1893 = vld [vmem:[#allocation2 + $0x10a] sm:$0xff]
        %v1894 = vld [vmem:[#allocation2 + $0x112] sm:$0xff]
        %v1895 = vld [vmem:[#allocation2 + $0x11a] sm:$0xff]
        %v1896 = vld [vmem:[#allocation2 + $0x122] sm:$0xff]
        %v1897 = vld [vmem:[#allocation2 + $0x12a] sm:$0x3f]
        %s1898 = scalar_lea.vmem %s1, 12
        %v1899 = vld [vmem:[%s1898] sm:$0x7]
        %v1901 = vsel %vm291, %v1862, 0
        %v1904 = vsel %vm291, %v1863, 0
        %v1907 = vsel %vm291, %v1864, 0
        %v1910 = vsel %vm291, %v1865, 0
        %v1913 = vsel %vm291, %v1866, 0
        %v1916 = vsel %vm291, %v1867, 0
        %v1919 = vsel %vm291, %v1868, 0
        %v1922 = vsel %vm291, %v1869, 0
        %v1925 = vsel %vm291, %v1870, 0
        %v1928 = vsel %vm291, %v1871, 0
        %v1931 = vsel %vm291, %v1872, 0
        %v1934 = vsel %vm291, %v1873, 0
        %v1937 = vsel %vm291, %v1874, 0
        %v1940 = vsel %vm291, %v1875, 0
        %v1943 = vsel %vm291, %v1876, 0
        %v1946 = vsel %vm291, %v1877, 0
        %v1949 = vsel %vm291, %v1878, 0
        %v1952 = vsel %vm291, %v1879, 0
        %v1955 = vsel %vm291, %v1880, 0
        %v1958 = vsel %vm291, %v1881, 0
        %v1961 = vsel %vm291, %v1882, 0
        %v1964 = vsel %vm291, %v1883, 0
        %v1967 = vsel %vm291, %v1884, 0
        %v1970 = vsel %vm291, %v1885, 0
        %v1973 = vsel %vm291, %v1886, 0
        %v1976 = vsel %vm291, %v1887, 0
        %v1979 = vsel %vm291, %v1888, 0
        %v1982 = vsel %vm291, %v1889, 0
        %v1985 = vsel %vm291, %v1890, 0
        %v1988 = vsel %vm291, %v1891, 0
        %v1991 = vsel %vm291, %v1892, 0
        %v1994 = vsel %vm291, %v1893, 0
        %v1997 = vsel %vm291, %v1894, 0
        %v2000 = vsel %vm291, %v1895, 0
        %v2003 = vsel %vm291, %v1896, 0
        %v2006 = vsel %vm291, %v1897, 0
        %v2009 = vsel %vm572, %v1899, 0
        %2011 = vmatprep.subr.mxu0 0.0
        %2012 = vmatpush1.msra.mxu0 0.0
        %2013 = vmatprep.subr.mxu0 0.0
        %2014 = vmatpush1.msra.mxu0 0.0
        %2015 = vmatprep.subr.mxu0 0.0
        %2016 = vmatpush1.msra.mxu0 0.0
        %2017 = vmatprep.subr.mxu0 0.0
        %2018 = vmatpush1.msra.mxu0 0.0
        %2019 = vmatprep.subr.mxu0 0.0
        %2020 = vmatpush1.msra.mxu0 0.0
        %2021 = vmatprep.subr.mxu0 0.0
        %2022 = vmatpush1.msra.mxu0 0.0
        %2023 = vmatprep.subr.mxu0 0.0
        %2024 = vmatpush1.msra.mxu0 0.0
        %2025 = vmatprep.subr.mxu0 0.0
        %2026 = vmatpush1.msra.mxu0 0.0
        %2027 = vmatprep.subr.mxu0 0.0
        %2028 = vmatpush1.msra.mxu0 0.0
        %2029 = vmatprep.subr.mxu0 0.0
        %2030 = vmatpush1.msra.mxu0 0.0
        %2031 = vmatprep.subr.mxu0 0.0
        %2032 = vmatpush1.msra.mxu0 0.0
        %2033 = vmatprep.subr.mxu0 0.0
        %2034 = vmatpush1.msra.mxu0 0.0
        %2035 = vmatprep.subr.mxu0 0.0
        %2036 = vmatpush1.msra.mxu0 0.0
        %2037 = vmatprep.subr.mxu0 0.0
        %2038 = vmatpush1.msra.mxu0 0.0
        %2039 = vmatprep.subr.mxu0 0.0
        %2040 = vmatpush1.msra.mxu0 0.0
        %2041 = vmatprep.subr.mxu0 0.0
        %2042 = vmatpush1.msra.mxu0 %v2009
        %2043 = vmatprep.subr.mxu0 0.0
        %2044 = vmatpush2.msra.mxu0 0.0
        %2045 = vmatprep.subr.mxu0 0.0
        %2046 = vmatpush2.msra.mxu0 0.0
        %2047 = vmatprep.subr.mxu0 0.0
        %2048 = vmatpush2.msra.mxu0 0.0
        %2049 = vmatprep.subr.mxu0 0.0
        %2050 = vmatpush2.msra.mxu0 0.0
        %2051 = vmatprep.subr.mxu0 0.0
        %2052 = vmatpush2.msra.mxu0 0.0
        %2053 = vmatprep.subr.mxu0 0.0
        %2054 = vmatpush2.msra.mxu0 0.0
        %2055 = vmatprep.subr.mxu0 0.0
        %2056 = vmatpush2.msra.mxu0 0.0
        %2057 = vmatprep.subr.mxu0 0.0
        %2058 = vmatpush2.msra.mxu0 0.0
        %2059 = vmatprep.subr.mxu0 0.0
        %2060 = vmatpush2.msra.mxu0 0.0
        %2061 = vmatprep.subr.mxu0 0.0
        %2062 = vmatpush2.msra.mxu0 0.0
        %2063 = vmatprep.subr.mxu0 0.0
        %2064 = vmatpush2.msra.mxu0 0.0
        %2065 = vmatprep.subr.mxu0 0.0
        %2066 = vmatpush2.msra.mxu0 0.0
        %2067 = vmatprep.subr.mxu0 0.0
        %2068 = vmatpush2.msra.mxu0 0.0
        %2069 = vmatprep.subr.mxu0 0.0
        %2070 = vmatpush2.msra.mxu0 0.0
        %2071 = vmatprep.subr.mxu0 0.0
        %2072 = vmatpush2.msra.mxu0 0.0
        %2073 = vmatprep.subr.mxu0 0.0
        %2074 = vmatpush2.msra.mxu0 0.0
        %2075 = vmatprep.mubr.f32.mxu0 0.0
        %2076 = vmatmul.mubr.f32.gmra.mxu0 %v1901
        %v2077 = vpop.f32.mrf.mxu0
        %v2078 = vadd.f32 0.0, %v2077
        %v2079 = vpop.f32.mrf.mxu0
        %2080 = vmatprep.mubr.f32.mxu0 0.0
        %2081 = vmatmul.mubr.f32.gmra.mxu0 %v1904
        %v2082 = vpop.f32.mrf.mxu0
        %v2083 = vadd.f32 0.0, %v2082
        %v2084 = vpop.f32.mrf.mxu0
        %2085 = vmatprep.mubr.f32.mxu0 0.0
        %2086 = vmatmul.mubr.f32.gmra.mxu0 %v1907
        %v2087 = vpop.f32.mrf.mxu0
        %v2088 = vadd.f32 0.0, %v2087
        %v2089 = vpop.f32.mrf.mxu0
        %2090 = vmatprep.mubr.f32.mxu0 0.0
        %2091 = vmatmul.mubr.f32.gmra.mxu0 %v1910
        %v2092 = vpop.f32.mrf.mxu0
        %v2093 = vadd.f32 0.0, %v2092
        %v2094 = vpop.f32.mrf.mxu0
        %2095 = vmatprep.mubr.f32.mxu0 0.0
        %2096 = vmatmul.mubr.f32.gmra.mxu0 %v1913
        %v2097 = vpop.f32.mrf.mxu0
        %v2098 = vadd.f32 0.0, %v2097
        %v2099 = vpop.f32.mrf.mxu0
        %2100 = vmatprep.mubr.f32.mxu0 0.0
        %2101 = vmatmul.mubr.f32.gmra.mxu0 %v1916
        %v2102 = vpop.f32.mrf.mxu0
        %v2103 = vadd.f32 0.0, %v2102
        %v2104 = vpop.f32.mrf.mxu0
        %2105 = vmatprep.mubr.f32.mxu0 0.0
        %2106 = vmatmul.mubr.f32.gmra.mxu0 %v1919
        %v2107 = vpop.f32.mrf.mxu0
        %v2108 = vadd.f32 0.0, %v2107
        %v2109 = vpop.f32.mrf.mxu0
        %2110 = vmatprep.mubr.f32.mxu0 0.0
        %2111 = vmatmul.mubr.f32.gmra.mxu0 %v1922
        %v2112 = vpop.f32.mrf.mxu0
        %v2113 = vadd.f32 0.0, %v2112
        %v2114 = vpop.f32.mrf.mxu0
        %2115 = vmatprep.mubr.f32.mxu0 0.0
        %2116 = vmatmul.mubr.f32.gmra.mxu0 %v1925
        %v2117 = vpop.f32.mrf.mxu0
        %v2118 = vadd.f32 0.0, %v2117
        %v2119 = vpop.f32.mrf.mxu0
        %2120 = vmatprep.mubr.f32.mxu0 0.0
        %2121 = vmatmul.mubr.f32.gmra.mxu0 %v1928
        %v2122 = vpop.f32.mrf.mxu0
        %v2123 = vadd.f32 0.0, %v2122
        %v2124 = vpop.f32.mrf.mxu0
        %2125 = vmatprep.mubr.f32.mxu0 0.0
        %2126 = vmatmul.mubr.f32.gmra.mxu0 %v1931
        %v2127 = vpop.f32.mrf.mxu0
        %v2128 = vadd.f32 0.0, %v2127
        %v2129 = vpop.f32.mrf.mxu0
        %2130 = vmatprep.mubr.f32.mxu0 0.0
        %2131 = vmatmul.mubr.f32.gmra.mxu0 %v1934
        %v2132 = vpop.f32.mrf.mxu0
        %v2133 = vadd.f32 0.0, %v2132
        %v2134 = vpop.f32.mrf.mxu0
        %2135 = vmatprep.mubr.f32.mxu0 0.0
        %2136 = vmatmul.mubr.f32.gmra.mxu0 %v1937
        %v2137 = vpop.f32.mrf.mxu0
        %v2138 = vadd.f32 0.0, %v2137
        %v2139 = vpop.f32.mrf.mxu0
        %2140 = vmatprep.mubr.f32.mxu0 0.0
        %2141 = vmatmul.mubr.f32.gmra.mxu0 %v1940
        %v2142 = vpop.f32.mrf.mxu0
        %v2143 = vadd.f32 0.0, %v2142
        %v2144 = vpop.f32.mrf.mxu0
        %2145 = vmatprep.mubr.f32.mxu0 0.0
        %2146 = vmatmul.mubr.f32.gmra.mxu0 %v1943
        %v2147 = vpop.f32.mrf.mxu0
        %v2148 = vadd.f32 0.0, %v2147
        %v2149 = vpop.f32.mrf.mxu0
        %2150 = vmatprep.mubr.f32.mxu0 0.0
        %2151 = vmatmul.mubr.f32.gmra.mxu0 %v1946
        %v2152 = vpop.f32.mrf.mxu0
        %v2153 = vadd.f32 0.0, %v2152
        %v2154 = vpop.f32.mrf.mxu0
        %2155 = vmatprep.mubr.f32.mxu0 0.0
        %2156 = vmatmul.mubr.f32.gmra.mxu0 %v1949
        %v2157 = vpop.f32.mrf.mxu0
        %v2158 = vadd.f32 0.0, %v2157
        %v2159 = vpop.f32.mrf.mxu0
        %2160 = vmatprep.mubr.f32.mxu0 0.0
        %2161 = vmatmul.mubr.f32.gmra.mxu0 %v1952
        %v2162 = vpop.f32.mrf.mxu0
        %v2163 = vadd.f32 0.0, %v2162
        %v2164 = vpop.f32.mrf.mxu0
        %2165 = vmatprep.mubr.f32.mxu0 0.0
        %2166 = vmatmul.mubr.f32.gmra.mxu0 %v1955
        %v2167 = vpop.f32.mrf.mxu0
        %v2168 = vadd.f32 0.0, %v2167
        %v2169 = vpop.f32.mrf.mxu0
        %2170 = vmatprep.mubr.f32.mxu0 0.0
        %2171 = vmatmul.mubr.f32.gmra.mxu0 %v1958
        %v2172 = vpop.f32.mrf.mxu0
        %v2173 = vadd.f32 0.0, %v2172
        %v2174 = vpop.f32.mrf.mxu0
        %2175 = vmatprep.mubr.f32.mxu0 0.0
        %2176 = vmatmul.mubr.f32.gmra.mxu0 %v1961
        %v2177 = vpop.f32.mrf.mxu0
        %v2178 = vadd.f32 0.0, %v2177
        %v2179 = vpop.f32.mrf.mxu0
        %2180 = vmatprep.mubr.f32.mxu0 0.0
        %2181 = vmatmul.mubr.f32.gmra.mxu0 %v1964
        %v2182 = vpop.f32.mrf.mxu0
        %v2183 = vadd.f32 0.0, %v2182
        %v2184 = vpop.f32.mrf.mxu0
        %2185 = vmatprep.mubr.f32.mxu0 0.0
        %2186 = vmatmul.mubr.f32.gmra.mxu0 %v1967
        %v2187 = vpop.f32.mrf.mxu0
        %v2188 = vadd.f32 0.0, %v2187
        %v2189 = vpop.f32.mrf.mxu0
        %2190 = vmatprep.mubr.f32.mxu0 0.0
        %2191 = vmatmul.mubr.f32.gmra.mxu0 %v1970
        %v2192 = vpop.f32.mrf.mxu0
        %v2193 = vadd.f32 0.0, %v2192
        %v2194 = vpop.f32.mrf.mxu0
        %2195 = vmatprep.mubr.f32.mxu0 0.0
        %2196 = vmatmul.mubr.f32.gmra.mxu0 %v1973
        %v2197 = vpop.f32.mrf.mxu0
        %v2198 = vadd.f32 0.0, %v2197
        %v2199 = vpop.f32.mrf.mxu0
        %2200 = vmatprep.mubr.f32.mxu0 0.0
        %2201 = vmatmul.mubr.f32.gmra.mxu0 %v1976
        %v2202 = vpop.f32.mrf.mxu0
        %v2203 = vadd.f32 0.0, %v2202
        %v2204 = vpop.f32.mrf.mxu0
        %2205 = vmatprep.mubr.f32.mxu0 0.0
        %2206 = vmatmul.mubr.f32.gmra.mxu0 %v1979
        %v2207 = vpop.f32.mrf.mxu0
        %v2208 = vadd.f32 0.0, %v2207
        %v2209 = vpop.f32.mrf.mxu0
        %2210 = vmatprep.mubr.f32.mxu0 0.0
        %2211 = vmatmul.mubr.f32.gmra.mxu0 %v1982
        %v2212 = vpop.f32.mrf.mxu0
        %v2213 = vadd.f32 0.0, %v2212
        %v2214 = vpop.f32.mrf.mxu0
        %2215 = vmatprep.mubr.f32.mxu0 0.0
        %2216 = vmatmul.mubr.f32.gmra.mxu0 %v1985
        %v2217 = vpop.f32.mrf.mxu0
        %v2218 = vadd.f32 0.0, %v2217
        %v2219 = vpop.f32.mrf.mxu0
        %2220 = vmatprep.mubr.f32.mxu0 0.0
        %2221 = vmatmul.mubr.f32.gmra.mxu0 %v1988
        %v2222 = vpop.f32.mrf.mxu0
        %v2223 = vadd.f32 0.0, %v2222
        %v2224 = vpop.f32.mrf.mxu0
        %2225 = vmatprep.mubr.f32.mxu0 0.0
        %2226 = vmatmul.mubr.f32.gmra.mxu0 %v1991
        %v2227 = vpop.f32.mrf.mxu0
        %v2228 = vadd.f32 0.0, %v2227
        %v2229 = vpop.f32.mrf.mxu0
        %2230 = vmatprep.mubr.f32.mxu0 0.0
        %2231 = vmatmul.mubr.f32.gmra.mxu0 %v1994
        %v2232 = vpop.f32.mrf.mxu0
        %v2233 = vadd.f32 0.0, %v2232
        %v2234 = vpop.f32.mrf.mxu0
        %2235 = vmatprep.mubr.f32.mxu0 0.0
        %2236 = vmatmul.mubr.f32.gmra.mxu0 %v1997
        %v2237 = vpop.f32.mrf.mxu0
        %v2238 = vadd.f32 0.0, %v2237
        %v2239 = vpop.f32.mrf.mxu0
        %2240 = vmatprep.mubr.f32.mxu0 0.0
        %2241 = vmatmul.mubr.f32.gmra.mxu0 %v2000
        %v2242 = vpop.f32.mrf.mxu0
        %v2243 = vadd.f32 0.0, %v2242
        %v2244 = vpop.f32.mrf.mxu0
        %2245 = vmatprep.mubr.f32.mxu0 0.0
        %2246 = vmatmul.mubr.f32.gmra.mxu0 %v2003
        %v2247 = vpop.f32.mrf.mxu0
        %v2248 = vadd.f32 0.0, %v2247
        %v2249 = vpop.f32.mrf.mxu0
        %2250 = vmatprep.mubr.f32.mxu0 0.0
        %2251 = vmatmul.mubr.f32.gmra.mxu0 %v2006
        %v2252 = vpop.f32.mrf.mxu0
        %v2253 = vadd.f32 0.0, %v2252
        %v2254 = vpop.f32.mrf.mxu0
        %2255 = vdwg.mxu0
        %v2256 = vld [vmem:[#allocation6] sm:$0xff]
        %v2257 = vld [vmem:[#allocation6 + $0x8] sm:$0xff]
        %v2258 = vld [vmem:[#allocation6 + $0x10] sm:$0xff]
        %v2259 = vld [vmem:[#allocation6 + $0x18] sm:$0xff]
        %v2260 = vld [vmem:[#allocation6 + $0x20] sm:$0xff]
        %v2261 = vld [vmem:[#allocation6 + $0x28] sm:$0xff]
        %v2262 = vld [vmem:[#allocation6 + $0x30] sm:$0xff]
        %v2263 = vld [vmem:[#allocation6 + $0x38] sm:$0xff]
        %v2264 = vld [vmem:[#allocation6 + $0x40] sm:$0xff]
        %v2265 = vld [vmem:[#allocation6 + $0x48] sm:$0xff]
        %v2266 = vld [vmem:[#allocation6 + $0x50] sm:$0xff]
        %v2267 = vld [vmem:[#allocation6 + $0x58] sm:$0xff]
        %v2268 = vld [vmem:[#allocation6 + $0x60] sm:$0xff]
        %v2269 = vld [vmem:[#allocation6 + $0x68] sm:$0xff]
        %v2270 = vld [vmem:[#allocation6 + $0x70] sm:$0xff]
        %v2271 = vld [vmem:[#allocation6 + $0x78] sm:$0xff]
        %v2272 = vld [vmem:[#allocation6 + $0x80] sm:$0xff]
        %v2273 = vld [vmem:[#allocation6 + $0x88] sm:$0xff]
        %v2274 = vld [vmem:[#allocation6 + $0x90] sm:$0xff]
        %v2275 = vld [vmem:[#allocation6 + $0x98] sm:$0xff]
        %v2276 = vld [vmem:[#allocation6 + $0xa0] sm:$0xff]
        %v2277 = vld [vmem:[#allocation6 + $0xa8] sm:$0xff]
        %v2278 = vld [vmem:[#allocation6 + $0xb0] sm:$0xff]
        %v2279 = vld [vmem:[#allocation6 + $0xb8] sm:$0xff]
        %v2280 = vld [vmem:[#allocation6 + $0xc0] sm:$0xff]
        %v2281 = vld [vmem:[#allocation6 + $0xc8] sm:$0xff]
        %v2282 = vld [vmem:[#allocation6 + $0xd0] sm:$0xff]
        %v2283 = vld [vmem:[#allocation6 + $0xd8] sm:$0xff]
        %v2284 = vld [vmem:[#allocation6 + $0xe0] sm:$0xff]
        %v2285 = vld [vmem:[#allocation6 + $0xe8] sm:$0xff]
        %v2286 = vld [vmem:[#allocation6 + $0xf0] sm:$0xff]
        %v2287 = vld [vmem:[#allocation6 + $0xf8] sm:$0xff]
        %v2288 = vld [vmem:[#allocation6 + $0x100] sm:$0xff]
        %v2289 = vld [vmem:[#allocation6 + $0x108] sm:$0xff]
        %v2290 = vld [vmem:[#allocation6 + $0x110] sm:$0xff]
        %v2291 = vld [vmem:[#allocation6 + $0x118] sm:$0x3f]
        %v2292 = vadd.f32 %v2256, %v2078
        %v2293 = vadd.f32 %v2257, %v2083
        %v2294 = vadd.f32 %v2258, %v2088
        %v2295 = vadd.f32 %v2259, %v2093
        %v2296 = vadd.f32 %v2260, %v2098
        %v2297 = vadd.f32 %v2261, %v2103
        %v2298 = vadd.f32 %v2262, %v2108
        %v2299 = vadd.f32 %v2263, %v2113
        %v2300 = vadd.f32 %v2264, %v2118
        %v2301 = vadd.f32 %v2265, %v2123
        %v2302 = vadd.f32 %v2266, %v2128
        %v2303 = vadd.f32 %v2267, %v2133
        %v2304 = vadd.f32 %v2268, %v2138
        %v2305 = vadd.f32 %v2269, %v2143
        %v2306 = vadd.f32 %v2270, %v2148
        %v2307 = vadd.f32 %v2271, %v2153
        %v2308 = vadd.f32 %v2272, %v2158
        %v2309 = vadd.f32 %v2273, %v2163
        %v2310 = vadd.f32 %v2274, %v2168
        %v2311 = vadd.f32 %v2275, %v2173
        %v2312 = vadd.f32 %v2276, %v2178
        %v2313 = vadd.f32 %v2277, %v2183
        %v2314 = vadd.f32 %v2278, %v2188
        %v2315 = vadd.f32 %v2279, %v2193
        %v2316 = vadd.f32 %v2280, %v2198
        %v2317 = vadd.f32 %v2281, %v2203
        %v2318 = vadd.f32 %v2282, %v2208
        %v2319 = vadd.f32 %v2283, %v2213
        %v2320 = vadd.f32 %v2284, %v2218
        %v2321 = vadd.f32 %v2285, %v2223
        %v2322 = vadd.f32 %v2286, %v2228
        %v2323 = vadd.f32 %v2287, %v2233
        %v2324 = vadd.f32 %v2288, %v2238
        %v2325 = vadd.f32 %v2289, %v2243
        %v2326 = vadd.f32 %v2290, %v2248
        %v2327 = vadd.f32 %v2291, %v2253
        %2328 = vst.msk [vmem:[#allocation6] sm:$0xff] %vm412, %v2292
        %2329 = vst.msk [vmem:[#allocation6 + $0x8] sm:$0xff] %vm412, %v2293
        %2330 = vst.msk [vmem:[#allocation6 + $0x10] sm:$0xff] %vm412, %v2294
        %2331 = vst.msk [vmem:[#allocation6 + $0x18] sm:$0xff] %vm412, %v2295
        %2332 = vst.msk [vmem:[#allocation6 + $0x20] sm:$0xff] %vm412, %v2296
        %2333 = vst.msk [vmem:[#allocation6 + $0x28] sm:$0xff] %vm412, %v2297
        %2334 = vst.msk [vmem:[#allocation6 + $0x30] sm:$0xff] %vm412, %v2298
        %2335 = vst.msk [vmem:[#allocation6 + $0x38] sm:$0xff] %vm412, %v2299
        %2336 = vst.msk [vmem:[#allocation6 + $0x40] sm:$0xff] %vm412, %v2300
        %2337 = vst.msk [vmem:[#allocation6 + $0x48] sm:$0xff] %vm412, %v2301
        %2338 = vst.msk [vmem:[#allocation6 + $0x50] sm:$0xff] %vm412, %v2302
        %2339 = vst.msk [vmem:[#allocation6 + $0x58] sm:$0xff] %vm412, %v2303
        %2340 = vst.msk [vmem:[#allocation6 + $0x60] sm:$0xff] %vm412, %v2304
        %2341 = vst.msk [vmem:[#allocation6 + $0x68] sm:$0xff] %vm412, %v2305
        %2342 = vst.msk [vmem:[#allocation6 + $0x70] sm:$0xff] %vm412, %v2306
        %2343 = vst.msk [vmem:[#allocation6 + $0x78] sm:$0xff] %vm412, %v2307
        %2344 = vst.msk [vmem:[#allocation6 + $0x80] sm:$0xff] %vm412, %v2308
        %2345 = vst.msk [vmem:[#allocation6 + $0x88] sm:$0xff] %vm412, %v2309
        %2346 = vst.msk [vmem:[#allocation6 + $0x90] sm:$0xff] %vm412, %v2310
        %2347 = vst.msk [vmem:[#allocation6 + $0x98] sm:$0xff] %vm412, %v2311
        %2348 = vst.msk [vmem:[#allocation6 + $0xa0] sm:$0xff] %vm412, %v2312
        %2349 = vst.msk [vmem:[#allocation6 + $0xa8] sm:$0xff] %vm412, %v2313
        %2350 = vst.msk [vmem:[#allocation6 + $0xb0] sm:$0xff] %vm412, %v2314
        %2351 = vst.msk [vmem:[#allocation6 + $0xb8] sm:$0xff] %vm412, %v2315
        %2352 = vst.msk [vmem:[#allocation6 + $0xc0] sm:$0xff] %vm412, %v2316
        %2353 = vst.msk [vmem:[#allocation6 + $0xc8] sm:$0xff] %vm412, %v2317
        %2354 = vst.msk [vmem:[#allocation6 + $0xd0] sm:$0xff] %vm412, %v2318
        %2355 = vst.msk [vmem:[#allocation6 + $0xd8] sm:$0xff] %vm412, %v2319
        %2356 = vst.msk [vmem:[#allocation6 + $0xe0] sm:$0xff] %vm412, %v2320
        %2357 = vst.msk [vmem:[#allocation6 + $0xe8] sm:$0xff] %vm412, %v2321
        %2358 = vst.msk [vmem:[#allocation6 + $0xf0] sm:$0xff] %vm412, %v2322
        %2359 = vst.msk [vmem:[#allocation6 + $0xf8] sm:$0xff] %vm412, %v2323
        %2360 = vst.msk [vmem:[#allocation6 + $0x100] sm:$0xff] %vm412, %v2324
        %2361 = vst.msk [vmem:[#allocation6 + $0x108] sm:$0xff] %vm412, %v2325
        %2362 = vst.msk [vmem:[#allocation6 + $0x110] sm:$0xff] %vm412, %v2326
        %2363 = vst.msk [vmem:[#allocation6 + $0x118] sm:$0x3f] %vm856, %v2327
        %v2364 = vld [vmem:[#allocation2 + $0x13] sm:$0xff]
        %v2365 = vld [vmem:[#allocation2 + $0x1b] sm:$0xff]
        %v2366 = vld [vmem:[#allocation2 + $0x23] sm:$0xff]
        %v2367 = vld [vmem:[#allocation2 + $0x2b] sm:$0xff]
        %v2368 = vld [vmem:[#allocation2 + $0x33] sm:$0xff]
        %v2369 = vld [vmem:[#allocation2 + $0x3b] sm:$0xff]
        %v2370 = vld [vmem:[#allocation2 + $0x43] sm:$0xff]
        %v2371 = vld [vmem:[#allocation2 + $0x4b] sm:$0xff]
        %v2372 = vld [vmem:[#allocation2 + $0x53] sm:$0xff]
        %v2373 = vld [vmem:[#allocation2 + $0x5b] sm:$0xff]
        %v2374 = vld [vmem:[#allocation2 + $0x63] sm:$0xff]
        %v2375 = vld [vmem:[#allocation2 + $0x6b] sm:$0xff]
        %v2376 = vld [vmem:[#allocation2 + $0x73] sm:$0xff]
        %v2377 = vld [vmem:[#allocation2 + $0x7b] sm:$0xff]
        %v2378 = vld [vmem:[#allocation2 + $0x83] sm:$0xff]
        %v2379 = vld [vmem:[#allocation2 + $0x8b] sm:$0xff]
        %v2380 = vld [vmem:[#allocation2 + $0x93] sm:$0xff]
        %v2381 = vld [vmem:[#allocation2 + $0x9b] sm:$0xff]
        %v2382 = vld [vmem:[#allocation2 + $0xa3] sm:$0xff]
        %v2383 = vld [vmem:[#allocation2 + $0xab] sm:$0xff]
        %v2384 = vld [vmem:[#allocation2 + $0xb3] sm:$0xff]
        %v2385 = vld [vmem:[#allocation2 + $0xbb] sm:$0xff]
        %v2386 = vld [vmem:[#allocation2 + $0xc3] sm:$0xff]
        %v2387 = vld [vmem:[#allocation2 + $0xcb] sm:$0xff]
        %v2388 = vld [vmem:[#allocation2 + $0xd3] sm:$0xff]
        %v2389 = vld [vmem:[#allocation2 + $0xdb] sm:$0xff]
        %v2390 = vld [vmem:[#allocation2 + $0xe3] sm:$0xff]
        %v2391 = vld [vmem:[#allocation2 + $0xeb] sm:$0xff]
        %v2392 = vld [vmem:[#allocation2 + $0xf3] sm:$0xff]
        %v2393 = vld [vmem:[#allocation2 + $0xfb] sm:$0xff]
        %v2394 = vld [vmem:[#allocation2 + $0x103] sm:$0xff]
        %v2395 = vld [vmem:[#allocation2 + $0x10b] sm:$0xff]
        %v2396 = vld [vmem:[#allocation2 + $0x113] sm:$0xff]
        %v2397 = vld [vmem:[#allocation2 + $0x11b] sm:$0xff]
        %v2398 = vld [vmem:[#allocation2 + $0x123] sm:$0xff]
        %v2399 = vld [vmem:[#allocation2 + $0x12b] sm:$0x3f]
        %s2400 = scalar_lea.vmem %s1, 16
        %v2401 = vld [vmem:[%s2400] sm:$0x7]
        %v2403 = vsel %vm291, %v2364, 0
        %v2406 = vsel %vm291, %v2365, 0
        %v2409 = vsel %vm291, %v2366, 0
        %v2412 = vsel %vm291, %v2367, 0
        %v2415 = vsel %vm291, %v2368, 0
        %v2418 = vsel %vm291, %v2369, 0
        %v2421 = vsel %vm291, %v2370, 0
        %v2424 = vsel %vm291, %v2371, 0
        %v2427 = vsel %vm291, %v2372, 0
        %v2430 = vsel %vm291, %v2373, 0
        %v2433 = vsel %vm291, %v2374, 0
        %v2436 = vsel %vm291, %v2375, 0
        %v2439 = vsel %vm291, %v2376, 0
        %v2442 = vsel %vm291, %v2377, 0
        %v2445 = vsel %vm291, %v2378, 0
        %v2448 = vsel %vm291, %v2379, 0
        %v2451 = vsel %vm291, %v2380, 0
        %v2454 = vsel %vm291, %v2381, 0
        %v2457 = vsel %vm291, %v2382, 0
        %v2460 = vsel %vm291, %v2383, 0
        %v2463 = vsel %vm291, %v2384, 0
        %v2466 = vsel %vm291, %v2385, 0
        %v2469 = vsel %vm291, %v2386, 0
        %v2472 = vsel %vm291, %v2387, 0
        %v2475 = vsel %vm291, %v2388, 0
        %v2478 = vsel %vm291, %v2389, 0
        %v2481 = vsel %vm291, %v2390, 0
        %v2484 = vsel %vm291, %v2391, 0
        %v2487 = vsel %vm291, %v2392, 0
        %v2490 = vsel %vm291, %v2393, 0
        %v2493 = vsel %vm291, %v2394, 0
        %v2496 = vsel %vm291, %v2395, 0
        %v2499 = vsel %vm291, %v2396, 0
        %v2502 = vsel %vm291, %v2397, 0
        %v2505 = vsel %vm291, %v2398, 0
        %v2508 = vsel %vm291, %v2399, 0
        %v2511 = vsel %vm572, %v2401, 0
        %2513 = vmatprep.subr.mxu0 0.0
        %2514 = vmatpush1.msra.mxu0 0.0
        %2515 = vmatprep.subr.mxu0 0.0
        %2516 = vmatpush1.msra.mxu0 0.0
        %2517 = vmatprep.subr.mxu0 0.0
        %2518 = vmatpush1.msra.mxu0 0.0
        %2519 = vmatprep.subr.mxu0 0.0
        %2520 = vmatpush1.msra.mxu0 0.0
        %2521 = vmatprep.subr.mxu0 0.0
        %2522 = vmatpush1.msra.mxu0 0.0
        %2523 = vmatprep.subr.mxu0 0.0
        %2524 = vmatpush1.msra.mxu0 0.0
        %2525 = vmatprep.subr.mxu0 0.0
        %2526 = vmatpush1.msra.mxu0 0.0
        %2527 = vmatprep.subr.mxu0 0.0
        %2528 = vmatpush1.msra.mxu0 0.0
        %2529 = vmatprep.subr.mxu0 0.0
        %2530 = vmatpush1.msra.mxu0 0.0
        %2531 = vmatprep.subr.mxu0 0.0
        %2532 = vmatpush1.msra.mxu0 0.0
        %2533 = vmatprep.subr.mxu0 0.0
        %2534 = vmatpush1.msra.mxu0 0.0
        %2535 = vmatprep.subr.mxu0 0.0
        %2536 = vmatpush1.msra.mxu0 0.0
        %2537 = vmatprep.subr.mxu0 0.0
        %2538 = vmatpush1.msra.mxu0 0.0
        %2539 = vmatprep.subr.mxu0 0.0
        %2540 = vmatpush1.msra.mxu0 0.0
        %2541 = vmatprep.subr.mxu0 0.0
        %2542 = vmatpush1.msra.mxu0 0.0
        %2543 = vmatprep.subr.mxu0 0.0
        %2544 = vmatpush1.msra.mxu0 %v2511
        %2545 = vmatprep.subr.mxu0 0.0
        %2546 = vmatpush2.msra.mxu0 0.0
        %2547 = vmatprep.subr.mxu0 0.0
        %2548 = vmatpush2.msra.mxu0 0.0
        %2549 = vmatprep.subr.mxu0 0.0
        %2550 = vmatpush2.msra.mxu0 0.0
        %2551 = vmatprep.subr.mxu0 0.0
        %2552 = vmatpush2.msra.mxu0 0.0
        %2553 = vmatprep.subr.mxu0 0.0
        %2554 = vmatpush2.msra.mxu0 0.0
        %2555 = vmatprep.subr.mxu0 0.0
        %2556 = vmatpush2.msra.mxu0 0.0
        %2557 = vmatprep.subr.mxu0 0.0
        %2558 = vmatpush2.msra.mxu0 0.0
        %2559 = vmatprep.subr.mxu0 0.0
        %2560 = vmatpush2.msra.mxu0 0.0
        %2561 = vmatprep.subr.mxu0 0.0
        %2562 = vmatpush2.msra.mxu0 0.0
        %2563 = vmatprep.subr.mxu0 0.0
        %2564 = vmatpush2.msra.mxu0 0.0
        %2565 = vmatprep.subr.mxu0 0.0
        %2566 = vmatpush2.msra.mxu0 0.0
        %2567 = vmatprep.subr.mxu0 0.0
        %2568 = vmatpush2.msra.mxu0 0.0
        %2569 = vmatprep.subr.mxu0 0.0
        %2570 = vmatpush2.msra.mxu0 0.0
        %2571 = vmatprep.subr.mxu0 0.0
        %2572 = vmatpush2.msra.mxu0 0.0
        %2573 = vmatprep.subr.mxu0 0.0
        %2574 = vmatpush2.msra.mxu0 0.0
        %2575 = vmatprep.subr.mxu0 0.0
        %2576 = vmatpush2.msra.mxu0 0.0
        %2577 = vmatprep.mubr.f32.mxu0 0.0
        %2578 = vmatmul.mubr.f32.gmra.mxu0 %v2403
        %v2579 = vpop.f32.mrf.mxu0
        %v2580 = vadd.f32 0.0, %v2579
        %v2581 = vpop.f32.mrf.mxu0
        %2582 = vmatprep.mubr.f32.mxu0 0.0
        %2583 = vmatmul.mubr.f32.gmra.mxu0 %v2406
        %v2584 = vpop.f32.mrf.mxu0
        %v2585 = vadd.f32 0.0, %v2584
        %v2586 = vpop.f32.mrf.mxu0
        %2587 = vmatprep.mubr.f32.mxu0 0.0
        %2588 = vmatmul.mubr.f32.gmra.mxu0 %v2409
        %v2589 = vpop.f32.mrf.mxu0
        %v2590 = vadd.f32 0.0, %v2589
        %v2591 = vpop.f32.mrf.mxu0
        %2592 = vmatprep.mubr.f32.mxu0 0.0
        %2593 = vmatmul.mubr.f32.gmra.mxu0 %v2412
        %v2594 = vpop.f32.mrf.mxu0
        %v2595 = vadd.f32 0.0, %v2594
        %v2596 = vpop.f32.mrf.mxu0
        %2597 = vmatprep.mubr.f32.mxu0 0.0
        %2598 = vmatmul.mubr.f32.gmra.mxu0 %v2415
        %v2599 = vpop.f32.mrf.mxu0
        %v2600 = vadd.f32 0.0, %v2599
        %v2601 = vpop.f32.mrf.mxu0
        %2602 = vmatprep.mubr.f32.mxu0 0.0
        %2603 = vmatmul.mubr.f32.gmra.mxu0 %v2418
        %v2604 = vpop.f32.mrf.mxu0
        %v2605 = vadd.f32 0.0, %v2604
        %v2606 = vpop.f32.mrf.mxu0
        %2607 = vmatprep.mubr.f32.mxu0 0.0
        %2608 = vmatmul.mubr.f32.gmra.mxu0 %v2421
        %v2609 = vpop.f32.mrf.mxu0
        %v2610 = vadd.f32 0.0, %v2609
        %v2611 = vpop.f32.mrf.mxu0
        %2612 = vmatprep.mubr.f32.mxu0 0.0
        %2613 = vmatmul.mubr.f32.gmra.mxu0 %v2424
        %v2614 = vpop.f32.mrf.mxu0
        %v2615 = vadd.f32 0.0, %v2614
        %v2616 = vpop.f32.mrf.mxu0
        %2617 = vmatprep.mubr.f32.mxu0 0.0
        %2618 = vmatmul.mubr.f32.gmra.mxu0 %v2427
        %v2619 = vpop.f32.mrf.mxu0
        %v2620 = vadd.f32 0.0, %v2619
        %v2621 = vpop.f32.mrf.mxu0
        %2622 = vmatprep.mubr.f32.mxu0 0.0
        %2623 = vmatmul.mubr.f32.gmra.mxu0 %v2430
        %v2624 = vpop.f32.mrf.mxu0
        %v2625 = vadd.f32 0.0, %v2624
        %v2626 = vpop.f32.mrf.mxu0
        %2627 = vmatprep.mubr.f32.mxu0 0.0
        %2628 = vmatmul.mubr.f32.gmra.mxu0 %v2433
        %v2629 = vpop.f32.mrf.mxu0
        %v2630 = vadd.f32 0.0, %v2629
        %v2631 = vpop.f32.mrf.mxu0
        %2632 = vmatprep.mubr.f32.mxu0 0.0
        %2633 = vmatmul.mubr.f32.gmra.mxu0 %v2436
        %v2634 = vpop.f32.mrf.mxu0
        %v2635 = vadd.f32 0.0, %v2634
        %v2636 = vpop.f32.mrf.mxu0
        %2637 = vmatprep.mubr.f32.mxu0 0.0
        %2638 = vmatmul.mubr.f32.gmra.mxu0 %v2439
        %v2639 = vpop.f32.mrf.mxu0
        %v2640 = vadd.f32 0.0, %v2639
        %v2641 = vpop.f32.mrf.mxu0
        %2642 = vmatprep.mubr.f32.mxu0 0.0
        %2643 = vmatmul.mubr.f32.gmra.mxu0 %v2442
        %v2644 = vpop.f32.mrf.mxu0
        %v2645 = vadd.f32 0.0, %v2644
        %v2646 = vpop.f32.mrf.mxu0
        %2647 = vmatprep.mubr.f32.mxu0 0.0
        %2648 = vmatmul.mubr.f32.gmra.mxu0 %v2445
        %v2649 = vpop.f32.mrf.mxu0
        %v2650 = vadd.f32 0.0, %v2649
        %v2651 = vpop.f32.mrf.mxu0
        %2652 = vmatprep.mubr.f32.mxu0 0.0
        %2653 = vmatmul.mubr.f32.gmra.mxu0 %v2448
        %v2654 = vpop.f32.mrf.mxu0
        %v2655 = vadd.f32 0.0, %v2654
        %v2656 = vpop.f32.mrf.mxu0
        %2657 = vmatprep.mubr.f32.mxu0 0.0
        %2658 = vmatmul.mubr.f32.gmra.mxu0 %v2451
        %v2659 = vpop.f32.mrf.mxu0
        %v2660 = vadd.f32 0.0, %v2659
        %v2661 = vpop.f32.mrf.mxu0
        %2662 = vmatprep.mubr.f32.mxu0 0.0
        %2663 = vmatmul.mubr.f32.gmra.mxu0 %v2454
        %v2664 = vpop.f32.mrf.mxu0
        %v2665 = vadd.f32 0.0, %v2664
        %v2666 = vpop.f32.mrf.mxu0
        %2667 = vmatprep.mubr.f32.mxu0 0.0
        %2668 = vmatmul.mubr.f32.gmra.mxu0 %v2457
        %v2669 = vpop.f32.mrf.mxu0
        %v2670 = vadd.f32 0.0, %v2669
        %v2671 = vpop.f32.mrf.mxu0
        %2672 = vmatprep.mubr.f32.mxu0 0.0
        %2673 = vmatmul.mubr.f32.gmra.mxu0 %v2460
        %v2674 = vpop.f32.mrf.mxu0
        %v2675 = vadd.f32 0.0, %v2674
        %v2676 = vpop.f32.mrf.mxu0
        %2677 = vmatprep.mubr.f32.mxu0 0.0
        %2678 = vmatmul.mubr.f32.gmra.mxu0 %v2463
        %v2679 = vpop.f32.mrf.mxu0
        %v2680 = vadd.f32 0.0, %v2679
        %v2681 = vpop.f32.mrf.mxu0
        %2682 = vmatprep.mubr.f32.mxu0 0.0
        %2683 = vmatmul.mubr.f32.gmra.mxu0 %v2466
        %v2684 = vpop.f32.mrf.mxu0
        %v2685 = vadd.f32 0.0, %v2684
        %v2686 = vpop.f32.mrf.mxu0
        %2687 = vmatprep.mubr.f32.mxu0 0.0
        %2688 = vmatmul.mubr.f32.gmra.mxu0 %v2469
        %v2689 = vpop.f32.mrf.mxu0
        %v2690 = vadd.f32 0.0, %v2689
        %v2691 = vpop.f32.mrf.mxu0
        %2692 = vmatprep.mubr.f32.mxu0 0.0
        %2693 = vmatmul.mubr.f32.gmra.mxu0 %v2472
        %v2694 = vpop.f32.mrf.mxu0
        %v2695 = vadd.f32 0.0, %v2694
        %v2696 = vpop.f32.mrf.mxu0
        %2697 = vmatprep.mubr.f32.mxu0 0.0
        %2698 = vmatmul.mubr.f32.gmra.mxu0 %v2475
        %v2699 = vpop.f32.mrf.mxu0
        %v2700 = vadd.f32 0.0, %v2699
        %v2701 = vpop.f32.mrf.mxu0
        %2702 = vmatprep.mubr.f32.mxu0 0.0
        %2703 = vmatmul.mubr.f32.gmra.mxu0 %v2478
        %v2704 = vpop.f32.mrf.mxu0
        %v2705 = vadd.f32 0.0, %v2704
        %v2706 = vpop.f32.mrf.mxu0
        %2707 = vmatprep.mubr.f32.mxu0 0.0
        %2708 = vmatmul.mubr.f32.gmra.mxu0 %v2481
        %v2709 = vpop.f32.mrf.mxu0
        %v2710 = vadd.f32 0.0, %v2709
        %v2711 = vpop.f32.mrf.mxu0
        %2712 = vmatprep.mubr.f32.mxu0 0.0
        %2713 = vmatmul.mubr.f32.gmra.mxu0 %v2484
        %v2714 = vpop.f32.mrf.mxu0
        %v2715 = vadd.f32 0.0, %v2714
        %v2716 = vpop.f32.mrf.mxu0
        %2717 = vmatprep.mubr.f32.mxu0 0.0
        %2718 = vmatmul.mubr.f32.gmra.mxu0 %v2487
        %v2719 = vpop.f32.mrf.mxu0
        %v2720 = vadd.f32 0.0, %v2719
        %v2721 = vpop.f32.mrf.mxu0
        %2722 = vmatprep.mubr.f32.mxu0 0.0
        %2723 = vmatmul.mubr.f32.gmra.mxu0 %v2490
        %v2724 = vpop.f32.mrf.mxu0
        %v2725 = vadd.f32 0.0, %v2724
        %v2726 = vpop.f32.mrf.mxu0
        %2727 = vmatprep.mubr.f32.mxu0 0.0
        %2728 = vmatmul.mubr.f32.gmra.mxu0 %v2493
        %v2729 = vpop.f32.mrf.mxu0
        %v2730 = vadd.f32 0.0, %v2729
        %v2731 = vpop.f32.mrf.mxu0
        %2732 = vmatprep.mubr.f32.mxu0 0.0
        %2733 = vmatmul.mubr.f32.gmra.mxu0 %v2496
        %v2734 = vpop.f32.mrf.mxu0
        %v2735 = vadd.f32 0.0, %v2734
        %v2736 = vpop.f32.mrf.mxu0
        %2737 = vmatprep.mubr.f32.mxu0 0.0
        %2738 = vmatmul.mubr.f32.gmra.mxu0 %v2499
        %v2739 = vpop.f32.mrf.mxu0
        %v2740 = vadd.f32 0.0, %v2739
        %v2741 = vpop.f32.mrf.mxu0
        %2742 = vmatprep.mubr.f32.mxu0 0.0
        %2743 = vmatmul.mubr.f32.gmra.mxu0 %v2502
        %v2744 = vpop.f32.mrf.mxu0
        %v2745 = vadd.f32 0.0, %v2744
        %v2746 = vpop.f32.mrf.mxu0
        %2747 = vmatprep.mubr.f32.mxu0 0.0
        %2748 = vmatmul.mubr.f32.gmra.mxu0 %v2505
        %v2749 = vpop.f32.mrf.mxu0
        %v2750 = vadd.f32 0.0, %v2749
        %v2751 = vpop.f32.mrf.mxu0
        %2752 = vmatprep.mubr.f32.mxu0 0.0
        %2753 = vmatmul.mubr.f32.gmra.mxu0 %v2508
        %v2754 = vpop.f32.mrf.mxu0
        %v2755 = vadd.f32 0.0, %v2754
        %v2756 = vpop.f32.mrf.mxu0
        %2757 = vdwg.mxu0
        %v2758 = vld [vmem:[#allocation6] sm:$0xff]
        %v2759 = vld [vmem:[#allocation6 + $0x8] sm:$0xff]
        %v2760 = vld [vmem:[#allocation6 + $0x10] sm:$0xff]
        %v2761 = vld [vmem:[#allocation6 + $0x18] sm:$0xff]
        %v2762 = vld [vmem:[#allocation6 + $0x20] sm:$0xff]
        %v2763 = vld [vmem:[#allocation6 + $0x28] sm:$0xff]
        %v2764 = vld [vmem:[#allocation6 + $0x30] sm:$0xff]
        %v2765 = vld [vmem:[#allocation6 + $0x38] sm:$0xff]
        %v2766 = vld [vmem:[#allocation6 + $0x40] sm:$0xff]
        %v2767 = vld [vmem:[#allocation6 + $0x48] sm:$0xff]
        %v2768 = vld [vmem:[#allocation6 + $0x50] sm:$0xff]
        %v2769 = vld [vmem:[#allocation6 + $0x58] sm:$0xff]
        %v2770 = vld [vmem:[#allocation6 + $0x60] sm:$0xff]
        %v2771 = vld [vmem:[#allocation6 + $0x68] sm:$0xff]
        %v2772 = vld [vmem:[#allocation6 + $0x70] sm:$0xff]
        %v2773 = vld [vmem:[#allocation6 + $0x78] sm:$0xff]
        %v2774 = vld [vmem:[#allocation6 + $0x80] sm:$0xff]
        %v2775 = vld [vmem:[#allocation6 + $0x88] sm:$0xff]
        %v2776 = vld [vmem:[#allocation6 + $0x90] sm:$0xff]
        %v2777 = vld [vmem:[#allocation6 + $0x98] sm:$0xff]
        %v2778 = vld [vmem:[#allocation6 + $0xa0] sm:$0xff]
        %v2779 = vld [vmem:[#allocation6 + $0xa8] sm:$0xff]
        %v2780 = vld [vmem:[#allocation6 + $0xb0] sm:$0xff]
        %v2781 = vld [vmem:[#allocation6 + $0xb8] sm:$0xff]
        %v2782 = vld [vmem:[#allocation6 + $0xc0] sm:$0xff]
        %v2783 = vld [vmem:[#allocation6 + $0xc8] sm:$0xff]
        %v2784 = vld [vmem:[#allocation6 + $0xd0] sm:$0xff]
        %v2785 = vld [vmem:[#allocation6 + $0xd8] sm:$0xff]
        %v2786 = vld [vmem:[#allocation6 + $0xe0] sm:$0xff]
        %v2787 = vld [vmem:[#allocation6 + $0xe8] sm:$0xff]
        %v2788 = vld [vmem:[#allocation6 + $0xf0] sm:$0xff]
        %v2789 = vld [vmem:[#allocation6 + $0xf8] sm:$0xff]
        %v2790 = vld [vmem:[#allocation6 + $0x100] sm:$0xff]
        %v2791 = vld [vmem:[#allocation6 + $0x108] sm:$0xff]
        %v2792 = vld [vmem:[#allocation6 + $0x110] sm:$0xff]
        %v2793 = vld [vmem:[#allocation6 + $0x118] sm:$0x3f]
        %v2794 = vadd.f32 %v2758, %v2580
        %v2795 = vadd.f32 %v2759, %v2585
        %v2796 = vadd.f32 %v2760, %v2590
        %v2797 = vadd.f32 %v2761, %v2595
        %v2798 = vadd.f32 %v2762, %v2600
        %v2799 = vadd.f32 %v2763, %v2605
        %v2800 = vadd.f32 %v2764, %v2610
        %v2801 = vadd.f32 %v2765, %v2615
        %v2802 = vadd.f32 %v2766, %v2620
        %v2803 = vadd.f32 %v2767, %v2625
        %v2804 = vadd.f32 %v2768, %v2630
        %v2805 = vadd.f32 %v2769, %v2635
        %v2806 = vadd.f32 %v2770, %v2640
        %v2807 = vadd.f32 %v2771, %v2645
        %v2808 = vadd.f32 %v2772, %v2650
        %v2809 = vadd.f32 %v2773, %v2655
        %v2810 = vadd.f32 %v2774, %v2660
        %v2811 = vadd.f32 %v2775, %v2665
        %v2812 = vadd.f32 %v2776, %v2670
        %v2813 = vadd.f32 %v2777, %v2675
        %v2814 = vadd.f32 %v2778, %v2680
        %v2815 = vadd.f32 %v2779, %v2685
        %v2816 = vadd.f32 %v2780, %v2690
        %v2817 = vadd.f32 %v2781, %v2695
        %v2818 = vadd.f32 %v2782, %v2700
        %v2819 = vadd.f32 %v2783, %v2705
        %v2820 = vadd.f32 %v2784, %v2710
        %v2821 = vadd.f32 %v2785, %v2715
        %v2822 = vadd.f32 %v2786, %v2720
        %v2823 = vadd.f32 %v2787, %v2725
        %v2824 = vadd.f32 %v2788, %v2730
        %v2825 = vadd.f32 %v2789, %v2735
        %v2826 = vadd.f32 %v2790, %v2740
        %v2827 = vadd.f32 %v2791, %v2745
        %v2828 = vadd.f32 %v2792, %v2750
        %v2829 = vadd.f32 %v2793, %v2755
        %2830 = vst.msk [vmem:[#allocation6] sm:$0xff] %vm412, %v2794
        %2831 = vst.msk [vmem:[#allocation6 + $0x8] sm:$0xff] %vm412, %v2795
        %2832 = vst.msk [vmem:[#allocation6 + $0x10] sm:$0xff] %vm412, %v2796
        %2833 = vst.msk [vmem:[#allocation6 + $0x18] sm:$0xff] %vm412, %v2797
        %2834 = vst.msk [vmem:[#allocation6 + $0x20] sm:$0xff] %vm412, %v2798
        %2835 = vst.msk [vmem:[#allocation6 + $0x28] sm:$0xff] %vm412, %v2799
        %2836 = vst.msk [vmem:[#allocation6 + $0x30] sm:$0xff] %vm412, %v2800
        %2837 = vst.msk [vmem:[#allocation6 + $0x38] sm:$0xff] %vm412, %v2801
        %2838 = vst.msk [vmem:[#allocation6 + $0x40] sm:$0xff] %vm412, %v2802
        %2839 = vst.msk [vmem:[#allocation6 + $0x48] sm:$0xff] %vm412, %v2803
        %2840 = vst.msk [vmem:[#allocation6 + $0x50] sm:$0xff] %vm412, %v2804
        %2841 = vst.msk [vmem:[#allocation6 + $0x58] sm:$0xff] %vm412, %v2805
        %2842 = vst.msk [vmem:[#allocation6 + $0x60] sm:$0xff] %vm412, %v2806
        %2843 = vst.msk [vmem:[#allocation6 + $0x68] sm:$0xff] %vm412, %v2807
        %2844 = vst.msk [vmem:[#allocation6 + $0x70] sm:$0xff] %vm412, %v2808
        %2845 = vst.msk [vmem:[#allocation6 + $0x78] sm:$0xff] %vm412, %v2809
        %2846 = vst.msk [vmem:[#allocation6 + $0x80] sm:$0xff] %vm412, %v2810
        %2847 = vst.msk [vmem:[#allocation6 + $0x88] sm:$0xff] %vm412, %v2811
        %2848 = vst.msk [vmem:[#allocation6 + $0x90] sm:$0xff] %vm412, %v2812
        %2849 = vst.msk [vmem:[#allocation6 + $0x98] sm:$0xff] %vm412, %v2813
        %2850 = vst.msk [vmem:[#allocation6 + $0xa0] sm:$0xff] %vm412, %v2814
        %2851 = vst.msk [vmem:[#allocation6 + $0xa8] sm:$0xff] %vm412, %v2815
        %2852 = vst.msk [vmem:[#allocation6 + $0xb0] sm:$0xff] %vm412, %v2816
        %2853 = vst.msk [vmem:[#allocation6 + $0xb8] sm:$0xff] %vm412, %v2817
        %2854 = vst.msk [vmem:[#allocation6 + $0xc0] sm:$0xff] %vm412, %v2818
        %2855 = vst.msk [vmem:[#allocation6 + $0xc8] sm:$0xff] %vm412, %v2819
        %2856 = vst.msk [vmem:[#allocation6 + $0xd0] sm:$0xff] %vm412, %v2820
        %2857 = vst.msk [vmem:[#allocation6 + $0xd8] sm:$0xff] %vm412, %v2821
        %2858 = vst.msk [vmem:[#allocation6 + $0xe0] sm:$0xff] %vm412, %v2822
        %2859 = vst.msk [vmem:[#allocation6 + $0xe8] sm:$0xff] %vm412, %v2823
        %2860 = vst.msk [vmem:[#allocation6 + $0xf0] sm:$0xff] %vm412, %v2824
        %2861 = vst.msk [vmem:[#allocation6 + $0xf8] sm:$0xff] %vm412, %v2825
        %2862 = vst.msk [vmem:[#allocation6 + $0x100] sm:$0xff] %vm412, %v2826
        %2863 = vst.msk [vmem:[#allocation6 + $0x108] sm:$0xff] %vm412, %v2827
        %2864 = vst.msk [vmem:[#allocation6 + $0x110] sm:$0xff] %vm412, %v2828
        %2865 = vst.msk [vmem:[#allocation6 + $0x118] sm:$0x3f] %vm856, %v2829
        %v2866 = vld [vmem:[#allocation2 + $0x14] sm:$0xff]
        %v2867 = vld [vmem:[#allocation2 + $0x1c] sm:$0xff]
        %v2868 = vld [vmem:[#allocation2 + $0x24] sm:$0xff]
        %v2869 = vld [vmem:[#allocation2 + $0x2c] sm:$0xff]
        %v2870 = vld [vmem:[#allocation2 + $0x34] sm:$0xff]
        %v2871 = vld [vmem:[#allocation2 + $0x3c] sm:$0xff]
        %v2872 = vld [vmem:[#allocation2 + $0x44] sm:$0xff]
        %v2873 = vld [vmem:[#allocation2 + $0x4c] sm:$0xff]
        %v2874 = vld [vmem:[#allocation2 + $0x54] sm:$0xff]
        %v2875 = vld [vmem:[#allocation2 + $0x5c] sm:$0xff]
        %v2876 = vld [vmem:[#allocation2 + $0x64] sm:$0xff]
        %v2877 = vld [vmem:[#allocation2 + $0x6c] sm:$0xff]
        %v2878 = vld [vmem:[#allocation2 + $0x74] sm:$0xff]
        %v2879 = vld [vmem:[#allocation2 + $0x7c] sm:$0xff]
        %v2880 = vld [vmem:[#allocation2 + $0x84] sm:$0xff]
        %v2881 = vld [vmem:[#allocation2 + $0x8c] sm:$0xff]
        %v2882 = vld [vmem:[#allocation2 + $0x94] sm:$0xff]
        %v2883 = vld [vmem:[#allocation2 + $0x9c] sm:$0xff]
        %v2884 = vld [vmem:[#allocation2 + $0xa4] sm:$0xff]
        %v2885 = vld [vmem:[#allocation2 + $0xac] sm:$0xff]
        %v2886 = vld [vmem:[#allocation2 + $0xb4] sm:$0xff]
        %v2887 = vld [vmem:[#allocation2 + $0xbc] sm:$0xff]
        %v2888 = vld [vmem:[#allocation2 + $0xc4] sm:$0xff]
        %v2889 = vld [vmem:[#allocation2 + $0xcc] sm:$0xff]
        %v2890 = vld [vmem:[#allocation2 + $0xd4] sm:$0xff]
        %v2891 = vld [vmem:[#allocation2 + $0xdc] sm:$0xff]
        %v2892 = vld [vmem:[#allocation2 + $0xe4] sm:$0xff]
        %v2893 = vld [vmem:[#allocation2 + $0xec] sm:$0xff]
        %v2894 = vld [vmem:[#allocation2 + $0xf4] sm:$0xff]
        %v2895 = vld [vmem:[#allocation2 + $0xfc] sm:$0xff]
        %v2896 = vld [vmem:[#allocation2 + $0x104] sm:$0xff]
        %v2897 = vld [vmem:[#allocation2 + $0x10c] sm:$0xff]
        %v2898 = vld [vmem:[#allocation2 + $0x114] sm:$0xff]
        %v2899 = vld [vmem:[#allocation2 + $0x11c] sm:$0xff]
        %v2900 = vld [vmem:[#allocation2 + $0x124] sm:$0xff]
        %v2901 = vld [vmem:[#allocation2 + $0x12c] sm:$0x3f]
        %s2902 = scalar_lea.vmem %s1, 20
        %v2903 = vld [vmem:[%s2902] sm:$0x7]
        %v2905 = vsel %vm291, %v2866, 0
        %v2908 = vsel %vm291, %v2867, 0
        %v2911 = vsel %vm291, %v2868, 0
        %v2914 = vsel %vm291, %v2869, 0
        %v2917 = vsel %vm291, %v2870, 0
        %v2920 = vsel %vm291, %v2871, 0
        %v2923 = vsel %vm291, %v2872, 0
        %v2926 = vsel %vm291, %v2873, 0
        %v2929 = vsel %vm291, %v2874, 0
        %v2932 = vsel %vm291, %v2875, 0
        %v2935 = vsel %vm291, %v2876, 0
        %v2938 = vsel %vm291, %v2877, 0
        %v2941 = vsel %vm291, %v2878, 0
        %v2944 = vsel %vm291, %v2879, 0
        %v2947 = vsel %vm291, %v2880, 0
        %v2950 = vsel %vm291, %v2881, 0
        %v2953 = vsel %vm291, %v2882, 0
        %v2956 = vsel %vm291, %v2883, 0
        %v2959 = vsel %vm291, %v2884, 0
        %v2962 = vsel %vm291, %v2885, 0
        %v2965 = vsel %vm291, %v2886, 0
        %v2968 = vsel %vm291, %v2887, 0
        %v2971 = vsel %vm291, %v2888, 0
        %v2974 = vsel %vm291, %v2889, 0
        %v2977 = vsel %vm291, %v2890, 0
        %v2980 = vsel %vm291, %v2891, 0
        %v2983 = vsel %vm291, %v2892, 0
        %v2986 = vsel %vm291, %v2893, 0
        %v2989 = vsel %vm291, %v2894, 0
        %v2992 = vsel %vm291, %v2895, 0
        %v2995 = vsel %vm291, %v2896, 0
        %v2998 = vsel %vm291, %v2897, 0
        %v3001 = vsel %vm291, %v2898, 0
        %v3004 = vsel %vm291, %v2899, 0
        %v3007 = vsel %vm291, %v2900, 0
        %v3010 = vsel %vm291, %v2901, 0
        %v3013 = vsel %vm572, %v2903, 0
        %3015 = vmatprep.subr.mxu0 0.0
        %3016 = vmatpush1.msra.mxu0 0.0
        %3017 = vmatprep.subr.mxu0 0.0
        %3018 = vmatpush1.msra.mxu0 0.0
        %3019 = vmatprep.subr.mxu0 0.0
        %3020 = vmatpush1.msra.mxu0 0.0
        %3021 = vmatprep.subr.mxu0 0.0
        %3022 = vmatpush1.msra.mxu0 0.0
        %3023 = vmatprep.subr.mxu0 0.0
        %3024 = vmatpush1.msra.mxu0 0.0
        %3025 = vmatprep.subr.mxu0 0.0
        %3026 = vmatpush1.msra.mxu0 0.0
        %3027 = vmatprep.subr.mxu0 0.0
        %3028 = vmatpush1.msra.mxu0 0.0
        %3029 = vmatprep.subr.mxu0 0.0
        %3030 = vmatpush1.msra.mxu0 0.0
        %3031 = vmatprep.subr.mxu0 0.0
        %3032 = vmatpush1.msra.mxu0 0.0
        %3033 = vmatprep.subr.mxu0 0.0
        %3034 = vmatpush1.msra.mxu0 0.0
        %3035 = vmatprep.subr.mxu0 0.0
        %3036 = vmatpush1.msra.mxu0 0.0
        %3037 = vmatprep.subr.mxu0 0.0
        %3038 = vmatpush1.msra.mxu0 0.0
        %3039 = vmatprep.subr.mxu0 0.0
        %3040 = vmatpush1.msra.mxu0 0.0
        %3041 = vmatprep.subr.mxu0 0.0
        %3042 = vmatpush1.msra.mxu0 0.0
        %3043 = vmatprep.subr.mxu0 0.0
        %3044 = vmatpush1.msra.mxu0 0.0
        %3045 = vmatprep.subr.mxu0 0.0
        %3046 = vmatpush1.msra.mxu0 %v3013
        %3047 = vmatprep.subr.mxu0 0.0
        %3048 = vmatpush2.msra.mxu0 0.0
        %3049 = vmatprep.subr.mxu0 0.0
        %3050 = vmatpush2.msra.mxu0 0.0
        %3051 = vmatprep.subr.mxu0 0.0
        %3052 = vmatpush2.msra.mxu0 0.0
        %3053 = vmatprep.subr.mxu0 0.0
        %3054 = vmatpush2.msra.mxu0 0.0
        %3055 = vmatprep.subr.mxu0 0.0
        %3056 = vmatpush2.msra.mxu0 0.0
        %3057 = vmatprep.subr.mxu0 0.0
        %3058 = vmatpush2.msra.mxu0 0.0
        %3059 = vmatprep.subr.mxu0 0.0
        %3060 = vmatpush2.msra.mxu0 0.0
        %3061 = vmatprep.subr.mxu0 0.0
        %3062 = vmatpush2.msra.mxu0 0.0
        %3063 = vmatprep.subr.mxu0 0.0
        %3064 = vmatpush2.msra.mxu0 0.0
        %3065 = vmatprep.subr.mxu0 0.0
        %3066 = vmatpush2.msra.mxu0 0.0
        %3067 = vmatprep.subr.mxu0 0.0
        %3068 = vmatpush2.msra.mxu0 0.0
        %3069 = vmatprep.subr.mxu0 0.0
        %3070 = vmatpush2.msra.mxu0 0.0
        %3071 = vmatprep.subr.mxu0 0.0
        %3072 = vmatpush2.msra.mxu0 0.0
        %3073 = vmatprep.subr.mxu0 0.0
        %3074 = vmatpush2.msra.mxu0 0.0
        %3075 = vmatprep.subr.mxu0 0.0
        %3076 = vmatpush2.msra.mxu0 0.0
        %3077 = vmatprep.subr.mxu0 0.0
        %3078 = vmatpush2.msra.mxu0 0.0
        %3079 = vmatprep.mubr.f32.mxu0 0.0
        %3080 = vmatmul.mubr.f32.gmra.mxu0 %v2905
        %v3081 = vpop.f32.mrf.mxu0
        %v3082 = vadd.f32 0.0, %v3081
        %v3083 = vpop.f32.mrf.mxu0
        %3084 = vmatprep.mubr.f32.mxu0 0.0
        %3085 = vmatmul.mubr.f32.gmra.mxu0 %v2908
        %v3086 = vpop.f32.mrf.mxu0
        %v3087 = vadd.f32 0.0, %v3086
        %v3088 = vpop.f32.mrf.mxu0
        %3089 = vmatprep.mubr.f32.mxu0 0.0
        %3090 = vmatmul.mubr.f32.gmra.mxu0 %v2911
        %v3091 = vpop.f32.mrf.mxu0
        %v3092 = vadd.f32 0.0, %v3091
        %v3093 = vpop.f32.mrf.mxu0
        %3094 = vmatprep.mubr.f32.mxu0 0.0
        %3095 = vmatmul.mubr.f32.gmra.mxu0 %v2914
        %v3096 = vpop.f32.mrf.mxu0
        %v3097 = vadd.f32 0.0, %v3096
        %v3098 = vpop.f32.mrf.mxu0
        %3099 = vmatprep.mubr.f32.mxu0 0.0
        %3100 = vmatmul.mubr.f32.gmra.mxu0 %v2917
        %v3101 = vpop.f32.mrf.mxu0
        %v3102 = vadd.f32 0.0, %v3101
        %v3103 = vpop.f32.mrf.mxu0
        %3104 = vmatprep.mubr.f32.mxu0 0.0
        %3105 = vmatmul.mubr.f32.gmra.mxu0 %v2920
        %v3106 = vpop.f32.mrf.mxu0
        %v3107 = vadd.f32 0.0, %v3106
        %v3108 = vpop.f32.mrf.mxu0
        %3109 = vmatprep.mubr.f32.mxu0 0.0
        %3110 = vmatmul.mubr.f32.gmra.mxu0 %v2923
        %v3111 = vpop.f32.mrf.mxu0
        %v3112 = vadd.f32 0.0, %v3111
        %v3113 = vpop.f32.mrf.mxu0
        %3114 = vmatprep.mubr.f32.mxu0 0.0
        %3115 = vmatmul.mubr.f32.gmra.mxu0 %v2926
        %v3116 = vpop.f32.mrf.mxu0
        %v3117 = vadd.f32 0.0, %v3116
        %v3118 = vpop.f32.mrf.mxu0
        %3119 = vmatprep.mubr.f32.mxu0 0.0
        %3120 = vmatmul.mubr.f32.gmra.mxu0 %v2929
        %v3121 = vpop.f32.mrf.mxu0
        %v3122 = vadd.f32 0.0, %v3121
        %v3123 = vpop.f32.mrf.mxu0
        %3124 = vmatprep.mubr.f32.mxu0 0.0
        %3125 = vmatmul.mubr.f32.gmra.mxu0 %v2932
        %v3126 = vpop.f32.mrf.mxu0
        %v3127 = vadd.f32 0.0, %v3126
        %v3128 = vpop.f32.mrf.mxu0
        %3129 = vmatprep.mubr.f32.mxu0 0.0
        %3130 = vmatmul.mubr.f32.gmra.mxu0 %v2935
        %v3131 = vpop.f32.mrf.mxu0
        %v3132 = vadd.f32 0.0, %v3131
        %v3133 = vpop.f32.mrf.mxu0
        %3134 = vmatprep.mubr.f32.mxu0 0.0
        %3135 = vmatmul.mubr.f32.gmra.mxu0 %v2938
        %v3136 = vpop.f32.mrf.mxu0
        %v3137 = vadd.f32 0.0, %v3136
        %v3138 = vpop.f32.mrf.mxu0
        %3139 = vmatprep.mubr.f32.mxu0 0.0
        %3140 = vmatmul.mubr.f32.gmra.mxu0 %v2941
        %v3141 = vpop.f32.mrf.mxu0
        %v3142 = vadd.f32 0.0, %v3141
        %v3143 = vpop.f32.mrf.mxu0
        %3144 = vmatprep.mubr.f32.mxu0 0.0
        %3145 = vmatmul.mubr.f32.gmra.mxu0 %v2944
        %v3146 = vpop.f32.mrf.mxu0
        %v3147 = vadd.f32 0.0, %v3146
        %v3148 = vpop.f32.mrf.mxu0
        %3149 = vmatprep.mubr.f32.mxu0 0.0
        %3150 = vmatmul.mubr.f32.gmra.mxu0 %v2947
        %v3151 = vpop.f32.mrf.mxu0
        %v3152 = vadd.f32 0.0, %v3151
        %v3153 = vpop.f32.mrf.mxu0
        %3154 = vmatprep.mubr.f32.mxu0 0.0
        %3155 = vmatmul.mubr.f32.gmra.mxu0 %v2950
        %v3156 = vpop.f32.mrf.mxu0
        %v3157 = vadd.f32 0.0, %v3156
        %v3158 = vpop.f32.mrf.mxu0
        %3159 = vmatprep.mubr.f32.mxu0 0.0
        %3160 = vmatmul.mubr.f32.gmra.mxu0 %v2953
        %v3161 = vpop.f32.mrf.mxu0
        %v3162 = vadd.f32 0.0, %v3161
        %v3163 = vpop.f32.mrf.mxu0
        %3164 = vmatprep.mubr.f32.mxu0 0.0
        %3165 = vmatmul.mubr.f32.gmra.mxu0 %v2956
        %v3166 = vpop.f32.mrf.mxu0
        %v3167 = vadd.f32 0.0, %v3166
        %v3168 = vpop.f32.mrf.mxu0
        %3169 = vmatprep.mubr.f32.mxu0 0.0
        %3170 = vmatmul.mubr.f32.gmra.mxu0 %v2959
        %v3171 = vpop.f32.mrf.mxu0
        %v3172 = vadd.f32 0.0, %v3171
        %v3173 = vpop.f32.mrf.mxu0
        %3174 = vmatprep.mubr.f32.mxu0 0.0
        %3175 = vmatmul.mubr.f32.gmra.mxu0 %v2962
        %v3176 = vpop.f32.mrf.mxu0
        %v3177 = vadd.f32 0.0, %v3176
        %v3178 = vpop.f32.mrf.mxu0
        %3179 = vmatprep.mubr.f32.mxu0 0.0
        %3180 = vmatmul.mubr.f32.gmra.mxu0 %v2965
        %v3181 = vpop.f32.mrf.mxu0
        %v3182 = vadd.f32 0.0, %v3181
        %v3183 = vpop.f32.mrf.mxu0
        %3184 = vmatprep.mubr.f32.mxu0 0.0
        %3185 = vmatmul.mubr.f32.gmra.mxu0 %v2968
        %v3186 = vpop.f32.mrf.mxu0
        %v3187 = vadd.f32 0.0, %v3186
        %v3188 = vpop.f32.mrf.mxu0
        %3189 = vmatprep.mubr.f32.mxu0 0.0
        %3190 = vmatmul.mubr.f32.gmra.mxu0 %v2971
        %v3191 = vpop.f32.mrf.mxu0
        %v3192 = vadd.f32 0.0, %v3191
        %v3193 = vpop.f32.mrf.mxu0
        %3194 = vmatprep.mubr.f32.mxu0 0.0
        %3195 = vmatmul.mubr.f32.gmra.mxu0 %v2974
        %v3196 = vpop.f32.mrf.mxu0
        %v3197 = vadd.f32 0.0, %v3196
        %v3198 = vpop.f32.mrf.mxu0
        %3199 = vmatprep.mubr.f32.mxu0 0.0
        %3200 = vmatmul.mubr.f32.gmra.mxu0 %v2977
        %v3201 = vpop.f32.mrf.mxu0
        %v3202 = vadd.f32 0.0, %v3201
        %v3203 = vpop.f32.mrf.mxu0
        %3204 = vmatprep.mubr.f32.mxu0 0.0
        %3205 = vmatmul.mubr.f32.gmra.mxu0 %v2980
        %v3206 = vpop.f32.mrf.mxu0
        %v3207 = vadd.f32 0.0, %v3206
        %v3208 = vpop.f32.mrf.mxu0
        %3209 = vmatprep.mubr.f32.mxu0 0.0
        %3210 = vmatmul.mubr.f32.gmra.mxu0 %v2983
        %v3211 = vpop.f32.mrf.mxu0
        %v3212 = vadd.f32 0.0, %v3211
        %v3213 = vpop.f32.mrf.mxu0
        %3214 = vmatprep.mubr.f32.mxu0 0.0
        %3215 = vmatmul.mubr.f32.gmra.mxu0 %v2986
        %v3216 = vpop.f32.mrf.mxu0
        %v3217 = vadd.f32 0.0, %v3216
        %v3218 = vpop.f32.mrf.mxu0
        %3219 = vmatprep.mubr.f32.mxu0 0.0
        %3220 = vmatmul.mubr.f32.gmra.mxu0 %v2989
        %v3221 = vpop.f32.mrf.mxu0
        %v3222 = vadd.f32 0.0, %v3221
        %v3223 = vpop.f32.mrf.mxu0
        %3224 = vmatprep.mubr.f32.mxu0 0.0
        %3225 = vmatmul.mubr.f32.gmra.mxu0 %v2992
        %v3226 = vpop.f32.mrf.mxu0
        %v3227 = vadd.f32 0.0, %v3226
        %v3228 = vpop.f32.mrf.mxu0
        %3229 = vmatprep.mubr.f32.mxu0 0.0
        %3230 = vmatmul.mubr.f32.gmra.mxu0 %v2995
        %v3231 = vpop.f32.mrf.mxu0
        %v3232 = vadd.f32 0.0, %v3231
        %v3233 = vpop.f32.mrf.mxu0
        %3234 = vmatprep.mubr.f32.mxu0 0.0
        %3235 = vmatmul.mubr.f32.gmra.mxu0 %v2998
        %v3236 = vpop.f32.mrf.mxu0
        %v3237 = vadd.f32 0.0, %v3236
        %v3238 = vpop.f32.mrf.mxu0
        %3239 = vmatprep.mubr.f32.mxu0 0.0
        %3240 = vmatmul.mubr.f32.gmra.mxu0 %v3001
        %v3241 = vpop.f32.mrf.mxu0
        %v3242 = vadd.f32 0.0, %v3241
        %v3243 = vpop.f32.mrf.mxu0
        %3244 = vmatprep.mubr.f32.mxu0 0.0
        %3245 = vmatmul.mubr.f32.gmra.mxu0 %v3004
        %v3246 = vpop.f32.mrf.mxu0
        %v3247 = vadd.f32 0.0, %v3246
        %v3248 = vpop.f32.mrf.mxu0
        %3249 = vmatprep.mubr.f32.mxu0 0.0
        %3250 = vmatmul.mubr.f32.gmra.mxu0 %v3007
        %v3251 = vpop.f32.mrf.mxu0
        %v3252 = vadd.f32 0.0, %v3251
        %v3253 = vpop.f32.mrf.mxu0
        %3254 = vmatprep.mubr.f32.mxu0 0.0
        %3255 = vmatmul.mubr.f32.gmra.mxu0 %v3010
        %v3256 = vpop.f32.mrf.mxu0
        %v3257 = vadd.f32 0.0, %v3256
        %v3258 = vpop.f32.mrf.mxu0
        %3259 = vdwg.mxu0
        %v3260 = vld [vmem:[#allocation6] sm:$0xff]
        %v3261 = vld [vmem:[#allocation6 + $0x8] sm:$0xff]
        %v3262 = vld [vmem:[#allocation6 + $0x10] sm:$0xff]
        %v3263 = vld [vmem:[#allocation6 + $0x18] sm:$0xff]
        %v3264 = vld [vmem:[#allocation6 + $0x20] sm:$0xff]
        %v3265 = vld [vmem:[#allocation6 + $0x28] sm:$0xff]
        %v3266 = vld [vmem:[#allocation6 + $0x30] sm:$0xff]
        %v3267 = vld [vmem:[#allocation6 + $0x38] sm:$0xff]
        %v3268 = vld [vmem:[#allocation6 + $0x40] sm:$0xff]
        %v3269 = vld [vmem:[#allocation6 + $0x48] sm:$0xff]
        %v3270 = vld [vmem:[#allocation6 + $0x50] sm:$0xff]
        %v3271 = vld [vmem:[#allocation6 + $0x58] sm:$0xff]
        %v3272 = vld [vmem:[#allocation6 + $0x60] sm:$0xff]
        %v3273 = vld [vmem:[#allocation6 + $0x68] sm:$0xff]
        %v3274 = vld [vmem:[#allocation6 + $0x70] sm:$0xff]
        %v3275 = vld [vmem:[#allocation6 + $0x78] sm:$0xff]
        %v3276 = vld [vmem:[#allocation6 + $0x80] sm:$0xff]
        %v3277 = vld [vmem:[#allocation6 + $0x88] sm:$0xff]
        %v3278 = vld [vmem:[#allocation6 + $0x90] sm:$0xff]
        %v3279 = vld [vmem:[#allocation6 + $0x98] sm:$0xff]
        %v3280 = vld [vmem:[#allocation6 + $0xa0] sm:$0xff]
        %v3281 = vld [vmem:[#allocation6 + $0xa8] sm:$0xff]
        %v3282 = vld [vmem:[#allocation6 + $0xb0] sm:$0xff]
        %v3283 = vld [vmem:[#allocation6 + $0xb8] sm:$0xff]
        %v3284 = vld [vmem:[#allocation6 + $0xc0] sm:$0xff]
        %v3285 = vld [vmem:[#allocation6 + $0xc8] sm:$0xff]
        %v3286 = vld [vmem:[#allocation6 + $0xd0] sm:$0xff]
        %v3287 = vld [vmem:[#allocation6 + $0xd8] sm:$0xff]
        %v3288 = vld [vmem:[#allocation6 + $0xe0] sm:$0xff]
        %v3289 = vld [vmem:[#allocation6 + $0xe8] sm:$0xff]
        %v3290 = vld [vmem:[#allocation6 + $0xf0] sm:$0xff]
        %v3291 = vld [vmem:[#allocation6 + $0xf8] sm:$0xff]
        %v3292 = vld [vmem:[#allocation6 + $0x100] sm:$0xff]
        %v3293 = vld [vmem:[#allocation6 + $0x108] sm:$0xff]
        %v3294 = vld [vmem:[#allocation6 + $0x110] sm:$0xff]
        %v3295 = vld [vmem:[#allocation6 + $0x118] sm:$0x3f]
        %v3296 = vadd.f32 %v3260, %v3082
        %v3297 = vadd.f32 %v3261, %v3087
        %v3298 = vadd.f32 %v3262, %v3092
        %v3299 = vadd.f32 %v3263, %v3097
        %v3300 = vadd.f32 %v3264, %v3102
        %v3301 = vadd.f32 %v3265, %v3107
        %v3302 = vadd.f32 %v3266, %v3112
        %v3303 = vadd.f32 %v3267, %v3117
        %v3304 = vadd.f32 %v3268, %v3122
        %v3305 = vadd.f32 %v3269, %v3127
        %v3306 = vadd.f32 %v3270, %v3132
        %v3307 = vadd.f32 %v3271, %v3137
        %v3308 = vadd.f32 %v3272, %v3142
        %v3309 = vadd.f32 %v3273, %v3147
        %v3310 = vadd.f32 %v3274, %v3152
        %v3311 = vadd.f32 %v3275, %v3157
        %v3312 = vadd.f32 %v3276, %v3162
        %v3313 = vadd.f32 %v3277, %v3167
        %v3314 = vadd.f32 %v3278, %v3172
        %v3315 = vadd.f32 %v3279, %v3177
        %v3316 = vadd.f32 %v3280, %v3182
        %v3317 = vadd.f32 %v3281, %v3187
        %v3318 = vadd.f32 %v3282, %v3192
        %v3319 = vadd.f32 %v3283, %v3197
        %v3320 = vadd.f32 %v3284, %v3202
        %v3321 = vadd.f32 %v3285, %v3207
        %v3322 = vadd.f32 %v3286, %v3212
        %v3323 = vadd.f32 %v3287, %v3217
        %v3324 = vadd.f32 %v3288, %v3222
        %v3325 = vadd.f32 %v3289, %v3227
        %v3326 = vadd.f32 %v3290, %v3232
        %v3327 = vadd.f32 %v3291, %v3237
        %v3328 = vadd.f32 %v3292, %v3242
        %v3329 = vadd.f32 %v3293, %v3247
        %v3330 = vadd.f32 %v3294, %v3252
        %v3331 = vadd.f32 %v3295, %v3257
        %3332 = vst.msk [vmem:[#allocation6] sm:$0xff] %vm412, %v3296
        %3333 = vst.msk [vmem:[#allocation6 + $0x8] sm:$0xff] %vm412, %v3297
        %3334 = vst.msk [vmem:[#allocation6 + $0x10] sm:$0xff] %vm412, %v3298
        %3335 = vst.msk [vmem:[#allocation6 + $0x18] sm:$0xff] %vm412, %v3299
        %3336 = vst.msk [vmem:[#allocation6 + $0x20] sm:$0xff] %vm412, %v3300
        %3337 = vst.msk [vmem:[#allocation6 + $0x28] sm:$0xff] %vm412, %v3301
        %3338 = vst.msk [vmem:[#allocation6 + $0x30] sm:$0xff] %vm412, %v3302
        %3339 = vst.msk [vmem:[#allocation6 + $0x38] sm:$0xff] %vm412, %v3303
        %3340 = vst.msk [vmem:[#allocation6 + $0x40] sm:$0xff] %vm412, %v3304
        %3341 = vst.msk [vmem:[#allocation6 + $0x48] sm:$0xff] %vm412, %v3305
        %3342 = vst.msk [vmem:[#allocation6 + $0x50] sm:$0xff] %vm412, %v3306
        %3343 = vst.msk [vmem:[#allocation6 + $0x58] sm:$0xff] %vm412, %v3307
        %3344 = vst.msk [vmem:[#allocation6 + $0x60] sm:$0xff] %vm412, %v3308
        %3345 = vst.msk [vmem:[#allocation6 + $0x68] sm:$0xff] %vm412, %v3309
        %3346 = vst.msk [vmem:[#allocation6 + $0x70] sm:$0xff] %vm412, %v3310
        %3347 = vst.msk [vmem:[#allocation6 + $0x78] sm:$0xff] %vm412, %v3311
        %3348 = vst.msk [vmem:[#allocation6 + $0x80] sm:$0xff] %vm412, %v3312
        %3349 = vst.msk [vmem:[#allocation6 + $0x88] sm:$0xff] %vm412, %v3313
        %3350 = vst.msk [vmem:[#allocation6 + $0x90] sm:$0xff] %vm412, %v3314
        %3351 = vst.msk [vmem:[#allocation6 + $0x98] sm:$0xff] %vm412, %v3315
        %3352 = vst.msk [vmem:[#allocation6 + $0xa0] sm:$0xff] %vm412, %v3316
        %3353 = vst.msk [vmem:[#allocation6 + $0xa8] sm:$0xff] %vm412, %v3317
        %3354 = vst.msk [vmem:[#allocation6 + $0xb0] sm:$0xff] %vm412, %v3318
        %3355 = vst.msk [vmem:[#allocation6 + $0xb8] sm:$0xff] %vm412, %v3319
        %3356 = vst.msk [vmem:[#allocation6 + $0xc0] sm:$0xff] %vm412, %v3320
        %3357 = vst.msk [vmem:[#allocation6 + $0xc8] sm:$0xff] %vm412, %v3321
        %3358 = vst.msk [vmem:[#allocation6 + $0xd0] sm:$0xff] %vm412, %v3322
        %3359 = vst.msk [vmem:[#allocation6 + $0xd8] sm:$0xff] %vm412, %v3323
        %3360 = vst.msk [vmem:[#allocation6 + $0xe0] sm:$0xff] %vm412, %v3324
        %3361 = vst.msk [vmem:[#allocation6 + $0xe8] sm:$0xff] %vm412, %v3325
        %3362 = vst.msk [vmem:[#allocation6 + $0xf0] sm:$0xff] %vm412, %v3326
        %3363 = vst.msk [vmem:[#allocation6 + $0xf8] sm:$0xff] %vm412, %v3327
        %3364 = vst.msk [vmem:[#allocation6 + $0x100] sm:$0xff] %vm412, %v3328
        %3365 = vst.msk [vmem:[#allocation6 + $0x108] sm:$0xff] %vm412, %v3329
        %3366 = vst.msk [vmem:[#allocation6 + $0x110] sm:$0xff] %vm412, %v3330
        %3367 = vst.msk [vmem:[#allocation6 + $0x118] sm:$0x3f] %vm856, %v3331
        %v3368 = vld [vmem:[#allocation2 + $0x24] sm:$0xff]
        %v3369 = vld [vmem:[#allocation2 + $0x2c] sm:$0xff]
        %v3370 = vld [vmem:[#allocation2 + $0x34] sm:$0xff]
        %v3371 = vld [vmem:[#allocation2 + $0x3c] sm:$0xff]
        %v3372 = vld [vmem:[#allocation2 + $0x44] sm:$0xff]
        %v3373 = vld [vmem:[#allocation2 + $0x4c] sm:$0xff]
        %v3374 = vld [vmem:[#allocation2 + $0x54] sm:$0xff]
        %v3375 = vld [vmem:[#allocation2 + $0x5c] sm:$0xff]
        %v3376 = vld [vmem:[#allocation2 + $0x64] sm:$0xff]
        %v3377 = vld [vmem:[#allocation2 + $0x6c] sm:$0xff]
        %v3378 = vld [vmem:[#allocation2 + $0x74] sm:$0xff]
        %v3379 = vld [vmem:[#allocation2 + $0x7c] sm:$0xff]
        %v3380 = vld [vmem:[#allocation2 + $0x84] sm:$0xff]
        %v3381 = vld [vmem:[#allocation2 + $0x8c] sm:$0xff]
        %v3382 = vld [vmem:[#allocation2 + $0x94] sm:$0xff]
        %v3383 = vld [vmem:[#allocation2 + $0x9c] sm:$0xff]
        %v3384 = vld [vmem:[#allocation2 + $0xa4] sm:$0xff]
        %v3385 = vld [vmem:[#allocation2 + $0xac] sm:$0xff]
        %v3386 = vld [vmem:[#allocation2 + $0xb4] sm:$0xff]
        %v3387 = vld [vmem:[#allocation2 + $0xbc] sm:$0xff]
        %v3388 = vld [vmem:[#allocation2 + $0xc4] sm:$0xff]
        %v3389 = vld [vmem:[#allocation2 + $0xcc] sm:$0xff]
        %v3390 = vld [vmem:[#allocation2 + $0xd4] sm:$0xff]
        %v3391 = vld [vmem:[#allocation2 + $0xdc] sm:$0xff]
        %v3392 = vld [vmem:[#allocation2 + $0xe4] sm:$0xff]
        %v3393 = vld [vmem:[#allocation2 + $0xec] sm:$0xff]
        %v3394 = vld [vmem:[#allocation2 + $0xf4] sm:$0xff]
        %v3395 = vld [vmem:[#allocation2 + $0xfc] sm:$0xff]
        %v3396 = vld [vmem:[#allocation2 + $0x104] sm:$0xff]
        %v3397 = vld [vmem:[#allocation2 + $0x10c] sm:$0xff]
        %v3398 = vld [vmem:[#allocation2 + $0x114] sm:$0xff]
        %v3399 = vld [vmem:[#allocation2 + $0x11c] sm:$0xff]
        %v3400 = vld [vmem:[#allocation2 + $0x124] sm:$0xff]
        %v3401 = vld [vmem:[#allocation2 + $0x12c] sm:$0xff]
        %v3402 = vld [vmem:[#allocation2 + $0x134] sm:$0xff]
        %v3403 = vld [vmem:[#allocation2 + $0x13c] sm:$0x3f]
        %s3404 = scalar_lea.vmem %s1, 24
        %v3405 = vld [vmem:[%s3404] sm:$0x7]
        %v3407 = vsel %vm291, %v3368, 0
        %v3410 = vsel %vm291, %v3369, 0
        %v3413 = vsel %vm291, %v3370, 0
        %v3416 = vsel %vm291, %v3371, 0
        %v3419 = vsel %vm291, %v3372, 0
        %v3422 = vsel %vm291, %v3373, 0
        %v3425 = vsel %vm291, %v3374, 0
        %v3428 = vsel %vm291, %v3375, 0
        %v3431 = vsel %vm291, %v3376, 0
        %v3434 = vsel %vm291, %v3377, 0
        %v3437 = vsel %vm291, %v3378, 0
        %v3440 = vsel %vm291, %v3379, 0
        %v3443 = vsel %vm291, %v3380, 0
        %v3446 = vsel %vm291, %v3381, 0
        %v3449 = vsel %vm291, %v3382, 0
        %v3452 = vsel %vm291, %v3383, 0
        %v3455 = vsel %vm291, %v3384, 0
        %v3458 = vsel %vm291, %v3385, 0
        %v3461 = vsel %vm291, %v3386, 0
        %v3464 = vsel %vm291, %v3387, 0
        %v3467 = vsel %vm291, %v3388, 0
        %v3470 = vsel %vm291, %v3389, 0
        %v3473 = vsel %vm291, %v3390, 0
        %v3476 = vsel %vm291, %v3391, 0
        %v3479 = vsel %vm291, %v3392, 0
        %v3482 = vsel %vm291, %v3393, 0
        %v3485 = vsel %vm291, %v3394, 0
        %v3488 = vsel %vm291, %v3395, 0
        %v3491 = vsel %vm291, %v3396, 0
        %v3494 = vsel %vm291, %v3397, 0
        %v3497 = vsel %vm291, %v3398, 0
        %v3500 = vsel %vm291, %v3399, 0
        %v3503 = vsel %vm291, %v3400, 0
        %v3506 = vsel %vm291, %v3401, 0
        %v3509 = vsel %vm291, %v3402, 0
        %v3512 = vsel %vm291, %v3403, 0
        %v3515 = vsel %vm572, %v3405, 0
        %3517 = vmatprep.subr.mxu0 0.0
        %3518 = vmatpush1.msra.mxu0 0.0
        %3519 = vmatprep.subr.mxu0 0.0
        %3520 = vmatpush1.msra.mxu0 0.0
        %3521 = vmatprep.subr.mxu0 0.0
        %3522 = vmatpush1.msra.mxu0 0.0
        %3523 = vmatprep.subr.mxu0 0.0
        %3524 = vmatpush1.msra.mxu0 0.0
        %3525 = vmatprep.subr.mxu0 0.0
        %3526 = vmatpush1.msra.mxu0 0.0
        %3527 = vmatprep.subr.mxu0 0.0
        %3528 = vmatpush1.msra.mxu0 0.0
        %3529 = vmatprep.subr.mxu0 0.0
        %3530 = vmatpush1.msra.mxu0 0.0
        %3531 = vmatprep.subr.mxu0 0.0
        %3532 = vmatpush1.msra.mxu0 0.0
        %3533 = vmatprep.subr.mxu0 0.0
        %3534 = vmatpush1.msra.mxu0 0.0
        %3535 = vmatprep.subr.mxu0 0.0
        %3536 = vmatpush1.msra.mxu0 0.0
        %3537 = vmatprep.subr.mxu0 0.0
        %3538 = vmatpush1.msra.mxu0 0.0
        %3539 = vmatprep.subr.mxu0 0.0
        %3540 = vmatpush1.msra.mxu0 0.0
        %3541 = vmatprep.subr.mxu0 0.0
        %3542 = vmatpush1.msra.mxu0 0.0
        %3543 = vmatprep.subr.mxu0 0.0
        %3544 = vmatpush1.msra.mxu0 0.0
        %3545 = vmatprep.subr.mxu0 0.0
        %3546 = vmatpush1.msra.mxu0 0.0
        %3547 = vmatprep.subr.mxu0 0.0
        %3548 = vmatpush1.msra.mxu0 %v3515
        %3549 = vmatprep.subr.mxu0 0.0
        %3550 = vmatpush2.msra.mxu0 0.0
        %3551 = vmatprep.subr.mxu0 0.0
        %3552 = vmatpush2.msra.mxu0 0.0
        %3553 = vmatprep.subr.mxu0 0.0
        %3554 = vmatpush2.msra.mxu0 0.0
        %3555 = vmatprep.subr.mxu0 0.0
        %3556 = vmatpush2.msra.mxu0 0.0
        %3557 = vmatprep.subr.mxu0 0.0
        %3558 = vmatpush2.msra.mxu0 0.0
        %3559 = vmatprep.subr.mxu0 0.0
        %3560 = vmatpush2.msra.mxu0 0.0
        %3561 = vmatprep.subr.mxu0 0.0
        %3562 = vmatpush2.msra.mxu0 0.0
        %3563 = vmatprep.subr.mxu0 0.0
        %3564 = vmatpush2.msra.mxu0 0.0
        %3565 = vmatprep.subr.mxu0 0.0
        %3566 = vmatpush2.msra.mxu0 0.0
        %3567 = vmatprep.subr.mxu0 0.0
        %3568 = vmatpush2.msra.mxu0 0.0
        %3569 = vmatprep.subr.mxu0 0.0
        %3570 = vmatpush2.msra.mxu0 0.0
        %3571 = vmatprep.subr.mxu0 0.0
        %3572 = vmatpush2.msra.mxu0 0.0
        %3573 = vmatprep.subr.mxu0 0.0
        %3574 = vmatpush2.msra.mxu0 0.0
        %3575 = vmatprep.subr.mxu0 0.0
        %3576 = vmatpush2.msra.mxu0 0.0
        %3577 = vmatprep.subr.mxu0 0.0
        %3578 = vmatpush2.msra.mxu0 0.0
        %3579 = vmatprep.subr.mxu0 0.0
        %3580 = vmatpush2.msra.mxu0 0.0
        %3581 = vmatprep.mubr.f32.mxu0 0.0
        %3582 = vmatmul.mubr.f32.gmra.mxu0 %v3407
        %v3583 = vpop.f32.mrf.mxu0
        %v3584 = vadd.f32 0.0, %v3583
        %v3585 = vpop.f32.mrf.mxu0
        %3586 = vmatprep.mubr.f32.mxu0 0.0
        %3587 = vmatmul.mubr.f32.gmra.mxu0 %v3410
        %v3588 = vpop.f32.mrf.mxu0
        %v3589 = vadd.f32 0.0, %v3588
        %v3590 = vpop.f32.mrf.mxu0
        %3591 = vmatprep.mubr.f32.mxu0 0.0
        %3592 = vmatmul.mubr.f32.gmra.mxu0 %v3413
        %v3593 = vpop.f32.mrf.mxu0
        %v3594 = vadd.f32 0.0, %v3593
        %v3595 = vpop.f32.mrf.mxu0
        %3596 = vmatprep.mubr.f32.mxu0 0.0
        %3597 = vmatmul.mubr.f32.gmra.mxu0 %v3416
        %v3598 = vpop.f32.mrf.mxu0
        %v3599 = vadd.f32 0.0, %v3598
        %v3600 = vpop.f32.mrf.mxu0
        %3601 = vmatprep.mubr.f32.mxu0 0.0
        %3602 = vmatmul.mubr.f32.gmra.mxu0 %v3419
        %v3603 = vpop.f32.mrf.mxu0
        %v3604 = vadd.f32 0.0, %v3603
        %v3605 = vpop.f32.mrf.mxu0
        %3606 = vmatprep.mubr.f32.mxu0 0.0
        %3607 = vmatmul.mubr.f32.gmra.mxu0 %v3422
        %v3608 = vpop.f32.mrf.mxu0
        %v3609 = vadd.f32 0.0, %v3608
        %v3610 = vpop.f32.mrf.mxu0
        %3611 = vmatprep.mubr.f32.mxu0 0.0
        %3612 = vmatmul.mubr.f32.gmra.mxu0 %v3425
        %v3613 = vpop.f32.mrf.mxu0
        %v3614 = vadd.f32 0.0, %v3613
        %v3615 = vpop.f32.mrf.mxu0
        %3616 = vmatprep.mubr.f32.mxu0 0.0
        %3617 = vmatmul.mubr.f32.gmra.mxu0 %v3428
        %v3618 = vpop.f32.mrf.mxu0
        %v3619 = vadd.f32 0.0, %v3618
        %v3620 = vpop.f32.mrf.mxu0
        %3621 = vmatprep.mubr.f32.mxu0 0.0
        %3622 = vmatmul.mubr.f32.gmra.mxu0 %v3431
        %v3623 = vpop.f32.mrf.mxu0
        %v3624 = vadd.f32 0.0, %v3623
        %v3625 = vpop.f32.mrf.mxu0
        %3626 = vmatprep.mubr.f32.mxu0 0.0
        %3627 = vmatmul.mubr.f32.gmra.mxu0 %v3434
        %v3628 = vpop.f32.mrf.mxu0
        %v3629 = vadd.f32 0.0, %v3628
        %v3630 = vpop.f32.mrf.mxu0
        %3631 = vmatprep.mubr.f32.mxu0 0.0
        %3632 = vmatmul.mubr.f32.gmra.mxu0 %v3437
        %v3633 = vpop.f32.mrf.mxu0
        %v3634 = vadd.f32 0.0, %v3633
        %v3635 = vpop.f32.mrf.mxu0
        %3636 = vmatprep.mubr.f32.mxu0 0.0
        %3637 = vmatmul.mubr.f32.gmra.mxu0 %v3440
        %v3638 = vpop.f32.mrf.mxu0
        %v3639 = vadd.f32 0.0, %v3638
        %v3640 = vpop.f32.mrf.mxu0
        %3641 = vmatprep.mubr.f32.mxu0 0.0
        %3642 = vmatmul.mubr.f32.gmra.mxu0 %v3443
        %v3643 = vpop.f32.mrf.mxu0
        %v3644 = vadd.f32 0.0, %v3643
        %v3645 = vpop.f32.mrf.mxu0
        %3646 = vmatprep.mubr.f32.mxu0 0.0
        %3647 = vmatmul.mubr.f32.gmra.mxu0 %v3446
        %v3648 = vpop.f32.mrf.mxu0
        %v3649 = vadd.f32 0.0, %v3648
        %v3650 = vpop.f32.mrf.mxu0
        %3651 = vmatprep.mubr.f32.mxu0 0.0
        %3652 = vmatmul.mubr.f32.gmra.mxu0 %v3449
        %v3653 = vpop.f32.mrf.mxu0
        %v3654 = vadd.f32 0.0, %v3653
        %v3655 = vpop.f32.mrf.mxu0
        %3656 = vmatprep.mubr.f32.mxu0 0.0
        %3657 = vmatmul.mubr.f32.gmra.mxu0 %v3452
        %v3658 = vpop.f32.mrf.mxu0
        %v3659 = vadd.f32 0.0, %v3658
        %v3660 = vpop.f32.mrf.mxu0
        %3661 = vmatprep.mubr.f32.mxu0 0.0
        %3662 = vmatmul.mubr.f32.gmra.mxu0 %v3455
        %v3663 = vpop.f32.mrf.mxu0
        %v3664 = vadd.f32 0.0, %v3663
        %v3665 = vpop.f32.mrf.mxu0
        %3666 = vmatprep.mubr.f32.mxu0 0.0
        %3667 = vmatmul.mubr.f32.gmra.mxu0 %v3458
        %v3668 = vpop.f32.mrf.mxu0
        %v3669 = vadd.f32 0.0, %v3668
        %v3670 = vpop.f32.mrf.mxu0
        %3671 = vmatprep.mubr.f32.mxu0 0.0
        %3672 = vmatmul.mubr.f32.gmra.mxu0 %v3461
        %v3673 = vpop.f32.mrf.mxu0
        %v3674 = vadd.f32 0.0, %v3673
        %v3675 = vpop.f32.mrf.mxu0
        %3676 = vmatprep.mubr.f32.mxu0 0.0
        %3677 = vmatmul.mubr.f32.gmra.mxu0 %v3464
        %v3678 = vpop.f32.mrf.mxu0
        %v3679 = vadd.f32 0.0, %v3678
        %v3680 = vpop.f32.mrf.mxu0
        %3681 = vmatprep.mubr.f32.mxu0 0.0
        %3682 = vmatmul.mubr.f32.gmra.mxu0 %v3467
        %v3683 = vpop.f32.mrf.mxu0
        %v3684 = vadd.f32 0.0, %v3683
        %v3685 = vpop.f32.mrf.mxu0
        %3686 = vmatprep.mubr.f32.mxu0 0.0
        %3687 = vmatmul.mubr.f32.gmra.mxu0 %v3470
        %v3688 = vpop.f32.mrf.mxu0
        %v3689 = vadd.f32 0.0, %v3688
        %v3690 = vpop.f32.mrf.mxu0
        %3691 = vmatprep.mubr.f32.mxu0 0.0
        %3692 = vmatmul.mubr.f32.gmra.mxu0 %v3473
        %v3693 = vpop.f32.mrf.mxu0
        %v3694 = vadd.f32 0.0, %v3693
        %v3695 = vpop.f32.mrf.mxu0
        %3696 = vmatprep.mubr.f32.mxu0 0.0
        %3697 = vmatmul.mubr.f32.gmra.mxu0 %v3476
        %v3698 = vpop.f32.mrf.mxu0
        %v3699 = vadd.f32 0.0, %v3698
        %v3700 = vpop.f32.mrf.mxu0
        %3701 = vmatprep.mubr.f32.mxu0 0.0
        %3702 = vmatmul.mubr.f32.gmra.mxu0 %v3479
        %v3703 = vpop.f32.mrf.mxu0
        %v3704 = vadd.f32 0.0, %v3703
        %v3705 = vpop.f32.mrf.mxu0
        %3706 = vmatprep.mubr.f32.mxu0 0.0
        %3707 = vmatmul.mubr.f32.gmra.mxu0 %v3482
        %v3708 = vpop.f32.mrf.mxu0
        %v3709 = vadd.f32 0.0, %v3708
        %v3710 = vpop.f32.mrf.mxu0
        %3711 = vmatprep.mubr.f32.mxu0 0.0
        %3712 = vmatmul.mubr.f32.gmra.mxu0 %v3485
        %v3713 = vpop.f32.mrf.mxu0
        %v3714 = vadd.f32 0.0, %v3713
        %v3715 = vpop.f32.mrf.mxu0
        %3716 = vmatprep.mubr.f32.mxu0 0.0
        %3717 = vmatmul.mubr.f32.gmra.mxu0 %v3488
        %v3718 = vpop.f32.mrf.mxu0
        %v3719 = vadd.f32 0.0, %v3718
        %v3720 = vpop.f32.mrf.mxu0
        %3721 = vmatprep.mubr.f32.mxu0 0.0
        %3722 = vmatmul.mubr.f32.gmra.mxu0 %v3491
        %v3723 = vpop.f32.mrf.mxu0
        %v3724 = vadd.f32 0.0, %v3723
        %v3725 = vpop.f32.mrf.mxu0
        %3726 = vmatprep.mubr.f32.mxu0 0.0
        %3727 = vmatmul.mubr.f32.gmra.mxu0 %v3494
        %v3728 = vpop.f32.mrf.mxu0
        %v3729 = vadd.f32 0.0, %v3728
        %v3730 = vpop.f32.mrf.mxu0
        %3731 = vmatprep.mubr.f32.mxu0 0.0
        %3732 = vmatmul.mubr.f32.gmra.mxu0 %v3497
        %v3733 = vpop.f32.mrf.mxu0
        %v3734 = vadd.f32 0.0, %v3733
        %v3735 = vpop.f32.mrf.mxu0
        %3736 = vmatprep.mubr.f32.mxu0 0.0
        %3737 = vmatmul.mubr.f32.gmra.mxu0 %v3500
        %v3738 = vpop.f32.mrf.mxu0
        %v3739 = vadd.f32 0.0, %v3738
        %v3740 = vpop.f32.mrf.mxu0
        %3741 = vmatprep.mubr.f32.mxu0 0.0
        %3742 = vmatmul.mubr.f32.gmra.mxu0 %v3503
        %v3743 = vpop.f32.mrf.mxu0
        %v3744 = vadd.f32 0.0, %v3743
        %v3745 = vpop.f32.mrf.mxu0
        %3746 = vmatprep.mubr.f32.mxu0 0.0
        %3747 = vmatmul.mubr.f32.gmra.mxu0 %v3506
        %v3748 = vpop.f32.mrf.mxu0
        %v3749 = vadd.f32 0.0, %v3748
        %v3750 = vpop.f32.mrf.mxu0
        %3751 = vmatprep.mubr.f32.mxu0 0.0
        %3752 = vmatmul.mubr.f32.gmra.mxu0 %v3509
        %v3753 = vpop.f32.mrf.mxu0
        %v3754 = vadd.f32 0.0, %v3753
        %v3755 = vpop.f32.mrf.mxu0
        %3756 = vmatprep.mubr.f32.mxu0 0.0
        %3757 = vmatmul.mubr.f32.gmra.mxu0 %v3512
        %v3758 = vpop.f32.mrf.mxu0
        %v3759 = vadd.f32 0.0, %v3758
        %v3760 = vpop.f32.mrf.mxu0
        %3761 = vdwg.mxu0
        %v3762 = vld [vmem:[#allocation6] sm:$0xff]
        %v3763 = vld [vmem:[#allocation6 + $0x8] sm:$0xff]
        %v3764 = vld [vmem:[#allocation6 + $0x10] sm:$0xff]
        %v3765 = vld [vmem:[#allocation6 + $0x18] sm:$0xff]
        %v3766 = vld [vmem:[#allocation6 + $0x20] sm:$0xff]
        %v3767 = vld [vmem:[#allocation6 + $0x28] sm:$0xff]
        %v3768 = vld [vmem:[#allocation6 + $0x30] sm:$0xff]
        %v3769 = vld [vmem:[#allocation6 + $0x38] sm:$0xff]
        %v3770 = vld [vmem:[#allocation6 + $0x40] sm:$0xff]
        %v3771 = vld [vmem:[#allocation6 + $0x48] sm:$0xff]
        %v3772 = vld [vmem:[#allocation6 + $0x50] sm:$0xff]
        %v3773 = vld [vmem:[#allocation6 + $0x58] sm:$0xff]
        %v3774 = vld [vmem:[#allocation6 + $0x60] sm:$0xff]
        %v3775 = vld [vmem:[#allocation6 + $0x68] sm:$0xff]
        %v3776 = vld [vmem:[#allocation6 + $0x70] sm:$0xff]
        %v3777 = vld [vmem:[#allocation6 + $0x78] sm:$0xff]
        %v3778 = vld [vmem:[#allocation6 + $0x80] sm:$0xff]
        %v3779 = vld [vmem:[#allocation6 + $0x88] sm:$0xff]
        %v3780 = vld [vmem:[#allocation6 + $0x90] sm:$0xff]
        %v3781 = vld [vmem:[#allocation6 + $0x98] sm:$0xff]
        %v3782 = vld [vmem:[#allocation6 + $0xa0] sm:$0xff]
        %v3783 = vld [vmem:[#allocation6 + $0xa8] sm:$0xff]
        %v3784 = vld [vmem:[#allocation6 + $0xb0] sm:$0xff]
        %v3785 = vld [vmem:[#allocation6 + $0xb8] sm:$0xff]
        %v3786 = vld [vmem:[#allocation6 + $0xc0] sm:$0xff]
        %v3787 = vld [vmem:[#allocation6 + $0xc8] sm:$0xff]
        %v3788 = vld [vmem:[#allocation6 + $0xd0] sm:$0xff]
        %v3789 = vld [vmem:[#allocation6 + $0xd8] sm:$0xff]
        %v3790 = vld [vmem:[#allocation6 + $0xe0] sm:$0xff]
        %v3791 = vld [vmem:[#allocation6 + $0xe8] sm:$0xff]
        %v3792 = vld [vmem:[#allocation6 + $0xf0] sm:$0xff]
        %v3793 = vld [vmem:[#allocation6 + $0xf8] sm:$0xff]
        %v3794 = vld [vmem:[#allocation6 + $0x100] sm:$0xff]
        %v3795 = vld [vmem:[#allocation6 + $0x108] sm:$0xff]
        %v3796 = vld [vmem:[#allocation6 + $0x110] sm:$0xff]
        %v3797 = vld [vmem:[#allocation6 + $0x118] sm:$0x3f]
        %v3798 = vadd.f32 %v3762, %v3584
        %v3799 = vadd.f32 %v3763, %v3589
        %v3800 = vadd.f32 %v3764, %v3594
        %v3801 = vadd.f32 %v3765, %v3599
        %v3802 = vadd.f32 %v3766, %v3604
        %v3803 = vadd.f32 %v3767, %v3609
        %v3804 = vadd.f32 %v3768, %v3614
        %v3805 = vadd.f32 %v3769, %v3619
        %v3806 = vadd.f32 %v3770, %v3624
        %v3807 = vadd.f32 %v3771, %v3629
        %v3808 = vadd.f32 %v3772, %v3634
        %v3809 = vadd.f32 %v3773, %v3639
        %v3810 = vadd.f32 %v3774, %v3644
        %v3811 = vadd.f32 %v3775, %v3649
        %v3812 = vadd.f32 %v3776, %v3654
        %v3813 = vadd.f32 %v3777, %v3659
        %v3814 = vadd.f32 %v3778, %v3664
        %v3815 = vadd.f32 %v3779, %v3669
        %v3816 = vadd.f32 %v3780, %v3674
        %v3817 = vadd.f32 %v3781, %v3679
        %v3818 = vadd.f32 %v3782, %v3684
        %v3819 = vadd.f32 %v3783, %v3689
        %v3820 = vadd.f32 %v3784, %v3694
        %v3821 = vadd.f32 %v3785, %v3699
        %v3822 = vadd.f32 %v3786, %v3704
        %v3823 = vadd.f32 %v3787, %v3709
        %v3824 = vadd.f32 %v3788, %v3714
        %v3825 = vadd.f32 %v3789, %v3719
        %v3826 = vadd.f32 %v3790, %v3724
        %v3827 = vadd.f32 %v3791, %v3729
        %v3828 = vadd.f32 %v3792, %v3734
        %v3829 = vadd.f32 %v3793, %v3739
        %v3830 = vadd.f32 %v3794, %v3744
        %v3831 = vadd.f32 %v3795, %v3749
        %v3832 = vadd.f32 %v3796, %v3754
        %v3833 = vadd.f32 %v3797, %v3759
        %3834 = vst.msk [vmem:[#allocation6] sm:$0xff] %vm412, %v3798
        %3835 = vst.msk [vmem:[#allocation6 + $0x8] sm:$0xff] %vm412, %v3799
        %3836 = vst.msk [vmem:[#allocation6 + $0x10] sm:$0xff] %vm412, %v3800
        %3837 = vst.msk [vmem:[#allocation6 + $0x18] sm:$0xff] %vm412, %v3801
        %3838 = vst.msk [vmem:[#allocation6 + $0x20] sm:$0xff] %vm412, %v3802
        %3839 = vst.msk [vmem:[#allocation6 + $0x28] sm:$0xff] %vm412, %v3803
        %3840 = vst.msk [vmem:[#allocation6 + $0x30] sm:$0xff] %vm412, %v3804
        %3841 = vst.msk [vmem:[#allocation6 + $0x38] sm:$0xff] %vm412, %v3805
        %3842 = vst.msk [vmem:[#allocation6 + $0x40] sm:$0xff] %vm412, %v3806
        %3843 = vst.msk [vmem:[#allocation6 + $0x48] sm:$0xff] %vm412, %v3807
        %3844 = vst.msk [vmem:[#allocation6 + $0x50] sm:$0xff] %vm412, %v3808
        %3845 = vst.msk [vmem:[#allocation6 + $0x58] sm:$0xff] %vm412, %v3809
        %3846 = vst.msk [vmem:[#allocation6 + $0x60] sm:$0xff] %vm412, %v3810
        %3847 = vst.msk [vmem:[#allocation6 + $0x68] sm:$0xff] %vm412, %v3811
        %3848 = vst.msk [vmem:[#allocation6 + $0x70] sm:$0xff] %vm412, %v3812
        %3849 = vst.msk [vmem:[#allocation6 + $0x78] sm:$0xff] %vm412, %v3813
        %3850 = vst.msk [vmem:[#allocation6 + $0x80] sm:$0xff] %vm412, %v3814
        %3851 = vst.msk [vmem:[#allocation6 + $0x88] sm:$0xff] %vm412, %v3815
        %3852 = vst.msk [vmem:[#allocation6 + $0x90] sm:$0xff] %vm412, %v3816
        %3853 = vst.msk [vmem:[#allocation6 + $0x98] sm:$0xff] %vm412, %v3817
        %3854 = vst.msk [vmem:[#allocation6 + $0xa0] sm:$0xff] %vm412, %v3818
        %3855 = vst.msk [vmem:[#allocation6 + $0xa8] sm:$0xff] %vm412, %v3819
        %3856 = vst.msk [vmem:[#allocation6 + $0xb0] sm:$0xff] %vm412, %v3820
        %3857 = vst.msk [vmem:[#allocation6 + $0xb8] sm:$0xff] %vm412, %v3821
        %3858 = vst.msk [vmem:[#allocation6 + $0xc0] sm:$0xff] %vm412, %v3822
        %3859 = vst.msk [vmem:[#allocation6 + $0xc8] sm:$0xff] %vm412, %v3823
        %3860 = vst.msk [vmem:[#allocation6 + $0xd0] sm:$0xff] %vm412, %v3824
        %3861 = vst.msk [vmem:[#allocation6 + $0xd8] sm:$0xff] %vm412, %v3825
        %3862 = vst.msk [vmem:[#allocation6 + $0xe0] sm:$0xff] %vm412, %v3826
        %3863 = vst.msk [vmem:[#allocation6 + $0xe8] sm:$0xff] %vm412, %v3827
        %3864 = vst.msk [vmem:[#allocation6 + $0xf0] sm:$0xff] %vm412, %v3828
        %3865 = vst.msk [vmem:[#allocation6 + $0xf8] sm:$0xff] %vm412, %v3829
        %3866 = vst.msk [vmem:[#allocation6 + $0x100] sm:$0xff] %vm412, %v3830
        %3867 = vst.msk [vmem:[#allocation6 + $0x108] sm:$0xff] %vm412, %v3831
        %3868 = vst.msk [vmem:[#allocation6 + $0x110] sm:$0xff] %vm412, %v3832
        %3869 = vst.msk [vmem:[#allocation6 + $0x118] sm:$0x3f] %vm856, %v3833
        %v3870 = vld [vmem:[#allocation2 + $0x25] sm:$0xff]
        %v3871 = vld [vmem:[#allocation2 + $0x2d] sm:$0xff]
        %v3872 = vld [vmem:[#allocation2 + $0x35] sm:$0xff]
        %v3873 = vld [vmem:[#allocation2 + $0x3d] sm:$0xff]
        %v3874 = vld [vmem:[#allocation2 + $0x45] sm:$0xff]
        %v3875 = vld [vmem:[#allocation2 + $0x4d] sm:$0xff]
        %v3876 = vld [vmem:[#allocation2 + $0x55] sm:$0xff]
        %v3877 = vld [vmem:[#allocation2 + $0x5d] sm:$0xff]
        %v3878 = vld [vmem:[#allocation2 + $0x65] sm:$0xff]
        %v3879 = vld [vmem:[#allocation2 + $0x6d] sm:$0xff]
        %v3880 = vld [vmem:[#allocation2 + $0x75] sm:$0xff]
        %v3881 = vld [vmem:[#allocation2 + $0x7d] sm:$0xff]
        %v3882 = vld [vmem:[#allocation2 + $0x85] sm:$0xff]
        %v3883 = vld [vmem:[#allocation2 + $0x8d] sm:$0xff]
        %v3884 = vld [vmem:[#allocation2 + $0x95] sm:$0xff]
        %v3885 = vld [vmem:[#allocation2 + $0x9d] sm:$0xff]
        %v3886 = vld [vmem:[#allocation2 + $0xa5] sm:$0xff]
        %v3887 = vld [vmem:[#allocation2 + $0xad] sm:$0xff]
        %v3888 = vld [vmem:[#allocation2 + $0xb5] sm:$0xff]
        %v3889 = vld [vmem:[#allocation2 + $0xbd] sm:$0xff]
        %v3890 = vld [vmem:[#allocation2 + $0xc5] sm:$0xff]
        %v3891 = vld [vmem:[#allocation2 + $0xcd] sm:$0xff]
        %v3892 = vld [vmem:[#allocation2 + $0xd5] sm:$0xff]
        %v3893 = vld [vmem:[#allocation2 + $0xdd] sm:$0xff]
        %v3894 = vld [vmem:[#allocation2 + $0xe5] sm:$0xff]
        %v3895 = vld [vmem:[#allocation2 + $0xed] sm:$0xff]
        %v3896 = vld [vmem:[#allocation2 + $0xf5] sm:$0xff]
        %v3897 = vld [vmem:[#allocation2 + $0xfd] sm:$0xff]
        %v3898 = vld [vmem:[#allocation2 + $0x105] sm:$0xff]
        %v3899 = vld [vmem:[#allocation2 + $0x10d] sm:$0xff]
        %v3900 = vld [vmem:[#allocation2 + $0x115] sm:$0xff]
        %v3901 = vld [vmem:[#allocation2 + $0x11d] sm:$0xff]
        %v3902 = vld [vmem:[#allocation2 + $0x125] sm:$0xff]
        %v3903 = vld [vmem:[#allocation2 + $0x12d] sm:$0xff]
        %v3904 = vld [vmem:[#allocation2 + $0x135] sm:$0xff]
        %v3905 = vld [vmem:[#allocation2 + $0x13d] sm:$0x3f]
        %s3906 = scalar_lea.vmem %s1, 28
        %v3907 = vld [vmem:[%s3906] sm:$0x7]
        %v3909 = vsel %vm291, %v3870, 0
        %v3912 = vsel %vm291, %v3871, 0
        %v3915 = vsel %vm291, %v3872, 0
        %v3918 = vsel %vm291, %v3873, 0
        %v3921 = vsel %vm291, %v3874, 0
        %v3924 = vsel %vm291, %v3875, 0
        %v3927 = vsel %vm291, %v3876, 0
        %v3930 = vsel %vm291, %v3877, 0
        %v3933 = vsel %vm291, %v3878, 0
        %v3936 = vsel %vm291, %v3879, 0
        %v3939 = vsel %vm291, %v3880, 0
        %v3942 = vsel %vm291, %v3881, 0
        %v3945 = vsel %vm291, %v3882, 0
        %v3948 = vsel %vm291, %v3883, 0
        %v3951 = vsel %vm291, %v3884, 0
        %v3954 = vsel %vm291, %v3885, 0
        %v3957 = vsel %vm291, %v3886, 0
        %v3960 = vsel %vm291, %v3887, 0
        %v3963 = vsel %vm291, %v3888, 0
        %v3966 = vsel %vm291, %v3889, 0
        %v3969 = vsel %vm291, %v3890, 0
        %v3972 = vsel %vm291, %v3891, 0
        %v3975 = vsel %vm291, %v3892, 0
        %v3978 = vsel %vm291, %v3893, 0
        %v3981 = vsel %vm291, %v3894, 0
        %v3984 = vsel %vm291, %v3895, 0
        %v3987 = vsel %vm291, %v3896, 0
        %v3990 = vsel %vm291, %v3897, 0
        %v3993 = vsel %vm291, %v3898, 0
        %v3996 = vsel %vm291, %v3899, 0
        %v3999 = vsel %vm291, %v3900, 0
        %v4002 = vsel %vm291, %v3901, 0
        %v4005 = vsel %vm291, %v3902, 0
        %v4008 = vsel %vm291, %v3903, 0
        %v4011 = vsel %vm291, %v3904, 0
        %v4014 = vsel %vm291, %v3905, 0
        %v4017 = vsel %vm572, %v3907, 0
        %4019 = vmatprep.subr.mxu0 0.0
        %4020 = vmatpush1.msra.mxu0 0.0
        %4021 = vmatprep.subr.mxu0 0.0
        %4022 = vmatpush1.msra.mxu0 0.0
        %4023 = vmatprep.subr.mxu0 0.0
        %4024 = vmatpush1.msra.mxu0 0.0
        %4025 = vmatprep.subr.mxu0 0.0
        %4026 = vmatpush1.msra.mxu0 0.0
        %4027 = vmatprep.subr.mxu0 0.0
        %4028 = vmatpush1.msra.mxu0 0.0
        %4029 = vmatprep.subr.mxu0 0.0
        %4030 = vmatpush1.msra.mxu0 0.0
        %4031 = vmatprep.subr.mxu0 0.0
        %4032 = vmatpush1.msra.mxu0 0.0
        %4033 = vmatprep.subr.mxu0 0.0
        %4034 = vmatpush1.msra.mxu0 0.0
        %4035 = vmatprep.subr.mxu0 0.0
        %4036 = vmatpush1.msra.mxu0 0.0
        %4037 = vmatprep.subr.mxu0 0.0
        %4038 = vmatpush1.msra.mxu0 0.0
        %4039 = vmatprep.subr.mxu0 0.0
        %4040 = vmatpush1.msra.mxu0 0.0
        %4041 = vmatprep.subr.mxu0 0.0
        %4042 = vmatpush1.msra.mxu0 0.0
        %4043 = vmatprep.subr.mxu0 0.0
        %4044 = vmatpush1.msra.mxu0 0.0
        %4045 = vmatprep.subr.mxu0 0.0
        %4046 = vmatpush1.msra.mxu0 0.0
        %4047 = vmatprep.subr.mxu0 0.0
        %4048 = vmatpush1.msra.mxu0 0.0
        %4049 = vmatprep.subr.mxu0 0.0
        %4050 = vmatpush1.msra.mxu0 %v4017
        %4051 = vmatprep.subr.mxu0 0.0
        %4052 = vmatpush2.msra.mxu0 0.0
        %4053 = vmatprep.subr.mxu0 0.0
        %4054 = vmatpush2.msra.mxu0 0.0
        %4055 = vmatprep.subr.mxu0 0.0
        %4056 = vmatpush2.msra.mxu0 0.0
        %4057 = vmatprep.subr.mxu0 0.0
        %4058 = vmatpush2.msra.mxu0 0.0
        %4059 = vmatprep.subr.mxu0 0.0
        %4060 = vmatpush2.msra.mxu0 0.0
        %4061 = vmatprep.subr.mxu0 0.0
        %4062 = vmatpush2.msra.mxu0 0.0
        %4063 = vmatprep.subr.mxu0 0.0
        %4064 = vmatpush2.msra.mxu0 0.0
        %4065 = vmatprep.subr.mxu0 0.0
        %4066 = vmatpush2.msra.mxu0 0.0
        %4067 = vmatprep.subr.mxu0 0.0
        %4068 = vmatpush2.msra.mxu0 0.0
        %4069 = vmatprep.subr.mxu0 0.0
        %4070 = vmatpush2.msra.mxu0 0.0
        %4071 = vmatprep.subr.mxu0 0.0
        %4072 = vmatpush2.msra.mxu0 0.0
        %4073 = vmatprep.subr.mxu0 0.0
        %4074 = vmatpush2.msra.mxu0 0.0
        %4075 = vmatprep.subr.mxu0 0.0
        %4076 = vmatpush2.msra.mxu0 0.0
        %4077 = vmatprep.subr.mxu0 0.0
        %4078 = vmatpush2.msra.mxu0 0.0
        %4079 = vmatprep.subr.mxu0 0.0
        %4080 = vmatpush2.msra.mxu0 0.0
        %4081 = vmatprep.subr.mxu0 0.0
        %4082 = vmatpush2.msra.mxu0 0.0
        %4083 = vmatprep.mubr.f32.mxu0 0.0
        %4084 = vmatmul.mubr.f32.gmra.mxu0 %v3909
        %v4085 = vpop.f32.mrf.mxu0
        %v4086 = vadd.f32 0.0, %v4085
        %v4087 = vpop.f32.mrf.mxu0
        %4088 = vmatprep.mubr.f32.mxu0 0.0
        %4089 = vmatmul.mubr.f32.gmra.mxu0 %v3912
        %v4090 = vpop.f32.mrf.mxu0
        %v4091 = vadd.f32 0.0, %v4090
        %v4092 = vpop.f32.mrf.mxu0
        %4093 = vmatprep.mubr.f32.mxu0 0.0
        %4094 = vmatmul.mubr.f32.gmra.mxu0 %v3915
        %v4095 = vpop.f32.mrf.mxu0
        %v4096 = vadd.f32 0.0, %v4095
        %v4097 = vpop.f32.mrf.mxu0
        %4098 = vmatprep.mubr.f32.mxu0 0.0
        %4099 = vmatmul.mubr.f32.gmra.mxu0 %v3918
        %v4100 = vpop.f32.mrf.mxu0
        %v4101 = vadd.f32 0.0, %v4100
        %v4102 = vpop.f32.mrf.mxu0
        %4103 = vmatprep.mubr.f32.mxu0 0.0
        %4104 = vmatmul.mubr.f32.gmra.mxu0 %v3921
        %v4105 = vpop.f32.mrf.mxu0
        %v4106 = vadd.f32 0.0, %v4105
        %v4107 = vpop.f32.mrf.mxu0
        %4108 = vmatprep.mubr.f32.mxu0 0.0
        %4109 = vmatmul.mubr.f32.gmra.mxu0 %v3924
        %v4110 = vpop.f32.mrf.mxu0
        %v4111 = vadd.f32 0.0, %v4110
        %v4112 = vpop.f32.mrf.mxu0
        %4113 = vmatprep.mubr.f32.mxu0 0.0
        %4114 = vmatmul.mubr.f32.gmra.mxu0 %v3927
        %v4115 = vpop.f32.mrf.mxu0
        %v4116 = vadd.f32 0.0, %v4115
        %v4117 = vpop.f32.mrf.mxu0
        %4118 = vmatprep.mubr.f32.mxu0 0.0
        %4119 = vmatmul.mubr.f32.gmra.mxu0 %v3930
        %v4120 = vpop.f32.mrf.mxu0
        %v4121 = vadd.f32 0.0, %v4120
        %v4122 = vpop.f32.mrf.mxu0
        %4123 = vmatprep.mubr.f32.mxu0 0.0
        %4124 = vmatmul.mubr.f32.gmra.mxu0 %v3933
        %v4125 = vpop.f32.mrf.mxu0
        %v4126 = vadd.f32 0.0, %v4125
        %v4127 = vpop.f32.mrf.mxu0
        %4128 = vmatprep.mubr.f32.mxu0 0.0
        %4129 = vmatmul.mubr.f32.gmra.mxu0 %v3936
        %v4130 = vpop.f32.mrf.mxu0
        %v4131 = vadd.f32 0.0, %v4130
        %v4132 = vpop.f32.mrf.mxu0
        %4133 = vmatprep.mubr.f32.mxu0 0.0
        %4134 = vmatmul.mubr.f32.gmra.mxu0 %v3939
        %v4135 = vpop.f32.mrf.mxu0
        %v4136 = vadd.f32 0.0, %v4135
        %v4137 = vpop.f32.mrf.mxu0
        %4138 = vmatprep.mubr.f32.mxu0 0.0
        %4139 = vmatmul.mubr.f32.gmra.mxu0 %v3942
        %v4140 = vpop.f32.mrf.mxu0
        %v4141 = vadd.f32 0.0, %v4140
        %v4142 = vpop.f32.mrf.mxu0
        %4143 = vmatprep.mubr.f32.mxu0 0.0
        %4144 = vmatmul.mubr.f32.gmra.mxu0 %v3945
        %v4145 = vpop.f32.mrf.mxu0
        %v4146 = vadd.f32 0.0, %v4145
        %v4147 = vpop.f32.mrf.mxu0
        %4148 = vmatprep.mubr.f32.mxu0 0.0
        %4149 = vmatmul.mubr.f32.gmra.mxu0 %v3948
        %v4150 = vpop.f32.mrf.mxu0
        %v4151 = vadd.f32 0.0, %v4150
        %v4152 = vpop.f32.mrf.mxu0
        %4153 = vmatprep.mubr.f32.mxu0 0.0
        %4154 = vmatmul.mubr.f32.gmra.mxu0 %v3951
        %v4155 = vpop.f32.mrf.mxu0
        %v4156 = vadd.f32 0.0, %v4155
        %v4157 = vpop.f32.mrf.mxu0
        %4158 = vmatprep.mubr.f32.mxu0 0.0
        %4159 = vmatmul.mubr.f32.gmra.mxu0 %v3954
        %v4160 = vpop.f32.mrf.mxu0
        %v4161 = vadd.f32 0.0, %v4160
        %v4162 = vpop.f32.mrf.mxu0
        %4163 = vmatprep.mubr.f32.mxu0 0.0
        %4164 = vmatmul.mubr.f32.gmra.mxu0 %v3957
        %v4165 = vpop.f32.mrf.mxu0
        %v4166 = vadd.f32 0.0, %v4165
        %v4167 = vpop.f32.mrf.mxu0
        %4168 = vmatprep.mubr.f32.mxu0 0.0
        %4169 = vmatmul.mubr.f32.gmra.mxu0 %v3960
        %v4170 = vpop.f32.mrf.mxu0
        %v4171 = vadd.f32 0.0, %v4170
        %v4172 = vpop.f32.mrf.mxu0
        %4173 = vmatprep.mubr.f32.mxu0 0.0
        %4174 = vmatmul.mubr.f32.gmra.mxu0 %v3963
        %v4175 = vpop.f32.mrf.mxu0
        %v4176 = vadd.f32 0.0, %v4175
        %v4177 = vpop.f32.mrf.mxu0
        %4178 = vmatprep.mubr.f32.mxu0 0.0
        %4179 = vmatmul.mubr.f32.gmra.mxu0 %v3966
        %v4180 = vpop.f32.mrf.mxu0
        %v4181 = vadd.f32 0.0, %v4180
        %v4182 = vpop.f32.mrf.mxu0
        %4183 = vmatprep.mubr.f32.mxu0 0.0
        %4184 = vmatmul.mubr.f32.gmra.mxu0 %v3969
        %v4185 = vpop.f32.mrf.mxu0
        %v4186 = vadd.f32 0.0, %v4185
        %v4187 = vpop.f32.mrf.mxu0
        %4188 = vmatprep.mubr.f32.mxu0 0.0
        %4189 = vmatmul.mubr.f32.gmra.mxu0 %v3972
        %v4190 = vpop.f32.mrf.mxu0
        %v4191 = vadd.f32 0.0, %v4190
        %v4192 = vpop.f32.mrf.mxu0
        %4193 = vmatprep.mubr.f32.mxu0 0.0
        %4194 = vmatmul.mubr.f32.gmra.mxu0 %v3975
        %v4195 = vpop.f32.mrf.mxu0
        %v4196 = vadd.f32 0.0, %v4195
        %v4197 = vpop.f32.mrf.mxu0
        %4198 = vmatprep.mubr.f32.mxu0 0.0
        %4199 = vmatmul.mubr.f32.gmra.mxu0 %v3978
        %v4200 = vpop.f32.mrf.mxu0
        %v4201 = vadd.f32 0.0, %v4200
        %v4202 = vpop.f32.mrf.mxu0
        %4203 = vmatprep.mubr.f32.mxu0 0.0
        %4204 = vmatmul.mubr.f32.gmra.mxu0 %v3981
        %v4205 = vpop.f32.mrf.mxu0
        %v4206 = vadd.f32 0.0, %v4205
        %v4207 = vpop.f32.mrf.mxu0
        %4208 = vmatprep.mubr.f32.mxu0 0.0
        %4209 = vmatmul.mubr.f32.gmra.mxu0 %v3984
        %v4210 = vpop.f32.mrf.mxu0
        %v4211 = vadd.f32 0.0, %v4210
        %v4212 = vpop.f32.mrf.mxu0
        %4213 = vmatprep.mubr.f32.mxu0 0.0
        %4214 = vmatmul.mubr.f32.gmra.mxu0 %v3987
        %v4215 = vpop.f32.mrf.mxu0
        %v4216 = vadd.f32 0.0, %v4215
        %v4217 = vpop.f32.mrf.mxu0
        %4218 = vmatprep.mubr.f32.mxu0 0.0
        %4219 = vmatmul.mubr.f32.gmra.mxu0 %v3990
        %v4220 = vpop.f32.mrf.mxu0
        %v4221 = vadd.f32 0.0, %v4220
        %v4222 = vpop.f32.mrf.mxu0
        %4223 = vmatprep.mubr.f32.mxu0 0.0
        %4224 = vmatmul.mubr.f32.gmra.mxu0 %v3993
        %v4225 = vpop.f32.mrf.mxu0
        %v4226 = vadd.f32 0.0, %v4225
        %v4227 = vpop.f32.mrf.mxu0
        %4228 = vmatprep.mubr.f32.mxu0 0.0
        %4229 = vmatmul.mubr.f32.gmra.mxu0 %v3996
        %v4230 = vpop.f32.mrf.mxu0
        %v4231 = vadd.f32 0.0, %v4230
        %v4232 = vpop.f32.mrf.mxu0
        %4233 = vmatprep.mubr.f32.mxu0 0.0
        %4234 = vmatmul.mubr.f32.gmra.mxu0 %v3999
        %v4235 = vpop.f32.mrf.mxu0
        %v4236 = vadd.f32 0.0, %v4235
        %v4237 = vpop.f32.mrf.mxu0
        %4238 = vmatprep.mubr.f32.mxu0 0.0
        %4239 = vmatmul.mubr.f32.gmra.mxu0 %v4002
        %v4240 = vpop.f32.mrf.mxu0
        %v4241 = vadd.f32 0.0, %v4240
        %v4242 = vpop.f32.mrf.mxu0
        %4243 = vmatprep.mubr.f32.mxu0 0.0
        %4244 = vmatmul.mubr.f32.gmra.mxu0 %v4005
        %v4245 = vpop.f32.mrf.mxu0
        %v4246 = vadd.f32 0.0, %v4245
        %v4247 = vpop.f32.mrf.mxu0
        %4248 = vmatprep.mubr.f32.mxu0 0.0
        %4249 = vmatmul.mubr.f32.gmra.mxu0 %v4008
        %v4250 = vpop.f32.mrf.mxu0
        %v4251 = vadd.f32 0.0, %v4250
        %v4252 = vpop.f32.mrf.mxu0
        %4253 = vmatprep.mubr.f32.mxu0 0.0
        %4254 = vmatmul.mubr.f32.gmra.mxu0 %v4011
        %v4255 = vpop.f32.mrf.mxu0
        %v4256 = vadd.f32 0.0, %v4255
        %v4257 = vpop.f32.mrf.mxu0
        %4258 = vmatprep.mubr.f32.mxu0 0.0
        %4259 = vmatmul.mubr.f32.gmra.mxu0 %v4014
        %v4260 = vpop.f32.mrf.mxu0
        %v4261 = vadd.f32 0.0, %v4260
        %v4262 = vpop.f32.mrf.mxu0
        %4263 = vdwg.mxu0
        %v4264 = vld [vmem:[#allocation6] sm:$0xff]
        %v4265 = vld [vmem:[#allocation6 + $0x8] sm:$0xff]
        %v4266 = vld [vmem:[#allocation6 + $0x10] sm:$0xff]
        %v4267 = vld [vmem:[#allocation6 + $0x18] sm:$0xff]
        %v4268 = vld [vmem:[#allocation6 + $0x20] sm:$0xff]
        %v4269 = vld [vmem:[#allocation6 + $0x28] sm:$0xff]
        %v4270 = vld [vmem:[#allocation6 + $0x30] sm:$0xff]
        %v4271 = vld [vmem:[#allocation6 + $0x38] sm:$0xff]
        %v4272 = vld [vmem:[#allocation6 + $0x40] sm:$0xff]
        %v4273 = vld [vmem:[#allocation6 + $0x48] sm:$0xff]
        %v4274 = vld [vmem:[#allocation6 + $0x50] sm:$0xff]
        %v4275 = vld [vmem:[#allocation6 + $0x58] sm:$0xff]
        %v4276 = vld [vmem:[#allocation6 + $0x60] sm:$0xff]
        %v4277 = vld [vmem:[#allocation6 + $0x68] sm:$0xff]
        %v4278 = vld [vmem:[#allocation6 + $0x70] sm:$0xff]
        %v4279 = vld [vmem:[#allocation6 + $0x78] sm:$0xff]
        %v4280 = vld [vmem:[#allocation6 + $0x80] sm:$0xff]
        %v4281 = vld [vmem:[#allocation6 + $0x88] sm:$0xff]
        %v4282 = vld [vmem:[#allocation6 + $0x90] sm:$0xff]
        %v4283 = vld [vmem:[#allocation6 + $0x98] sm:$0xff]
        %v4284 = vld [vmem:[#allocation6 + $0xa0] sm:$0xff]
        %v4285 = vld [vmem:[#allocation6 + $0xa8] sm:$0xff]
        %v4286 = vld [vmem:[#allocation6 + $0xb0] sm:$0xff]
        %v4287 = vld [vmem:[#allocation6 + $0xb8] sm:$0xff]
        %v4288 = vld [vmem:[#allocation6 + $0xc0] sm:$0xff]
        %v4289 = vld [vmem:[#allocation6 + $0xc8] sm:$0xff]
        %v4290 = vld [vmem:[#allocation6 + $0xd0] sm:$0xff]
        %v4291 = vld [vmem:[#allocation6 + $0xd8] sm:$0xff]
        %v4292 = vld [vmem:[#allocation6 + $0xe0] sm:$0xff]
        %v4293 = vld [vmem:[#allocation6 + $0xe8] sm:$0xff]
        %v4294 = vld [vmem:[#allocation6 + $0xf0] sm:$0xff]
        %v4295 = vld [vmem:[#allocation6 + $0xf8] sm:$0xff]
        %v4296 = vld [vmem:[#allocation6 + $0x100] sm:$0xff]
        %v4297 = vld [vmem:[#allocation6 + $0x108] sm:$0xff]
        %v4298 = vld [vmem:[#allocation6 + $0x110] sm:$0xff]
        %v4299 = vld [vmem:[#allocation6 + $0x118] sm:$0x3f]
        %v4300 = vadd.f32 %v4264, %v4086
        %v4301 = vadd.f32 %v4265, %v4091
        %v4302 = vadd.f32 %v4266, %v4096
        %v4303 = vadd.f32 %v4267, %v4101
        %v4304 = vadd.f32 %v4268, %v4106
        %v4305 = vadd.f32 %v4269, %v4111
        %v4306 = vadd.f32 %v4270, %v4116
        %v4307 = vadd.f32 %v4271, %v4121
        %v4308 = vadd.f32 %v4272, %v4126
        %v4309 = vadd.f32 %v4273, %v4131
        %v4310 = vadd.f32 %v4274, %v4136
        %v4311 = vadd.f32 %v4275, %v4141
        %v4312 = vadd.f32 %v4276, %v4146
        %v4313 = vadd.f32 %v4277, %v4151
        %v4314 = vadd.f32 %v4278, %v4156
        %v4315 = vadd.f32 %v4279, %v4161
        %v4316 = vadd.f32 %v4280, %v4166
        %v4317 = vadd.f32 %v4281, %v4171
        %v4318 = vadd.f32 %v4282, %v4176
        %v4319 = vadd.f32 %v4283, %v4181
        %v4320 = vadd.f32 %v4284, %v4186
        %v4321 = vadd.f32 %v4285, %v4191
        %v4322 = vadd.f32 %v4286, %v4196
        %v4323 = vadd.f32 %v4287, %v4201
        %v4324 = vadd.f32 %v4288, %v4206
        %v4325 = vadd.f32 %v4289, %v4211
        %v4326 = vadd.f32 %v4290, %v4216
        %v4327 = vadd.f32 %v4291, %v4221
        %v4328 = vadd.f32 %v4292, %v4226
        %v4329 = vadd.f32 %v4293, %v4231
        %v4330 = vadd.f32 %v4294, %v4236
        %v4331 = vadd.f32 %v4295, %v4241
        %v4332 = vadd.f32 %v4296, %v4246
        %v4333 = vadd.f32 %v4297, %v4251
        %v4334 = vadd.f32 %v4298, %v4256
        %v4335 = vadd.f32 %v4299, %v4261
        %4336 = vst.msk [vmem:[#allocation6] sm:$0xff] %vm412, %v4300
        %4337 = vst.msk [vmem:[#allocation6 + $0x8] sm:$0xff] %vm412, %v4301
        %4338 = vst.msk [vmem:[#allocation6 + $0x10] sm:$0xff] %vm412, %v4302
        %4339 = vst.msk [vmem:[#allocation6 + $0x18] sm:$0xff] %vm412, %v4303
        %4340 = vst.msk [vmem:[#allocation6 + $0x20] sm:$0xff] %vm412, %v4304
        %4341 = vst.msk [vmem:[#allocation6 + $0x28] sm:$0xff] %vm412, %v4305
        %4342 = vst.msk [vmem:[#allocation6 + $0x30] sm:$0xff] %vm412, %v4306
        %4343 = vst.msk [vmem:[#allocation6 + $0x38] sm:$0xff] %vm412, %v4307
        %4344 = vst.msk [vmem:[#allocation6 + $0x40] sm:$0xff] %vm412, %v4308
        %4345 = vst.msk [vmem:[#allocation6 + $0x48] sm:$0xff] %vm412, %v4309
        %4346 = vst.msk [vmem:[#allocation6 + $0x50] sm:$0xff] %vm412, %v4310
        %4347 = vst.msk [vmem:[#allocation6 + $0x58] sm:$0xff] %vm412, %v4311
        %4348 = vst.msk [vmem:[#allocation6 + $0x60] sm:$0xff] %vm412, %v4312
        %4349 = vst.msk [vmem:[#allocation6 + $0x68] sm:$0xff] %vm412, %v4313
        %4350 = vst.msk [vmem:[#allocation6 + $0x70] sm:$0xff] %vm412, %v4314
        %4351 = vst.msk [vmem:[#allocation6 + $0x78] sm:$0xff] %vm412, %v4315
        %4352 = vst.msk [vmem:[#allocation6 + $0x80] sm:$0xff] %vm412, %v4316
        %4353 = vst.msk [vmem:[#allocation6 + $0x88] sm:$0xff] %vm412, %v4317
        %4354 = vst.msk [vmem:[#allocation6 + $0x90] sm:$0xff] %vm412, %v4318
        %4355 = vst.msk [vmem:[#allocation6 + $0x98] sm:$0xff] %vm412, %v4319
        %4356 = vst.msk [vmem:[#allocation6 + $0xa0] sm:$0xff] %vm412, %v4320
        %4357 = vst.msk [vmem:[#allocation6 + $0xa8] sm:$0xff] %vm412, %v4321
        %4358 = vst.msk [vmem:[#allocation6 + $0xb0] sm:$0xff] %vm412, %v4322
        %4359 = vst.msk [vmem:[#allocation6 + $0xb8] sm:$0xff] %vm412, %v4323
        %4360 = vst.msk [vmem:[#allocation6 + $0xc0] sm:$0xff] %vm412, %v4324
        %4361 = vst.msk [vmem:[#allocation6 + $0xc8] sm:$0xff] %vm412, %v4325
        %4362 = vst.msk [vmem:[#allocation6 + $0xd0] sm:$0xff] %vm412, %v4326
        %4363 = vst.msk [vmem:[#allocation6 + $0xd8] sm:$0xff] %vm412, %v4327
        %4364 = vst.msk [vmem:[#allocation6 + $0xe0] sm:$0xff] %vm412, %v4328
        %4365 = vst.msk [vmem:[#allocation6 + $0xe8] sm:$0xff] %vm412, %v4329
        %4366 = vst.msk [vmem:[#allocation6 + $0xf0] sm:$0xff] %vm412, %v4330
        %4367 = vst.msk [vmem:[#allocation6 + $0xf8] sm:$0xff] %vm412, %v4331
        %4368 = vst.msk [vmem:[#allocation6 + $0x100] sm:$0xff] %vm412, %v4332
        %4369 = vst.msk [vmem:[#allocation6 + $0x108] sm:$0xff] %vm412, %v4333
        %4370 = vst.msk [vmem:[#allocation6 + $0x110] sm:$0xff] %vm412, %v4334
        %4371 = vst.msk [vmem:[#allocation6 + $0x118] sm:$0x3f] %vm856, %v4335
        %v4372 = vld [vmem:[#allocation2 + $0x26] sm:$0xff]
        %v4373 = vld [vmem:[#allocation2 + $0x2e] sm:$0xff]
        %v4374 = vld [vmem:[#allocation2 + $0x36] sm:$0xff]
        %v4375 = vld [vmem:[#allocation2 + $0x3e] sm:$0xff]
        %v4376 = vld [vmem:[#allocation2 + $0x46] sm:$0xff]
        %v4377 = vld [vmem:[#allocation2 + $0x4e] sm:$0xff]
        %v4378 = vld [vmem:[#allocation2 + $0x56] sm:$0xff]
        %v4379 = vld [vmem:[#allocation2 + $0x5e] sm:$0xff]
        %v4380 = vld [vmem:[#allocation2 + $0x66] sm:$0xff]
        %v4381 = vld [vmem:[#allocation2 + $0x6e] sm:$0xff]
        %v4382 = vld [vmem:[#allocation2 + $0x76] sm:$0xff]
        %v4383 = vld [vmem:[#allocation2 + $0x7e] sm:$0xff]
        %v4384 = vld [vmem:[#allocation2 + $0x86] sm:$0xff]
        %v4385 = vld [vmem:[#allocation2 + $0x8e] sm:$0xff]
        %v4386 = vld [vmem:[#allocation2 + $0x96] sm:$0xff]
        %v4387 = vld [vmem:[#allocation2 + $0x9e] sm:$0xff]
        %v4388 = vld [vmem:[#allocation2 + $0xa6] sm:$0xff]
        %v4389 = vld [vmem:[#allocation2 + $0xae] sm:$0xff]
        %v4390 = vld [vmem:[#allocation2 + $0xb6] sm:$0xff]
        %v4391 = vld [vmem:[#allocation2 + $0xbe] sm:$0xff]
        %v4392 = vld [vmem:[#allocation2 + $0xc6] sm:$0xff]
        %v4393 = vld [vmem:[#allocation2 + $0xce] sm:$0xff]
        %v4394 = vld [vmem:[#allocation2 + $0xd6] sm:$0xff]
        %v4395 = vld [vmem:[#allocation2 + $0xde] sm:$0xff]
        %v4396 = vld [vmem:[#allocation2 + $0xe6] sm:$0xff]
        %v4397 = vld [vmem:[#allocation2 + $0xee] sm:$0xff]
        %v4398 = vld [vmem:[#allocation2 + $0xf6] sm:$0xff]
        %v4399 = vld [vmem:[#allocation2 + $0xfe] sm:$0xff]
        %v4400 = vld [vmem:[#allocation2 + $0x106] sm:$0xff]
        %v4401 = vld [vmem:[#allocation2 + $0x10e] sm:$0xff]
        %v4402 = vld [vmem:[#allocation2 + $0x116] sm:$0xff]
        %v4403 = vld [vmem:[#allocation2 + $0x11e] sm:$0xff]
        %v4404 = vld [vmem:[#allocation2 + $0x126] sm:$0xff]
        %v4405 = vld [vmem:[#allocation2 + $0x12e] sm:$0xff]
        %v4406 = vld [vmem:[#allocation2 + $0x136] sm:$0xff]
        %v4407 = vld [vmem:[#allocation2 + $0x13e] sm:$0x3f]
        %s4408 = scalar_lea.vmem %s1, 32
        %v4409 = vld [vmem:[%s4408] sm:$0x7]
        %v4411 = vsel %vm291, %v4372, 0
        %v4414 = vsel %vm291, %v4373, 0
        %v4417 = vsel %vm291, %v4374, 0
        %v4420 = vsel %vm291, %v4375, 0
        %v4423 = vsel %vm291, %v4376, 0
        %v4426 = vsel %vm291, %v4377, 0
        %v4429 = vsel %vm291, %v4378, 0
        %v4432 = vsel %vm291, %v4379, 0
        %v4435 = vsel %vm291, %v4380, 0
        %v4438 = vsel %vm291, %v4381, 0
        %v4441 = vsel %vm291, %v4382, 0
        %v4444 = vsel %vm291, %v4383, 0
        %v4447 = vsel %vm291, %v4384, 0
        %v4450 = vsel %vm291, %v4385, 0
        %v4453 = vsel %vm291, %v4386, 0
        %v4456 = vsel %vm291, %v4387, 0
        %v4459 = vsel %vm291, %v4388, 0
        %v4462 = vsel %vm291, %v4389, 0
        %v4465 = vsel %vm291, %v4390, 0
        %v4468 = vsel %vm291, %v4391, 0
        %v4471 = vsel %vm291, %v4392, 0
        %v4474 = vsel %vm291, %v4393, 0
        %v4477 = vsel %vm291, %v4394, 0
        %v4480 = vsel %vm291, %v4395, 0
        %v4483 = vsel %vm291, %v4396, 0
        %v4486 = vsel %vm291, %v4397, 0
        %v4489 = vsel %vm291, %v4398, 0
        %v4492 = vsel %vm291, %v4399, 0
        %v4495 = vsel %vm291, %v4400, 0
        %v4498 = vsel %vm291, %v4401, 0
        %v4501 = vsel %vm291, %v4402, 0
        %v4504 = vsel %vm291, %v4403, 0
        %v4507 = vsel %vm291, %v4404, 0
        %v4510 = vsel %vm291, %v4405, 0
        %v4513 = vsel %vm291, %v4406, 0
        %v4516 = vsel %vm291, %v4407, 0
        %v4519 = vsel %vm572, %v4409, 0
        %4521 = vmatprep.subr.mxu0 0.0
        %4522 = vmatpush1.msra.mxu0 0.0
        %4523 = vmatprep.subr.mxu0 0.0
        %4524 = vmatpush1.msra.mxu0 0.0
        %4525 = vmatprep.subr.mxu0 0.0
        %4526 = vmatpush1.msra.mxu0 0.0
        %4527 = vmatprep.subr.mxu0 0.0
        %4528 = vmatpush1.msra.mxu0 0.0
        %4529 = vmatprep.subr.mxu0 0.0
        %4530 = vmatpush1.msra.mxu0 0.0
        %4531 = vmatprep.subr.mxu0 0.0
        %4532 = vmatpush1.msra.mxu0 0.0
        %4533 = vmatprep.subr.mxu0 0.0
        %4534 = vmatpush1.msra.mxu0 0.0
        %4535 = vmatprep.subr.mxu0 0.0
        %4536 = vmatpush1.msra.mxu0 0.0
        %4537 = vmatprep.subr.mxu0 0.0
        %4538 = vmatpush1.msra.mxu0 0.0
        %4539 = vmatprep.subr.mxu0 0.0
        %4540 = vmatpush1.msra.mxu0 0.0
        %4541 = vmatprep.subr.mxu0 0.0
        %4542 = vmatpush1.msra.mxu0 0.0
        %4543 = vmatprep.subr.mxu0 0.0
        %4544 = vmatpush1.msra.mxu0 0.0
        %4545 = vmatprep.subr.mxu0 0.0
        %4546 = vmatpush1.msra.mxu0 0.0
        %4547 = vmatprep.subr.mxu0 0.0
        %4548 = vmatpush1.msra.mxu0 0.0
        %4549 = vmatprep.subr.mxu0 0.0
        %4550 = vmatpush1.msra.mxu0 0.0
        %4551 = vmatprep.subr.mxu0 0.0
        %4552 = vmatpush1.msra.mxu0 %v4519
        %4553 = vmatprep.subr.mxu0 0.0
        %4554 = vmatpush2.msra.mxu0 0.0
        %4555 = vmatprep.subr.mxu0 0.0
        %4556 = vmatpush2.msra.mxu0 0.0
        %4557 = vmatprep.subr.mxu0 0.0
        %4558 = vmatpush2.msra.mxu0 0.0
        %4559 = vmatprep.subr.mxu0 0.0
        %4560 = vmatpush2.msra.mxu0 0.0
        %4561 = vmatprep.subr.mxu0 0.0
        %4562 = vmatpush2.msra.mxu0 0.0
        %4563 = vmatprep.subr.mxu0 0.0
        %4564 = vmatpush2.msra.mxu0 0.0
        %4565 = vmatprep.subr.mxu0 0.0
        %4566 = vmatpush2.msra.mxu0 0.0
        %4567 = vmatprep.subr.mxu0 0.0
        %4568 = vmatpush2.msra.mxu0 0.0
        %4569 = vmatprep.subr.mxu0 0.0
        %4570 = vmatpush2.msra.mxu0 0.0
        %4571 = vmatprep.subr.mxu0 0.0
        %4572 = vmatpush2.msra.mxu0 0.0
        %4573 = vmatprep.subr.mxu0 0.0
        %4574 = vmatpush2.msra.mxu0 0.0
        %4575 = vmatprep.subr.mxu0 0.0
        %4576 = vmatpush2.msra.mxu0 0.0
        %4577 = vmatprep.subr.mxu0 0.0
        %4578 = vmatpush2.msra.mxu0 0.0
        %4579 = vmatprep.subr.mxu0 0.0
        %4580 = vmatpush2.msra.mxu0 0.0
        %4581 = vmatprep.subr.mxu0 0.0
        %4582 = vmatpush2.msra.mxu0 0.0
        %4583 = vmatprep.subr.mxu0 0.0
        %4584 = vmatpush2.msra.mxu0 0.0
        %4585 = vmatprep.mubr.f32.mxu0 0.0
        %4586 = vmatmul.mubr.f32.gmra.mxu0 %v4411
        %v4587 = vpop.f32.mrf.mxu0
        %v4588 = vadd.f32 0.0, %v4587
        %v4589 = vpop.f32.mrf.mxu0
        %4590 = vmatprep.mubr.f32.mxu0 0.0
        %4591 = vmatmul.mubr.f32.gmra.mxu0 %v4414
        %v4592 = vpop.f32.mrf.mxu0
        %v4593 = vadd.f32 0.0, %v4592
        %v4594 = vpop.f32.mrf.mxu0
        %4595 = vmatprep.mubr.f32.mxu0 0.0
        %4596 = vmatmul.mubr.f32.gmra.mxu0 %v4417
        %v4597 = vpop.f32.mrf.mxu0
        %v4598 = vadd.f32 0.0, %v4597
        %v4599 = vpop.f32.mrf.mxu0
        %4600 = vmatprep.mubr.f32.mxu0 0.0
        %4601 = vmatmul.mubr.f32.gmra.mxu0 %v4420
        %v4602 = vpop.f32.mrf.mxu0
        %v4603 = vadd.f32 0.0, %v4602
        %v4604 = vpop.f32.mrf.mxu0
        %4605 = vmatprep.mubr.f32.mxu0 0.0
        %4606 = vmatmul.mubr.f32.gmra.mxu0 %v4423
        %v4607 = vpop.f32.mrf.mxu0
        %v4608 = vadd.f32 0.0, %v4607
        %v4609 = vpop.f32.mrf.mxu0
        %4610 = vmatprep.mubr.f32.mxu0 0.0
        %4611 = vmatmul.mubr.f32.gmra.mxu0 %v4426
        %v4612 = vpop.f32.mrf.mxu0
        %v4613 = vadd.f32 0.0, %v4612
        %v4614 = vpop.f32.mrf.mxu0
        %4615 = vmatprep.mubr.f32.mxu0 0.0
        %4616 = vmatmul.mubr.f32.gmra.mxu0 %v4429
        %v4617 = vpop.f32.mrf.mxu0
        %v4618 = vadd.f32 0.0, %v4617
        %v4619 = vpop.f32.mrf.mxu0
        %4620 = vmatprep.mubr.f32.mxu0 0.0
        %4621 = vmatmul.mubr.f32.gmra.mxu0 %v4432
        %v4622 = vpop.f32.mrf.mxu0
        %v4623 = vadd.f32 0.0, %v4622
        %v4624 = vpop.f32.mrf.mxu0
        %4625 = vmatprep.mubr.f32.mxu0 0.0
        %4626 = vmatmul.mubr.f32.gmra.mxu0 %v4435
        %v4627 = vpop.f32.mrf.mxu0
        %v4628 = vadd.f32 0.0, %v4627
        %v4629 = vpop.f32.mrf.mxu0
        %4630 = vmatprep.mubr.f32.mxu0 0.0
        %4631 = vmatmul.mubr.f32.gmra.mxu0 %v4438
        %v4632 = vpop.f32.mrf.mxu0
        %v4633 = vadd.f32 0.0, %v4632
        %v4634 = vpop.f32.mrf.mxu0
        %4635 = vmatprep.mubr.f32.mxu0 0.0
        %4636 = vmatmul.mubr.f32.gmra.mxu0 %v4441
        %v4637 = vpop.f32.mrf.mxu0
        %v4638 = vadd.f32 0.0, %v4637
        %v4639 = vpop.f32.mrf.mxu0
        %4640 = vmatprep.mubr.f32.mxu0 0.0
        %4641 = vmatmul.mubr.f32.gmra.mxu0 %v4444
        %v4642 = vpop.f32.mrf.mxu0
        %v4643 = vadd.f32 0.0, %v4642
        %v4644 = vpop.f32.mrf.mxu0
        %4645 = vmatprep.mubr.f32.mxu0 0.0
        %4646 = vmatmul.mubr.f32.gmra.mxu0 %v4447
        %v4647 = vpop.f32.mrf.mxu0
        %v4648 = vadd.f32 0.0, %v4647
        %v4649 = vpop.f32.mrf.mxu0
        %4650 = vmatprep.mubr.f32.mxu0 0.0
        %4651 = vmatmul.mubr.f32.gmra.mxu0 %v4450
        %v4652 = vpop.f32.mrf.mxu0
        %v4653 = vadd.f32 0.0, %v4652
        %v4654 = vpop.f32.mrf.mxu0
        %4655 = vmatprep.mubr.f32.mxu0 0.0
        %4656 = vmatmul.mubr.f32.gmra.mxu0 %v4453
        %v4657 = vpop.f32.mrf.mxu0
        %v4658 = vadd.f32 0.0, %v4657
        %v4659 = vpop.f32.mrf.mxu0
        %4660 = vmatprep.mubr.f32.mxu0 0.0
        %4661 = vmatmul.mubr.f32.gmra.mxu0 %v4456
        %v4662 = vpop.f32.mrf.mxu0
        %v4663 = vadd.f32 0.0, %v4662
        %v4664 = vpop.f32.mrf.mxu0
        %4665 = vmatprep.mubr.f32.mxu0 0.0
        %4666 = vmatmul.mubr.f32.gmra.mxu0 %v4459
        %v4667 = vpop.f32.mrf.mxu0
        %v4668 = vadd.f32 0.0, %v4667
        %v4669 = vpop.f32.mrf.mxu0
        %4670 = vmatprep.mubr.f32.mxu0 0.0
        %4671 = vmatmul.mubr.f32.gmra.mxu0 %v4462
        %v4672 = vpop.f32.mrf.mxu0
        %v4673 = vadd.f32 0.0, %v4672
        %v4674 = vpop.f32.mrf.mxu0
        %4675 = vmatprep.mubr.f32.mxu0 0.0
        %4676 = vmatmul.mubr.f32.gmra.mxu0 %v4465
        %v4677 = vpop.f32.mrf.mxu0
        %v4678 = vadd.f32 0.0, %v4677
        %v4679 = vpop.f32.mrf.mxu0
        %4680 = vmatprep.mubr.f32.mxu0 0.0
        %4681 = vmatmul.mubr.f32.gmra.mxu0 %v4468
        %v4682 = vpop.f32.mrf.mxu0
        %v4683 = vadd.f32 0.0, %v4682
        %v4684 = vpop.f32.mrf.mxu0
        %4685 = vmatprep.mubr.f32.mxu0 0.0
        %4686 = vmatmul.mubr.f32.gmra.mxu0 %v4471
        %v4687 = vpop.f32.mrf.mxu0
        %v4688 = vadd.f32 0.0, %v4687
        %v4689 = vpop.f32.mrf.mxu0
        %4690 = vmatprep.mubr.f32.mxu0 0.0
        %4691 = vmatmul.mubr.f32.gmra.mxu0 %v4474
        %v4692 = vpop.f32.mrf.mxu0
        %v4693 = vadd.f32 0.0, %v4692
        %v4694 = vpop.f32.mrf.mxu0
        %4695 = vmatprep.mubr.f32.mxu0 0.0
        %4696 = vmatmul.mubr.f32.gmra.mxu0 %v4477
        %v4697 = vpop.f32.mrf.mxu0
        %v4698 = vadd.f32 0.0, %v4697
        %v4699 = vpop.f32.mrf.mxu0
        %4700 = vmatprep.mubr.f32.mxu0 0.0
        %4701 = vmatmul.mubr.f32.gmra.mxu0 %v4480
        %v4702 = vpop.f32.mrf.mxu0
        %v4703 = vadd.f32 0.0, %v4702
        %v4704 = vpop.f32.mrf.mxu0
        %4705 = vmatprep.mubr.f32.mxu0 0.0
        %4706 = vmatmul.mubr.f32.gmra.mxu0 %v4483
        %v4707 = vpop.f32.mrf.mxu0
        %v4708 = vadd.f32 0.0, %v4707
        %v4709 = vpop.f32.mrf.mxu0
        %4710 = vmatprep.mubr.f32.mxu0 0.0
        %4711 = vmatmul.mubr.f32.gmra.mxu0 %v4486
        %v4712 = vpop.f32.mrf.mxu0
        %v4713 = vadd.f32 0.0, %v4712
        %v4714 = vpop.f32.mrf.mxu0
        %4715 = vmatprep.mubr.f32.mxu0 0.0
        %4716 = vmatmul.mubr.f32.gmra.mxu0 %v4489
        %v4717 = vpop.f32.mrf.mxu0
        %v4718 = vadd.f32 0.0, %v4717
        %v4719 = vpop.f32.mrf.mxu0
        %4720 = vmatprep.mubr.f32.mxu0 0.0
        %4721 = vmatmul.mubr.f32.gmra.mxu0 %v4492
        %v4722 = vpop.f32.mrf.mxu0
        %v4723 = vadd.f32 0.0, %v4722
        %v4724 = vpop.f32.mrf.mxu0
        %4725 = vmatprep.mubr.f32.mxu0 0.0
        %4726 = vmatmul.mubr.f32.gmra.mxu0 %v4495
        %v4727 = vpop.f32.mrf.mxu0
        %v4728 = vadd.f32 0.0, %v4727
        %v4729 = vpop.f32.mrf.mxu0
        %4730 = vmatprep.mubr.f32.mxu0 0.0
        %4731 = vmatmul.mubr.f32.gmra.mxu0 %v4498
        %v4732 = vpop.f32.mrf.mxu0
        %v4733 = vadd.f32 0.0, %v4732
        %v4734 = vpop.f32.mrf.mxu0
        %4735 = vmatprep.mubr.f32.mxu0 0.0
        %4736 = vmatmul.mubr.f32.gmra.mxu0 %v4501
        %v4737 = vpop.f32.mrf.mxu0
        %v4738 = vadd.f32 0.0, %v4737
        %v4739 = vpop.f32.mrf.mxu0
        %4740 = vmatprep.mubr.f32.mxu0 0.0
        %4741 = vmatmul.mubr.f32.gmra.mxu0 %v4504
        %v4742 = vpop.f32.mrf.mxu0
        %v4743 = vadd.f32 0.0, %v4742
        %v4744 = vpop.f32.mrf.mxu0
        %4745 = vmatprep.mubr.f32.mxu0 0.0
        %4746 = vmatmul.mubr.f32.gmra.mxu0 %v4507
        %v4747 = vpop.f32.mrf.mxu0
        %v4748 = vadd.f32 0.0, %v4747
        %v4749 = vpop.f32.mrf.mxu0
        %4750 = vmatprep.mubr.f32.mxu0 0.0
        %4751 = vmatmul.mubr.f32.gmra.mxu0 %v4510
        %v4752 = vpop.f32.mrf.mxu0
        %v4753 = vadd.f32 0.0, %v4752
        %v4754 = vpop.f32.mrf.mxu0
        %4755 = vmatprep.mubr.f32.mxu0 0.0
        %4756 = vmatmul.mubr.f32.gmra.mxu0 %v4513
        %v4757 = vpop.f32.mrf.mxu0
        %v4758 = vadd.f32 0.0, %v4757
        %v4759 = vpop.f32.mrf.mxu0
        %4760 = vmatprep.mubr.f32.mxu0 0.0
        %4761 = vmatmul.mubr.f32.gmra.mxu0 %v4516
        %v4762 = vpop.f32.mrf.mxu0
        %v4763 = vadd.f32 0.0, %v4762
        %v4764 = vpop.f32.mrf.mxu0
        %4765 = vdwg.mxu0
        %v4766 = vld [vmem:[#allocation6] sm:$0xff]
        %v4767 = vld [vmem:[#allocation6 + $0x8] sm:$0xff]
        %v4768 = vld [vmem:[#allocation6 + $0x10] sm:$0xff]
        %v4769 = vld [vmem:[#allocation6 + $0x18] sm:$0xff]
        %v4770 = vld [vmem:[#allocation6 + $0x20] sm:$0xff]
        %v4771 = vld [vmem:[#allocation6 + $0x28] sm:$0xff]
        %v4772 = vld [vmem:[#allocation6 + $0x30] sm:$0xff]
        %v4773 = vld [vmem:[#allocation6 + $0x38] sm:$0xff]
        %v4774 = vld [vmem:[#allocation6 + $0x40] sm:$0xff]
        %v4775 = vld [vmem:[#allocation6 + $0x48] sm:$0xff]
        %v4776 = vld [vmem:[#allocation6 + $0x50] sm:$0xff]
        %v4777 = vld [vmem:[#allocation6 + $0x58] sm:$0xff]
        %v4778 = vld [vmem:[#allocation6 + $0x60] sm:$0xff]
        %v4779 = vld [vmem:[#allocation6 + $0x68] sm:$0xff]
        %v4780 = vld [vmem:[#allocation6 + $0x70] sm:$0xff]
        %v4781 = vld [vmem:[#allocation6 + $0x78] sm:$0xff]
        %v4782 = vld [vmem:[#allocation6 + $0x80] sm:$0xff]
        %v4783 = vld [vmem:[#allocation6 + $0x88] sm:$0xff]
        %v4784 = vld [vmem:[#allocation6 + $0x90] sm:$0xff]
        %v4785 = vld [vmem:[#allocation6 + $0x98] sm:$0xff]
        %v4786 = vld [vmem:[#allocation6 + $0xa0] sm:$0xff]
        %v4787 = vld [vmem:[#allocation6 + $0xa8] sm:$0xff]
        %v4788 = vld [vmem:[#allocation6 + $0xb0] sm:$0xff]
        %v4789 = vld [vmem:[#allocation6 + $0xb8] sm:$0xff]
        %v4790 = vld [vmem:[#allocation6 + $0xc0] sm:$0xff]
        %v4791 = vld [vmem:[#allocation6 + $0xc8] sm:$0xff]
        %v4792 = vld [vmem:[#allocation6 + $0xd0] sm:$0xff]
        %v4793 = vld [vmem:[#allocation6 + $0xd8] sm:$0xff]
        %v4794 = vld [vmem:[#allocation6 + $0xe0] sm:$0xff]
        %v4795 = vld [vmem:[#allocation6 + $0xe8] sm:$0xff]
        %v4796 = vld [vmem:[#allocation6 + $0xf0] sm:$0xff]
        %v4797 = vld [vmem:[#allocation6 + $0xf8] sm:$0xff]
        %v4798 = vld [vmem:[#allocation6 + $0x100] sm:$0xff]
        %v4799 = vld [vmem:[#allocation6 + $0x108] sm:$0xff]
        %v4800 = vld [vmem:[#allocation6 + $0x110] sm:$0xff]
        %v4801 = vld [vmem:[#allocation6 + $0x118] sm:$0x3f]
        %v4802 = vadd.f32 %v4766, %v4588
        %v4803 = vadd.f32 %v4767, %v4593
        %v4804 = vadd.f32 %v4768, %v4598
        %v4805 = vadd.f32 %v4769, %v4603
        %v4806 = vadd.f32 %v4770, %v4608
        %v4807 = vadd.f32 %v4771, %v4613
        %v4808 = vadd.f32 %v4772, %v4618
        %v4809 = vadd.f32 %v4773, %v4623
        %v4810 = vadd.f32 %v4774, %v4628
        %v4811 = vadd.f32 %v4775, %v4633
        %v4812 = vadd.f32 %v4776, %v4638
        %v4813 = vadd.f32 %v4777, %v4643
        %v4814 = vadd.f32 %v4778, %v4648
        %v4815 = vadd.f32 %v4779, %v4653
        %v4816 = vadd.f32 %v4780, %v4658
        %v4817 = vadd.f32 %v4781, %v4663
        %v4818 = vadd.f32 %v4782, %v4668
        %v4819 = vadd.f32 %v4783, %v4673
        %v4820 = vadd.f32 %v4784, %v4678
        %v4821 = vadd.f32 %v4785, %v4683
        %v4822 = vadd.f32 %v4786, %v4688
        %v4823 = vadd.f32 %v4787, %v4693
        %v4824 = vadd.f32 %v4788, %v4698
        %v4825 = vadd.f32 %v4789, %v4703
        %v4826 = vadd.f32 %v4790, %v4708
        %v4827 = vadd.f32 %v4791, %v4713
        %v4828 = vadd.f32 %v4792, %v4718
        %v4829 = vadd.f32 %v4793, %v4723
        %v4830 = vadd.f32 %v4794, %v4728
        %v4831 = vadd.f32 %v4795, %v4733
        %v4832 = vadd.f32 %v4796, %v4738
        %v4833 = vadd.f32 %v4797, %v4743
        %v4834 = vadd.f32 %v4798, %v4748
        %v4835 = vadd.f32 %v4799, %v4753
        %v4836 = vadd.f32 %v4800, %v4758
        %v4837 = vadd.f32 %v4801, %v4763
        %4838 = vst.msk [vmem:[#allocation6] sm:$0xff] %vm412, %v4802
        %4839 = vst.msk [vmem:[#allocation6 + $0x8] sm:$0xff] %vm412, %v4803
        %4840 = vst.msk [vmem:[#allocation6 + $0x10] sm:$0xff] %vm412, %v4804
        %4841 = vst.msk [vmem:[#allocation6 + $0x18] sm:$0xff] %vm412, %v4805
        %4842 = vst.msk [vmem:[#allocation6 + $0x20] sm:$0xff] %vm412, %v4806
        %4843 = vst.msk [vmem:[#allocation6 + $0x28] sm:$0xff] %vm412, %v4807
        %4844 = vst.msk [vmem:[#allocation6 + $0x30] sm:$0xff] %vm412, %v4808
        %4845 = vst.msk [vmem:[#allocation6 + $0x38] sm:$0xff] %vm412, %v4809
        %4846 = vst.msk [vmem:[#allocation6 + $0x40] sm:$0xff] %vm412, %v4810
        %4847 = vst.msk [vmem:[#allocation6 + $0x48] sm:$0xff] %vm412, %v4811
        %4848 = vst.msk [vmem:[#allocation6 + $0x50] sm:$0xff] %vm412, %v4812
        %4849 = vst.msk [vmem:[#allocation6 + $0x58] sm:$0xff] %vm412, %v4813
        %4850 = vst.msk [vmem:[#allocation6 + $0x60] sm:$0xff] %vm412, %v4814
        %4851 = vst.msk [vmem:[#allocation6 + $0x68] sm:$0xff] %vm412, %v4815
        %4852 = vst.msk [vmem:[#allocation6 + $0x70] sm:$0xff] %vm412, %v4816
        %4853 = vst.msk [vmem:[#allocation6 + $0x78] sm:$0xff] %vm412, %v4817
        %4854 = vst.msk [vmem:[#allocation6 + $0x80] sm:$0xff] %vm412, %v4818
        %4855 = vst.msk [vmem:[#allocation6 + $0x88] sm:$0xff] %vm412, %v4819
        %4856 = vst.msk [vmem:[#allocation6 + $0x90] sm:$0xff] %vm412, %v4820
        %4857 = vst.msk [vmem:[#allocation6 + $0x98] sm:$0xff] %vm412, %v4821
        %4858 = vst.msk [vmem:[#allocation6 + $0xa0] sm:$0xff] %vm412, %v4822
        %4859 = vst.msk [vmem:[#allocation6 + $0xa8] sm:$0xff] %vm412, %v4823
        %4860 = vst.msk [vmem:[#allocation6 + $0xb0] sm:$0xff] %vm412, %v4824
        %4861 = vst.msk [vmem:[#allocation6 + $0xb8] sm:$0xff] %vm412, %v4825
        %4862 = vst.msk [vmem:[#allocation6 + $0xc0] sm:$0xff] %vm412, %v4826
        %4863 = vst.msk [vmem:[#allocation6 + $0xc8] sm:$0xff] %vm412, %v4827
        %4864 = vst.msk [vmem:[#allocation6 + $0xd0] sm:$0xff] %vm412, %v4828
        %4865 = vst.msk [vmem:[#allocation6 + $0xd8] sm:$0xff] %vm412, %v4829
        %4866 = vst.msk [vmem:[#allocation6 + $0xe0] sm:$0xff] %vm412, %v4830
        %4867 = vst.msk [vmem:[#allocation6 + $0xe8] sm:$0xff] %vm412, %v4831
        %4868 = vst.msk [vmem:[#allocation6 + $0xf0] sm:$0xff] %vm412, %v4832
        %4869 = vst.msk [vmem:[#allocation6 + $0xf8] sm:$0xff] %vm412, %v4833
        %4870 = vst.msk [vmem:[#allocation6 + $0x100] sm:$0xff] %vm412, %v4834
        %4871 = vst.msk [vmem:[#allocation6 + $0x108] sm:$0xff] %vm412, %v4835
        %4872 = vst.msk [vmem:[#allocation6 + $0x110] sm:$0xff] %vm412, %v4836
        %4873 = vst.msk [vmem:[#allocation6 + $0x118] sm:$0x3f] %vm856, %v4837
        %v4874 = vld [vmem:[#allocation6] sm:$0xff]
        %v4875 = vld [vmem:[#allocation6 + $0x8] sm:$0xff]
        %v4876 = vld [vmem:[#allocation6 + $0x10] sm:$0xff]
        %v4877 = vld [vmem:[#allocation6 + $0x18] sm:$0xff]
        %v4878 = vld [vmem:[#allocation6 + $0x20] sm:$0xff]
        %v4879 = vld [vmem:[#allocation6 + $0x28] sm:$0xff]
        %v4880 = vld [vmem:[#allocation6 + $0x30] sm:$0xff]
        %v4881 = vld [vmem:[#allocation6 + $0x38] sm:$0xff]
        %v4882 = vld [vmem:[#allocation6 + $0x40] sm:$0xff]
        %v4883 = vld [vmem:[#allocation6 + $0x48] sm:$0xff]
        %v4884 = vld [vmem:[#allocation6 + $0x50] sm:$0xff]
        %v4885 = vld [vmem:[#allocation6 + $0x58] sm:$0xff]
        %v4886 = vld [vmem:[#allocation6 + $0x60] sm:$0xff]
        %v4887 = vld [vmem:[#allocation6 + $0x68] sm:$0xff]
        %v4888 = vld [vmem:[#allocation6 + $0x70] sm:$0xff]
        %v4889 = vld [vmem:[#allocation6 + $0x78] sm:$0xff]
        %v4890 = vld [vmem:[#allocation6 + $0x80] sm:$0xff]
        %v4891 = vld [vmem:[#allocation6 + $0x88] sm:$0xff]
        %v4892 = vld [vmem:[#allocation6 + $0x90] sm:$0xff]
        %v4893 = vld [vmem:[#allocation6 + $0x98] sm:$0xff]
        %v4894 = vld [vmem:[#allocation6 + $0xa0] sm:$0xff]
        %v4895 = vld [vmem:[#allocation6 + $0xa8] sm:$0xff]
        %v4896 = vld [vmem:[#allocation6 + $0xb0] sm:$0xff]
        %v4897 = vld [vmem:[#allocation6 + $0xb8] sm:$0xff]
        %v4898 = vld [vmem:[#allocation6 + $0xc0] sm:$0xff]
        %v4899 = vld [vmem:[#allocation6 + $0xc8] sm:$0xff]
        %v4900 = vld [vmem:[#allocation6 + $0xd0] sm:$0xff]
        %v4901 = vld [vmem:[#allocation6 + $0xd8] sm:$0xff]
        %v4902 = vld [vmem:[#allocation6 + $0xe0] sm:$0xff]
        %v4903 = vld [vmem:[#allocation6 + $0xe8] sm:$0xff]
        %v4904 = vld [vmem:[#allocation6 + $0xf0] sm:$0xff]
        %v4905 = vld [vmem:[#allocation6 + $0xf8] sm:$0xff]
        %v4906 = vld [vmem:[#allocation6 + $0x100] sm:$0xff]
        %v4907 = vld [vmem:[#allocation6 + $0x108] sm:$0xff]
        %v4908 = vld [vmem:[#allocation6 + $0x110] sm:$0xff]
        %v4909 = vld [vmem:[#allocation6 + $0x118] sm:$0x3f]
        %v4911 = vlaneseq
        %v4912 = vshrl.u32 %v4911, 7
        %v4913 = vsub.s32 0, %v4912
        %v4914 = vrot.slane %v398, %v4913
        %v4916 = vmul.f32 %v4874, %v4914
        %v4917 = vmul.f32 %v4875, %v4914
        %v4918 = vmul.f32 %v4876, %v4914
        %v4919 = vmul.f32 %v4877, %v4914
        %v4920 = vmul.f32 %v4878, %v4914
        %v4921 = vmul.f32 %v4879, %v4914
        %v4922 = vmul.f32 %v4880, %v4914
        %v4923 = vmul.f32 %v4881, %v4914
        %v4924 = vmul.f32 %v4882, %v4914
        %v4925 = vmul.f32 %v4883, %v4914
        %v4926 = vmul.f32 %v4884, %v4914
        %v4927 = vmul.f32 %v4885, %v4914
        %v4928 = vmul.f32 %v4886, %v4914
        %v4929 = vmul.f32 %v4887, %v4914
        %v4930 = vmul.f32 %v4888, %v4914
        %v4931 = vmul.f32 %v4889, %v4914
        %v4932 = vmul.f32 %v4890, %v4914
        %v4933 = vmul.f32 %v4891, %v4914
        %v4934 = vmul.f32 %v4892, %v4914
        %v4935 = vmul.f32 %v4893, %v4914
        %v4936 = vmul.f32 %v4894, %v4914
        %v4937 = vmul.f32 %v4895, %v4914
        %v4938 = vmul.f32 %v4896, %v4914
        %v4939 = vmul.f32 %v4897, %v4914
        %v4940 = vmul.f32 %v4898, %v4914
        %v4941 = vmul.f32 %v4899, %v4914
        %v4942 = vmul.f32 %v4900, %v4914
        %v4943 = vmul.f32 %v4901, %v4914
        %v4944 = vmul.f32 %v4902, %v4914
        %v4945 = vmul.f32 %v4903, %v4914
        %v4946 = vmul.f32 %v4904, %v4914
        %v4947 = vmul.f32 %v4905, %v4914
        %v4948 = vmul.f32 %v4906, %v4914
        %v4949 = vmul.f32 %v4907, %v4914
        %v4950 = vmul.f32 %v4908, %v4914
        %v4951 = vmul.f32 %v4909, %v4914
        %v4953 = vlaneseq
        %v4954 = vshrl.u32 %v4953, 7
        %v4955 = vsub.s32 0, %v4954
        %v4956 = vrot.slane %v405, %v4955
        %v4958 = vadd.f32 %v4916, %v4956
        %v4959 = vadd.f32 %v4917, %v4956
        %v4960 = vadd.f32 %v4918, %v4956
        %v4961 = vadd.f32 %v4919, %v4956
        %v4962 = vadd.f32 %v4920, %v4956
        %v4963 = vadd.f32 %v4921, %v4956
        %v4964 = vadd.f32 %v4922, %v4956
        %v4965 = vadd.f32 %v4923, %v4956
        %v4966 = vadd.f32 %v4924, %v4956
        %v4967 = vadd.f32 %v4925, %v4956
        %v4968 = vadd.f32 %v4926, %v4956
        %v4969 = vadd.f32 %v4927, %v4956
        %v4970 = vadd.f32 %v4928, %v4956
        %v4971 = vadd.f32 %v4929, %v4956
        %v4972 = vadd.f32 %v4930, %v4956
        %v4973 = vadd.f32 %v4931, %v4956
        %v4974 = vadd.f32 %v4932, %v4956
        %v4975 = vadd.f32 %v4933, %v4956
        %v4976 = vadd.f32 %v4934, %v4956
        %v4977 = vadd.f32 %v4935, %v4956
        %v4978 = vadd.f32 %v4936, %v4956
        %v4979 = vadd.f32 %v4937, %v4956
        %v4980 = vadd.f32 %v4938, %v4956
        %v4981 = vadd.f32 %v4939, %v4956
        %v4982 = vadd.f32 %v4940, %v4956
        %v4983 = vadd.f32 %v4941, %v4956
        %v4984 = vadd.f32 %v4942, %v4956
        %v4985 = vadd.f32 %v4943, %v4956
        %v4986 = vadd.f32 %v4944, %v4956
        %v4987 = vadd.f32 %v4945, %v4956
        %v4988 = vadd.f32 %v4946, %v4956
        %v4989 = vadd.f32 %v4947, %v4956
        %v4990 = vadd.f32 %v4948, %v4956
        %v4991 = vadd.f32 %v4949, %v4956
        %v4992 = vadd.f32 %v4950, %v4956
        %v4993 = vadd.f32 %v4951, %v4956
        %v4994 = vmax.f32 %v4958, 0.0
        %v4995 = vmax.f32 %v4959, 0.0
        %v4996 = vmax.f32 %v4960, 0.0
        %v4997 = vmax.f32 %v4961, 0.0
        %v4998 = vmax.f32 %v4962, 0.0
        %v4999 = vmax.f32 %v4963, 0.0
        %v5000 = vmax.f32 %v4964, 0.0
        %v5001 = vmax.f32 %v4965, 0.0
        %v5002 = vmax.f32 %v4966, 0.0
        %v5003 = vmax.f32 %v4967, 0.0
        %v5004 = vmax.f32 %v4968, 0.0
        %v5005 = vmax.f32 %v4969, 0.0
        %v5006 = vmax.f32 %v4970, 0.0
        %v5007 = vmax.f32 %v4971, 0.0
        %v5008 = vmax.f32 %v4972, 0.0
        %v5009 = vmax.f32 %v4973, 0.0
        %v5010 = vmax.f32 %v4974, 0.0
        %v5011 = vmax.f32 %v4975, 0.0
        %v5012 = vmax.f32 %v4976, 0.0
        %v5013 = vmax.f32 %v4977, 0.0
        %v5014 = vmax.f32 %v4978, 0.0
        %v5015 = vmax.f32 %v4979, 0.0
        %v5016 = vmax.f32 %v4980, 0.0
        %v5017 = vmax.f32 %v4981, 0.0
        %v5018 = vmax.f32 %v4982, 0.0
        %v5019 = vmax.f32 %v4983, 0.0
        %v5020 = vmax.f32 %v4984, 0.0
        %v5021 = vmax.f32 %v4985, 0.0
        %v5022 = vmax.f32 %v4986, 0.0
        %v5023 = vmax.f32 %v4987, 0.0
        %v5024 = vmax.f32 %v4988, 0.0
        %v5025 = vmax.f32 %v4989, 0.0
        %v5026 = vmax.f32 %v4990, 0.0
        %v5027 = vmax.f32 %v4991, 0.0
        %v5028 = vmax.f32 %v4992, 0.0
        %v5029 = vmax.f32 %v4993, 0.0
        %5030 = vst.msk [vmem:[#allocation6] sm:$0xff] %vm412, %v4994
        %5031 = vst.msk [vmem:[#allocation6 + $0x8] sm:$0xff] %vm412, %v4995
        %5032 = vst.msk [vmem:[#allocation6 + $0x10] sm:$0xff] %vm412, %v4996
        %5033 = vst.msk [vmem:[#allocation6 + $0x18] sm:$0xff] %vm412, %v4997
        %5034 = vst.msk [vmem:[#allocation6 + $0x20] sm:$0xff] %vm412, %v4998
        %5035 = vst.msk [vmem:[#allocation6 + $0x28] sm:$0xff] %vm412, %v4999
        %5036 = vst.msk [vmem:[#allocation6 + $0x30] sm:$0xff] %vm412, %v5000
        %5037 = vst.msk [vmem:[#allocation6 + $0x38] sm:$0xff] %vm412, %v5001
        %5038 = vst.msk [vmem:[#allocation6 + $0x40] sm:$0xff] %vm412, %v5002
        %5039 = vst.msk [vmem:[#allocation6 + $0x48] sm:$0xff] %vm412, %v5003
        %5040 = vst.msk [vmem:[#allocation6 + $0x50] sm:$0xff] %vm412, %v5004
        %5041 = vst.msk [vmem:[#allocation6 + $0x58] sm:$0xff] %vm412, %v5005
        %5042 = vst.msk [vmem:[#allocation6 + $0x60] sm:$0xff] %vm412, %v5006
        %5043 = vst.msk [vmem:[#allocation6 + $0x68] sm:$0xff] %vm412, %v5007
        %5044 = vst.msk [vmem:[#allocation6 + $0x70] sm:$0xff] %vm412, %v5008
        %5045 = vst.msk [vmem:[#allocation6 + $0x78] sm:$0xff] %vm412, %v5009
        %5046 = vst.msk [vmem:[#allocation6 + $0x80] sm:$0xff] %vm412, %v5010
        %5047 = vst.msk [vmem:[#allocation6 + $0x88] sm:$0xff] %vm412, %v5011
        %5048 = vst.msk [vmem:[#allocation6 + $0x90] sm:$0xff] %vm412, %v5012
        %5049 = vst.msk [vmem:[#allocation6 + $0x98] sm:$0xff] %vm412, %v5013
        %5050 = vst.msk [vmem:[#allocation6 + $0xa0] sm:$0xff] %vm412, %v5014
        %5051 = vst.msk [vmem:[#allocation6 + $0xa8] sm:$0xff] %vm412, %v5015
        %5052 = vst.msk [vmem:[#allocation6 + $0xb0] sm:$0xff] %vm412, %v5016
        %5053 = vst.msk [vmem:[#allocation6 + $0xb8] sm:$0xff] %vm412, %v5017
        %5054 = vst.msk [vmem:[#allocation6 + $0xc0] sm:$0xff] %vm412, %v5018
        %5055 = vst.msk [vmem:[#allocation6 + $0xc8] sm:$0xff] %vm412, %v5019
        %5056 = vst.msk [vmem:[#allocation6 + $0xd0] sm:$0xff] %vm412, %v5020
        %5057 = vst.msk [vmem:[#allocation6 + $0xd8] sm:$0xff] %vm412, %v5021
        %5058 = vst.msk [vmem:[#allocation6 + $0xe0] sm:$0xff] %vm412, %v5022
        %5059 = vst.msk [vmem:[#allocation6 + $0xe8] sm:$0xff] %vm412, %v5023
        %5060 = vst.msk [vmem:[#allocation6 + $0xf0] sm:$0xff] %vm412, %v5024
        %5061 = vst.msk [vmem:[#allocation6 + $0xf8] sm:$0xff] %vm412, %v5025
        %5062 = vst.msk [vmem:[#allocation6 + $0x100] sm:$0xff] %vm412, %v5026
        %5063 = vst.msk [vmem:[#allocation6 + $0x108] sm:$0xff] %vm412, %v5027
        %5064 = vst.msk [vmem:[#allocation6 + $0x110] sm:$0xff] %vm412, %v5028
        %5065 = vst.msk [vmem:[#allocation6 + $0x118] sm:$0x3f] %vm856, %v5029
        %v5066 = vld [vmem:[#allocation6] ss:$2 sm:$0xff]
        %s5067 = scalar_lea.vmem [#allocation6], 1
        %v5068 = vld [vmem:[%s5067] ss:$2 sm:$0xff]
        %v5069 = vmax.f32 %v5066, %v5068
        %s5070 = scalar_lea.vmem [#allocation6], 18
        %v5071 = vld [vmem:[%s5070] ss:$2 sm:$0xff]
        %s5072 = scalar_lea.vmem [#allocation6], 19
        %v5073 = vld [vmem:[%s5072] ss:$2 sm:$0xff]
        %v5074 = vmax.f32 %v5071, %v5073
        %v5075 = vmax.f32 %v5069, %v5074
        %5076 = vst.msk [vmem:[#allocation3 + $0xb] sm:$0xff] %vm412, %v5075
        %s5077 = scalar_lea.vmem [#allocation6], 36
        %v5078 = vld [vmem:[%s5077] ss:$2 sm:$0xff]
        %s5079 = scalar_lea.vmem [#allocation6], 37
        %v5080 = vld [vmem:[%s5079] ss:$2 sm:$0xff]
        %v5081 = vmax.f32 %v5078, %v5080
        %s5082 = scalar_lea.vmem [#allocation6], 54
        %v5083 = vld [vmem:[%s5082] ss:$2 sm:$0xff]
        %s5084 = scalar_lea.vmem [#allocation6], 55
        %v5085 = vld [vmem:[%s5084] ss:$2 sm:$0xff]
        %v5086 = vmax.f32 %v5083, %v5085
        %v5087 = vmax.f32 %v5081, %v5086
        %5088 = vst.msk [vmem:[#allocation3 + $0x15] sm:$0xff] %vm412, %v5087
        %s5089 = scalar_lea.vmem [#allocation6], 72
        %v5090 = vld [vmem:[%s5089] ss:$2 sm:$0xff]
        %s5091 = scalar_lea.vmem [#allocation6], 73
        %v5092 = vld [vmem:[%s5091] ss:$2 sm:$0xff]
        %v5093 = vmax.f32 %v5090, %v5092
        %s5094 = scalar_lea.vmem [#allocation6], 90
        %v5095 = vld [vmem:[%s5094] ss:$2 sm:$0xff]
        %s5096 = scalar_lea.vmem [#allocation6], 91
        %v5097 = vld [vmem:[%s5096] ss:$2 sm:$0xff]
        %v5098 = vmax.f32 %v5095, %v5097
        %v5099 = vmax.f32 %v5093, %v5098
        %5100 = vst.msk [vmem:[#allocation3 + $0x1f] sm:$0xff] %vm412, %v5099
        %s5101 = scalar_lea.vmem [#allocation6], 108
        %v5102 = vld [vmem:[%s5101] ss:$2 sm:$0xff]
        %s5103 = scalar_lea.vmem [#allocation6], 109
        %v5104 = vld [vmem:[%s5103] ss:$2 sm:$0xff]
        %v5105 = vmax.f32 %v5102, %v5104
        %s5106 = scalar_lea.vmem [#allocation6], 126
        %v5107 = vld [vmem:[%s5106] ss:$2 sm:$0xff]
        %s5108 = scalar_lea.vmem [#allocation6], 127
        %v5109 = vld [vmem:[%s5108] ss:$2 sm:$0xff]
        %v5110 = vmax.f32 %v5107, %v5109
        %v5111 = vmax.f32 %v5105, %v5110
        %5112 = vst.msk [vmem:[#allocation3 + $0x29] sm:$0xff] %vm412, %v5111
        %s5113 = scalar_lea.vmem [#allocation6], 144
        %v5114 = vld [vmem:[%s5113] ss:$2 sm:$0xff]
        %s5115 = scalar_lea.vmem [#allocation6], 145
        %v5116 = vld [vmem:[%s5115] ss:$2 sm:$0xff]
        %v5117 = vmax.f32 %v5114, %v5116
        %s5118 = scalar_lea.vmem [#allocation6], 162
        %v5119 = vld [vmem:[%s5118] ss:$2 sm:$0xff]
        %s5120 = scalar_lea.vmem [#allocation6], 163
        %v5121 = vld [vmem:[%s5120] ss:$2 sm:$0xff]
        %v5122 = vmax.f32 %v5119, %v5121
        %v5123 = vmax.f32 %v5117, %v5122
        %5124 = vst.msk [vmem:[#allocation3 + $0x33] sm:$0xff] %vm412, %v5123
        %s5125 = scalar_lea.vmem [#allocation6], 180
        %v5126 = vld [vmem:[%s5125] ss:$2 sm:$0xff]
        %s5127 = scalar_lea.vmem [#allocation6], 181
        %v5128 = vld [vmem:[%s5127] ss:$2 sm:$0xff]
        %v5129 = vmax.f32 %v5126, %v5128
        %s5130 = scalar_lea.vmem [#allocation6], 198
        %v5131 = vld [vmem:[%s5130] ss:$2 sm:$0xff]
        %s5132 = scalar_lea.vmem [#allocation6], 199
        %v5133 = vld [vmem:[%s5132] ss:$2 sm:$0xff]
        %v5134 = vmax.f32 %v5131, %v5133
        %v5135 = vmax.f32 %v5129, %v5134
        %5136 = vst.msk [vmem:[#allocation3 + $0x3d] sm:$0xff] %vm412, %v5135
        %s5137 = scalar_lea.vmem [#allocation6], 216
        %v5138 = vld [vmem:[%s5137] ss:$2 sm:$0xff]
        %s5139 = scalar_lea.vmem [#allocation6], 217
        %v5140 = vld [vmem:[%s5139] ss:$2 sm:$0xff]
        %v5141 = vmax.f32 %v5138, %v5140
        %s5142 = scalar_lea.vmem [#allocation6], 234
        %v5143 = vld [vmem:[%s5142] ss:$2 sm:$0xff]
        %s5144 = scalar_lea.vmem [#allocation6], 235
        %v5145 = vld [vmem:[%s5144] ss:$2 sm:$0xff]
        %v5146 = vmax.f32 %v5143, %v5145
        %v5147 = vmax.f32 %v5141, %v5146
        %5148 = vst.msk [vmem:[#allocation3 + $0x47] sm:$0xff] %vm412, %v5147
        %s5149 = scalar_lea.vmem [#allocation6], 252
        %v5150 = vld [vmem:[%s5149] ss:$2 sm:$0xff]
        %s5151 = scalar_lea.vmem [#allocation6], 253
        %v5152 = vld [vmem:[%s5151] ss:$2 sm:$0xff]
        %v5153 = vmax.f32 %v5150, %v5152
        %s5154 = scalar_lea.vmem [#allocation6], 270
        %v5155 = vld [vmem:[%s5154] ss:$2 sm:$0xff]
        %s5156 = scalar_lea.vmem [#allocation6], 271
        %v5157 = vld [vmem:[%s5156] ss:$2 sm:$0xff]
        %v5158 = vmax.f32 %v5155, %v5157
        %v5159 = vmax.f32 %v5153, %v5158
        %5160 = vst.msk [vmem:[#allocation3 + $0x51] sm:$0xff] %vm412, %v5159
        %5161 = vst.msk [vmem:[#allocation4] sm:$0xff] %vm412, 0.0
        %5162 = vst.msk [vmem:[#allocation4 + $0x8] sm:$0xff] %vm412, 0.0
        %5163 = vst.msk [vmem:[#allocation4 + $0x10] sm:$0xff] %vm412, 0.0
        %5164 = vst.msk [vmem:[#allocation4 + $0x18] sm:$0xff] %vm412, 0.0
        %5165 = vst.msk [vmem:[#allocation4 + $0x20] sm:$0xf] %vm425, 0.0
        %v5166 = vld [vmem:[#allocation3] sm:$0xff]
        %v5167 = vld [vmem:[#allocation3 + $0x8] sm:$0xff]
        %v5168 = vld [vmem:[#allocation3 + $0x10] sm:$0xff]
        %v5169 = vld [vmem:[#allocation3 + $0x18] sm:$0xff]
        %v5170 = vld [vmem:[#allocation3 + $0x20] sm:$0xff]
        %v5171 = vld [vmem:[#allocation3 + $0x28] sm:$0xff]
        %v5172 = vld [vmem:[#allocation3 + $0x30] sm:$0xff]
        %v5173 = vld [vmem:[#allocation3 + $0x38] sm:$0xff]
        %v5174 = vld [vmem:[#allocation3 + $0x40] sm:$0xff]
        %v5175 = vld [vmem:[#allocation3 + $0x48] sm:$0x3f]
        %v5176 = vld [vmem:[%s2] sm:$0xff]
        %v5177 = vld [vmem:[%s2 + $0x8] sm:$0xff]
        %v5178 = vld [vmem:[%s2 + $0x10] sm:$0xff]
        %v5179 = vld [vmem:[%s2 + $0x18] sm:$0xff]
        %v5181 = vsel %vm412, %v5166, 0
        %v5184 = vsel %vm412, %v5167, 0
        %v5187 = vsel %vm412, %v5168, 0
        %v5190 = vsel %vm412, %v5169, 0
        %v5193 = vsel %vm412, %v5170, 0
        %v5196 = vsel %vm412, %v5171, 0
        %v5199 = vsel %vm412, %v5172, 0
        %v5202 = vsel %vm412, %v5173, 0
        %v5205 = vsel %vm412, %v5174, 0
        %v5208 = vsel %vm412, %v5175, 0
        %5210 = vmatprep.subr.mxu0 0.0
        %5211 = vmatpush1.msra.mxu0 0.0
        %5212 = vmatprep.subr.mxu0 0.0
        %5213 = vmatpush1.msra.mxu0 0.0
        %5214 = vmatprep.subr.mxu0 0.0
        %5215 = vmatpush1.msra.mxu0 0.0
        %5216 = vmatprep.subr.mxu0 0.0
        %5217 = vmatpush1.msra.mxu0 0.0
        %5218 = vmatprep.subr.mxu0 0.0
        %5219 = vmatpush1.msra.mxu0 0.0
        %5220 = vmatprep.subr.mxu0 0.0
        %5221 = vmatpush1.msra.mxu0 0.0
        %5222 = vmatprep.subr.mxu0 0.0
        %5223 = vmatpush1.msra.mxu0 0.0
        %5224 = vmatprep.subr.mxu0 0.0
        %5225 = vmatpush1.msra.mxu0 0.0
        %5226 = vmatprep.subr.mxu0 0.0
        %5227 = vmatpush1.msra.mxu0 0.0
        %5228 = vmatprep.subr.mxu0 0.0
        %5229 = vmatpush1.msra.mxu0 0.0
        %5230 = vmatprep.subr.mxu0 0.0
        %5231 = vmatpush1.msra.mxu0 0.0
        %5232 = vmatprep.subr.mxu0 0.0
        %5233 = vmatpush1.msra.mxu0 0.0
        %5234 = vmatprep.subr.mxu0 0.0
        %5235 = vmatpush1.msra.mxu0 %v5179
        %5236 = vmatprep.subr.mxu0 0.0
        %5237 = vmatpush1.msra.mxu0 %v5178
        %5238 = vmatprep.subr.mxu0 0.0
        %5239 = vmatpush1.msra.mxu0 %v5177
        %5240 = vmatprep.subr.mxu0 0.0
        %5241 = vmatpush1.msra.mxu0 %v5176
        %5242 = vmatprep.subr.mxu0 0.0
        %5243 = vmatpush2.msra.mxu0 0.0
        %5244 = vmatprep.subr.mxu0 0.0
        %5245 = vmatpush2.msra.mxu0 0.0
        %5246 = vmatprep.subr.mxu0 0.0
        %5247 = vmatpush2.msra.mxu0 0.0
        %5248 = vmatprep.subr.mxu0 0.0
        %5249 = vmatpush2.msra.mxu0 0.0
        %5250 = vmatprep.subr.mxu0 0.0
        %5251 = vmatpush2.msra.mxu0 0.0
        %5252 = vmatprep.subr.mxu0 0.0
        %5253 = vmatpush2.msra.mxu0 0.0
        %5254 = vmatprep.subr.mxu0 0.0
        %5255 = vmatpush2.msra.mxu0 0.0
        %5256 = vmatprep.subr.mxu0 0.0
        %5257 = vmatpush2.msra.mxu0 0.0
        %5258 = vmatprep.subr.mxu0 0.0
        %5259 = vmatpush2.msra.mxu0 0.0
        %5260 = vmatprep.subr.mxu0 0.0
        %5261 = vmatpush2.msra.mxu0 0.0
        %5262 = vmatprep.subr.mxu0 0.0
        %5263 = vmatpush2.msra.mxu0 0.0
        %5264 = vmatprep.subr.mxu0 0.0
        %5265 = vmatpush2.msra.mxu0 0.0
        %5266 = vmatprep.subr.mxu0 0.0
        %5267 = vmatpush2.msra.mxu0 0.0
        %5268 = vmatprep.subr.mxu0 0.0
        %5269 = vmatpush2.msra.mxu0 0.0
        %5270 = vmatprep.subr.mxu0 0.0
        %5271 = vmatpush2.msra.mxu0 0.0
        %5272 = vmatprep.subr.mxu0 0.0
        %5273 = vmatpush2.msra.mxu0 0.0
        %5274 = vmatprep.mubr.f32.mxu0 0.0
        %5275 = vmatmul.mubr.f32.gmra.mxu0 %v5181
        %v5276 = vpop.f32.mrf.mxu0
        %v5277 = vadd.f32 0.0, %v5276
        %v5278 = vpop.f32.mrf.mxu0
        %5279 = vmatprep.mubr.f32.mxu0 0.0
        %5280 = vmatmul.mubr.f32.gmra.mxu0 %v5184
        %v5281 = vpop.f32.mrf.mxu0
        %v5282 = vadd.f32 0.0, %v5281
        %v5283 = vpop.f32.mrf.mxu0
        %5284 = vmatprep.mubr.f32.mxu0 0.0
        %5285 = vmatmul.mubr.f32.gmra.mxu0 %v5187
        %v5286 = vpop.f32.mrf.mxu0
        %v5287 = vadd.f32 0.0, %v5286
        %v5288 = vpop.f32.mrf.mxu0
        %5289 = vmatprep.mubr.f32.mxu0 0.0
        %5290 = vmatmul.mubr.f32.gmra.mxu0 %v5190
        %v5291 = vpop.f32.mrf.mxu0
        %v5292 = vadd.f32 0.0, %v5291
        %v5293 = vpop.f32.mrf.mxu0
        %5294 = vmatprep.mubr.f32.mxu0 0.0
        %5295 = vmatmul.mubr.f32.gmra.mxu0 %v5193
        %v5296 = vpop.f32.mrf.mxu0
        %v5297 = vadd.f32 0.0, %v5296
        %v5298 = vpop.f32.mrf.mxu0
        %5299 = vmatprep.mubr.f32.mxu0 0.0
        %5300 = vmatmul.mubr.f32.gmra.mxu0 %v5196
        %v5301 = vpop.f32.mrf.mxu0
        %v5302 = vadd.f32 0.0, %v5301
        %v5303 = vpop.f32.mrf.mxu0
        %5304 = vmatprep.mubr.f32.mxu0 0.0
        %5305 = vmatmul.mubr.f32.gmra.mxu0 %v5199
        %v5306 = vpop.f32.mrf.mxu0
        %v5307 = vadd.f32 0.0, %v5306
        %v5308 = vpop.f32.mrf.mxu0
        %5309 = vmatprep.mubr.f32.mxu0 0.0
        %5310 = vmatmul.mubr.f32.gmra.mxu0 %v5202
        %v5311 = vpop.f32.mrf.mxu0
        %v5312 = vadd.f32 0.0, %v5311
        %v5313 = vpop.f32.mrf.mxu0
        %5314 = vmatprep.mubr.f32.mxu0 0.0
        %5315 = vmatmul.mubr.f32.gmra.mxu0 %v5205
        %v5316 = vpop.f32.mrf.mxu0
        %v5317 = vadd.f32 0.0, %v5316
        %v5318 = vpop.f32.mrf.mxu0
        %5319 = vmatprep.mubr.f32.mxu0 0.0
        %5320 = vmatmul.mubr.f32.gmra.mxu0 %v5208
        %v5321 = vpop.f32.mrf.mxu0
        %v5322 = vadd.f32 0.0, %v5321
        %v5323 = vpop.f32.mrf.mxu0
        %5324 = vdwg.mxu0
        %5325 = vst.msk [vmem:[#allocation7] sm:$0xff] %vm412, %v5277
        %5326 = vst.msk [vmem:[#allocation7 + $0x8] sm:$0xff] %vm412, %v5282
        %5327 = vst.msk [vmem:[#allocation7 + $0x10] sm:$0xff] %vm412, %v5287
        %5328 = vst.msk [vmem:[#allocation7 + $0x18] sm:$0xff] %vm412, %v5292
        %5329 = vst.msk [vmem:[#allocation7 + $0x20] sm:$0xff] %vm412, %v5297
        %5330 = vst.msk [vmem:[#allocation7 + $0x28] sm:$0xff] %vm412, %v5302
        %5331 = vst.msk [vmem:[#allocation7 + $0x30] sm:$0xff] %vm412, %v5307
        %5332 = vst.msk [vmem:[#allocation7 + $0x38] sm:$0xff] %vm412, %v5312
        %5333 = vst.msk [vmem:[#allocation7 + $0x40] sm:$0xff] %vm412, %v5317
        %5334 = vst.msk [vmem:[#allocation7 + $0x48] sm:$0x3f] %vm856, %v5322
        %v5335 = vld [vmem:[#allocation3 + $0x1] sm:$0xff]
        %v5336 = vld [vmem:[#allocation3 + $0x9] sm:$0xff]
        %v5337 = vld [vmem:[#allocation3 + $0x11] sm:$0xff]
        %v5338 = vld [vmem:[#allocation3 + $0x19] sm:$0xff]
        %v5339 = vld [vmem:[#allocation3 + $0x21] sm:$0xff]
        %v5340 = vld [vmem:[#allocation3 + $0x29] sm:$0xff]
        %v5341 = vld [vmem:[#allocation3 + $0x31] sm:$0xff]
        %v5342 = vld [vmem:[#allocation3 + $0x39] sm:$0xff]
        %v5343 = vld [vmem:[#allocation3 + $0x41] sm:$0xff]
        %v5344 = vld [vmem:[#allocation3 + $0x49] sm:$0x3f]
        %s5345 = scalar_lea.vmem %s2, 32
        %v5346 = vld [vmem:[%s5345] sm:$0xff]
        %v5347 = vld [vmem:[%s5345 + $0x8] sm:$0xff]
        %v5348 = vld [vmem:[%s5345 + $0x10] sm:$0xff]
        %v5349 = vld [vmem:[%s5345 + $0x18] sm:$0xff]
        %v5351 = vsel %vm412, %v5335, 0
        %v5354 = vsel %vm412, %v5336, 0
        %v5357 = vsel %vm412, %v5337, 0
        %v5360 = vsel %vm412, %v5338, 0
        %v5363 = vsel %vm412, %v5339, 0
        %v5366 = vsel %vm412, %v5340, 0
        %v5369 = vsel %vm412, %v5341, 0
        %v5372 = vsel %vm412, %v5342, 0
        %v5375 = vsel %vm412, %v5343, 0
        %v5378 = vsel %vm412, %v5344, 0
        %5380 = vmatprep.subr.mxu0 0.0
        %5381 = vmatpush1.msra.mxu0 0.0
        %5382 = vmatprep.subr.mxu0 0.0
        %5383 = vmatpush1.msra.mxu0 0.0
        %5384 = vmatprep.subr.mxu0 0.0
        %5385 = vmatpush1.msra.mxu0 0.0
        %5386 = vmatprep.subr.mxu0 0.0
        %5387 = vmatpush1.msra.mxu0 0.0
        %5388 = vmatprep.subr.mxu0 0.0
        %5389 = vmatpush1.msra.mxu0 0.0
        %5390 = vmatprep.subr.mxu0 0.0
        %5391 = vmatpush1.msra.mxu0 0.0
        %5392 = vmatprep.subr.mxu0 0.0
        %5393 = vmatpush1.msra.mxu0 0.0
        %5394 = vmatprep.subr.mxu0 0.0
        %5395 = vmatpush1.msra.mxu0 0.0
        %5396 = vmatprep.subr.mxu0 0.0
        %5397 = vmatpush1.msra.mxu0 0.0
        %5398 = vmatprep.subr.mxu0 0.0
        %5399 = vmatpush1.msra.mxu0 0.0
        %5400 = vmatprep.subr.mxu0 0.0
        %5401 = vmatpush1.msra.mxu0 0.0
        %5402 = vmatprep.subr.mxu0 0.0
        %5403 = vmatpush1.msra.mxu0 0.0
        %5404 = vmatprep.subr.mxu0 0.0
        %5405 = vmatpush1.msra.mxu0 %v5349
        %5406 = vmatprep.subr.mxu0 0.0
        %5407 = vmatpush1.msra.mxu0 %v5348
        %5408 = vmatprep.subr.mxu0 0.0
        %5409 = vmatpush1.msra.mxu0 %v5347
        %5410 = vmatprep.subr.mxu0 0.0
        %5411 = vmatpush1.msra.mxu0 %v5346
        %5412 = vmatprep.subr.mxu0 0.0
        %5413 = vmatpush2.msra.mxu0 0.0
        %5414 = vmatprep.subr.mxu0 0.0
        %5415 = vmatpush2.msra.mxu0 0.0
        %5416 = vmatprep.subr.mxu0 0.0
        %5417 = vmatpush2.msra.mxu0 0.0
        %5418 = vmatprep.subr.mxu0 0.0
        %5419 = vmatpush2.msra.mxu0 0.0
        %5420 = vmatprep.subr.mxu0 0.0
        %5421 = vmatpush2.msra.mxu0 0.0
        %5422 = vmatprep.subr.mxu0 0.0
        %5423 = vmatpush2.msra.mxu0 0.0
        %5424 = vmatprep.subr.mxu0 0.0
        %5425 = vmatpush2.msra.mxu0 0.0
        %5426 = vmatprep.subr.mxu0 0.0
        %5427 = vmatpush2.msra.mxu0 0.0
        %5428 = vmatprep.subr.mxu0 0.0
        %5429 = vmatpush2.msra.mxu0 0.0
        %5430 = vmatprep.subr.mxu0 0.0
        %5431 = vmatpush2.msra.mxu0 0.0
        %5432 = vmatprep.subr.mxu0 0.0
        %5433 = vmatpush2.msra.mxu0 0.0
        %5434 = vmatprep.subr.mxu0 0.0
        %5435 = vmatpush2.msra.mxu0 0.0
        %5436 = vmatprep.subr.mxu0 0.0
        %5437 = vmatpush2.msra.mxu0 0.0
        %5438 = vmatprep.subr.mxu0 0.0
        %5439 = vmatpush2.msra.mxu0 0.0
        %5440 = vmatprep.subr.mxu0 0.0
        %5441 = vmatpush2.msra.mxu0 0.0
        %5442 = vmatprep.subr.mxu0 0.0
        %5443 = vmatpush2.msra.mxu0 0.0
        %5444 = vmatprep.mubr.f32.mxu0 0.0
        %5445 = vmatmul.mubr.f32.gmra.mxu0 %v5351
        %v5446 = vpop.f32.mrf.mxu0
        %v5447 = vadd.f32 0.0, %v5446
        %v5448 = vpop.f32.mrf.mxu0
        %5449 = vmatprep.mubr.f32.mxu0 0.0
        %5450 = vmatmul.mubr.f32.gmra.mxu0 %v5354
        %v5451 = vpop.f32.mrf.mxu0
        %v5452 = vadd.f32 0.0, %v5451
        %v5453 = vpop.f32.mrf.mxu0
        %5454 = vmatprep.mubr.f32.mxu0 0.0
        %5455 = vmatmul.mubr.f32.gmra.mxu0 %v5357
        %v5456 = vpop.f32.mrf.mxu0
        %v5457 = vadd.f32 0.0, %v5456
        %v5458 = vpop.f32.mrf.mxu0
        %5459 = vmatprep.mubr.f32.mxu0 0.0
        %5460 = vmatmul.mubr.f32.gmra.mxu0 %v5360
        %v5461 = vpop.f32.mrf.mxu0
        %v5462 = vadd.f32 0.0, %v5461
        %v5463 = vpop.f32.mrf.mxu0
        %5464 = vmatprep.mubr.f32.mxu0 0.0
        %5465 = vmatmul.mubr.f32.gmra.mxu0 %v5363
        %v5466 = vpop.f32.mrf.mxu0
        %v5467 = vadd.f32 0.0, %v5466
        %v5468 = vpop.f32.mrf.mxu0
        %5469 = vmatprep.mubr.f32.mxu0 0.0
        %5470 = vmatmul.mubr.f32.gmra.mxu0 %v5366
        %v5471 = vpop.f32.mrf.mxu0
        %v5472 = vadd.f32 0.0, %v5471
        %v5473 = vpop.f32.mrf.mxu0
        %5474 = vmatprep.mubr.f32.mxu0 0.0
        %5475 = vmatmul.mubr.f32.gmra.mxu0 %v5369
        %v5476 = vpop.f32.mrf.mxu0
        %v5477 = vadd.f32 0.0, %v5476
        %v5478 = vpop.f32.mrf.mxu0
        %5479 = vmatprep.mubr.f32.mxu0 0.0
        %5480 = vmatmul.mubr.f32.gmra.mxu0 %v5372
        %v5481 = vpop.f32.mrf.mxu0
        %v5482 = vadd.f32 0.0, %v5481
        %v5483 = vpop.f32.mrf.mxu0
        %5484 = vmatprep.mubr.f32.mxu0 0.0
        %5485 = vmatmul.mubr.f32.gmra.mxu0 %v5375
        %v5486 = vpop.f32.mrf.mxu0
        %v5487 = vadd.f32 0.0, %v5486
        %v5488 = vpop.f32.mrf.mxu0
        %5489 = vmatprep.mubr.f32.mxu0 0.0
        %5490 = vmatmul.mubr.f32.gmra.mxu0 %v5378
        %v5491 = vpop.f32.mrf.mxu0
        %v5492 = vadd.f32 0.0, %v5491
        %v5493 = vpop.f32.mrf.mxu0
        %5494 = vdwg.mxu0
        %v5495 = vld [vmem:[#allocation7] sm:$0xff]
        %v5496 = vld [vmem:[#allocation7 + $0x8] sm:$0xff]
        %v5497 = vld [vmem:[#allocation7 + $0x10] sm:$0xff]
        %v5498 = vld [vmem:[#allocation7 + $0x18] sm:$0xff]
        %v5499 = vld [vmem:[#allocation7 + $0x20] sm:$0xff]
        %v5500 = vld [vmem:[#allocation7 + $0x28] sm:$0xff]
        %v5501 = vld [vmem:[#allocation7 + $0x30] sm:$0xff]
        %v5502 = vld [vmem:[#allocation7 + $0x38] sm:$0xff]
        %v5503 = vld [vmem:[#allocation7 + $0x40] sm:$0xff]
        %v5504 = vld [vmem:[#allocation7 + $0x48] sm:$0x3f]
        %v5505 = vadd.f32 %v5495, %v5447
        %v5506 = vadd.f32 %v5496, %v5452
        %v5507 = vadd.f32 %v5497, %v5457
        %v5508 = vadd.f32 %v5498, %v5462
        %v5509 = vadd.f32 %v5499, %v5467
        %v5510 = vadd.f32 %v5500, %v5472
        %v5511 = vadd.f32 %v5501, %v5477
        %v5512 = vadd.f32 %v5502, %v5482
        %v5513 = vadd.f32 %v5503, %v5487
        %v5514 = vadd.f32 %v5504, %v5492
        %5515 = vst.msk [vmem:[#allocation7] sm:$0xff] %vm412, %v5505
        %5516 = vst.msk [vmem:[#allocation7 + $0x8] sm:$0xff] %vm412, %v5506
        %5517 = vst.msk [vmem:[#allocation7 + $0x10] sm:$0xff] %vm412, %v5507
        %5518 = vst.msk [vmem:[#allocation7 + $0x18] sm:$0xff] %vm412, %v5508
        %5519 = vst.msk [vmem:[#allocation7 + $0x20] sm:$0xff] %vm412, %v5509
        %5520 = vst.msk [vmem:[#allocation7 + $0x28] sm:$0xff] %vm412, %v5510
        %5521 = vst.msk [vmem:[#allocation7 + $0x30] sm:$0xff] %vm412, %v5511
        %5522 = vst.msk [vmem:[#allocation7 + $0x38] sm:$0xff] %vm412, %v5512
        %5523 = vst.msk [vmem:[#allocation7 + $0x40] sm:$0xff] %vm412, %v5513
        %5524 = vst.msk [vmem:[#allocation7 + $0x48] sm:$0x3f] %vm856, %v5514
        %v5525 = vld [vmem:[#allocation3 + $0x2] sm:$0xff]
        %v5526 = vld [vmem:[#allocation3 + $0xa] sm:$0xff]
        %v5527 = vld [vmem:[#allocation3 + $0x12] sm:$0xff]
        %v5528 = vld [vmem:[#allocation3 + $0x1a] sm:$0xff]
        %v5529 = vld [vmem:[#allocation3 + $0x22] sm:$0xff]
        %v5530 = vld [vmem:[#allocation3 + $0x2a] sm:$0xff]
        %v5531 = vld [vmem:[#allocation3 + $0x32] sm:$0xff]
        %v5532 = vld [vmem:[#allocation3 + $0x3a] sm:$0xff]
        %v5533 = vld [vmem:[#allocation3 + $0x42] sm:$0xff]
        %v5534 = vld [vmem:[#allocation3 + $0x4a] sm:$0x3f]
        %s5535 = scalar_lea.vmem %s2, 64
        %v5536 = vld [vmem:[%s5535] sm:$0xff]
        %v5537 = vld [vmem:[%s5535 + $0x8] sm:$0xff]
        %v5538 = vld [vmem:[%s5535 + $0x10] sm:$0xff]
        %v5539 = vld [vmem:[%s5535 + $0x18] sm:$0xff]
        %v5541 = vsel %vm412, %v5525, 0
        %v5544 = vsel %vm412, %v5526, 0
        %v5547 = vsel %vm412, %v5527, 0
        %v5550 = vsel %vm412, %v5528, 0
        %v5553 = vsel %vm412, %v5529, 0
        %v5556 = vsel %vm412, %v5530, 0
        %v5559 = vsel %vm412, %v5531, 0
        %v5562 = vsel %vm412, %v5532, 0
        %v5565 = vsel %vm412, %v5533, 0
        %v5568 = vsel %vm412, %v5534, 0
        %5570 = vmatprep.subr.mxu0 0.0
        %5571 = vmatpush1.msra.mxu0 0.0
        %5572 = vmatprep.subr.mxu0 0.0
        %5573 = vmatpush1.msra.mxu0 0.0
        %5574 = vmatprep.subr.mxu0 0.0
        %5575 = vmatpush1.msra.mxu0 0.0
        %5576 = vmatprep.subr.mxu0 0.0
        %5577 = vmatpush1.msra.mxu0 0.0
        %5578 = vmatprep.subr.mxu0 0.0
        %5579 = vmatpush1.msra.mxu0 0.0
        %5580 = vmatprep.subr.mxu0 0.0
        %5581 = vmatpush1.msra.mxu0 0.0
        %5582 = vmatprep.subr.mxu0 0.0
        %5583 = vmatpush1.msra.mxu0 0.0
        %5584 = vmatprep.subr.mxu0 0.0
        %5585 = vmatpush1.msra.mxu0 0.0
        %5586 = vmatprep.subr.mxu0 0.0
        %5587 = vmatpush1.msra.mxu0 0.0
        %5588 = vmatprep.subr.mxu0 0.0
        %5589 = vmatpush1.msra.mxu0 0.0
        %5590 = vmatprep.subr.mxu0 0.0
        %5591 = vmatpush1.msra.mxu0 0.0
        %5592 = vmatprep.subr.mxu0 0.0
        %5593 = vmatpush1.msra.mxu0 0.0
        %5594 = vmatprep.subr.mxu0 0.0
        %5595 = vmatpush1.msra.mxu0 %v5539
        %5596 = vmatprep.subr.mxu0 0.0
        %5597 = vmatpush1.msra.mxu0 %v5538
        %5598 = vmatprep.subr.mxu0 0.0
        %5599 = vmatpush1.msra.mxu0 %v5537
        %5600 = vmatprep.subr.mxu0 0.0
        %5601 = vmatpush1.msra.mxu0 %v5536
        %5602 = vmatprep.subr.mxu0 0.0
        %5603 = vmatpush2.msra.mxu0 0.0
        %5604 = vmatprep.subr.mxu0 0.0
        %5605 = vmatpush2.msra.mxu0 0.0
        %5606 = vmatprep.subr.mxu0 0.0
        %5607 = vmatpush2.msra.mxu0 0.0
        %5608 = vmatprep.subr.mxu0 0.0
        %5609 = vmatpush2.msra.mxu0 0.0
        %5610 = vmatprep.subr.mxu0 0.0
        %5611 = vmatpush2.msra.mxu0 0.0
        %5612 = vmatprep.subr.mxu0 0.0
        %5613 = vmatpush2.msra.mxu0 0.0
        %5614 = vmatprep.subr.mxu0 0.0
        %5615 = vmatpush2.msra.mxu0 0.0
        %5616 = vmatprep.subr.mxu0 0.0
        %5617 = vmatpush2.msra.mxu0 0.0
        %5618 = vmatprep.subr.mxu0 0.0
        %5619 = vmatpush2.msra.mxu0 0.0
        %5620 = vmatprep.subr.mxu0 0.0
        %5621 = vmatpush2.msra.mxu0 0.0
        %5622 = vmatprep.subr.mxu0 0.0
        %5623 = vmatpush2.msra.mxu0 0.0
        %5624 = vmatprep.subr.mxu0 0.0
        %5625 = vmatpush2.msra.mxu0 0.0
        %5626 = vmatprep.subr.mxu0 0.0
        %5627 = vmatpush2.msra.mxu0 0.0
        %5628 = vmatprep.subr.mxu0 0.0
        %5629 = vmatpush2.msra.mxu0 0.0
        %5630 = vmatprep.subr.mxu0 0.0
        %5631 = vmatpush2.msra.mxu0 0.0
        %5632 = vmatprep.subr.mxu0 0.0
        %5633 = vmatpush2.msra.mxu0 0.0
        %5634 = vmatprep.mubr.f32.mxu0 0.0
        %5635 = vmatmul.mubr.f32.gmra.mxu0 %v5541
        %v5636 = vpop.f32.mrf.mxu0
        %v5637 = vadd.f32 0.0, %v5636
        %v5638 = vpop.f32.mrf.mxu0
        %5639 = vmatprep.mubr.f32.mxu0 0.0
        %5640 = vmatmul.mubr.f32.gmra.mxu0 %v5544
        %v5641 = vpop.f32.mrf.mxu0
        %v5642 = vadd.f32 0.0, %v5641
        %v5643 = vpop.f32.mrf.mxu0
        %5644 = vmatprep.mubr.f32.mxu0 0.0
        %5645 = vmatmul.mubr.f32.gmra.mxu0 %v5547
        %v5646 = vpop.f32.mrf.mxu0
        %v5647 = vadd.f32 0.0, %v5646
        %v5648 = vpop.f32.mrf.mxu0
        %5649 = vmatprep.mubr.f32.mxu0 0.0
        %5650 = vmatmul.mubr.f32.gmra.mxu0 %v5550
        %v5651 = vpop.f32.mrf.mxu0
        %v5652 = vadd.f32 0.0, %v5651
        %v5653 = vpop.f32.mrf.mxu0
        %5654 = vmatprep.mubr.f32.mxu0 0.0
        %5655 = vmatmul.mubr.f32.gmra.mxu0 %v5553
        %v5656 = vpop.f32.mrf.mxu0
        %v5657 = vadd.f32 0.0, %v5656
        %v5658 = vpop.f32.mrf.mxu0
        %5659 = vmatprep.mubr.f32.mxu0 0.0
        %5660 = vmatmul.mubr.f32.gmra.mxu0 %v5556
        %v5661 = vpop.f32.mrf.mxu0
        %v5662 = vadd.f32 0.0, %v5661
        %v5663 = vpop.f32.mrf.mxu0
        %5664 = vmatprep.mubr.f32.mxu0 0.0
        %5665 = vmatmul.mubr.f32.gmra.mxu0 %v5559
        %v5666 = vpop.f32.mrf.mxu0
        %v5667 = vadd.f32 0.0, %v5666
        %v5668 = vpop.f32.mrf.mxu0
        %5669 = vmatprep.mubr.f32.mxu0 0.0
        %5670 = vmatmul.mubr.f32.gmra.mxu0 %v5562
        %v5671 = vpop.f32.mrf.mxu0
        %v5672 = vadd.f32 0.0, %v5671
        %v5673 = vpop.f32.mrf.mxu0
        %5674 = vmatprep.mubr.f32.mxu0 0.0
        %5675 = vmatmul.mubr.f32.gmra.mxu0 %v5565
        %v5676 = vpop.f32.mrf.mxu0
        %v5677 = vadd.f32 0.0, %v5676
        %v5678 = vpop.f32.mrf.mxu0
        %5679 = vmatprep.mubr.f32.mxu0 0.0
        %5680 = vmatmul.mubr.f32.gmra.mxu0 %v5568
        %v5681 = vpop.f32.mrf.mxu0
        %v5682 = vadd.f32 0.0, %v5681
        %v5683 = vpop.f32.mrf.mxu0
        %5684 = vdwg.mxu0
        %v5685 = vld [vmem:[#allocation7] sm:$0xff]
        %v5686 = vld [vmem:[#allocation7 + $0x8] sm:$0xff]
        %v5687 = vld [vmem:[#allocation7 + $0x10] sm:$0xff]
        %v5688 = vld [vmem:[#allocation7 + $0x18] sm:$0xff]
        %v5689 = vld [vmem:[#allocation7 + $0x20] sm:$0xff]
        %v5690 = vld [vmem:[#allocation7 + $0x28] sm:$0xff]
        %v5691 = vld [vmem:[#allocation7 + $0x30] sm:$0xff]
        %v5692 = vld [vmem:[#allocation7 + $0x38] sm:$0xff]
        %v5693 = vld [vmem:[#allocation7 + $0x40] sm:$0xff]
        %v5694 = vld [vmem:[#allocation7 + $0x48] sm:$0x3f]
        %v5695 = vadd.f32 %v5685, %v5637
        %v5696 = vadd.f32 %v5686, %v5642
        %v5697 = vadd.f32 %v5687, %v5647
        %v5698 = vadd.f32 %v5688, %v5652
        %v5699 = vadd.f32 %v5689, %v5657
        %v5700 = vadd.f32 %v5690, %v5662
        %v5701 = vadd.f32 %v5691, %v5667
        %v5702 = vadd.f32 %v5692, %v5672
        %v5703 = vadd.f32 %v5693, %v5677
        %v5704 = vadd.f32 %v5694, %v5682
        %5705 = vst.msk [vmem:[#allocation7] sm:$0xff] %vm412, %v5695
        %5706 = vst.msk [vmem:[#allocation7 + $0x8] sm:$0xff] %vm412, %v5696
        %5707 = vst.msk [vmem:[#allocation7 + $0x10] sm:$0xff] %vm412, %v5697
        %5708 = vst.msk [vmem:[#allocation7 + $0x18] sm:$0xff] %vm412, %v5698
        %5709 = vst.msk [vmem:[#allocation7 + $0x20] sm:$0xff] %vm412, %v5699
        %5710 = vst.msk [vmem:[#allocation7 + $0x28] sm:$0xff] %vm412, %v5700
        %5711 = vst.msk [vmem:[#allocation7 + $0x30] sm:$0xff] %vm412, %v5701
        %5712 = vst.msk [vmem:[#allocation7 + $0x38] sm:$0xff] %vm412, %v5702
        %5713 = vst.msk [vmem:[#allocation7 + $0x40] sm:$0xff] %vm412, %v5703
        %5714 = vst.msk [vmem:[#allocation7 + $0x48] sm:$0x3f] %vm856, %v5704
        %v5715 = vld [vmem:[#allocation3 + $0xa] sm:$0xff]
        %v5716 = vld [vmem:[#allocation3 + $0x12] sm:$0xff]
        %v5717 = vld [vmem:[#allocation3 + $0x1a] sm:$0xff]
        %v5718 = vld [vmem:[#allocation3 + $0x22] sm:$0xff]
        %v5719 = vld [vmem:[#allocation3 + $0x2a] sm:$0xff]
        %v5720 = vld [vmem:[#allocation3 + $0x32] sm:$0xff]
        %v5721 = vld [vmem:[#allocation3 + $0x3a] sm:$0xff]
        %v5722 = vld [vmem:[#allocation3 + $0x42] sm:$0xff]
        %v5723 = vld [vmem:[#allocation3 + $0x4a] sm:$0xff]
        %v5724 = vld [vmem:[#allocation3 + $0x52] sm:$0x3f]
        %s5725 = scalar_lea.vmem %s2, 96
        %v5726 = vld [vmem:[%s5725] sm:$0xff]
        %v5727 = vld [vmem:[%s5725 + $0x8] sm:$0xff]
        %v5728 = vld [vmem:[%s5725 + $0x10] sm:$0xff]
        %v5729 = vld [vmem:[%s5725 + $0x18] sm:$0xff]
        %v5731 = vsel %vm412, %v5715, 0
        %v5734 = vsel %vm412, %v5716, 0
        %v5737 = vsel %vm412, %v5717, 0
        %v5740 = vsel %vm412, %v5718, 0
        %v5743 = vsel %vm412, %v5719, 0
        %v5746 = vsel %vm412, %v5720, 0
        %v5749 = vsel %vm412, %v5721, 0
        %v5752 = vsel %vm412, %v5722, 0
        %v5755 = vsel %vm412, %v5723, 0
        %v5758 = vsel %vm412, %v5724, 0
        %5760 = vmatprep.subr.mxu0 0.0
        %5761 = vmatpush1.msra.mxu0 0.0
        %5762 = vmatprep.subr.mxu0 0.0
        %5763 = vmatpush1.msra.mxu0 0.0
        %5764 = vmatprep.subr.mxu0 0.0
        %5765 = vmatpush1.msra.mxu0 0.0
        %5766 = vmatprep.subr.mxu0 0.0
        %5767 = vmatpush1.msra.mxu0 0.0
        %5768 = vmatprep.subr.mxu0 0.0
        %5769 = vmatpush1.msra.mxu0 0.0
        %5770 = vmatprep.subr.mxu0 0.0
        %5771 = vmatpush1.msra.mxu0 0.0
        %5772 = vmatprep.subr.mxu0 0.0
        %5773 = vmatpush1.msra.mxu0 0.0
        %5774 = vmatprep.subr.mxu0 0.0
        %5775 = vmatpush1.msra.mxu0 0.0
        %5776 = vmatprep.subr.mxu0 0.0
        %5777 = vmatpush1.msra.mxu0 0.0
        %5778 = vmatprep.subr.mxu0 0.0
        %5779 = vmatpush1.msra.mxu0 0.0
        %5780 = vmatprep.subr.mxu0 0.0
        %5781 = vmatpush1.msra.mxu0 0.0
        %5782 = vmatprep.subr.mxu0 0.0
        %5783 = vmatpush1.msra.mxu0 0.0
        %5784 = vmatprep.subr.mxu0 0.0
        %5785 = vmatpush1.msra.mxu0 %v5729
        %5786 = vmatprep.subr.mxu0 0.0
        %5787 = vmatpush1.msra.mxu0 %v5728
        %5788 = vmatprep.subr.mxu0 0.0
        %5789 = vmatpush1.msra.mxu0 %v5727
        %5790 = vmatprep.subr.mxu0 0.0
        %5791 = vmatpush1.msra.mxu0 %v5726
        %5792 = vmatprep.subr.mxu0 0.0
        %5793 = vmatpush2.msra.mxu0 0.0
        %5794 = vmatprep.subr.mxu0 0.0
        %5795 = vmatpush2.msra.mxu0 0.0
        %5796 = vmatprep.subr.mxu0 0.0
        %5797 = vmatpush2.msra.mxu0 0.0
        %5798 = vmatprep.subr.mxu0 0.0
        %5799 = vmatpush2.msra.mxu0 0.0
        %5800 = vmatprep.subr.mxu0 0.0
        %5801 = vmatpush2.msra.mxu0 0.0
        %5802 = vmatprep.subr.mxu0 0.0
        %5803 = vmatpush2.msra.mxu0 0.0
        %5804 = vmatprep.subr.mxu0 0.0
        %5805 = vmatpush2.msra.mxu0 0.0
        %5806 = vmatprep.subr.mxu0 0.0
        %5807 = vmatpush2.msra.mxu0 0.0
        %5808 = vmatprep.subr.mxu0 0.0
        %5809 = vmatpush2.msra.mxu0 0.0
        %5810 = vmatprep.subr.mxu0 0.0
        %5811 = vmatpush2.msra.mxu0 0.0
        %5812 = vmatprep.subr.mxu0 0.0
        %5813 = vmatpush2.msra.mxu0 0.0
        %5814 = vmatprep.subr.mxu0 0.0
        %5815 = vmatpush2.msra.mxu0 0.0
        %5816 = vmatprep.subr.mxu0 0.0
        %5817 = vmatpush2.msra.mxu0 0.0
        %5818 = vmatprep.subr.mxu0 0.0
        %5819 = vmatpush2.msra.mxu0 0.0
        %5820 = vmatprep.subr.mxu0 0.0
        %5821 = vmatpush2.msra.mxu0 0.0
        %5822 = vmatprep.subr.mxu0 0.0
        %5823 = vmatpush2.msra.mxu0 0.0
        %5824 = vmatprep.mubr.f32.mxu0 0.0
        %5825 = vmatmul.mubr.f32.gmra.mxu0 %v5731
        %v5826 = vpop.f32.mrf.mxu0
        %v5827 = vadd.f32 0.0, %v5826
        %v5828 = vpop.f32.mrf.mxu0
        %5829 = vmatprep.mubr.f32.mxu0 0.0
        %5830 = vmatmul.mubr.f32.gmra.mxu0 %v5734
        %v5831 = vpop.f32.mrf.mxu0
        %v5832 = vadd.f32 0.0, %v5831
        %v5833 = vpop.f32.mrf.mxu0
        %5834 = vmatprep.mubr.f32.mxu0 0.0
        %5835 = vmatmul.mubr.f32.gmra.mxu0 %v5737
        %v5836 = vpop.f32.mrf.mxu0
        %v5837 = vadd.f32 0.0, %v5836
        %v5838 = vpop.f32.mrf.mxu0
        %5839 = vmatprep.mubr.f32.mxu0 0.0
        %5840 = vmatmul.mubr.f32.gmra.mxu0 %v5740
        %v5841 = vpop.f32.mrf.mxu0
        %v5842 = vadd.f32 0.0, %v5841
        %v5843 = vpop.f32.mrf.mxu0
        %5844 = vmatprep.mubr.f32.mxu0 0.0
        %5845 = vmatmul.mubr.f32.gmra.mxu0 %v5743
        %v5846 = vpop.f32.mrf.mxu0
        %v5847 = vadd.f32 0.0, %v5846
        %v5848 = vpop.f32.mrf.mxu0
        %5849 = vmatprep.mubr.f32.mxu0 0.0
        %5850 = vmatmul.mubr.f32.gmra.mxu0 %v5746
        %v5851 = vpop.f32.mrf.mxu0
        %v5852 = vadd.f32 0.0, %v5851
        %v5853 = vpop.f32.mrf.mxu0
        %5854 = vmatprep.mubr.f32.mxu0 0.0
        %5855 = vmatmul.mubr.f32.gmra.mxu0 %v5749
        %v5856 = vpop.f32.mrf.mxu0
        %v5857 = vadd.f32 0.0, %v5856
        %v5858 = vpop.f32.mrf.mxu0
        %5859 = vmatprep.mubr.f32.mxu0 0.0
        %5860 = vmatmul.mubr.f32.gmra.mxu0 %v5752
        %v5861 = vpop.f32.mrf.mxu0
        %v5862 = vadd.f32 0.0, %v5861
        %v5863 = vpop.f32.mrf.mxu0
        %5864 = vmatprep.mubr.f32.mxu0 0.0
        %5865 = vmatmul.mubr.f32.gmra.mxu0 %v5755
        %v5866 = vpop.f32.mrf.mxu0
        %v5867 = vadd.f32 0.0, %v5866
        %v5868 = vpop.f32.mrf.mxu0
        %5869 = vmatprep.mubr.f32.mxu0 0.0
        %5870 = vmatmul.mubr.f32.gmra.mxu0 %v5758
        %v5871 = vpop.f32.mrf.mxu0
        %v5872 = vadd.f32 0.0, %v5871
        %v5873 = vpop.f32.mrf.mxu0
        %5874 = vdwg.mxu0
        %v5875 = vld [vmem:[#allocation7] sm:$0xff]
        %v5876 = vld [vmem:[#allocation7 + $0x8] sm:$0xff]
        %v5877 = vld [vmem:[#allocation7 + $0x10] sm:$0xff]
        %v5878 = vld [vmem:[#allocation7 + $0x18] sm:$0xff]
        %v5879 = vld [vmem:[#allocation7 + $0x20] sm:$0xff]
        %v5880 = vld [vmem:[#allocation7 + $0x28] sm:$0xff]
        %v5881 = vld [vmem:[#allocation7 + $0x30] sm:$0xff]
        %v5882 = vld [vmem:[#allocation7 + $0x38] sm:$0xff]
        %v5883 = vld [vmem:[#allocation7 + $0x40] sm:$0xff]
        %v5884 = vld [vmem:[#allocation7 + $0x48] sm:$0x3f]
        %v5885 = vadd.f32 %v5875, %v5827
        %v5886 = vadd.f32 %v5876, %v5832
        %v5887 = vadd.f32 %v5877, %v5837
        %v5888 = vadd.f32 %v5878, %v5842
        %v5889 = vadd.f32 %v5879, %v5847
        %v5890 = vadd.f32 %v5880, %v5852
        %v5891 = vadd.f32 %v5881, %v5857
        %v5892 = vadd.f32 %v5882, %v5862
        %v5893 = vadd.f32 %v5883, %v5867
        %v5894 = vadd.f32 %v5884, %v5872
        %5895 = vst.msk [vmem:[#allocation7] sm:$0xff] %vm412, %v5885
        %5896 = vst.msk [vmem:[#allocation7 + $0x8] sm:$0xff] %vm412, %v5886
        %5897 = vst.msk [vmem:[#allocation7 + $0x10] sm:$0xff] %vm412, %v5887
        %5898 = vst.msk [vmem:[#allocation7 + $0x18] sm:$0xff] %vm412, %v5888
        %5899 = vst.msk [vmem:[#allocation7 + $0x20] sm:$0xff] %vm412, %v5889
        %5900 = vst.msk [vmem:[#allocation7 + $0x28] sm:$0xff] %vm412, %v5890
        %5901 = vst.msk [vmem:[#allocation7 + $0x30] sm:$0xff] %vm412, %v5891
        %5902 = vst.msk [vmem:[#allocation7 + $0x38] sm:$0xff] %vm412, %v5892
        %5903 = vst.msk [vmem:[#allocation7 + $0x40] sm:$0xff] %vm412, %v5893
        %5904 = vst.msk [vmem:[#allocation7 + $0x48] sm:$0x3f] %vm856, %v5894
        %v5905 = vld [vmem:[#allocation3 + $0xb] sm:$0xff]
        %v5906 = vld [vmem:[#allocation3 + $0x13] sm:$0xff]
        %v5907 = vld [vmem:[#allocation3 + $0x1b] sm:$0xff]
        %v5908 = vld [vmem:[#allocation3 + $0x23] sm:$0xff]
        %v5909 = vld [vmem:[#allocation3 + $0x2b] sm:$0xff]
        %v5910 = vld [vmem:[#allocation3 + $0x33] sm:$0xff]
        %v5911 = vld [vmem:[#allocation3 + $0x3b] sm:$0xff]
        %v5912 = vld [vmem:[#allocation3 + $0x43] sm:$0xff]
        %v5913 = vld [vmem:[#allocation3 + $0x4b] sm:$0xff]
        %v5914 = vld [vmem:[#allocation3 + $0x53] sm:$0x3f]
        %s5915 = scalar_lea.vmem %s2, 128
        %v5916 = vld [vmem:[%s5915] sm:$0xff]
        %v5917 = vld [vmem:[%s5915 + $0x8] sm:$0xff]
        %v5918 = vld [vmem:[%s5915 + $0x10] sm:$0xff]
        %v5919 = vld [vmem:[%s5915 + $0x18] sm:$0xff]
        %v5921 = vsel %vm412, %v5905, 0
        %v5924 = vsel %vm412, %v5906, 0
        %v5927 = vsel %vm412, %v5907, 0
        %v5930 = vsel %vm412, %v5908, 0
        %v5933 = vsel %vm412, %v5909, 0
        %v5936 = vsel %vm412, %v5910, 0
        %v5939 = vsel %vm412, %v5911, 0
        %v5942 = vsel %vm412, %v5912, 0
        %v5945 = vsel %vm412, %v5913, 0
        %v5948 = vsel %vm412, %v5914, 0
        %5950 = vmatprep.subr.mxu0 0.0
        %5951 = vmatpush1.msra.mxu0 0.0
        %5952 = vmatprep.subr.mxu0 0.0
        %5953 = vmatpush1.msra.mxu0 0.0
        %5954 = vmatprep.subr.mxu0 0.0
        %5955 = vmatpush1.msra.mxu0 0.0
        %5956 = vmatprep.subr.mxu0 0.0
        %5957 = vmatpush1.msra.mxu0 0.0
        %5958 = vmatprep.subr.mxu0 0.0
        %5959 = vmatpush1.msra.mxu0 0.0
        %5960 = vmatprep.subr.mxu0 0.0
        %5961 = vmatpush1.msra.mxu0 0.0
        %5962 = vmatprep.subr.mxu0 0.0
        %5963 = vmatpush1.msra.mxu0 0.0
        %5964 = vmatprep.subr.mxu0 0.0
        %5965 = vmatpush1.msra.mxu0 0.0
        %5966 = vmatprep.subr.mxu0 0.0
        %5967 = vmatpush1.msra.mxu0 0.0
        %5968 = vmatprep.subr.mxu0 0.0
        %5969 = vmatpush1.msra.mxu0 0.0
        %5970 = vmatprep.subr.mxu0 0.0
        %5971 = vmatpush1.msra.mxu0 0.0
        %5972 = vmatprep.subr.mxu0 0.0
        %5973 = vmatpush1.msra.mxu0 0.0
        %5974 = vmatprep.subr.mxu0 0.0
        %5975 = vmatpush1.msra.mxu0 %v5919
        %5976 = vmatprep.subr.mxu0 0.0
        %5977 = vmatpush1.msra.mxu0 %v5918
        %5978 = vmatprep.subr.mxu0 0.0
        %5979 = vmatpush1.msra.mxu0 %v5917
        %5980 = vmatprep.subr.mxu0 0.0
        %5981 = vmatpush1.msra.mxu0 %v5916
        %5982 = vmatprep.subr.mxu0 0.0
        %5983 = vmatpush2.msra.mxu0 0.0
        %5984 = vmatprep.subr.mxu0 0.0
        %5985 = vmatpush2.msra.mxu0 0.0
        %5986 = vmatprep.subr.mxu0 0.0
        %5987 = vmatpush2.msra.mxu0 0.0
        %5988 = vmatprep.subr.mxu0 0.0
        %5989 = vmatpush2.msra.mxu0 0.0
        %5990 = vmatprep.subr.mxu0 0.0
        %5991 = vmatpush2.msra.mxu0 0.0
        %5992 = vmatprep.subr.mxu0 0.0
        %5993 = vmatpush2.msra.mxu0 0.0
        %5994 = vmatprep.subr.mxu0 0.0
        %5995 = vmatpush2.msra.mxu0 0.0
        %5996 = vmatprep.subr.mxu0 0.0
        %5997 = vmatpush2.msra.mxu0 0.0
        %5998 = vmatprep.subr.mxu0 0.0
        %5999 = vmatpush2.msra.mxu0 0.0
        %6000 = vmatprep.subr.mxu0 0.0
        %6001 = vmatpush2.msra.mxu0 0.0
        %6002 = vmatprep.subr.mxu0 0.0
        %6003 = vmatpush2.msra.mxu0 0.0
        %6004 = vmatprep.subr.mxu0 0.0
        %6005 = vmatpush2.msra.mxu0 0.0
        %6006 = vmatprep.subr.mxu0 0.0
        %6007 = vmatpush2.msra.mxu0 0.0
        %6008 = vmatprep.subr.mxu0 0.0
        %6009 = vmatpush2.msra.mxu0 0.0
        %6010 = vmatprep.subr.mxu0 0.0
        %6011 = vmatpush2.msra.mxu0 0.0
        %6012 = vmatprep.subr.mxu0 0.0
        %6013 = vmatpush2.msra.mxu0 0.0
        %6014 = vmatprep.mubr.f32.mxu0 0.0
        %6015 = vmatmul.mubr.f32.gmra.mxu0 %v5921
        %v6016 = vpop.f32.mrf.mxu0
        %v6017 = vadd.f32 0.0, %v6016
        %v6018 = vpop.f32.mrf.mxu0
        %6019 = vmatprep.mubr.f32.mxu0 0.0
        %6020 = vmatmul.mubr.f32.gmra.mxu0 %v5924
        %v6021 = vpop.f32.mrf.mxu0
        %v6022 = vadd.f32 0.0, %v6021
        %v6023 = vpop.f32.mrf.mxu0
        %6024 = vmatprep.mubr.f32.mxu0 0.0
        %6025 = vmatmul.mubr.f32.gmra.mxu0 %v5927
        %v6026 = vpop.f32.mrf.mxu0
        %v6027 = vadd.f32 0.0, %v6026
        %v6028 = vpop.f32.mrf.mxu0
        %6029 = vmatprep.mubr.f32.mxu0 0.0
        %6030 = vmatmul.mubr.f32.gmra.mxu0 %v5930
        %v6031 = vpop.f32.mrf.mxu0
        %v6032 = vadd.f32 0.0, %v6031
        %v6033 = vpop.f32.mrf.mxu0
        %6034 = vmatprep.mubr.f32.mxu0 0.0
        %6035 = vmatmul.mubr.f32.gmra.mxu0 %v5933
        %v6036 = vpop.f32.mrf.mxu0
        %v6037 = vadd.f32 0.0, %v6036
        %v6038 = vpop.f32.mrf.mxu0
        %6039 = vmatprep.mubr.f32.mxu0 0.0
        %6040 = vmatmul.mubr.f32.gmra.mxu0 %v5936
        %v6041 = vpop.f32.mrf.mxu0
        %v6042 = vadd.f32 0.0, %v6041
        %v6043 = vpop.f32.mrf.mxu0
        %6044 = vmatprep.mubr.f32.mxu0 0.0
        %6045 = vmatmul.mubr.f32.gmra.mxu0 %v5939
        %v6046 = vpop.f32.mrf.mxu0
        %v6047 = vadd.f32 0.0, %v6046
        %v6048 = vpop.f32.mrf.mxu0
        %6049 = vmatprep.mubr.f32.mxu0 0.0
        %6050 = vmatmul.mubr.f32.gmra.mxu0 %v5942
        %v6051 = vpop.f32.mrf.mxu0
        %v6052 = vadd.f32 0.0, %v6051
        %v6053 = vpop.f32.mrf.mxu0
        %6054 = vmatprep.mubr.f32.mxu0 0.0
        %6055 = vmatmul.mubr.f32.gmra.mxu0 %v5945
        %v6056 = vpop.f32.mrf.mxu0
        %v6057 = vadd.f32 0.0, %v6056
        %v6058 = vpop.f32.mrf.mxu0
        %6059 = vmatprep.mubr.f32.mxu0 0.0
        %6060 = vmatmul.mubr.f32.gmra.mxu0 %v5948
        %v6061 = vpop.f32.mrf.mxu0
        %v6062 = vadd.f32 0.0, %v6061
        %v6063 = vpop.f32.mrf.mxu0
        %6064 = vdwg.mxu0
        %v6065 = vld [vmem:[#allocation7] sm:$0xff]
        %v6066 = vld [vmem:[#allocation7 + $0x8] sm:$0xff]
        %v6067 = vld [vmem:[#allocation7 + $0x10] sm:$0xff]
        %v6068 = vld [vmem:[#allocation7 + $0x18] sm:$0xff]
        %v6069 = vld [vmem:[#allocation7 + $0x20] sm:$0xff]
        %v6070 = vld [vmem:[#allocation7 + $0x28] sm:$0xff]
        %v6071 = vld [vmem:[#allocation7 + $0x30] sm:$0xff]
        %v6072 = vld [vmem:[#allocation7 + $0x38] sm:$0xff]
        %v6073 = vld [vmem:[#allocation7 + $0x40] sm:$0xff]
        %v6074 = vld [vmem:[#allocation7 + $0x48] sm:$0x3f]
        %v6075 = vadd.f32 %v6065, %v6017
        %v6076 = vadd.f32 %v6066, %v6022
        %v6077 = vadd.f32 %v6067, %v6027
        %v6078 = vadd.f32 %v6068, %v6032
        %v6079 = vadd.f32 %v6069, %v6037
        %v6080 = vadd.f32 %v6070, %v6042
        %v6081 = vadd.f32 %v6071, %v6047
        %v6082 = vadd.f32 %v6072, %v6052
        %v6083 = vadd.f32 %v6073, %v6057
        %v6084 = vadd.f32 %v6074, %v6062
        %6085 = vst.msk [vmem:[#allocation7] sm:$0xff] %vm412, %v6075
        %6086 = vst.msk [vmem:[#allocation7 + $0x8] sm:$0xff] %vm412, %v6076
        %6087 = vst.msk [vmem:[#allocation7 + $0x10] sm:$0xff] %vm412, %v6077
        %6088 = vst.msk [vmem:[#allocation7 + $0x18] sm:$0xff] %vm412, %v6078
        %6089 = vst.msk [vmem:[#allocation7 + $0x20] sm:$0xff] %vm412, %v6079
        %6090 = vst.msk [vmem:[#allocation7 + $0x28] sm:$0xff] %vm412, %v6080
        %6091 = vst.msk [vmem:[#allocation7 + $0x30] sm:$0xff] %vm412, %v6081
        %6092 = vst.msk [vmem:[#allocation7 + $0x38] sm:$0xff] %vm412, %v6082
        %6093 = vst.msk [vmem:[#allocation7 + $0x40] sm:$0xff] %vm412, %v6083
        %6094 = vst.msk [vmem:[#allocation7 + $0x48] sm:$0x3f] %vm856, %v6084
        %v6095 = vld [vmem:[#allocation3 + $0xc] sm:$0xff]
        %v6096 = vld [vmem:[#allocation3 + $0x14] sm:$0xff]
        %v6097 = vld [vmem:[#allocation3 + $0x1c] sm:$0xff]
        %v6098 = vld [vmem:[#allocation3 + $0x24] sm:$0xff]
        %v6099 = vld [vmem:[#allocation3 + $0x2c] sm:$0xff]
        %v6100 = vld [vmem:[#allocation3 + $0x34] sm:$0xff]
        %v6101 = vld [vmem:[#allocation3 + $0x3c] sm:$0xff]
        %v6102 = vld [vmem:[#allocation3 + $0x44] sm:$0xff]
        %v6103 = vld [vmem:[#allocation3 + $0x4c] sm:$0xff]
        %v6104 = vld [vmem:[#allocation3 + $0x54] sm:$0x3f]
        %s6105 = scalar_lea.vmem %s2, 160
        %v6106 = vld [vmem:[%s6105] sm:$0xff]
        %v6107 = vld [vmem:[%s6105 + $0x8] sm:$0xff]
        %v6108 = vld [vmem:[%s6105 + $0x10] sm:$0xff]
        %v6109 = vld [vmem:[%s6105 + $0x18] sm:$0xff]
        %v6111 = vsel %vm412, %v6095, 0
        %v6114 = vsel %vm412, %v6096, 0
        %v6117 = vsel %vm412, %v6097, 0
        %v6120 = vsel %vm412, %v6098, 0
        %v6123 = vsel %vm412, %v6099, 0
        %v6126 = vsel %vm412, %v6100, 0
        %v6129 = vsel %vm412, %v6101, 0
        %v6132 = vsel %vm412, %v6102, 0
        %v6135 = vsel %vm412, %v6103, 0
        %v6138 = vsel %vm412, %v6104, 0
        %6140 = vmatprep.subr.mxu0 0.0
        %6141 = vmatpush1.msra.mxu0 0.0
        %6142 = vmatprep.subr.mxu0 0.0
        %6143 = vmatpush1.msra.mxu0 0.0
        %6144 = vmatprep.subr.mxu0 0.0
        %6145 = vmatpush1.msra.mxu0 0.0
        %6146 = vmatprep.subr.mxu0 0.0
        %6147 = vmatpush1.msra.mxu0 0.0
        %6148 = vmatprep.subr.mxu0 0.0
        %6149 = vmatpush1.msra.mxu0 0.0
        %6150 = vmatprep.subr.mxu0 0.0
        %6151 = vmatpush1.msra.mxu0 0.0
        %6152 = vmatprep.subr.mxu0 0.0
        %6153 = vmatpush1.msra.mxu0 0.0
        %6154 = vmatprep.subr.mxu0 0.0
        %6155 = vmatpush1.msra.mxu0 0.0
        %6156 = vmatprep.subr.mxu0 0.0
        %6157 = vmatpush1.msra.mxu0 0.0
        %6158 = vmatprep.subr.mxu0 0.0
        %6159 = vmatpush1.msra.mxu0 0.0
        %6160 = vmatprep.subr.mxu0 0.0
        %6161 = vmatpush1.msra.mxu0 0.0
        %6162 = vmatprep.subr.mxu0 0.0
        %6163 = vmatpush1.msra.mxu0 0.0
        %6164 = vmatprep.subr.mxu0 0.0
        %6165 = vmatpush1.msra.mxu0 %v6109
        %6166 = vmatprep.subr.mxu0 0.0
        %6167 = vmatpush1.msra.mxu0 %v6108
        %6168 = vmatprep.subr.mxu0 0.0
        %6169 = vmatpush1.msra.mxu0 %v6107
        %6170 = vmatprep.subr.mxu0 0.0
        %6171 = vmatpush1.msra.mxu0 %v6106
        %6172 = vmatprep.subr.mxu0 0.0
        %6173 = vmatpush2.msra.mxu0 0.0
        %6174 = vmatprep.subr.mxu0 0.0
        %6175 = vmatpush2.msra.mxu0 0.0
        %6176 = vmatprep.subr.mxu0 0.0
        %6177 = vmatpush2.msra.mxu0 0.0
        %6178 = vmatprep.subr.mxu0 0.0
        %6179 = vmatpush2.msra.mxu0 0.0
        %6180 = vmatprep.subr.mxu0 0.0
        %6181 = vmatpush2.msra.mxu0 0.0
        %6182 = vmatprep.subr.mxu0 0.0
        %6183 = vmatpush2.msra.mxu0 0.0
        %6184 = vmatprep.subr.mxu0 0.0
        %6185 = vmatpush2.msra.mxu0 0.0
        %6186 = vmatprep.subr.mxu0 0.0
        %6187 = vmatpush2.msra.mxu0 0.0
        %6188 = vmatprep.subr.mxu0 0.0
        %6189 = vmatpush2.msra.mxu0 0.0
        %6190 = vmatprep.subr.mxu0 0.0
        %6191 = vmatpush2.msra.mxu0 0.0
        %6192 = vmatprep.subr.mxu0 0.0
        %6193 = vmatpush2.msra.mxu0 0.0
        %6194 = vmatprep.subr.mxu0 0.0
        %6195 = vmatpush2.msra.mxu0 0.0
        %6196 = vmatprep.subr.mxu0 0.0
        %6197 = vmatpush2.msra.mxu0 0.0
        %6198 = vmatprep.subr.mxu0 0.0
        %6199 = vmatpush2.msra.mxu0 0.0
        %6200 = vmatprep.subr.mxu0 0.0
        %6201 = vmatpush2.msra.mxu0 0.0
        %6202 = vmatprep.subr.mxu0 0.0
        %6203 = vmatpush2.msra.mxu0 0.0
        %6204 = vmatprep.mubr.f32.mxu0 0.0
        %6205 = vmatmul.mubr.f32.gmra.mxu0 %v6111
        %v6206 = vpop.f32.mrf.mxu0
        %v6207 = vadd.f32 0.0, %v6206
        %v6208 = vpop.f32.mrf.mxu0
        %6209 = vmatprep.mubr.f32.mxu0 0.0
        %6210 = vmatmul.mubr.f32.gmra.mxu0 %v6114
        %v6211 = vpop.f32.mrf.mxu0
        %v6212 = vadd.f32 0.0, %v6211
        %v6213 = vpop.f32.mrf.mxu0
        %6214 = vmatprep.mubr.f32.mxu0 0.0
        %6215 = vmatmul.mubr.f32.gmra.mxu0 %v6117
        %v6216 = vpop.f32.mrf.mxu0
        %v6217 = vadd.f32 0.0, %v6216
        %v6218 = vpop.f32.mrf.mxu0
        %6219 = vmatprep.mubr.f32.mxu0 0.0
        %6220 = vmatmul.mubr.f32.gmra.mxu0 %v6120
        %v6221 = vpop.f32.mrf.mxu0
        %v6222 = vadd.f32 0.0, %v6221
        %v6223 = vpop.f32.mrf.mxu0
        %6224 = vmatprep.mubr.f32.mxu0 0.0
        %6225 = vmatmul.mubr.f32.gmra.mxu0 %v6123
        %v6226 = vpop.f32.mrf.mxu0
        %v6227 = vadd.f32 0.0, %v6226
        %v6228 = vpop.f32.mrf.mxu0
        %6229 = vmatprep.mubr.f32.mxu0 0.0
        %6230 = vmatmul.mubr.f32.gmra.mxu0 %v6126
        %v6231 = vpop.f32.mrf.mxu0
        %v6232 = vadd.f32 0.0, %v6231
        %v6233 = vpop.f32.mrf.mxu0
        %6234 = vmatprep.mubr.f32.mxu0 0.0
        %6235 = vmatmul.mubr.f32.gmra.mxu0 %v6129
        %v6236 = vpop.f32.mrf.mxu0
        %v6237 = vadd.f32 0.0, %v6236
        %v6238 = vpop.f32.mrf.mxu0
        %6239 = vmatprep.mubr.f32.mxu0 0.0
        %6240 = vmatmul.mubr.f32.gmra.mxu0 %v6132
        %v6241 = vpop.f32.mrf.mxu0
        %v6242 = vadd.f32 0.0, %v6241
        %v6243 = vpop.f32.mrf.mxu0
        %6244 = vmatprep.mubr.f32.mxu0 0.0
        %6245 = vmatmul.mubr.f32.gmra.mxu0 %v6135
        %v6246 = vpop.f32.mrf.mxu0
        %v6247 = vadd.f32 0.0, %v6246
        %v6248 = vpop.f32.mrf.mxu0
        %6249 = vmatprep.mubr.f32.mxu0 0.0
        %6250 = vmatmul.mubr.f32.gmra.mxu0 %v6138
        %v6251 = vpop.f32.mrf.mxu0
        %v6252 = vadd.f32 0.0, %v6251
        %v6253 = vpop.f32.mrf.mxu0
        %6254 = vdwg.mxu0
        %v6255 = vld [vmem:[#allocation7] sm:$0xff]
        %v6256 = vld [vmem:[#allocation7 + $0x8] sm:$0xff]
        %v6257 = vld [vmem:[#allocation7 + $0x10] sm:$0xff]
        %v6258 = vld [vmem:[#allocation7 + $0x18] sm:$0xff]
        %v6259 = vld [vmem:[#allocation7 + $0x20] sm:$0xff]
        %v6260 = vld [vmem:[#allocation7 + $0x28] sm:$0xff]
        %v6261 = vld [vmem:[#allocation7 + $0x30] sm:$0xff]
        %v6262 = vld [vmem:[#allocation7 + $0x38] sm:$0xff]
        %v6263 = vld [vmem:[#allocation7 + $0x40] sm:$0xff]
        %v6264 = vld [vmem:[#allocation7 + $0x48] sm:$0x3f]
        %v6265 = vadd.f32 %v6255, %v6207
        %v6266 = vadd.f32 %v6256, %v6212
        %v6267 = vadd.f32 %v6257, %v6217
        %v6268 = vadd.f32 %v6258, %v6222
        %v6269 = vadd.f32 %v6259, %v6227
        %v6270 = vadd.f32 %v6260, %v6232
        %v6271 = vadd.f32 %v6261, %v6237
        %v6272 = vadd.f32 %v6262, %v6242
        %v6273 = vadd.f32 %v6263, %v6247
        %v6274 = vadd.f32 %v6264, %v6252
        %6275 = vst.msk [vmem:[#allocation7] sm:$0xff] %vm412, %v6265
        %6276 = vst.msk [vmem:[#allocation7 + $0x8] sm:$0xff] %vm412, %v6266
        %6277 = vst.msk [vmem:[#allocation7 + $0x10] sm:$0xff] %vm412, %v6267
        %6278 = vst.msk [vmem:[#allocation7 + $0x18] sm:$0xff] %vm412, %v6268
        %6279 = vst.msk [vmem:[#allocation7 + $0x20] sm:$0xff] %vm412, %v6269
        %6280 = vst.msk [vmem:[#allocation7 + $0x28] sm:$0xff] %vm412, %v6270
        %6281 = vst.msk [vmem:[#allocation7 + $0x30] sm:$0xff] %vm412, %v6271
        %6282 = vst.msk [vmem:[#allocation7 + $0x38] sm:$0xff] %vm412, %v6272
        %6283 = vst.msk [vmem:[#allocation7 + $0x40] sm:$0xff] %vm412, %v6273
        %6284 = vst.msk [vmem:[#allocation7 + $0x48] sm:$0x3f] %vm856, %v6274
        %v6285 = vld [vmem:[#allocation3 + $0x14] sm:$0xff]
        %v6286 = vld [vmem:[#allocation3 + $0x1c] sm:$0xff]
        %v6287 = vld [vmem:[#allocation3 + $0x24] sm:$0xff]
        %v6288 = vld [vmem:[#allocation3 + $0x2c] sm:$0xff]
        %v6289 = vld [vmem:[#allocation3 + $0x34] sm:$0xff]
        %v6290 = vld [vmem:[#allocation3 + $0x3c] sm:$0xff]
        %v6291 = vld [vmem:[#allocation3 + $0x44] sm:$0xff]
        %v6292 = vld [vmem:[#allocation3 + $0x4c] sm:$0xff]
        %v6293 = vld [vmem:[#allocation3 + $0x54] sm:$0xff]
        %v6294 = vld [vmem:[#allocation3 + $0x5c] sm:$0x3f]
        %s6295 = scalar_lea.vmem %s2, 192
        %v6296 = vld [vmem:[%s6295] sm:$0xff]
        %v6297 = vld [vmem:[%s6295 + $0x8] sm:$0xff]
        %v6298 = vld [vmem:[%s6295 + $0x10] sm:$0xff]
        %v6299 = vld [vmem:[%s6295 + $0x18] sm:$0xff]
        %v6301 = vsel %vm412, %v6285, 0
        %v6304 = vsel %vm412, %v6286, 0
        %v6307 = vsel %vm412, %v6287, 0
        %v6310 = vsel %vm412, %v6288, 0
        %v6313 = vsel %vm412, %v6289, 0
        %v6316 = vsel %vm412, %v6290, 0
        %v6319 = vsel %vm412, %v6291, 0
        %v6322 = vsel %vm412, %v6292, 0
        %v6325 = vsel %vm412, %v6293, 0
        %v6328 = vsel %vm412, %v6294, 0
        %6330 = vmatprep.subr.mxu0 0.0
        %6331 = vmatpush1.msra.mxu0 0.0
        %6332 = vmatprep.subr.mxu0 0.0
        %6333 = vmatpush1.msra.mxu0 0.0
        %6334 = vmatprep.subr.mxu0 0.0
        %6335 = vmatpush1.msra.mxu0 0.0
        %6336 = vmatprep.subr.mxu0 0.0
        %6337 = vmatpush1.msra.mxu0 0.0
        %6338 = vmatprep.subr.mxu0 0.0
        %6339 = vmatpush1.msra.mxu0 0.0
        %6340 = vmatprep.subr.mxu0 0.0
        %6341 = vmatpush1.msra.mxu0 0.0
        %6342 = vmatprep.subr.mxu0 0.0
        %6343 = vmatpush1.msra.mxu0 0.0
        %6344 = vmatprep.subr.mxu0 0.0
        %6345 = vmatpush1.msra.mxu0 0.0
        %6346 = vmatprep.subr.mxu0 0.0
        %6347 = vmatpush1.msra.mxu0 0.0
        %6348 = vmatprep.subr.mxu0 0.0
        %6349 = vmatpush1.msra.mxu0 0.0
        %6350 = vmatprep.subr.mxu0 0.0
        %6351 = vmatpush1.msra.mxu0 0.0
        %6352 = vmatprep.subr.mxu0 0.0
        %6353 = vmatpush1.msra.mxu0 0.0
        %6354 = vmatprep.subr.mxu0 0.0
        %6355 = vmatpush1.msra.mxu0 %v6299
        %6356 = vmatprep.subr.mxu0 0.0
        %6357 = vmatpush1.msra.mxu0 %v6298
        %6358 = vmatprep.subr.mxu0 0.0
        %6359 = vmatpush1.msra.mxu0 %v6297
        %6360 = vmatprep.subr.mxu0 0.0
        %6361 = vmatpush1.msra.mxu0 %v6296
        %6362 = vmatprep.subr.mxu0 0.0
        %6363 = vmatpush2.msra.mxu0 0.0
        %6364 = vmatprep.subr.mxu0 0.0
        %6365 = vmatpush2.msra.mxu0 0.0
        %6366 = vmatprep.subr.mxu0 0.0
        %6367 = vmatpush2.msra.mxu0 0.0
        %6368 = vmatprep.subr.mxu0 0.0
        %6369 = vmatpush2.msra.mxu0 0.0
        %6370 = vmatprep.subr.mxu0 0.0
        %6371 = vmatpush2.msra.mxu0 0.0
        %6372 = vmatprep.subr.mxu0 0.0
        %6373 = vmatpush2.msra.mxu0 0.0
        %6374 = vmatprep.subr.mxu0 0.0
        %6375 = vmatpush2.msra.mxu0 0.0
        %6376 = vmatprep.subr.mxu0 0.0
        %6377 = vmatpush2.msra.mxu0 0.0
        %6378 = vmatprep.subr.mxu0 0.0
        %6379 = vmatpush2.msra.mxu0 0.0
        %6380 = vmatprep.subr.mxu0 0.0
        %6381 = vmatpush2.msra.mxu0 0.0
        %6382 = vmatprep.subr.mxu0 0.0
        %6383 = vmatpush2.msra.mxu0 0.0
        %6384 = vmatprep.subr.mxu0 0.0
        %6385 = vmatpush2.msra.mxu0 0.0
        %6386 = vmatprep.subr.mxu0 0.0
        %6387 = vmatpush2.msra.mxu0 0.0
        %6388 = vmatprep.subr.mxu0 0.0
        %6389 = vmatpush2.msra.mxu0 0.0
        %6390 = vmatprep.subr.mxu0 0.0
        %6391 = vmatpush2.msra.mxu0 0.0
        %6392 = vmatprep.subr.mxu0 0.0
        %6393 = vmatpush2.msra.mxu0 0.0
        %6394 = vmatprep.mubr.f32.mxu0 0.0
        %6395 = vmatmul.mubr.f32.gmra.mxu0 %v6301
        %v6396 = vpop.f32.mrf.mxu0
        %v6397 = vadd.f32 0.0, %v6396
        %v6398 = vpop.f32.mrf.mxu0
        %6399 = vmatprep.mubr.f32.mxu0 0.0
        %6400 = vmatmul.mubr.f32.gmra.mxu0 %v6304
        %v6401 = vpop.f32.mrf.mxu0
        %v6402 = vadd.f32 0.0, %v6401
        %v6403 = vpop.f32.mrf.mxu0
        %6404 = vmatprep.mubr.f32.mxu0 0.0
        %6405 = vmatmul.mubr.f32.gmra.mxu0 %v6307
        %v6406 = vpop.f32.mrf.mxu0
        %v6407 = vadd.f32 0.0, %v6406
        %v6408 = vpop.f32.mrf.mxu0
        %6409 = vmatprep.mubr.f32.mxu0 0.0
        %6410 = vmatmul.mubr.f32.gmra.mxu0 %v6310
        %v6411 = vpop.f32.mrf.mxu0
        %v6412 = vadd.f32 0.0, %v6411
        %v6413 = vpop.f32.mrf.mxu0
        %6414 = vmatprep.mubr.f32.mxu0 0.0
        %6415 = vmatmul.mubr.f32.gmra.mxu0 %v6313
        %v6416 = vpop.f32.mrf.mxu0
        %v6417 = vadd.f32 0.0, %v6416
        %v6418 = vpop.f32.mrf.mxu0
        %6419 = vmatprep.mubr.f32.mxu0 0.0
        %6420 = vmatmul.mubr.f32.gmra.mxu0 %v6316
        %v6421 = vpop.f32.mrf.mxu0
        %v6422 = vadd.f32 0.0, %v6421
        %v6423 = vpop.f32.mrf.mxu0
        %6424 = vmatprep.mubr.f32.mxu0 0.0
        %6425 = vmatmul.mubr.f32.gmra.mxu0 %v6319
        %v6426 = vpop.f32.mrf.mxu0
        %v6427 = vadd.f32 0.0, %v6426
        %v6428 = vpop.f32.mrf.mxu0
        %6429 = vmatprep.mubr.f32.mxu0 0.0
        %6430 = vmatmul.mubr.f32.gmra.mxu0 %v6322
        %v6431 = vpop.f32.mrf.mxu0
        %v6432 = vadd.f32 0.0, %v6431
        %v6433 = vpop.f32.mrf.mxu0
        %6434 = vmatprep.mubr.f32.mxu0 0.0
        %6435 = vmatmul.mubr.f32.gmra.mxu0 %v6325
        %v6436 = vpop.f32.mrf.mxu0
        %v6437 = vadd.f32 0.0, %v6436
        %v6438 = vpop.f32.mrf.mxu0
        %6439 = vmatprep.mubr.f32.mxu0 0.0
        %6440 = vmatmul.mubr.f32.gmra.mxu0 %v6328
        %v6441 = vpop.f32.mrf.mxu0
        %v6442 = vadd.f32 0.0, %v6441
        %v6443 = vpop.f32.mrf.mxu0
        %6444 = vdwg.mxu0
        %v6445 = vld [vmem:[#allocation7] sm:$0xff]
        %v6446 = vld [vmem:[#allocation7 + $0x8] sm:$0xff]
        %v6447 = vld [vmem:[#allocation7 + $0x10] sm:$0xff]
        %v6448 = vld [vmem:[#allocation7 + $0x18] sm:$0xff]
        %v6449 = vld [vmem:[#allocation7 + $0x20] sm:$0xff]
        %v6450 = vld [vmem:[#allocation7 + $0x28] sm:$0xff]
        %v6451 = vld [vmem:[#allocation7 + $0x30] sm:$0xff]
        %v6452 = vld [vmem:[#allocation7 + $0x38] sm:$0xff]
        %v6453 = vld [vmem:[#allocation7 + $0x40] sm:$0xff]
        %v6454 = vld [vmem:[#allocation7 + $0x48] sm:$0x3f]
        %v6455 = vadd.f32 %v6445, %v6397
        %v6456 = vadd.f32 %v6446, %v6402
        %v6457 = vadd.f32 %v6447, %v6407
        %v6458 = vadd.f32 %v6448, %v6412
        %v6459 = vadd.f32 %v6449, %v6417
        %v6460 = vadd.f32 %v6450, %v6422
        %v6461 = vadd.f32 %v6451, %v6427
        %v6462 = vadd.f32 %v6452, %v6432
        %v6463 = vadd.f32 %v6453, %v6437
        %v6464 = vadd.f32 %v6454, %v6442
        %6465 = vst.msk [vmem:[#allocation7] sm:$0xff] %vm412, %v6455
        %6466 = vst.msk [vmem:[#allocation7 + $0x8] sm:$0xff] %vm412, %v6456
        %6467 = vst.msk [vmem:[#allocation7 + $0x10] sm:$0xff] %vm412, %v6457
        %6468 = vst.msk [vmem:[#allocation7 + $0x18] sm:$0xff] %vm412, %v6458
        %6469 = vst.msk [vmem:[#allocation7 + $0x20] sm:$0xff] %vm412, %v6459
        %6470 = vst.msk [vmem:[#allocation7 + $0x28] sm:$0xff] %vm412, %v6460
        %6471 = vst.msk [vmem:[#allocation7 + $0x30] sm:$0xff] %vm412, %v6461
        %6472 = vst.msk [vmem:[#allocation7 + $0x38] sm:$0xff] %vm412, %v6462
        %6473 = vst.msk [vmem:[#allocation7 + $0x40] sm:$0xff] %vm412, %v6463
        %6474 = vst.msk [vmem:[#allocation7 + $0x48] sm:$0x3f] %vm856, %v6464
        %v6475 = vld [vmem:[#allocation3 + $0x15] sm:$0xff]
        %v6476 = vld [vmem:[#allocation3 + $0x1d] sm:$0xff]
        %v6477 = vld [vmem:[#allocation3 + $0x25] sm:$0xff]
        %v6478 = vld [vmem:[#allocation3 + $0x2d] sm:$0xff]
        %v6479 = vld [vmem:[#allocation3 + $0x35] sm:$0xff]
        %v6480 = vld [vmem:[#allocation3 + $0x3d] sm:$0xff]
        %v6481 = vld [vmem:[#allocation3 + $0x45] sm:$0xff]
        %v6482 = vld [vmem:[#allocation3 + $0x4d] sm:$0xff]
        %v6483 = vld [vmem:[#allocation3 + $0x55] sm:$0xff]
        %v6484 = vld [vmem:[#allocation3 + $0x5d] sm:$0x3f]
        %s6485 = scalar_lea.vmem %s2, 224
        %v6486 = vld [vmem:[%s6485] sm:$0xff]
        %v6487 = vld [vmem:[%s6485 + $0x8] sm:$0xff]
        %v6488 = vld [vmem:[%s6485 + $0x10] sm:$0xff]
        %v6489 = vld [vmem:[%s6485 + $0x18] sm:$0xff]
        %v6491 = vsel %vm412, %v6475, 0
        %v6494 = vsel %vm412, %v6476, 0
        %v6497 = vsel %vm412, %v6477, 0
        %v6500 = vsel %vm412, %v6478, 0
        %v6503 = vsel %vm412, %v6479, 0
        %v6506 = vsel %vm412, %v6480, 0
        %v6509 = vsel %vm412, %v6481, 0
        %v6512 = vsel %vm412, %v6482, 0
        %v6515 = vsel %vm412, %v6483, 0
        %v6518 = vsel %vm412, %v6484, 0
        %6520 = vmatprep.subr.mxu0 0.0
        %6521 = vmatpush1.msra.mxu0 0.0
        %6522 = vmatprep.subr.mxu0 0.0
        %6523 = vmatpush1.msra.mxu0 0.0
        %6524 = vmatprep.subr.mxu0 0.0
        %6525 = vmatpush1.msra.mxu0 0.0
        %6526 = vmatprep.subr.mxu0 0.0
        %6527 = vmatpush1.msra.mxu0 0.0
        %6528 = vmatprep.subr.mxu0 0.0
        %6529 = vmatpush1.msra.mxu0 0.0
        %6530 = vmatprep.subr.mxu0 0.0
        %6531 = vmatpush1.msra.mxu0 0.0
        %6532 = vmatprep.subr.mxu0 0.0
        %6533 = vmatpush1.msra.mxu0 0.0
        %6534 = vmatprep.subr.mxu0 0.0
        %6535 = vmatpush1.msra.mxu0 0.0
        %6536 = vmatprep.subr.mxu0 0.0
        %6537 = vmatpush1.msra.mxu0 0.0
        %6538 = vmatprep.subr.mxu0 0.0
        %6539 = vmatpush1.msra.mxu0 0.0
        %6540 = vmatprep.subr.mxu0 0.0
        %6541 = vmatpush1.msra.mxu0 0.0
        %6542 = vmatprep.subr.mxu0 0.0
        %6543 = vmatpush1.msra.mxu0 0.0
        %6544 = vmatprep.subr.mxu0 0.0
        %6545 = vmatpush1.msra.mxu0 %v6489
        %6546 = vmatprep.subr.mxu0 0.0
        %6547 = vmatpush1.msra.mxu0 %v6488
        %6548 = vmatprep.subr.mxu0 0.0
        %6549 = vmatpush1.msra.mxu0 %v6487
        %6550 = vmatprep.subr.mxu0 0.0
        %6551 = vmatpush1.msra.mxu0 %v6486
        %6552 = vmatprep.subr.mxu0 0.0
        %6553 = vmatpush2.msra.mxu0 0.0
        %6554 = vmatprep.subr.mxu0 0.0
        %6555 = vmatpush2.msra.mxu0 0.0
        %6556 = vmatprep.subr.mxu0 0.0
        %6557 = vmatpush2.msra.mxu0 0.0
        %6558 = vmatprep.subr.mxu0 0.0
        %6559 = vmatpush2.msra.mxu0 0.0
        %6560 = vmatprep.subr.mxu0 0.0
        %6561 = vmatpush2.msra.mxu0 0.0
        %6562 = vmatprep.subr.mxu0 0.0
        %6563 = vmatpush2.msra.mxu0 0.0
        %6564 = vmatprep.subr.mxu0 0.0
        %6565 = vmatpush2.msra.mxu0 0.0
        %6566 = vmatprep.subr.mxu0 0.0
        %6567 = vmatpush2.msra.mxu0 0.0
        %6568 = vmatprep.subr.mxu0 0.0
        %6569 = vmatpush2.msra.mxu0 0.0
        %6570 = vmatprep.subr.mxu0 0.0
        %6571 = vmatpush2.msra.mxu0 0.0
        %6572 = vmatprep.subr.mxu0 0.0
        %6573 = vmatpush2.msra.mxu0 0.0
        %6574 = vmatprep.subr.mxu0 0.0
        %6575 = vmatpush2.msra.mxu0 0.0
        %6576 = vmatprep.subr.mxu0 0.0
        %6577 = vmatpush2.msra.mxu0 0.0
        %6578 = vmatprep.subr.mxu0 0.0
        %6579 = vmatpush2.msra.mxu0 0.0
        %6580 = vmatprep.subr.mxu0 0.0
        %6581 = vmatpush2.msra.mxu0 0.0
        %6582 = vmatprep.subr.mxu0 0.0
        %6583 = vmatpush2.msra.mxu0 0.0
        %6584 = vmatprep.mubr.f32.mxu0 0.0
        %6585 = vmatmul.mubr.f32.gmra.mxu0 %v6491
        %v6586 = vpop.f32.mrf.mxu0
        %v6587 = vadd.f32 0.0, %v6586
        %v6588 = vpop.f32.mrf.mxu0
        %6589 = vmatprep.mubr.f32.mxu0 0.0
        %6590 = vmatmul.mubr.f32.gmra.mxu0 %v6494
        %v6591 = vpop.f32.mrf.mxu0
        %v6592 = vadd.f32 0.0, %v6591
        %v6593 = vpop.f32.mrf.mxu0
        %6594 = vmatprep.mubr.f32.mxu0 0.0
        %6595 = vmatmul.mubr.f32.gmra.mxu0 %v6497
        %v6596 = vpop.f32.mrf.mxu0
        %v6597 = vadd.f32 0.0, %v6596
        %v6598 = vpop.f32.mrf.mxu0
        %6599 = vmatprep.mubr.f32.mxu0 0.0
        %6600 = vmatmul.mubr.f32.gmra.mxu0 %v6500
        %v6601 = vpop.f32.mrf.mxu0
        %v6602 = vadd.f32 0.0, %v6601
        %v6603 = vpop.f32.mrf.mxu0
        %6604 = vmatprep.mubr.f32.mxu0 0.0
        %6605 = vmatmul.mubr.f32.gmra.mxu0 %v6503
        %v6606 = vpop.f32.mrf.mxu0
        %v6607 = vadd.f32 0.0, %v6606
        %v6608 = vpop.f32.mrf.mxu0
        %6609 = vmatprep.mubr.f32.mxu0 0.0
        %6610 = vmatmul.mubr.f32.gmra.mxu0 %v6506
        %v6611 = vpop.f32.mrf.mxu0
        %v6612 = vadd.f32 0.0, %v6611
        %v6613 = vpop.f32.mrf.mxu0
        %6614 = vmatprep.mubr.f32.mxu0 0.0
        %6615 = vmatmul.mubr.f32.gmra.mxu0 %v6509
        %v6616 = vpop.f32.mrf.mxu0
        %v6617 = vadd.f32 0.0, %v6616
        %v6618 = vpop.f32.mrf.mxu0
        %6619 = vmatprep.mubr.f32.mxu0 0.0
        %6620 = vmatmul.mubr.f32.gmra.mxu0 %v6512
        %v6621 = vpop.f32.mrf.mxu0
        %v6622 = vadd.f32 0.0, %v6621
        %v6623 = vpop.f32.mrf.mxu0
        %6624 = vmatprep.mubr.f32.mxu0 0.0
        %6625 = vmatmul.mubr.f32.gmra.mxu0 %v6515
        %v6626 = vpop.f32.mrf.mxu0
        %v6627 = vadd.f32 0.0, %v6626
        %v6628 = vpop.f32.mrf.mxu0
        %6629 = vmatprep.mubr.f32.mxu0 0.0
        %6630 = vmatmul.mubr.f32.gmra.mxu0 %v6518
        %v6631 = vpop.f32.mrf.mxu0
        %v6632 = vadd.f32 0.0, %v6631
        %v6633 = vpop.f32.mrf.mxu0
        %6634 = vdwg.mxu0
        %v6635 = vld [vmem:[#allocation7] sm:$0xff]
        %v6636 = vld [vmem:[#allocation7 + $0x8] sm:$0xff]
        %v6637 = vld [vmem:[#allocation7 + $0x10] sm:$0xff]
        %v6638 = vld [vmem:[#allocation7 + $0x18] sm:$0xff]
        %v6639 = vld [vmem:[#allocation7 + $0x20] sm:$0xff]
        %v6640 = vld [vmem:[#allocation7 + $0x28] sm:$0xff]
        %v6641 = vld [vmem:[#allocation7 + $0x30] sm:$0xff]
        %v6642 = vld [vmem:[#allocation7 + $0x38] sm:$0xff]
        %v6643 = vld [vmem:[#allocation7 + $0x40] sm:$0xff]
        %v6644 = vld [vmem:[#allocation7 + $0x48] sm:$0x3f]
        %v6645 = vadd.f32 %v6635, %v6587
        %v6646 = vadd.f32 %v6636, %v6592
        %v6647 = vadd.f32 %v6637, %v6597
        %v6648 = vadd.f32 %v6638, %v6602
        %v6649 = vadd.f32 %v6639, %v6607
        %v6650 = vadd.f32 %v6640, %v6612
        %v6651 = vadd.f32 %v6641, %v6617
        %v6652 = vadd.f32 %v6642, %v6622
        %v6653 = vadd.f32 %v6643, %v6627
        %v6654 = vadd.f32 %v6644, %v6632
        %6655 = vst.msk [vmem:[#allocation7] sm:$0xff] %vm412, %v6645
        %6656 = vst.msk [vmem:[#allocation7 + $0x8] sm:$0xff] %vm412, %v6646
        %6657 = vst.msk [vmem:[#allocation7 + $0x10] sm:$0xff] %vm412, %v6647
        %6658 = vst.msk [vmem:[#allocation7 + $0x18] sm:$0xff] %vm412, %v6648
        %6659 = vst.msk [vmem:[#allocation7 + $0x20] sm:$0xff] %vm412, %v6649
        %6660 = vst.msk [vmem:[#allocation7 + $0x28] sm:$0xff] %vm412, %v6650
        %6661 = vst.msk [vmem:[#allocation7 + $0x30] sm:$0xff] %vm412, %v6651
        %6662 = vst.msk [vmem:[#allocation7 + $0x38] sm:$0xff] %vm412, %v6652
        %6663 = vst.msk [vmem:[#allocation7 + $0x40] sm:$0xff] %vm412, %v6653
        %6664 = vst.msk [vmem:[#allocation7 + $0x48] sm:$0x3f] %vm856, %v6654
        %v6665 = vld [vmem:[#allocation3 + $0x16] sm:$0xff]
        %v6666 = vld [vmem:[#allocation3 + $0x1e] sm:$0xff]
        %v6667 = vld [vmem:[#allocation3 + $0x26] sm:$0xff]
        %v6668 = vld [vmem:[#allocation3 + $0x2e] sm:$0xff]
        %v6669 = vld [vmem:[#allocation3 + $0x36] sm:$0xff]
        %v6670 = vld [vmem:[#allocation3 + $0x3e] sm:$0xff]
        %v6671 = vld [vmem:[#allocation3 + $0x46] sm:$0xff]
        %v6672 = vld [vmem:[#allocation3 + $0x4e] sm:$0xff]
        %v6673 = vld [vmem:[#allocation3 + $0x56] sm:$0xff]
        %v6674 = vld [vmem:[#allocation3 + $0x5e] sm:$0x3f]
        %s6675 = scalar_lea.vmem %s2, 256
        %v6676 = vld [vmem:[%s6675] sm:$0xff]
        %v6677 = vld [vmem:[%s6675 + $0x8] sm:$0xff]
        %v6678 = vld [vmem:[%s6675 + $0x10] sm:$0xff]
        %v6679 = vld [vmem:[%s6675 + $0x18] sm:$0xff]
        %v6681 = vsel %vm412, %v6665, 0
        %v6684 = vsel %vm412, %v6666, 0
        %v6687 = vsel %vm412, %v6667, 0
        %v6690 = vsel %vm412, %v6668, 0
        %v6693 = vsel %vm412, %v6669, 0
        %v6696 = vsel %vm412, %v6670, 0
        %v6699 = vsel %vm412, %v6671, 0
        %v6702 = vsel %vm412, %v6672, 0
        %v6705 = vsel %vm412, %v6673, 0
        %v6708 = vsel %vm412, %v6674, 0
        %6710 = vmatprep.subr.mxu0 0.0
        %6711 = vmatpush1.msra.mxu0 0.0
        %6712 = vmatprep.subr.mxu0 0.0
        %6713 = vmatpush1.msra.mxu0 0.0
        %6714 = vmatprep.subr.mxu0 0.0
        %6715 = vmatpush1.msra.mxu0 0.0
        %6716 = vmatprep.subr.mxu0 0.0
        %6717 = vmatpush1.msra.mxu0 0.0
        %6718 = vmatprep.subr.mxu0 0.0
        %6719 = vmatpush1.msra.mxu0 0.0
        %6720 = vmatprep.subr.mxu0 0.0
        %6721 = vmatpush1.msra.mxu0 0.0
        %6722 = vmatprep.subr.mxu0 0.0
        %6723 = vmatpush1.msra.mxu0 0.0
        %6724 = vmatprep.subr.mxu0 0.0
        %6725 = vmatpush1.msra.mxu0 0.0
        %6726 = vmatprep.subr.mxu0 0.0
        %6727 = vmatpush1.msra.mxu0 0.0
        %6728 = vmatprep.subr.mxu0 0.0
        %6729 = vmatpush1.msra.mxu0 0.0
        %6730 = vmatprep.subr.mxu0 0.0
        %6731 = vmatpush1.msra.mxu0 0.0
        %6732 = vmatprep.subr.mxu0 0.0
        %6733 = vmatpush1.msra.mxu0 0.0
        %6734 = vmatprep.subr.mxu0 0.0
        %6735 = vmatpush1.msra.mxu0 %v6679
        %6736 = vmatprep.subr.mxu0 0.0
        %6737 = vmatpush1.msra.mxu0 %v6678
        %6738 = vmatprep.subr.mxu0 0.0
        %6739 = vmatpush1.msra.mxu0 %v6677
        %6740 = vmatprep.subr.mxu0 0.0
        %6741 = vmatpush1.msra.mxu0 %v6676
        %6742 = vmatprep.subr.mxu0 0.0
        %6743 = vmatpush2.msra.mxu0 0.0
        %6744 = vmatprep.subr.mxu0 0.0
        %6745 = vmatpush2.msra.mxu0 0.0
        %6746 = vmatprep.subr.mxu0 0.0
        %6747 = vmatpush2.msra.mxu0 0.0
        %6748 = vmatprep.subr.mxu0 0.0
        %6749 = vmatpush2.msra.mxu0 0.0
        %6750 = vmatprep.subr.mxu0 0.0
        %6751 = vmatpush2.msra.mxu0 0.0
        %6752 = vmatprep.subr.mxu0 0.0
        %6753 = vmatpush2.msra.mxu0 0.0
        %6754 = vmatprep.subr.mxu0 0.0
        %6755 = vmatpush2.msra.mxu0 0.0
        %6756 = vmatprep.subr.mxu0 0.0
        %6757 = vmatpush2.msra.mxu0 0.0
        %6758 = vmatprep.subr.mxu0 0.0
        %6759 = vmatpush2.msra.mxu0 0.0
        %6760 = vmatprep.subr.mxu0 0.0
        %6761 = vmatpush2.msra.mxu0 0.0
        %6762 = vmatprep.subr.mxu0 0.0
        %6763 = vmatpush2.msra.mxu0 0.0
        %6764 = vmatprep.subr.mxu0 0.0
        %6765 = vmatpush2.msra.mxu0 0.0
        %6766 = vmatprep.subr.mxu0 0.0
        %6767 = vmatpush2.msra.mxu0 0.0
        %6768 = vmatprep.subr.mxu0 0.0
        %6769 = vmatpush2.msra.mxu0 0.0
        %6770 = vmatprep.subr.mxu0 0.0
        %6771 = vmatpush2.msra.mxu0 0.0
        %6772 = vmatprep.subr.mxu0 0.0
        %6773 = vmatpush2.msra.mxu0 0.0
        %6774 = vmatprep.mubr.f32.mxu0 0.0
        %6775 = vmatmul.mubr.f32.gmra.mxu0 %v6681
        %v6776 = vpop.f32.mrf.mxu0
        %v6777 = vadd.f32 0.0, %v6776
        %v6778 = vpop.f32.mrf.mxu0
        %6779 = vmatprep.mubr.f32.mxu0 0.0
        %6780 = vmatmul.mubr.f32.gmra.mxu0 %v6684
        %v6781 = vpop.f32.mrf.mxu0
        %v6782 = vadd.f32 0.0, %v6781
        %v6783 = vpop.f32.mrf.mxu0
        %6784 = vmatprep.mubr.f32.mxu0 0.0
        %6785 = vmatmul.mubr.f32.gmra.mxu0 %v6687
        %v6786 = vpop.f32.mrf.mxu0
        %v6787 = vadd.f32 0.0, %v6786
        %v6788 = vpop.f32.mrf.mxu0
        %6789 = vmatprep.mubr.f32.mxu0 0.0
        %6790 = vmatmul.mubr.f32.gmra.mxu0 %v6690
        %v6791 = vpop.f32.mrf.mxu0
        %v6792 = vadd.f32 0.0, %v6791
        %v6793 = vpop.f32.mrf.mxu0
        %6794 = vmatprep.mubr.f32.mxu0 0.0
        %6795 = vmatmul.mubr.f32.gmra.mxu0 %v6693
        %v6796 = vpop.f32.mrf.mxu0
        %v6797 = vadd.f32 0.0, %v6796
        %v6798 = vpop.f32.mrf.mxu0
        %6799 = vmatprep.mubr.f32.mxu0 0.0
        %6800 = vmatmul.mubr.f32.gmra.mxu0 %v6696
        %v6801 = vpop.f32.mrf.mxu0
        %v6802 = vadd.f32 0.0, %v6801
        %v6803 = vpop.f32.mrf.mxu0
        %6804 = vmatprep.mubr.f32.mxu0 0.0
        %6805 = vmatmul.mubr.f32.gmra.mxu0 %v6699
        %v6806 = vpop.f32.mrf.mxu0
        %v6807 = vadd.f32 0.0, %v6806
        %v6808 = vpop.f32.mrf.mxu0
        %6809 = vmatprep.mubr.f32.mxu0 0.0
        %6810 = vmatmul.mubr.f32.gmra.mxu0 %v6702
        %v6811 = vpop.f32.mrf.mxu0
        %v6812 = vadd.f32 0.0, %v6811
        %v6813 = vpop.f32.mrf.mxu0
        %6814 = vmatprep.mubr.f32.mxu0 0.0
        %6815 = vmatmul.mubr.f32.gmra.mxu0 %v6705
        %v6816 = vpop.f32.mrf.mxu0
        %v6817 = vadd.f32 0.0, %v6816
        %v6818 = vpop.f32.mrf.mxu0
        %6819 = vmatprep.mubr.f32.mxu0 0.0
        %6820 = vmatmul.mubr.f32.gmra.mxu0 %v6708
        %v6821 = vpop.f32.mrf.mxu0
        %v6822 = vadd.f32 0.0, %v6821
        %v6823 = vpop.f32.mrf.mxu0
        %6824 = vdwg.mxu0
        %v6825 = vld [vmem:[#allocation7] sm:$0xff]
        %v6826 = vld [vmem:[#allocation7 + $0x8] sm:$0xff]
        %v6827 = vld [vmem:[#allocation7 + $0x10] sm:$0xff]
        %v6828 = vld [vmem:[#allocation7 + $0x18] sm:$0xff]
        %v6829 = vld [vmem:[#allocation7 + $0x20] sm:$0xff]
        %v6830 = vld [vmem:[#allocation7 + $0x28] sm:$0xff]
        %v6831 = vld [vmem:[#allocation7 + $0x30] sm:$0xff]
        %v6832 = vld [vmem:[#allocation7 + $0x38] sm:$0xff]
        %v6833 = vld [vmem:[#allocation7 + $0x40] sm:$0xff]
        %v6834 = vld [vmem:[#allocation7 + $0x48] sm:$0x3f]
        %v6835 = vadd.f32 %v6825, %v6777
        %v6836 = vadd.f32 %v6826, %v6782
        %v6837 = vadd.f32 %v6827, %v6787
        %v6838 = vadd.f32 %v6828, %v6792
        %v6839 = vadd.f32 %v6829, %v6797
        %v6840 = vadd.f32 %v6830, %v6802
        %v6841 = vadd.f32 %v6831, %v6807
        %v6842 = vadd.f32 %v6832, %v6812
        %v6843 = vadd.f32 %v6833, %v6817
        %v6844 = vadd.f32 %v6834, %v6822
        %6845 = vst.msk [vmem:[#allocation7] sm:$0xff] %vm412, %v6835
        %6846 = vst.msk [vmem:[#allocation7 + $0x8] sm:$0xff] %vm412, %v6836
        %6847 = vst.msk [vmem:[#allocation7 + $0x10] sm:$0xff] %vm412, %v6837
        %6848 = vst.msk [vmem:[#allocation7 + $0x18] sm:$0xff] %vm412, %v6838
        %6849 = vst.msk [vmem:[#allocation7 + $0x20] sm:$0xff] %vm412, %v6839
        %6850 = vst.msk [vmem:[#allocation7 + $0x28] sm:$0xff] %vm412, %v6840
        %6851 = vst.msk [vmem:[#allocation7 + $0x30] sm:$0xff] %vm412, %v6841
        %6852 = vst.msk [vmem:[#allocation7 + $0x38] sm:$0xff] %vm412, %v6842
        %6853 = vst.msk [vmem:[#allocation7 + $0x40] sm:$0xff] %vm412, %v6843
        %6854 = vst.msk [vmem:[#allocation7 + $0x48] sm:$0x3f] %vm856, %v6844
        %v6855 = vld [vmem:[#allocation7] sm:$0xff]
        %v6856 = vld [vmem:[#allocation7 + $0x8] sm:$0xff]
        %v6857 = vld [vmem:[#allocation7 + $0x10] sm:$0xff]
        %v6858 = vld [vmem:[#allocation7 + $0x18] sm:$0xff]
        %v6859 = vld [vmem:[#allocation7 + $0x20] sm:$0xff]
        %v6860 = vld [vmem:[#allocation7 + $0x28] sm:$0xff]
        %v6861 = vld [vmem:[#allocation7 + $0x30] sm:$0xff]
        %v6862 = vld [vmem:[#allocation7 + $0x38] sm:$0xff]
        %v6863 = vld [vmem:[#allocation7 + $0x40] sm:$0xff]
        %v6864 = vld [vmem:[#allocation7 + $0x48] sm:$0x3f]
        %v6866 = vlaneseq
        %v6867 = vshrl.u32 %v6866, 7
        %v6868 = vsub.s32 0, %v6867
        %v6869 = vrot.slane %v400, %v6868
        %v6871 = vmul.f32 %v6855, %v6869
        %v6872 = vmul.f32 %v6856, %v6869
        %v6873 = vmul.f32 %v6857, %v6869
        %v6874 = vmul.f32 %v6858, %v6869
        %v6875 = vmul.f32 %v6859, %v6869
        %v6876 = vmul.f32 %v6860, %v6869
        %v6877 = vmul.f32 %v6861, %v6869
        %v6878 = vmul.f32 %v6862, %v6869
        %v6879 = vmul.f32 %v6863, %v6869
        %v6880 = vmul.f32 %v6864, %v6869
        %v6882 = vlaneseq
        %v6883 = vshrl.u32 %v6882, 7
        %v6884 = vsub.s32 0, %v6883
        %v6885 = vrot.slane %v407, %v6884
        %v6887 = vadd.f32 %v6871, %v6885
        %v6888 = vadd.f32 %v6872, %v6885
        %v6889 = vadd.f32 %v6873, %v6885
        %v6890 = vadd.f32 %v6874, %v6885
        %v6891 = vadd.f32 %v6875, %v6885
        %v6892 = vadd.f32 %v6876, %v6885
        %v6893 = vadd.f32 %v6877, %v6885
        %v6894 = vadd.f32 %v6878, %v6885
        %v6895 = vadd.f32 %v6879, %v6885
        %v6896 = vadd.f32 %v6880, %v6885
        %v6897 = vmax.f32 %v6887, 0.0
        %v6898 = vmax.f32 %v6888, 0.0
        %v6899 = vmax.f32 %v6889, 0.0
        %v6900 = vmax.f32 %v6890, 0.0
        %v6901 = vmax.f32 %v6891, 0.0
        %v6902 = vmax.f32 %v6892, 0.0
        %v6903 = vmax.f32 %v6893, 0.0
        %v6904 = vmax.f32 %v6894, 0.0
        %v6905 = vmax.f32 %v6895, 0.0
        %v6906 = vmax.f32 %v6896, 0.0
        %6907 = vst.msk [vmem:[#allocation7] sm:$0xff] %vm412, %v6897
        %6908 = vst.msk [vmem:[#allocation7 + $0x8] sm:$0xff] %vm412, %v6898
        %6909 = vst.msk [vmem:[#allocation7 + $0x10] sm:$0xff] %vm412, %v6899
        %6910 = vst.msk [vmem:[#allocation7 + $0x18] sm:$0xff] %vm412, %v6900
        %6911 = vst.msk [vmem:[#allocation7 + $0x20] sm:$0xff] %vm412, %v6901
        %6912 = vst.msk [vmem:[#allocation7 + $0x28] sm:$0xff] %vm412, %v6902
        %6913 = vst.msk [vmem:[#allocation7 + $0x30] sm:$0xff] %vm412, %v6903
        %6914 = vst.msk [vmem:[#allocation7 + $0x38] sm:$0xff] %vm412, %v6904
        %6915 = vst.msk [vmem:[#allocation7 + $0x40] sm:$0xff] %vm412, %v6905
        %6916 = vst.msk [vmem:[#allocation7 + $0x48] sm:$0x3f] %vm856, %v6906
        %v6917 = vld [vmem:[#allocation7] ss:$2 sm:$0xf]
        %s6918 = scalar_lea.vmem [#allocation7], 1
        %v6919 = vld [vmem:[%s6918] ss:$2 sm:$0xf]
        %v6920 = vmax.f32 %v6917, %v6919
        %s6921 = scalar_lea.vmem [#allocation7], 10
        %v6922 = vld [vmem:[%s6921] ss:$2 sm:$0xf]
        %s6923 = scalar_lea.vmem [#allocation7], 11
        %v6924 = vld [vmem:[%s6923] ss:$2 sm:$0xf]
        %v6925 = vmax.f32 %v6922, %v6924
        %v6926 = vmax.f32 %v6920, %v6925
        %6927 = vst.msk [vmem:[#allocation4 + $0x7] sm:$0xf] %vm425, %v6926
        %s6928 = scalar_lea.vmem [#allocation7], 20
        %v6929 = vld [vmem:[%s6928] ss:$2 sm:$0xf]
        %s6930 = scalar_lea.vmem [#allocation7], 21
        %v6931 = vld [vmem:[%s6930] ss:$2 sm:$0xf]
        %v6932 = vmax.f32 %v6929, %v6931
        %s6933 = scalar_lea.vmem [#allocation7], 30
        %v6934 = vld [vmem:[%s6933] ss:$2 sm:$0xf]
        %s6935 = scalar_lea.vmem [#allocation7], 31
        %v6936 = vld [vmem:[%s6935] ss:$2 sm:$0xf]
        %v6937 = vmax.f32 %v6934, %v6936
        %v6938 = vmax.f32 %v6932, %v6937
        %6939 = vst.msk [vmem:[#allocation4 + $0xd] sm:$0xf] %vm425, %v6938
        %s6940 = scalar_lea.vmem [#allocation7], 40
        %v6941 = vld [vmem:[%s6940] ss:$2 sm:$0xf]
        %s6942 = scalar_lea.vmem [#allocation7], 41
        %v6943 = vld [vmem:[%s6942] ss:$2 sm:$0xf]
        %v6944 = vmax.f32 %v6941, %v6943
        %s6945 = scalar_lea.vmem [#allocation7], 50
        %v6946 = vld [vmem:[%s6945] ss:$2 sm:$0xf]
        %s6947 = scalar_lea.vmem [#allocation7], 51
        %v6948 = vld [vmem:[%s6947] ss:$2 sm:$0xf]
        %v6949 = vmax.f32 %v6946, %v6948
        %v6950 = vmax.f32 %v6944, %v6949
        %6951 = vst.msk [vmem:[#allocation4 + $0x13] sm:$0xf] %vm425, %v6950
        %s6952 = scalar_lea.vmem [#allocation7], 60
        %v6953 = vld [vmem:[%s6952] ss:$2 sm:$0xf]
        %s6954 = scalar_lea.vmem [#allocation7], 61
        %v6955 = vld [vmem:[%s6954] ss:$2 sm:$0xf]
        %v6956 = vmax.f32 %v6953, %v6955
        %s6957 = scalar_lea.vmem [#allocation7], 70
        %v6958 = vld [vmem:[%s6957] ss:$2 sm:$0xf]
        %s6959 = scalar_lea.vmem [#allocation7], 71
        %v6960 = vld [vmem:[%s6959] ss:$2 sm:$0xf]
        %v6961 = vmax.f32 %v6958, %v6960
        %v6962 = vmax.f32 %v6956, %v6961
        %6963 = vst.msk [vmem:[#allocation4 + $0x19] sm:$0xf] %vm425, %v6962
        %6964 = vst.msk [vmem:[#allocation5] sm:$0xff] %vm412, 0.0
        %6965 = vst.msk [vmem:[#allocation5 + $0x8] sm:$0xff] %vm412, 0.0
        %v6966 = vld [vmem:[#allocation4] sm:$0xff]
        %v6967 = vld [vmem:[#allocation4 + $0x8] sm:$0xff]
        %v6968 = vld [vmem:[#allocation4 + $0x10] sm:$0x3f]
        %v6969 = vld [vmem:[%s3] sm:$0xff]
        %v6970 = vld [vmem:[%s3 + $0x8] sm:$0xff]
        %v6971 = vld [vmem:[%s3 + $0x10] sm:$0xff]
        %v6972 = vld [vmem:[%s3 + $0x18] sm:$0xff]
        %v6974 = vsel %vm412, %v6966, 0
        %v6977 = vsel %vm412, %v6967, 0
        %v6980 = vsel %vm412, %v6968, 0
        %6982 = vmatprep.subr.mxu0 0.0
        %6983 = vmatpush1.msra.mxu0 0.0
        %6984 = vmatprep.subr.mxu0 0.0
        %6985 = vmatpush1.msra.mxu0 0.0
        %6986 = vmatprep.subr.mxu0 0.0
        %6987 = vmatpush1.msra.mxu0 0.0
        %6988 = vmatprep.subr.mxu0 0.0
        %6989 = vmatpush1.msra.mxu0 0.0
        %6990 = vmatprep.subr.mxu0 0.0
        %6991 = vmatpush1.msra.mxu0 0.0
        %6992 = vmatprep.subr.mxu0 0.0
        %6993 = vmatpush1.msra.mxu0 0.0
        %6994 = vmatprep.subr.mxu0 0.0
        %6995 = vmatpush1.msra.mxu0 0.0
        %6996 = vmatprep.subr.mxu0 0.0
        %6997 = vmatpush1.msra.mxu0 0.0
        %6998 = vmatprep.subr.mxu0 0.0
        %6999 = vmatpush1.msra.mxu0 0.0
        %7000 = vmatprep.subr.mxu0 0.0
        %7001 = vmatpush1.msra.mxu0 0.0
        %7002 = vmatprep.subr.mxu0 0.0
        %7003 = vmatpush1.msra.mxu0 0.0
        %7004 = vmatprep.subr.mxu0 0.0
        %7005 = vmatpush1.msra.mxu0 0.0
        %7006 = vmatprep.subr.mxu0 0.0
        %7007 = vmatpush1.msra.mxu0 %v6972
        %7008 = vmatprep.subr.mxu0 0.0
        %7009 = vmatpush1.msra.mxu0 %v6971
        %7010 = vmatprep.subr.mxu0 0.0
        %7011 = vmatpush1.msra.mxu0 %v6970
        %7012 = vmatprep.subr.mxu0 0.0
        %7013 = vmatpush1.msra.mxu0 %v6969
        %7014 = vmatprep.subr.mxu0 0.0
        %7015 = vmatpush2.msra.mxu0 0.0
        %7016 = vmatprep.subr.mxu0 0.0
        %7017 = vmatpush2.msra.mxu0 0.0
        %7018 = vmatprep.subr.mxu0 0.0
        %7019 = vmatpush2.msra.mxu0 0.0
        %7020 = vmatprep.subr.mxu0 0.0
        %7021 = vmatpush2.msra.mxu0 0.0
        %7022 = vmatprep.subr.mxu0 0.0
        %7023 = vmatpush2.msra.mxu0 0.0
        %7024 = vmatprep.subr.mxu0 0.0
        %7025 = vmatpush2.msra.mxu0 0.0
        %7026 = vmatprep.subr.mxu0 0.0
        %7027 = vmatpush2.msra.mxu0 0.0
        %7028 = vmatprep.subr.mxu0 0.0
        %7029 = vmatpush2.msra.mxu0 0.0
        %7030 = vmatprep.subr.mxu0 0.0
        %7031 = vmatpush2.msra.mxu0 0.0
        %7032 = vmatprep.subr.mxu0 0.0
        %7033 = vmatpush2.msra.mxu0 0.0
        %7034 = vmatprep.subr.mxu0 0.0
        %7035 = vmatpush2.msra.mxu0 0.0
        %7036 = vmatprep.subr.mxu0 0.0
        %7037 = vmatpush2.msra.mxu0 0.0
        %7038 = vmatprep.subr.mxu0 0.0
        %7039 = vmatpush2.msra.mxu0 0.0
        %7040 = vmatprep.subr.mxu0 0.0
        %7041 = vmatpush2.msra.mxu0 0.0
        %7042 = vmatprep.subr.mxu0 0.0
        %7043 = vmatpush2.msra.mxu0 0.0
        %7044 = vmatprep.subr.mxu0 0.0
        %7045 = vmatpush2.msra.mxu0 0.0
        %7046 = vmatprep.mubr.f32.mxu0 0.0
        %7047 = vmatmul.mubr.f32.gmra.mxu0 %v6974
        %v7048 = vpop.f32.mrf.mxu0
        %v7049 = vadd.f32 0.0, %v7048
        %v7050 = vpop.f32.mrf.mxu0
        %7051 = vmatprep.mubr.f32.mxu0 0.0
        %7052 = vmatmul.mubr.f32.gmra.mxu0 %v6977
        %v7053 = vpop.f32.mrf.mxu0
        %v7054 = vadd.f32 0.0, %v7053
        %v7055 = vpop.f32.mrf.mxu0
        %7056 = vmatprep.mubr.f32.mxu0 0.0
        %7057 = vmatmul.mubr.f32.gmra.mxu0 %v6980
        %v7058 = vpop.f32.mrf.mxu0
        %v7059 = vadd.f32 0.0, %v7058
        %v7060 = vpop.f32.mrf.mxu0
        %7061 = vdwg.mxu0
        %7062 = vst.msk [vmem:[#allocation8] sm:$0xff] %vm412, %v7049
        %7063 = vst.msk [vmem:[#allocation8 + $0x8] sm:$0xff] %vm412, %v7054
        %7064 = vst.msk [vmem:[#allocation8 + $0x10] sm:$0x3f] %vm856, %v7059
        %v7065 = vld [vmem:[#allocation4 + $0x1] sm:$0xff]
        %v7066 = vld [vmem:[#allocation4 + $0x9] sm:$0xff]
        %v7067 = vld [vmem:[#allocation4 + $0x11] sm:$0x3f]
        %s7068 = scalar_lea.vmem %s3, 32
        %v7069 = vld [vmem:[%s7068] sm:$0xff]
        %v7070 = vld [vmem:[%s7068 + $0x8] sm:$0xff]
        %v7071 = vld [vmem:[%s7068 + $0x10] sm:$0xff]
        %v7072 = vld [vmem:[%s7068 + $0x18] sm:$0xff]
        %v7074 = vsel %vm412, %v7065, 0
        %v7077 = vsel %vm412, %v7066, 0
        %v7080 = vsel %vm412, %v7067, 0
        %7082 = vmatprep.subr.mxu0 0.0
        %7083 = vmatpush1.msra.mxu0 0.0
        %7084 = vmatprep.subr.mxu0 0.0
        %7085 = vmatpush1.msra.mxu0 0.0
        %7086 = vmatprep.subr.mxu0 0.0
        %7087 = vmatpush1.msra.mxu0 0.0
        %7088 = vmatprep.subr.mxu0 0.0
        %7089 = vmatpush1.msra.mxu0 0.0
        %7090 = vmatprep.subr.mxu0 0.0
        %7091 = vmatpush1.msra.mxu0 0.0
        %7092 = vmatprep.subr.mxu0 0.0
        %7093 = vmatpush1.msra.mxu0 0.0
        %7094 = vmatprep.subr.mxu0 0.0
        %7095 = vmatpush1.msra.mxu0 0.0
        %7096 = vmatprep.subr.mxu0 0.0
        %7097 = vmatpush1.msra.mxu0 0.0
        %7098 = vmatprep.subr.mxu0 0.0
        %7099 = vmatpush1.msra.mxu0 0.0
        %7100 = vmatprep.subr.mxu0 0.0
        %7101 = vmatpush1.msra.mxu0 0.0
        %7102 = vmatprep.subr.mxu0 0.0
        %7103 = vmatpush1.msra.mxu0 0.0
        %7104 = vmatprep.subr.mxu0 0.0
        %7105 = vmatpush1.msra.mxu0 0.0
        %7106 = vmatprep.subr.mxu0 0.0
        %7107 = vmatpush1.msra.mxu0 %v7072
        %7108 = vmatprep.subr.mxu0 0.0
        %7109 = vmatpush1.msra.mxu0 %v7071
        %7110 = vmatprep.subr.mxu0 0.0
        %7111 = vmatpush1.msra.mxu0 %v7070
        %7112 = vmatprep.subr.mxu0 0.0
        %7113 = vmatpush1.msra.mxu0 %v7069
        %7114 = vmatprep.subr.mxu0 0.0
        %7115 = vmatpush2.msra.mxu0 0.0
        %7116 = vmatprep.subr.mxu0 0.0
        %7117 = vmatpush2.msra.mxu0 0.0
        %7118 = vmatprep.subr.mxu0 0.0
        %7119 = vmatpush2.msra.mxu0 0.0
        %7120 = vmatprep.subr.mxu0 0.0
        %7121 = vmatpush2.msra.mxu0 0.0
        %7122 = vmatprep.subr.mxu0 0.0
        %7123 = vmatpush2.msra.mxu0 0.0
        %7124 = vmatprep.subr.mxu0 0.0
        %7125 = vmatpush2.msra.mxu0 0.0
        %7126 = vmatprep.subr.mxu0 0.0
        %7127 = vmatpush2.msra.mxu0 0.0
        %7128 = vmatprep.subr.mxu0 0.0
        %7129 = vmatpush2.msra.mxu0 0.0
        %7130 = vmatprep.subr.mxu0 0.0
        %7131 = vmatpush2.msra.mxu0 0.0
        %7132 = vmatprep.subr.mxu0 0.0
        %7133 = vmatpush2.msra.mxu0 0.0
        %7134 = vmatprep.subr.mxu0 0.0
        %7135 = vmatpush2.msra.mxu0 0.0
        %7136 = vmatprep.subr.mxu0 0.0
        %7137 = vmatpush2.msra.mxu0 0.0
        %7138 = vmatprep.subr.mxu0 0.0
        %7139 = vmatpush2.msra.mxu0 0.0
        %7140 = vmatprep.subr.mxu0 0.0
        %7141 = vmatpush2.msra.mxu0 0.0
        %7142 = vmatprep.subr.mxu0 0.0
        %7143 = vmatpush2.msra.mxu0 0.0
        %7144 = vmatprep.subr.mxu0 0.0
        %7145 = vmatpush2.msra.mxu0 0.0
        %7146 = vmatprep.mubr.f32.mxu0 0.0
        %7147 = vmatmul.mubr.f32.gmra.mxu0 %v7074
        %v7148 = vpop.f32.mrf.mxu0
        %v7149 = vadd.f32 0.0, %v7148
        %v7150 = vpop.f32.mrf.mxu0
        %7151 = vmatprep.mubr.f32.mxu0 0.0
        %7152 = vmatmul.mubr.f32.gmra.mxu0 %v7077
        %v7153 = vpop.f32.mrf.mxu0
        %v7154 = vadd.f32 0.0, %v7153
        %v7155 = vpop.f32.mrf.mxu0
        %7156 = vmatprep.mubr.f32.mxu0 0.0
        %7157 = vmatmul.mubr.f32.gmra.mxu0 %v7080
        %v7158 = vpop.f32.mrf.mxu0
        %v7159 = vadd.f32 0.0, %v7158
        %v7160 = vpop.f32.mrf.mxu0
        %7161 = vdwg.mxu0
        %v7162 = vld [vmem:[#allocation8] sm:$0xff]
        %v7163 = vld [vmem:[#allocation8 + $0x8] sm:$0xff]
        %v7164 = vld [vmem:[#allocation8 + $0x10] sm:$0x3f]
        %v7165 = vadd.f32 %v7162, %v7149
        %v7166 = vadd.f32 %v7163, %v7154
        %v7167 = vadd.f32 %v7164, %v7159
        %7168 = vst.msk [vmem:[#allocation8] sm:$0xff] %vm412, %v7165
        %7169 = vst.msk [vmem:[#allocation8 + $0x8] sm:$0xff] %vm412, %v7166
        %7170 = vst.msk [vmem:[#allocation8 + $0x10] sm:$0x3f] %vm856, %v7167
        %v7171 = vld [vmem:[#allocation4 + $0x2] sm:$0xff]
        %v7172 = vld [vmem:[#allocation4 + $0xa] sm:$0xff]
        %v7173 = vld [vmem:[#allocation4 + $0x12] sm:$0x3f]
        %s7174 = scalar_lea.vmem %s3, 64
        %v7175 = vld [vmem:[%s7174] sm:$0xff]
        %v7176 = vld [vmem:[%s7174 + $0x8] sm:$0xff]
        %v7177 = vld [vmem:[%s7174 + $0x10] sm:$0xff]
        %v7178 = vld [vmem:[%s7174 + $0x18] sm:$0xff]
        %v7180 = vsel %vm412, %v7171, 0
        %v7183 = vsel %vm412, %v7172, 0
        %v7186 = vsel %vm412, %v7173, 0
        %7188 = vmatprep.subr.mxu0 0.0
        %7189 = vmatpush1.msra.mxu0 0.0
        %7190 = vmatprep.subr.mxu0 0.0
        %7191 = vmatpush1.msra.mxu0 0.0
        %7192 = vmatprep.subr.mxu0 0.0
        %7193 = vmatpush1.msra.mxu0 0.0
        %7194 = vmatprep.subr.mxu0 0.0
        %7195 = vmatpush1.msra.mxu0 0.0
        %7196 = vmatprep.subr.mxu0 0.0
        %7197 = vmatpush1.msra.mxu0 0.0
        %7198 = vmatprep.subr.mxu0 0.0
        %7199 = vmatpush1.msra.mxu0 0.0
        %7200 = vmatprep.subr.mxu0 0.0
        %7201 = vmatpush1.msra.mxu0 0.0
        %7202 = vmatprep.subr.mxu0 0.0
        %7203 = vmatpush1.msra.mxu0 0.0
        %7204 = vmatprep.subr.mxu0 0.0
        %7205 = vmatpush1.msra.mxu0 0.0
        %7206 = vmatprep.subr.mxu0 0.0
        %7207 = vmatpush1.msra.mxu0 0.0
        %7208 = vmatprep.subr.mxu0 0.0
        %7209 = vmatpush1.msra.mxu0 0.0
        %7210 = vmatprep.subr.mxu0 0.0
        %7211 = vmatpush1.msra.mxu0 0.0
        %7212 = vmatprep.subr.mxu0 0.0
        %7213 = vmatpush1.msra.mxu0 %v7178
        %7214 = vmatprep.subr.mxu0 0.0
        %7215 = vmatpush1.msra.mxu0 %v7177
        %7216 = vmatprep.subr.mxu0 0.0
        %7217 = vmatpush1.msra.mxu0 %v7176
        %7218 = vmatprep.subr.mxu0 0.0
        %7219 = vmatpush1.msra.mxu0 %v7175
        %7220 = vmatprep.subr.mxu0 0.0
        %7221 = vmatpush2.msra.mxu0 0.0
        %7222 = vmatprep.subr.mxu0 0.0
        %7223 = vmatpush2.msra.mxu0 0.0
        %7224 = vmatprep.subr.mxu0 0.0
        %7225 = vmatpush2.msra.mxu0 0.0
        %7226 = vmatprep.subr.mxu0 0.0
        %7227 = vmatpush2.msra.mxu0 0.0
        %7228 = vmatprep.subr.mxu0 0.0
        %7229 = vmatpush2.msra.mxu0 0.0
        %7230 = vmatprep.subr.mxu0 0.0
        %7231 = vmatpush2.msra.mxu0 0.0
        %7232 = vmatprep.subr.mxu0 0.0
        %7233 = vmatpush2.msra.mxu0 0.0
        %7234 = vmatprep.subr.mxu0 0.0
        %7235 = vmatpush2.msra.mxu0 0.0
        %7236 = vmatprep.subr.mxu0 0.0
        %7237 = vmatpush2.msra.mxu0 0.0
        %7238 = vmatprep.subr.mxu0 0.0
        %7239 = vmatpush2.msra.mxu0 0.0
        %7240 = vmatprep.subr.mxu0 0.0
        %7241 = vmatpush2.msra.mxu0 0.0
        %7242 = vmatprep.subr.mxu0 0.0
        %7243 = vmatpush2.msra.mxu0 0.0
        %7244 = vmatprep.subr.mxu0 0.0
        %7245 = vmatpush2.msra.mxu0 0.0
        %7246 = vmatprep.subr.mxu0 0.0
        %7247 = vmatpush2.msra.mxu0 0.0
        %7248 = vmatprep.subr.mxu0 0.0
        %7249 = vmatpush2.msra.mxu0 0.0
        %7250 = vmatprep.subr.mxu0 0.0
        %7251 = vmatpush2.msra.mxu0 0.0
        %7252 = vmatprep.mubr.f32.mxu0 0.0
        %7253 = vmatmul.mubr.f32.gmra.mxu0 %v7180
        %v7254 = vpop.f32.mrf.mxu0
        %v7255 = vadd.f32 0.0, %v7254
        %v7256 = vpop.f32.mrf.mxu0
        %7257 = vmatprep.mubr.f32.mxu0 0.0
        %7258 = vmatmul.mubr.f32.gmra.mxu0 %v7183
        %v7259 = vpop.f32.mrf.mxu0
        %v7260 = vadd.f32 0.0, %v7259
        %v7261 = vpop.f32.mrf.mxu0
        %7262 = vmatprep.mubr.f32.mxu0 0.0
        %7263 = vmatmul.mubr.f32.gmra.mxu0 %v7186
        %v7264 = vpop.f32.mrf.mxu0
        %v7265 = vadd.f32 0.0, %v7264
        %v7266 = vpop.f32.mrf.mxu0
        %7267 = vdwg.mxu0
        %v7268 = vld [vmem:[#allocation8] sm:$0xff]
        %v7269 = vld [vmem:[#allocation8 + $0x8] sm:$0xff]
        %v7270 = vld [vmem:[#allocation8 + $0x10] sm:$0x3f]
        %v7271 = vadd.f32 %v7268, %v7255
        %v7272 = vadd.f32 %v7269, %v7260
        %v7273 = vadd.f32 %v7270, %v7265
        %7274 = vst.msk [vmem:[#allocation8] sm:$0xff] %vm412, %v7271
        %7275 = vst.msk [vmem:[#allocation8 + $0x8] sm:$0xff] %vm412, %v7272
        %7276 = vst.msk [vmem:[#allocation8 + $0x10] sm:$0x3f] %vm856, %v7273
        %v7277 = vld [vmem:[#allocation4 + $0x6] sm:$0xff]
        %v7278 = vld [vmem:[#allocation4 + $0xe] sm:$0xff]
        %v7279 = vld [vmem:[#allocation4 + $0x16] sm:$0x3f]
        %s7280 = scalar_lea.vmem %s3, 96
        %v7281 = vld [vmem:[%s7280] sm:$0xff]
        %v7282 = vld [vmem:[%s7280 + $0x8] sm:$0xff]
        %v7283 = vld [vmem:[%s7280 + $0x10] sm:$0xff]
        %v7284 = vld [vmem:[%s7280 + $0x18] sm:$0xff]
        %v7286 = vsel %vm412, %v7277, 0
        %v7289 = vsel %vm412, %v7278, 0
        %v7292 = vsel %vm412, %v7279, 0
        %7294 = vmatprep.subr.mxu0 0.0
        %7295 = vmatpush1.msra.mxu0 0.0
        %7296 = vmatprep.subr.mxu0 0.0
        %7297 = vmatpush1.msra.mxu0 0.0
        %7298 = vmatprep.subr.mxu0 0.0
        %7299 = vmatpush1.msra.mxu0 0.0
        %7300 = vmatprep.subr.mxu0 0.0
        %7301 = vmatpush1.msra.mxu0 0.0
        %7302 = vmatprep.subr.mxu0 0.0
        %7303 = vmatpush1.msra.mxu0 0.0
        %7304 = vmatprep.subr.mxu0 0.0
        %7305 = vmatpush1.msra.mxu0 0.0
        %7306 = vmatprep.subr.mxu0 0.0
        %7307 = vmatpush1.msra.mxu0 0.0
        %7308 = vmatprep.subr.mxu0 0.0
        %7309 = vmatpush1.msra.mxu0 0.0
        %7310 = vmatprep.subr.mxu0 0.0
        %7311 = vmatpush1.msra.mxu0 0.0
        %7312 = vmatprep.subr.mxu0 0.0
        %7313 = vmatpush1.msra.mxu0 0.0
        %7314 = vmatprep.subr.mxu0 0.0
        %7315 = vmatpush1.msra.mxu0 0.0
        %7316 = vmatprep.subr.mxu0 0.0
        %7317 = vmatpush1.msra.mxu0 0.0
        %7318 = vmatprep.subr.mxu0 0.0
        %7319 = vmatpush1.msra.mxu0 %v7284
        %7320 = vmatprep.subr.mxu0 0.0
        %7321 = vmatpush1.msra.mxu0 %v7283
        %7322 = vmatprep.subr.mxu0 0.0
        %7323 = vmatpush1.msra.mxu0 %v7282
        %7324 = vmatprep.subr.mxu0 0.0
        %7325 = vmatpush1.msra.mxu0 %v7281
        %7326 = vmatprep.subr.mxu0 0.0
        %7327 = vmatpush2.msra.mxu0 0.0
        %7328 = vmatprep.subr.mxu0 0.0
        %7329 = vmatpush2.msra.mxu0 0.0
        %7330 = vmatprep.subr.mxu0 0.0
        %7331 = vmatpush2.msra.mxu0 0.0
        %7332 = vmatprep.subr.mxu0 0.0
        %7333 = vmatpush2.msra.mxu0 0.0
        %7334 = vmatprep.subr.mxu0 0.0
        %7335 = vmatpush2.msra.mxu0 0.0
        %7336 = vmatprep.subr.mxu0 0.0
        %7337 = vmatpush2.msra.mxu0 0.0
        %7338 = vmatprep.subr.mxu0 0.0
        %7339 = vmatpush2.msra.mxu0 0.0
        %7340 = vmatprep.subr.mxu0 0.0
        %7341 = vmatpush2.msra.mxu0 0.0
        %7342 = vmatprep.subr.mxu0 0.0
        %7343 = vmatpush2.msra.mxu0 0.0
        %7344 = vmatprep.subr.mxu0 0.0
        %7345 = vmatpush2.msra.mxu0 0.0
        %7346 = vmatprep.subr.mxu0 0.0
        %7347 = vmatpush2.msra.mxu0 0.0
        %7348 = vmatprep.subr.mxu0 0.0
        %7349 = vmatpush2.msra.mxu0 0.0
        %7350 = vmatprep.subr.mxu0 0.0
        %7351 = vmatpush2.msra.mxu0 0.0
        %7352 = vmatprep.subr.mxu0 0.0
        %7353 = vmatpush2.msra.mxu0 0.0
        %7354 = vmatprep.subr.mxu0 0.0
        %7355 = vmatpush2.msra.mxu0 0.0
        %7356 = vmatprep.subr.mxu0 0.0
        %7357 = vmatpush2.msra.mxu0 0.0
        %7358 = vmatprep.mubr.f32.mxu0 0.0
        %7359 = vmatmul.mubr.f32.gmra.mxu0 %v7286
        %v7360 = vpop.f32.mrf.mxu0
        %v7361 = vadd.f32 0.0, %v7360
        %v7362 = vpop.f32.mrf.mxu0
        %7363 = vmatprep.mubr.f32.mxu0 0.0
        %7364 = vmatmul.mubr.f32.gmra.mxu0 %v7289
        %v7365 = vpop.f32.mrf.mxu0
        %v7366 = vadd.f32 0.0, %v7365
        %v7367 = vpop.f32.mrf.mxu0
        %7368 = vmatprep.mubr.f32.mxu0 0.0
        %7369 = vmatmul.mubr.f32.gmra.mxu0 %v7292
        %v7370 = vpop.f32.mrf.mxu0
        %v7371 = vadd.f32 0.0, %v7370
        %v7372 = vpop.f32.mrf.mxu0
        %7373 = vdwg.mxu0
        %v7374 = vld [vmem:[#allocation8] sm:$0xff]
        %v7375 = vld [vmem:[#allocation8 + $0x8] sm:$0xff]
        %v7376 = vld [vmem:[#allocation8 + $0x10] sm:$0x3f]
        %v7377 = vadd.f32 %v7374, %v7361
        %v7378 = vadd.f32 %v7375, %v7366
        %v7379 = vadd.f32 %v7376, %v7371
        %7380 = vst.msk [vmem:[#allocation8] sm:$0xff] %vm412, %v7377
        %7381 = vst.msk [vmem:[#allocation8 + $0x8] sm:$0xff] %vm412, %v7378
        %7382 = vst.msk [vmem:[#allocation8 + $0x10] sm:$0x3f] %vm856, %v7379
        %v7383 = vld [vmem:[#allocation4 + $0x7] sm:$0xff]
        %v7384 = vld [vmem:[#allocation4 + $0xf] sm:$0xff]
        %v7385 = vld [vmem:[#allocation4 + $0x17] sm:$0x3f]
        %s7386 = scalar_lea.vmem %s3, 128
        %v7387 = vld [vmem:[%s7386] sm:$0xff]
        %v7388 = vld [vmem:[%s7386 + $0x8] sm:$0xff]
        %v7389 = vld [vmem:[%s7386 + $0x10] sm:$0xff]
        %v7390 = vld [vmem:[%s7386 + $0x18] sm:$0xff]
        %v7392 = vsel %vm412, %v7383, 0
        %v7395 = vsel %vm412, %v7384, 0
        %v7398 = vsel %vm412, %v7385, 0
        %7400 = vmatprep.subr.mxu0 0.0
        %7401 = vmatpush1.msra.mxu0 0.0
        %7402 = vmatprep.subr.mxu0 0.0
        %7403 = vmatpush1.msra.mxu0 0.0
        %7404 = vmatprep.subr.mxu0 0.0
        %7405 = vmatpush1.msra.mxu0 0.0
        %7406 = vmatprep.subr.mxu0 0.0
        %7407 = vmatpush1.msra.mxu0 0.0
        %7408 = vmatprep.subr.mxu0 0.0
        %7409 = vmatpush1.msra.mxu0 0.0
        %7410 = vmatprep.subr.mxu0 0.0
        %7411 = vmatpush1.msra.mxu0 0.0
        %7412 = vmatprep.subr.mxu0 0.0
        %7413 = vmatpush1.msra.mxu0 0.0
        %7414 = vmatprep.subr.mxu0 0.0
        %7415 = vmatpush1.msra.mxu0 0.0
        %7416 = vmatprep.subr.mxu0 0.0
        %7417 = vmatpush1.msra.mxu0 0.0
        %7418 = vmatprep.subr.mxu0 0.0
        %7419 = vmatpush1.msra.mxu0 0.0
        %7420 = vmatprep.subr.mxu0 0.0
        %7421 = vmatpush1.msra.mxu0 0.0
        %7422 = vmatprep.subr.mxu0 0.0
        %7423 = vmatpush1.msra.mxu0 0.0
        %7424 = vmatprep.subr.mxu0 0.0
        %7425 = vmatpush1.msra.mxu0 %v7390
        %7426 = vmatprep.subr.mxu0 0.0
        %7427 = vmatpush1.msra.mxu0 %v7389
        %7428 = vmatprep.subr.mxu0 0.0
        %7429 = vmatpush1.msra.mxu0 %v7388
        %7430 = vmatprep.subr.mxu0 0.0
        %7431 = vmatpush1.msra.mxu0 %v7387
        %7432 = vmatprep.subr.mxu0 0.0
        %7433 = vmatpush2.msra.mxu0 0.0
        %7434 = vmatprep.subr.mxu0 0.0
        %7435 = vmatpush2.msra.mxu0 0.0
        %7436 = vmatprep.subr.mxu0 0.0
        %7437 = vmatpush2.msra.mxu0 0.0
        %7438 = vmatprep.subr.mxu0 0.0
        %7439 = vmatpush2.msra.mxu0 0.0
        %7440 = vmatprep.subr.mxu0 0.0
        %7441 = vmatpush2.msra.mxu0 0.0
        %7442 = vmatprep.subr.mxu0 0.0
        %7443 = vmatpush2.msra.mxu0 0.0
        %7444 = vmatprep.subr.mxu0 0.0
        %7445 = vmatpush2.msra.mxu0 0.0
        %7446 = vmatprep.subr.mxu0 0.0
        %7447 = vmatpush2.msra.mxu0 0.0
        %7448 = vmatprep.subr.mxu0 0.0
        %7449 = vmatpush2.msra.mxu0 0.0
        %7450 = vmatprep.subr.mxu0 0.0
        %7451 = vmatpush2.msra.mxu0 0.0
        %7452 = vmatprep.subr.mxu0 0.0
        %7453 = vmatpush2.msra.mxu0 0.0
        %7454 = vmatprep.subr.mxu0 0.0
        %7455 = vmatpush2.msra.mxu0 0.0
        %7456 = vmatprep.subr.mxu0 0.0
        %7457 = vmatpush2.msra.mxu0 0.0
        %7458 = vmatprep.subr.mxu0 0.0
        %7459 = vmatpush2.msra.mxu0 0.0
        %7460 = vmatprep.subr.mxu0 0.0
        %7461 = vmatpush2.msra.mxu0 0.0
        %7462 = vmatprep.subr.mxu0 0.0
        %7463 = vmatpush2.msra.mxu0 0.0
        %7464 = vmatprep.mubr.f32.mxu0 0.0
        %7465 = vmatmul.mubr.f32.gmra.mxu0 %v7392
        %v7466 = vpop.f32.mrf.mxu0
        %v7467 = vadd.f32 0.0, %v7466
        %v7468 = vpop.f32.mrf.mxu0
        %7469 = vmatprep.mubr.f32.mxu0 0.0
        %7470 = vmatmul.mubr.f32.gmra.mxu0 %v7395
        %v7471 = vpop.f32.mrf.mxu0
        %v7472 = vadd.f32 0.0, %v7471
        %v7473 = vpop.f32.mrf.mxu0
        %7474 = vmatprep.mubr.f32.mxu0 0.0
        %7475 = vmatmul.mubr.f32.gmra.mxu0 %v7398
        %v7476 = vpop.f32.mrf.mxu0
        %v7477 = vadd.f32 0.0, %v7476
        %v7478 = vpop.f32.mrf.mxu0
        %7479 = vdwg.mxu0
        %v7480 = vld [vmem:[#allocation8] sm:$0xff]
        %v7481 = vld [vmem:[#allocation8 + $0x8] sm:$0xff]
        %v7482 = vld [vmem:[#allocation8 + $0x10] sm:$0x3f]
        %v7483 = vadd.f32 %v7480, %v7467
        %v7484 = vadd.f32 %v7481, %v7472
        %v7485 = vadd.f32 %v7482, %v7477
        %7486 = vst.msk [vmem:[#allocation8] sm:$0xff] %vm412, %v7483
        %7487 = vst.msk [vmem:[#allocation8 + $0x8] sm:$0xff] %vm412, %v7484
        %7488 = vst.msk [vmem:[#allocation8 + $0x10] sm:$0x3f] %vm856, %v7485
        %v7489 = vld [vmem:[#allocation4 + $0x8] sm:$0xff]
        %v7490 = vld [vmem:[#allocation4 + $0x10] sm:$0xff]
        %v7491 = vld [vmem:[#allocation4 + $0x18] sm:$0x3f]
        %s7492 = scalar_lea.vmem %s3, 160
        %v7493 = vld [vmem:[%s7492] sm:$0xff]
        %v7494 = vld [vmem:[%s7492 + $0x8] sm:$0xff]
        %v7495 = vld [vmem:[%s7492 + $0x10] sm:$0xff]
        %v7496 = vld [vmem:[%s7492 + $0x18] sm:$0xff]
        %v7498 = vsel %vm412, %v7489, 0
        %v7501 = vsel %vm412, %v7490, 0
        %v7504 = vsel %vm412, %v7491, 0
        %7506 = vmatprep.subr.mxu0 0.0
        %7507 = vmatpush1.msra.mxu0 0.0
        %7508 = vmatprep.subr.mxu0 0.0
        %7509 = vmatpush1.msra.mxu0 0.0
        %7510 = vmatprep.subr.mxu0 0.0
        %7511 = vmatpush1.msra.mxu0 0.0
        %7512 = vmatprep.subr.mxu0 0.0
        %7513 = vmatpush1.msra.mxu0 0.0
        %7514 = vmatprep.subr.mxu0 0.0
        %7515 = vmatpush1.msra.mxu0 0.0
        %7516 = vmatprep.subr.mxu0 0.0
        %7517 = vmatpush1.msra.mxu0 0.0
        %7518 = vmatprep.subr.mxu0 0.0
        %7519 = vmatpush1.msra.mxu0 0.0
        %7520 = vmatprep.subr.mxu0 0.0
        %7521 = vmatpush1.msra.mxu0 0.0
        %7522 = vmatprep.subr.mxu0 0.0
        %7523 = vmatpush1.msra.mxu0 0.0
        %7524 = vmatprep.subr.mxu0 0.0
        %7525 = vmatpush1.msra.mxu0 0.0
        %7526 = vmatprep.subr.mxu0 0.0
        %7527 = vmatpush1.msra.mxu0 0.0
        %7528 = vmatprep.subr.mxu0 0.0
        %7529 = vmatpush1.msra.mxu0 0.0
        %7530 = vmatprep.subr.mxu0 0.0
        %7531 = vmatpush1.msra.mxu0 %v7496
        %7532 = vmatprep.subr.mxu0 0.0
        %7533 = vmatpush1.msra.mxu0 %v7495
        %7534 = vmatprep.subr.mxu0 0.0
        %7535 = vmatpush1.msra.mxu0 %v7494
        %7536 = vmatprep.subr.mxu0 0.0
        %7537 = vmatpush1.msra.mxu0 %v7493
        %7538 = vmatprep.subr.mxu0 0.0
        %7539 = vmatpush2.msra.mxu0 0.0
        %7540 = vmatprep.subr.mxu0 0.0
        %7541 = vmatpush2.msra.mxu0 0.0
        %7542 = vmatprep.subr.mxu0 0.0
        %7543 = vmatpush2.msra.mxu0 0.0
        %7544 = vmatprep.subr.mxu0 0.0
        %7545 = vmatpush2.msra.mxu0 0.0
        %7546 = vmatprep.subr.mxu0 0.0
        %7547 = vmatpush2.msra.mxu0 0.0
        %7548 = vmatprep.subr.mxu0 0.0
        %7549 = vmatpush2.msra.mxu0 0.0
        %7550 = vmatprep.subr.mxu0 0.0
        %7551 = vmatpush2.msra.mxu0 0.0
        %7552 = vmatprep.subr.mxu0 0.0
        %7553 = vmatpush2.msra.mxu0 0.0
        %7554 = vmatprep.subr.mxu0 0.0
        %7555 = vmatpush2.msra.mxu0 0.0
        %7556 = vmatprep.subr.mxu0 0.0
        %7557 = vmatpush2.msra.mxu0 0.0
        %7558 = vmatprep.subr.mxu0 0.0
        %7559 = vmatpush2.msra.mxu0 0.0
        %7560 = vmatprep.subr.mxu0 0.0
        %7561 = vmatpush2.msra.mxu0 0.0
        %7562 = vmatprep.subr.mxu0 0.0
        %7563 = vmatpush2.msra.mxu0 0.0
        %7564 = vmatprep.subr.mxu0 0.0
        %7565 = vmatpush2.msra.mxu0 0.0
        %7566 = vmatprep.subr.mxu0 0.0
        %7567 = vmatpush2.msra.mxu0 0.0
        %7568 = vmatprep.subr.mxu0 0.0
        %7569 = vmatpush2.msra.mxu0 0.0
        %7570 = vmatprep.mubr.f32.mxu0 0.0
        %7571 = vmatmul.mubr.f32.gmra.mxu0 %v7498
        %v7572 = vpop.f32.mrf.mxu0
        %v7573 = vadd.f32 0.0, %v7572
        %v7574 = vpop.f32.mrf.mxu0
        %7575 = vmatprep.mubr.f32.mxu0 0.0
        %7576 = vmatmul.mubr.f32.gmra.mxu0 %v7501
        %v7577 = vpop.f32.mrf.mxu0
        %v7578 = vadd.f32 0.0, %v7577
        %v7579 = vpop.f32.mrf.mxu0
        %7580 = vmatprep.mubr.f32.mxu0 0.0
        %7581 = vmatmul.mubr.f32.gmra.mxu0 %v7504
        %v7582 = vpop.f32.mrf.mxu0
        %v7583 = vadd.f32 0.0, %v7582
        %v7584 = vpop.f32.mrf.mxu0
        %7585 = vdwg.mxu0
        %v7586 = vld [vmem:[#allocation8] sm:$0xff]
        %v7587 = vld [vmem:[#allocation8 + $0x8] sm:$0xff]
        %v7588 = vld [vmem:[#allocation8 + $0x10] sm:$0x3f]
        %v7589 = vadd.f32 %v7586, %v7573
        %v7590 = vadd.f32 %v7587, %v7578
        %v7591 = vadd.f32 %v7588, %v7583
        %7592 = vst.msk [vmem:[#allocation8] sm:$0xff] %vm412, %v7589
        %7593 = vst.msk [vmem:[#allocation8 + $0x8] sm:$0xff] %vm412, %v7590
        %7594 = vst.msk [vmem:[#allocation8 + $0x10] sm:$0x3f] %vm856, %v7591
        %v7595 = vld [vmem:[#allocation4 + $0xc] sm:$0xff]
        %v7596 = vld [vmem:[#allocation4 + $0x14] sm:$0xff]
        %v7597 = vld [vmem:[#allocation4 + $0x1c] sm:$0x3f]
        %s7598 = scalar_lea.vmem %s3, 192
        %v7599 = vld [vmem:[%s7598] sm:$0xff]
        %v7600 = vld [vmem:[%s7598 + $0x8] sm:$0xff]
        %v7601 = vld [vmem:[%s7598 + $0x10] sm:$0xff]
        %v7602 = vld [vmem:[%s7598 + $0x18] sm:$0xff]
        %v7604 = vsel %vm412, %v7595, 0
        %v7607 = vsel %vm412, %v7596, 0
        %v7610 = vsel %vm412, %v7597, 0
        %7612 = vmatprep.subr.mxu0 0.0
        %7613 = vmatpush1.msra.mxu0 0.0
        %7614 = vmatprep.subr.mxu0 0.0
        %7615 = vmatpush1.msra.mxu0 0.0
        %7616 = vmatprep.subr.mxu0 0.0
        %7617 = vmatpush1.msra.mxu0 0.0
        %7618 = vmatprep.subr.mxu0 0.0
        %7619 = vmatpush1.msra.mxu0 0.0
        %7620 = vmatprep.subr.mxu0 0.0
        %7621 = vmatpush1.msra.mxu0 0.0
        %7622 = vmatprep.subr.mxu0 0.0
        %7623 = vmatpush1.msra.mxu0 0.0
        %7624 = vmatprep.subr.mxu0 0.0
        %7625 = vmatpush1.msra.mxu0 0.0
        %7626 = vmatprep.subr.mxu0 0.0
        %7627 = vmatpush1.msra.mxu0 0.0
        %7628 = vmatprep.subr.mxu0 0.0
        %7629 = vmatpush1.msra.mxu0 0.0
        %7630 = vmatprep.subr.mxu0 0.0
        %7631 = vmatpush1.msra.mxu0 0.0
        %7632 = vmatprep.subr.mxu0 0.0
        %7633 = vmatpush1.msra.mxu0 0.0
        %7634 = vmatprep.subr.mxu0 0.0
        %7635 = vmatpush1.msra.mxu0 0.0
        %7636 = vmatprep.subr.mxu0 0.0
        %7637 = vmatpush1.msra.mxu0 %v7602
        %7638 = vmatprep.subr.mxu0 0.0
        %7639 = vmatpush1.msra.mxu0 %v7601
        %7640 = vmatprep.subr.mxu0 0.0
        %7641 = vmatpush1.msra.mxu0 %v7600
        %7642 = vmatprep.subr.mxu0 0.0
        %7643 = vmatpush1.msra.mxu0 %v7599
        %7644 = vmatprep.subr.mxu0 0.0
        %7645 = vmatpush2.msra.mxu0 0.0
        %7646 = vmatprep.subr.mxu0 0.0
        %7647 = vmatpush2.msra.mxu0 0.0
        %7648 = vmatprep.subr.mxu0 0.0
        %7649 = vmatpush2.msra.mxu0 0.0
        %7650 = vmatprep.subr.mxu0 0.0
        %7651 = vmatpush2.msra.mxu0 0.0
        %7652 = vmatprep.subr.mxu0 0.0
        %7653 = vmatpush2.msra.mxu0 0.0
        %7654 = vmatprep.subr.mxu0 0.0
        %7655 = vmatpush2.msra.mxu0 0.0
        %7656 = vmatprep.subr.mxu0 0.0
        %7657 = vmatpush2.msra.mxu0 0.0
        %7658 = vmatprep.subr.mxu0 0.0
        %7659 = vmatpush2.msra.mxu0 0.0
        %7660 = vmatprep.subr.mxu0 0.0
        %7661 = vmatpush2.msra.mxu0 0.0
        %7662 = vmatprep.subr.mxu0 0.0
        %7663 = vmatpush2.msra.mxu0 0.0
        %7664 = vmatprep.subr.mxu0 0.0
        %7665 = vmatpush2.msra.mxu0 0.0
        %7666 = vmatprep.subr.mxu0 0.0
        %7667 = vmatpush2.msra.mxu0 0.0
        %7668 = vmatprep.subr.mxu0 0.0
        %7669 = vmatpush2.msra.mxu0 0.0
        %7670 = vmatprep.subr.mxu0 0.0
        %7671 = vmatpush2.msra.mxu0 0.0
        %7672 = vmatprep.subr.mxu0 0.0
        %7673 = vmatpush2.msra.mxu0 0.0
        %7674 = vmatprep.subr.mxu0 0.0
        %7675 = vmatpush2.msra.mxu0 0.0
        %7676 = vmatprep.mubr.f32.mxu0 0.0
        %7677 = vmatmul.mubr.f32.gmra.mxu0 %v7604
        %v7678 = vpop.f32.mrf.mxu0
        %v7679 = vadd.f32 0.0, %v7678
        %v7680 = vpop.f32.mrf.mxu0
        %7681 = vmatprep.mubr.f32.mxu0 0.0
        %7682 = vmatmul.mubr.f32.gmra.mxu0 %v7607
        %v7683 = vpop.f32.mrf.mxu0
        %v7684 = vadd.f32 0.0, %v7683
        %v7685 = vpop.f32.mrf.mxu0
        %7686 = vmatprep.mubr.f32.mxu0 0.0
        %7687 = vmatmul.mubr.f32.gmra.mxu0 %v7610
        %v7688 = vpop.f32.mrf.mxu0
        %v7689 = vadd.f32 0.0, %v7688
        %v7690 = vpop.f32.mrf.mxu0
        %7691 = vdwg.mxu0
        %v7692 = vld [vmem:[#allocation8] sm:$0xff]
        %v7693 = vld [vmem:[#allocation8 + $0x8] sm:$0xff]
        %v7694 = vld [vmem:[#allocation8 + $0x10] sm:$0x3f]
        %v7695 = vadd.f32 %v7692, %v7679
        %v7696 = vadd.f32 %v7693, %v7684
        %v7697 = vadd.f32 %v7694, %v7689
        %7698 = vst.msk [vmem:[#allocation8] sm:$0xff] %vm412, %v7695
        %7699 = vst.msk [vmem:[#allocation8 + $0x8] sm:$0xff] %vm412, %v7696
        %7700 = vst.msk [vmem:[#allocation8 + $0x10] sm:$0x3f] %vm856, %v7697
        %v7701 = vld [vmem:[#allocation4 + $0xd] sm:$0xff]
        %v7702 = vld [vmem:[#allocation4 + $0x15] sm:$0xff]
        %v7703 = vld [vmem:[#allocation4 + $0x1d] sm:$0x3f]
        %s7704 = scalar_lea.vmem %s3, 224
        %v7705 = vld [vmem:[%s7704] sm:$0xff]
        %v7706 = vld [vmem:[%s7704 + $0x8] sm:$0xff]
        %v7707 = vld [vmem:[%s7704 + $0x10] sm:$0xff]
        %v7708 = vld [vmem:[%s7704 + $0x18] sm:$0xff]
        %v7710 = vsel %vm412, %v7701, 0
        %v7713 = vsel %vm412, %v7702, 0
        %v7716 = vsel %vm412, %v7703, 0
        %7718 = vmatprep.subr.mxu0 0.0
        %7719 = vmatpush1.msra.mxu0 0.0
        %7720 = vmatprep.subr.mxu0 0.0
        %7721 = vmatpush1.msra.mxu0 0.0
        %7722 = vmatprep.subr.mxu0 0.0
        %7723 = vmatpush1.msra.mxu0 0.0
        %7724 = vmatprep.subr.mxu0 0.0
        %7725 = vmatpush1.msra.mxu0 0.0
        %7726 = vmatprep.subr.mxu0 0.0
        %7727 = vmatpush1.msra.mxu0 0.0
        %7728 = vmatprep.subr.mxu0 0.0
        %7729 = vmatpush1.msra.mxu0 0.0
        %7730 = vmatprep.subr.mxu0 0.0
        %7731 = vmatpush1.msra.mxu0 0.0
        %7732 = vmatprep.subr.mxu0 0.0
        %7733 = vmatpush1.msra.mxu0 0.0
        %7734 = vmatprep.subr.mxu0 0.0
        %7735 = vmatpush1.msra.mxu0 0.0
        %7736 = vmatprep.subr.mxu0 0.0
        %7737 = vmatpush1.msra.mxu0 0.0
        %7738 = vmatprep.subr.mxu0 0.0
        %7739 = vmatpush1.msra.mxu0 0.0
        %7740 = vmatprep.subr.mxu0 0.0
        %7741 = vmatpush1.msra.mxu0 0.0
        %7742 = vmatprep.subr.mxu0 0.0
        %7743 = vmatpush1.msra.mxu0 %v7708
        %7744 = vmatprep.subr.mxu0 0.0
        %7745 = vmatpush1.msra.mxu0 %v7707
        %7746 = vmatprep.subr.mxu0 0.0
        %7747 = vmatpush1.msra.mxu0 %v7706
        %7748 = vmatprep.subr.mxu0 0.0
        %7749 = vmatpush1.msra.mxu0 %v7705
        %7750 = vmatprep.subr.mxu0 0.0
        %7751 = vmatpush2.msra.mxu0 0.0
        %7752 = vmatprep.subr.mxu0 0.0
        %7753 = vmatpush2.msra.mxu0 0.0
        %7754 = vmatprep.subr.mxu0 0.0
        %7755 = vmatpush2.msra.mxu0 0.0
        %7756 = vmatprep.subr.mxu0 0.0
        %7757 = vmatpush2.msra.mxu0 0.0
        %7758 = vmatprep.subr.mxu0 0.0
        %7759 = vmatpush2.msra.mxu0 0.0
        %7760 = vmatprep.subr.mxu0 0.0
        %7761 = vmatpush2.msra.mxu0 0.0
        %7762 = vmatprep.subr.mxu0 0.0
        %7763 = vmatpush2.msra.mxu0 0.0
        %7764 = vmatprep.subr.mxu0 0.0
        %7765 = vmatpush2.msra.mxu0 0.0
        %7766 = vmatprep.subr.mxu0 0.0
        %7767 = vmatpush2.msra.mxu0 0.0
        %7768 = vmatprep.subr.mxu0 0.0
        %7769 = vmatpush2.msra.mxu0 0.0
        %7770 = vmatprep.subr.mxu0 0.0
        %7771 = vmatpush2.msra.mxu0 0.0
        %7772 = vmatprep.subr.mxu0 0.0
        %7773 = vmatpush2.msra.mxu0 0.0
        %7774 = vmatprep.subr.mxu0 0.0
        %7775 = vmatpush2.msra.mxu0 0.0
        %7776 = vmatprep.subr.mxu0 0.0
        %7777 = vmatpush2.msra.mxu0 0.0
        %7778 = vmatprep.subr.mxu0 0.0
        %7779 = vmatpush2.msra.mxu0 0.0
        %7780 = vmatprep.subr.mxu0 0.0
        %7781 = vmatpush2.msra.mxu0 0.0
        %7782 = vmatprep.mubr.f32.mxu0 0.0
        %7783 = vmatmul.mubr.f32.gmra.mxu0 %v7710
        %v7784 = vpop.f32.mrf.mxu0
        %v7785 = vadd.f32 0.0, %v7784
        %v7786 = vpop.f32.mrf.mxu0
        %7787 = vmatprep.mubr.f32.mxu0 0.0
        %7788 = vmatmul.mubr.f32.gmra.mxu0 %v7713
        %v7789 = vpop.f32.mrf.mxu0
        %v7790 = vadd.f32 0.0, %v7789
        %v7791 = vpop.f32.mrf.mxu0
        %7792 = vmatprep.mubr.f32.mxu0 0.0
        %7793 = vmatmul.mubr.f32.gmra.mxu0 %v7716
        %v7794 = vpop.f32.mrf.mxu0
        %v7795 = vadd.f32 0.0, %v7794
        %v7796 = vpop.f32.mrf.mxu0
        %7797 = vdwg.mxu0
        %v7798 = vld [vmem:[#allocation8] sm:$0xff]
        %v7799 = vld [vmem:[#allocation8 + $0x8] sm:$0xff]
        %v7800 = vld [vmem:[#allocation8 + $0x10] sm:$0x3f]
        %v7801 = vadd.f32 %v7798, %v7785
        %v7802 = vadd.f32 %v7799, %v7790
        %v7803 = vadd.f32 %v7800, %v7795
        %7804 = vst.msk [vmem:[#allocation8] sm:$0xff] %vm412, %v7801
        %7805 = vst.msk [vmem:[#allocation8 + $0x8] sm:$0xff] %vm412, %v7802
        %7806 = vst.msk [vmem:[#allocation8 + $0x10] sm:$0x3f] %vm856, %v7803
        %v7807 = vld [vmem:[#allocation4 + $0xe] sm:$0xff]
        %v7808 = vld [vmem:[#allocation4 + $0x16] sm:$0xff]
        %v7809 = vld [vmem:[#allocation4 + $0x1e] sm:$0x3f]
        %s7810 = scalar_lea.vmem %s3, 256
        %v7811 = vld [vmem:[%s7810] sm:$0xff]
        %v7812 = vld [vmem:[%s7810 + $0x8] sm:$0xff]
        %v7813 = vld [vmem:[%s7810 + $0x10] sm:$0xff]
        %v7814 = vld [vmem:[%s7810 + $0x18] sm:$0xff]
        %v7816 = vsel %vm412, %v7807, 0
        %v7819 = vsel %vm412, %v7808, 0
        %v7822 = vsel %vm412, %v7809, 0
        %7824 = vmatprep.subr.mxu0 0.0
        %7825 = vmatpush1.msra.mxu0 0.0
        %7826 = vmatprep.subr.mxu0 0.0
        %7827 = vmatpush1.msra.mxu0 0.0
        %7828 = vmatprep.subr.mxu0 0.0
        %7829 = vmatpush1.msra.mxu0 0.0
        %7830 = vmatprep.subr.mxu0 0.0
        %7831 = vmatpush1.msra.mxu0 0.0
        %7832 = vmatprep.subr.mxu0 0.0
        %7833 = vmatpush1.msra.mxu0 0.0
        %7834 = vmatprep.subr.mxu0 0.0
        %7835 = vmatpush1.msra.mxu0 0.0
        %7836 = vmatprep.subr.mxu0 0.0
        %7837 = vmatpush1.msra.mxu0 0.0
        %7838 = vmatprep.subr.mxu0 0.0
        %7839 = vmatpush1.msra.mxu0 0.0
        %7840 = vmatprep.subr.mxu0 0.0
        %7841 = vmatpush1.msra.mxu0 0.0
        %7842 = vmatprep.subr.mxu0 0.0
        %7843 = vmatpush1.msra.mxu0 0.0
        %7844 = vmatprep.subr.mxu0 0.0
        %7845 = vmatpush1.msra.mxu0 0.0
        %7846 = vmatprep.subr.mxu0 0.0
        %7847 = vmatpush1.msra.mxu0 0.0
        %7848 = vmatprep.subr.mxu0 0.0
        %7849 = vmatpush1.msra.mxu0 %v7814
        %7850 = vmatprep.subr.mxu0 0.0
        %7851 = vmatpush1.msra.mxu0 %v7813
        %7852 = vmatprep.subr.mxu0 0.0
        %7853 = vmatpush1.msra.mxu0 %v7812
        %7854 = vmatprep.subr.mxu0 0.0
        %7855 = vmatpush1.msra.mxu0 %v7811
        %7856 = vmatprep.subr.mxu0 0.0
        %7857 = vmatpush2.msra.mxu0 0.0
        %7858 = vmatprep.subr.mxu0 0.0
        %7859 = vmatpush2.msra.mxu0 0.0
        %7860 = vmatprep.subr.mxu0 0.0
        %7861 = vmatpush2.msra.mxu0 0.0
        %7862 = vmatprep.subr.mxu0 0.0
        %7863 = vmatpush2.msra.mxu0 0.0
        %7864 = vmatprep.subr.mxu0 0.0
        %7865 = vmatpush2.msra.mxu0 0.0
        %7866 = vmatprep.subr.mxu0 0.0
        %7867 = vmatpush2.msra.mxu0 0.0
        %7868 = vmatprep.subr.mxu0 0.0
        %7869 = vmatpush2.msra.mxu0 0.0
        %7870 = vmatprep.subr.mxu0 0.0
        %7871 = vmatpush2.msra.mxu0 0.0
        %7872 = vmatprep.subr.mxu0 0.0
        %7873 = vmatpush2.msra.mxu0 0.0
        %7874 = vmatprep.subr.mxu0 0.0
        %7875 = vmatpush2.msra.mxu0 0.0
        %7876 = vmatprep.subr.mxu0 0.0
        %7877 = vmatpush2.msra.mxu0 0.0
        %7878 = vmatprep.subr.mxu0 0.0
        %7879 = vmatpush2.msra.mxu0 0.0
        %7880 = vmatprep.subr.mxu0 0.0
        %7881 = vmatpush2.msra.mxu0 0.0
        %7882 = vmatprep.subr.mxu0 0.0
        %7883 = vmatpush2.msra.mxu0 0.0
        %7884 = vmatprep.subr.mxu0 0.0
        %7885 = vmatpush2.msra.mxu0 0.0
        %7886 = vmatprep.subr.mxu0 0.0
        %7887 = vmatpush2.msra.mxu0 0.0
        %7888 = vmatprep.mubr.f32.mxu0 0.0
        %7889 = vmatmul.mubr.f32.gmra.mxu0 %v7816
        %v7890 = vpop.f32.mrf.mxu0
        %v7891 = vadd.f32 0.0, %v7890
        %v7892 = vpop.f32.mrf.mxu0
        %7893 = vmatprep.mubr.f32.mxu0 0.0
        %7894 = vmatmul.mubr.f32.gmra.mxu0 %v7819
        %v7895 = vpop.f32.mrf.mxu0
        %v7896 = vadd.f32 0.0, %v7895
        %v7897 = vpop.f32.mrf.mxu0
        %7898 = vmatprep.mubr.f32.mxu0 0.0
        %7899 = vmatmul.mubr.f32.gmra.mxu0 %v7822
        %v7900 = vpop.f32.mrf.mxu0
        %v7901 = vadd.f32 0.0, %v7900
        %v7902 = vpop.f32.mrf.mxu0
        %7903 = vdwg.mxu0
        %v7904 = vld [vmem:[#allocation8] sm:$0xff]
        %v7905 = vld [vmem:[#allocation8 + $0x8] sm:$0xff]
        %v7906 = vld [vmem:[#allocation8 + $0x10] sm:$0x3f]
        %v7907 = vadd.f32 %v7904, %v7891
        %v7908 = vadd.f32 %v7905, %v7896
        %v7909 = vadd.f32 %v7906, %v7901
        %7910 = vst.msk [vmem:[#allocation8] sm:$0xff] %vm412, %v7907
        %7911 = vst.msk [vmem:[#allocation8 + $0x8] sm:$0xff] %vm412, %v7908
        %7912 = vst.msk [vmem:[#allocation8 + $0x10] sm:$0x3f] %vm856, %v7909
        %v7913 = vld [vmem:[#allocation8] sm:$0xff]
        %v7914 = vld [vmem:[#allocation8 + $0x8] sm:$0xff]
        %v7915 = vld [vmem:[#allocation8 + $0x10] sm:$0x3f]
        %v7917 = vlaneseq
        %v7918 = vshrl.u32 %v7917, 7
        %v7919 = vsub.s32 0, %v7918
        %v7920 = vrot.slane %v402, %v7919
        %v7922 = vmul.f32 %v7913, %v7920
        %v7923 = vmul.f32 %v7914, %v7920
        %v7924 = vmul.f32 %v7915, %v7920
        %v7926 = vlaneseq
        %v7927 = vshrl.u32 %v7926, 7
        %v7928 = vsub.s32 0, %v7927
        %v7929 = vrot.slane %v409, %v7928
        %v7931 = vadd.f32 %v7922, %v7929
        %v7932 = vadd.f32 %v7923, %v7929
        %v7933 = vadd.f32 %v7924, %v7929
        %v7934 = vmax.f32 %v7931, 0.0
        %v7935 = vmax.f32 %v7932, 0.0
        %v7936 = vmax.f32 %v7933, 0.0
        %7937 = vst.msk [vmem:[#allocation8] sm:$0xff] %vm412, %v7934
        %7938 = vst.msk [vmem:[#allocation8 + $0x8] sm:$0xff] %vm412, %v7935
        %7939 = vst.msk [vmem:[#allocation8 + $0x10] sm:$0x3f] %vm856, %v7936
        %v7940 = vld [vmem:[#allocation8] ss:$2 sm:$0x3]
        %s7941 = scalar_lea.vmem [#allocation8], 1
        %v7942 = vld [vmem:[%s7941] ss:$2 sm:$0x3]
        %v7943 = vmax.f32 %v7940, %v7942
        %s7944 = scalar_lea.vmem [#allocation8], 6
        %v7945 = vld [vmem:[%s7944] ss:$2 sm:$0x3]
        %s7946 = scalar_lea.vmem [#allocation8], 7
        %v7947 = vld [vmem:[%s7946] ss:$2 sm:$0x3]
        %v7948 = vmax.f32 %v7945, %v7947
        %v7949 = vmax.f32 %v7943, %v7948
        %vm7950 = vcmask 254976
        %7951 = vst.msk [vmem:[#allocation5 + $0x5] sm:$0x3] %vm7950, %v7949
        %s7952 = scalar_lea.vmem [#allocation8], 12
        %v7953 = vld [vmem:[%s7952] ss:$2 sm:$0x3]
        %s7954 = scalar_lea.vmem [#allocation8], 13
        %v7955 = vld [vmem:[%s7954] ss:$2 sm:$0x3]
        %v7956 = vmax.f32 %v7953, %v7955
        %s7957 = scalar_lea.vmem [#allocation8], 18
        %v7958 = vld [vmem:[%s7957] ss:$2 sm:$0x3]
        %s7959 = scalar_lea.vmem [#allocation8], 19
        %v7960 = vld [vmem:[%s7959] ss:$2 sm:$0x3]
        %v7961 = vmax.f32 %v7958, %v7960
        %v7962 = vmax.f32 %v7956, %v7961
        %7963 = vst.msk [vmem:[#allocation5 + $0x9] sm:$0x3] %vm7950, %v7962
        %v7964 = vld [vmem:[#allocation5] sm:$0x3f]
        %v7965 = vld [vmem:[#allocation10] sm:$0xff]
        %v7966 = vld [vmem:[#allocation10 + $0x8] sm:$0xff]
        %v7967 = vld [vmem:[#allocation10 + $0x10] sm:$0xff]
        %v7968 = vld [vmem:[#allocation10 + $0x18] sm:$0xff]
        %v7970 = vsel %vm412, %v7964, 0
        %7972 = vmatprep.subr.mxu0 0.0
        %7973 = vmatpush1.msra.mxu0 0.0
        %7974 = vmatprep.subr.mxu0 0.0
        %7975 = vmatpush1.msra.mxu0 0.0
        %7976 = vmatprep.subr.mxu0 0.0
        %7977 = vmatpush1.msra.mxu0 0.0
        %7978 = vmatprep.subr.mxu0 0.0
        %7979 = vmatpush1.msra.mxu0 0.0
        %7980 = vmatprep.subr.mxu0 0.0
        %7981 = vmatpush1.msra.mxu0 0.0
        %7982 = vmatprep.subr.mxu0 0.0
        %7983 = vmatpush1.msra.mxu0 0.0
        %7984 = vmatprep.subr.mxu0 0.0
        %7985 = vmatpush1.msra.mxu0 0.0
        %7986 = vmatprep.subr.mxu0 0.0
        %7987 = vmatpush1.msra.mxu0 0.0
        %7988 = vmatprep.subr.mxu0 0.0
        %7989 = vmatpush1.msra.mxu0 0.0
        %7990 = vmatprep.subr.mxu0 0.0
        %7991 = vmatpush1.msra.mxu0 0.0
        %7992 = vmatprep.subr.mxu0 0.0
        %7993 = vmatpush1.msra.mxu0 0.0
        %7994 = vmatprep.subr.mxu0 0.0
        %7995 = vmatpush1.msra.mxu0 0.0
        %7996 = vmatprep.subr.mxu0 0.0
        %7997 = vmatpush1.msra.mxu0 %v7968
        %7998 = vmatprep.subr.mxu0 0.0
        %7999 = vmatpush1.msra.mxu0 %v7967
        %8000 = vmatprep.subr.mxu0 0.0
        %8001 = vmatpush1.msra.mxu0 %v7966
        %8002 = vmatprep.subr.mxu0 0.0
        %8003 = vmatpush1.msra.mxu0 %v7965
        %8004 = vmatprep.subr.mxu0 0.0
        %8005 = vmatpush2.msra.mxu0 0.0
        %8006 = vmatprep.subr.mxu0 0.0
        %8007 = vmatpush2.msra.mxu0 0.0
        %8008 = vmatprep.subr.mxu0 0.0
        %8009 = vmatpush2.msra.mxu0 0.0
        %8010 = vmatprep.subr.mxu0 0.0
        %8011 = vmatpush2.msra.mxu0 0.0
        %8012 = vmatprep.subr.mxu0 0.0
        %8013 = vmatpush2.msra.mxu0 0.0
        %8014 = vmatprep.subr.mxu0 0.0
        %8015 = vmatpush2.msra.mxu0 0.0
        %8016 = vmatprep.subr.mxu0 0.0
        %8017 = vmatpush2.msra.mxu0 0.0
        %8018 = vmatprep.subr.mxu0 0.0
        %8019 = vmatpush2.msra.mxu0 0.0
        %8020 = vmatprep.subr.mxu0 0.0
        %8021 = vmatpush2.msra.mxu0 0.0
        %8022 = vmatprep.subr.mxu0 0.0
        %8023 = vmatpush2.msra.mxu0 0.0
        %8024 = vmatprep.subr.mxu0 0.0
        %8025 = vmatpush2.msra.mxu0 0.0
        %8026 = vmatprep.subr.mxu0 0.0
        %8027 = vmatpush2.msra.mxu0 0.0
        %8028 = vmatprep.subr.mxu0 0.0
        %8029 = vmatpush2.msra.mxu0 0.0
        %8030 = vmatprep.subr.mxu0 0.0
        %8031 = vmatpush2.msra.mxu0 0.0
        %8032 = vmatprep.subr.mxu0 0.0
        %8033 = vmatpush2.msra.mxu0 0.0
        %8034 = vmatprep.subr.mxu0 0.0
        %8035 = vmatpush2.msra.mxu0 0.0
        %8036 = vmatprep.mubr.f32.mxu0 0.0
        %8037 = vmatmul.mubr.f32.gmra.mxu0 %v7970
        %v8038 = vpop.f32.mrf.mxu0
        %v8039 = vadd.f32 0.0, %v8038
        %v8040 = vpop.f32.mrf.mxu0
        %8041 = vdwg.mxu0
        %8042 = vst.msk [vmem:[#allocation9] sm:$0x3f] %vm856, %v8039
        %v8043 = vld [vmem:[#allocation5 + $0x1] sm:$0x3f]
        %s8044 = scalar_lea.vmem [#allocation10], 32
        %v8045 = vld [vmem:[%s8044] sm:$0xff]
        %v8046 = vld [vmem:[%s8044 + $0x8] sm:$0xff]
        %v8047 = vld [vmem:[%s8044 + $0x10] sm:$0xff]
        %v8048 = vld [vmem:[%s8044 + $0x18] sm:$0xff]
        %v8050 = vsel %vm412, %v8043, 0
        %8052 = vmatprep.subr.mxu0 0.0
        %8053 = vmatpush1.msra.mxu0 0.0
        %8054 = vmatprep.subr.mxu0 0.0
        %8055 = vmatpush1.msra.mxu0 0.0
        %8056 = vmatprep.subr.mxu0 0.0
        %8057 = vmatpush1.msra.mxu0 0.0
        %8058 = vmatprep.subr.mxu0 0.0
        %8059 = vmatpush1.msra.mxu0 0.0
        %8060 = vmatprep.subr.mxu0 0.0
        %8061 = vmatpush1.msra.mxu0 0.0
        %8062 = vmatprep.subr.mxu0 0.0
        %8063 = vmatpush1.msra.mxu0 0.0
        %8064 = vmatprep.subr.mxu0 0.0
        %8065 = vmatpush1.msra.mxu0 0.0
        %8066 = vmatprep.subr.mxu0 0.0
        %8067 = vmatpush1.msra.mxu0 0.0
        %8068 = vmatprep.subr.mxu0 0.0
        %8069 = vmatpush1.msra.mxu0 0.0
        %8070 = vmatprep.subr.mxu0 0.0
        %8071 = vmatpush1.msra.mxu0 0.0
        %8072 = vmatprep.subr.mxu0 0.0
        %8073 = vmatpush1.msra.mxu0 0.0
        %8074 = vmatprep.subr.mxu0 0.0
        %8075 = vmatpush1.msra.mxu0 0.0
        %8076 = vmatprep.subr.mxu0 0.0
        %8077 = vmatpush1.msra.mxu0 %v8048
        %8078 = vmatprep.subr.mxu0 0.0
        %8079 = vmatpush1.msra.mxu0 %v8047
        %8080 = vmatprep.subr.mxu0 0.0
        %8081 = vmatpush1.msra.mxu0 %v8046
        %8082 = vmatprep.subr.mxu0 0.0
        %8083 = vmatpush1.msra.mxu0 %v8045
        %8084 = vmatprep.subr.mxu0 0.0
        %8085 = vmatpush2.msra.mxu0 0.0
        %8086 = vmatprep.subr.mxu0 0.0
        %8087 = vmatpush2.msra.mxu0 0.0
        %8088 = vmatprep.subr.mxu0 0.0
        %8089 = vmatpush2.msra.mxu0 0.0
        %8090 = vmatprep.subr.mxu0 0.0
        %8091 = vmatpush2.msra.mxu0 0.0
        %8092 = vmatprep.subr.mxu0 0.0
        %8093 = vmatpush2.msra.mxu0 0.0
        %8094 = vmatprep.subr.mxu0 0.0
        %8095 = vmatpush2.msra.mxu0 0.0
        %8096 = vmatprep.subr.mxu0 0.0
        %8097 = vmatpush2.msra.mxu0 0.0
        %8098 = vmatprep.subr.mxu0 0.0
        %8099 = vmatpush2.msra.mxu0 0.0
        %8100 = vmatprep.subr.mxu0 0.0
        %8101 = vmatpush2.msra.mxu0 0.0
        %8102 = vmatprep.subr.mxu0 0.0
        %8103 = vmatpush2.msra.mxu0 0.0
        %8104 = vmatprep.subr.mxu0 0.0
        %8105 = vmatpush2.msra.mxu0 0.0
        %8106 = vmatprep.subr.mxu0 0.0
        %8107 = vmatpush2.msra.mxu0 0.0
        %8108 = vmatprep.subr.mxu0 0.0
        %8109 = vmatpush2.msra.mxu0 0.0
        %8110 = vmatprep.subr.mxu0 0.0
        %8111 = vmatpush2.msra.mxu0 0.0
        %8112 = vmatprep.subr.mxu0 0.0
        %8113 = vmatpush2.msra.mxu0 0.0
        %8114 = vmatprep.subr.mxu0 0.0
        %8115 = vmatpush2.msra.mxu0 0.0
        %8116 = vmatprep.mubr.f32.mxu0 0.0
        %8117 = vmatmul.mubr.f32.gmra.mxu0 %v8050
        %v8118 = vpop.f32.mrf.mxu0
        %v8119 = vadd.f32 0.0, %v8118
        %v8120 = vpop.f32.mrf.mxu0
        %8121 = vdwg.mxu0
        %v8122 = vld [vmem:[#allocation9] sm:$0x3f]
        %v8123 = vadd.f32 %v8122, %v8119
        %8124 = vst.msk [vmem:[#allocation9] sm:$0x3f] %vm856, %v8123
        %v8125 = vld [vmem:[#allocation5 + $0x2] sm:$0x3f]
        %s8126 = scalar_lea.vmem [#allocation10], 64
        %v8127 = vld [vmem:[%s8126] sm:$0xff]
        %v8128 = vld [vmem:[%s8126 + $0x8] sm:$0xff]
        %v8129 = vld [vmem:[%s8126 + $0x10] sm:$0xff]
        %v8130 = vld [vmem:[%s8126 + $0x18] sm:$0xff]
        %v8132 = vsel %vm412, %v8125, 0
        %8134 = vmatprep.subr.mxu0 0.0
        %8135 = vmatpush1.msra.mxu0 0.0
        %8136 = vmatprep.subr.mxu0 0.0
        %8137 = vmatpush1.msra.mxu0 0.0
        %8138 = vmatprep.subr.mxu0 0.0
        %8139 = vmatpush1.msra.mxu0 0.0
        %8140 = vmatprep.subr.mxu0 0.0
        %8141 = vmatpush1.msra.mxu0 0.0
        %8142 = vmatprep.subr.mxu0 0.0
        %8143 = vmatpush1.msra.mxu0 0.0
        %8144 = vmatprep.subr.mxu0 0.0
        %8145 = vmatpush1.msra.mxu0 0.0
        %8146 = vmatprep.subr.mxu0 0.0
        %8147 = vmatpush1.msra.mxu0 0.0
        %8148 = vmatprep.subr.mxu0 0.0
        %8149 = vmatpush1.msra.mxu0 0.0
        %8150 = vmatprep.subr.mxu0 0.0
        %8151 = vmatpush1.msra.mxu0 0.0
        %8152 = vmatprep.subr.mxu0 0.0
        %8153 = vmatpush1.msra.mxu0 0.0
        %8154 = vmatprep.subr.mxu0 0.0
        %8155 = vmatpush1.msra.mxu0 0.0
        %8156 = vmatprep.subr.mxu0 0.0
        %8157 = vmatpush1.msra.mxu0 0.0
        %8158 = vmatprep.subr.mxu0 0.0
        %8159 = vmatpush1.msra.mxu0 %v8130
        %8160 = vmatprep.subr.mxu0 0.0
        %8161 = vmatpush1.msra.mxu0 %v8129
        %8162 = vmatprep.subr.mxu0 0.0
        %8163 = vmatpush1.msra.mxu0 %v8128
        %8164 = vmatprep.subr.mxu0 0.0
        %8165 = vmatpush1.msra.mxu0 %v8127
        %8166 = vmatprep.subr.mxu0 0.0
        %8167 = vmatpush2.msra.mxu0 0.0
        %8168 = vmatprep.subr.mxu0 0.0
        %8169 = vmatpush2.msra.mxu0 0.0
        %8170 = vmatprep.subr.mxu0 0.0
        %8171 = vmatpush2.msra.mxu0 0.0
        %8172 = vmatprep.subr.mxu0 0.0
        %8173 = vmatpush2.msra.mxu0 0.0
        %8174 = vmatprep.subr.mxu0 0.0
        %8175 = vmatpush2.msra.mxu0 0.0
        %8176 = vmatprep.subr.mxu0 0.0
        %8177 = vmatpush2.msra.mxu0 0.0
        %8178 = vmatprep.subr.mxu0 0.0
        %8179 = vmatpush2.msra.mxu0 0.0
        %8180 = vmatprep.subr.mxu0 0.0
        %8181 = vmatpush2.msra.mxu0 0.0
        %8182 = vmatprep.subr.mxu0 0.0
        %8183 = vmatpush2.msra.mxu0 0.0
        %8184 = vmatprep.subr.mxu0 0.0
        %8185 = vmatpush2.msra.mxu0 0.0
        %8186 = vmatprep.subr.mxu0 0.0
        %8187 = vmatpush2.msra.mxu0 0.0
        %8188 = vmatprep.subr.mxu0 0.0
        %8189 = vmatpush2.msra.mxu0 0.0
        %8190 = vmatprep.subr.mxu0 0.0
        %8191 = vmatpush2.msra.mxu0 0.0
        %8192 = vmatprep.subr.mxu0 0.0
        %8193 = vmatpush2.msra.mxu0 0.0
        %8194 = vmatprep.subr.mxu0 0.0
        %8195 = vmatpush2.msra.mxu0 0.0
        %8196 = vmatprep.subr.mxu0 0.0
        %8197 = vmatpush2.msra.mxu0 0.0
        %8198 = vmatprep.mubr.f32.mxu0 0.0
        %8199 = vmatmul.mubr.f32.gmra.mxu0 %v8132
        %v8200 = vpop.f32.mrf.mxu0
        %v8201 = vadd.f32 0.0, %v8200
        %v8202 = vpop.f32.mrf.mxu0
        %8203 = vdwg.mxu0
        %v8204 = vld [vmem:[#allocation9] sm:$0x3f]
        %v8205 = vadd.f32 %v8204, %v8201
        %8206 = vst.msk [vmem:[#allocation9] sm:$0x3f] %vm856, %v8205
        %v8207 = vld [vmem:[#allocation5 + $0x4] sm:$0x3f]
        %s8208 = scalar_lea.vmem [#allocation10], 96
        %v8209 = vld [vmem:[%s8208] sm:$0xff]
        %v8210 = vld [vmem:[%s8208 + $0x8] sm:$0xff]
        %v8211 = vld [vmem:[%s8208 + $0x10] sm:$0xff]
        %v8212 = vld [vmem:[%s8208 + $0x18] sm:$0xff]
        %v8214 = vsel %vm412, %v8207, 0
        %8216 = vmatprep.subr.mxu0 0.0
        %8217 = vmatpush1.msra.mxu0 0.0
        %8218 = vmatprep.subr.mxu0 0.0
        %8219 = vmatpush1.msra.mxu0 0.0
        %8220 = vmatprep.subr.mxu0 0.0
        %8221 = vmatpush1.msra.mxu0 0.0
        %8222 = vmatprep.subr.mxu0 0.0
        %8223 = vmatpush1.msra.mxu0 0.0
        %8224 = vmatprep.subr.mxu0 0.0
        %8225 = vmatpush1.msra.mxu0 0.0
        %8226 = vmatprep.subr.mxu0 0.0
        %8227 = vmatpush1.msra.mxu0 0.0
        %8228 = vmatprep.subr.mxu0 0.0
        %8229 = vmatpush1.msra.mxu0 0.0
        %8230 = vmatprep.subr.mxu0 0.0
        %8231 = vmatpush1.msra.mxu0 0.0
        %8232 = vmatprep.subr.mxu0 0.0
        %8233 = vmatpush1.msra.mxu0 0.0
        %8234 = vmatprep.subr.mxu0 0.0
        %8235 = vmatpush1.msra.mxu0 0.0
        %8236 = vmatprep.subr.mxu0 0.0
        %8237 = vmatpush1.msra.mxu0 0.0
        %8238 = vmatprep.subr.mxu0 0.0
        %8239 = vmatpush1.msra.mxu0 0.0
        %8240 = vmatprep.subr.mxu0 0.0
        %8241 = vmatpush1.msra.mxu0 %v8212
        %8242 = vmatprep.subr.mxu0 0.0
        %8243 = vmatpush1.msra.mxu0 %v8211
        %8244 = vmatprep.subr.mxu0 0.0
        %8245 = vmatpush1.msra.mxu0 %v8210
        %8246 = vmatprep.subr.mxu0 0.0
        %8247 = vmatpush1.msra.mxu0 %v8209
        %8248 = vmatprep.subr.mxu0 0.0
        %8249 = vmatpush2.msra.mxu0 0.0
        %8250 = vmatprep.subr.mxu0 0.0
        %8251 = vmatpush2.msra.mxu0 0.0
        %8252 = vmatprep.subr.mxu0 0.0
        %8253 = vmatpush2.msra.mxu0 0.0
        %8254 = vmatprep.subr.mxu0 0.0
        %8255 = vmatpush2.msra.mxu0 0.0
        %8256 = vmatprep.subr.mxu0 0.0
        %8257 = vmatpush2.msra.mxu0 0.0
        %8258 = vmatprep.subr.mxu0 0.0
        %8259 = vmatpush2.msra.mxu0 0.0
        %8260 = vmatprep.subr.mxu0 0.0
        %8261 = vmatpush2.msra.mxu0 0.0
        %8262 = vmatprep.subr.mxu0 0.0
        %8263 = vmatpush2.msra.mxu0 0.0
        %8264 = vmatprep.subr.mxu0 0.0
        %8265 = vmatpush2.msra.mxu0 0.0
        %8266 = vmatprep.subr.mxu0 0.0
        %8267 = vmatpush2.msra.mxu0 0.0
        %8268 = vmatprep.subr.mxu0 0.0
        %8269 = vmatpush2.msra.mxu0 0.0
        %8270 = vmatprep.subr.mxu0 0.0
        %8271 = vmatpush2.msra.mxu0 0.0
        %8272 = vmatprep.subr.mxu0 0.0
        %8273 = vmatpush2.msra.mxu0 0.0
        %8274 = vmatprep.subr.mxu0 0.0
        %8275 = vmatpush2.msra.mxu0 0.0
        %8276 = vmatprep.subr.mxu0 0.0
        %8277 = vmatpush2.msra.mxu0 0.0
        %8278 = vmatprep.subr.mxu0 0.0
        %8279 = vmatpush2.msra.mxu0 0.0
        %8280 = vmatprep.mubr.f32.mxu0 0.0
        %8281 = vmatmul.mubr.f32.gmra.mxu0 %v8214
        %v8282 = vpop.f32.mrf.mxu0
        %v8283 = vadd.f32 0.0, %v8282
        %v8284 = vpop.f32.mrf.mxu0
        %8285 = vdwg.mxu0
        %v8286 = vld [vmem:[#allocation9] sm:$0x3f]
        %v8287 = vadd.f32 %v8286, %v8283
        %8288 = vst.msk [vmem:[#allocation9] sm:$0x3f] %vm856, %v8287
        %v8289 = vld [vmem:[#allocation5 + $0x5] sm:$0x3f]
        %s8290 = scalar_lea.vmem [#allocation10], 128
        %v8291 = vld [vmem:[%s8290] sm:$0xff]
        %v8292 = vld [vmem:[%s8290 + $0x8] sm:$0xff]
        %v8293 = vld [vmem:[%s8290 + $0x10] sm:$0xff]
        %v8294 = vld [vmem:[%s8290 + $0x18] sm:$0xff]
        %v8296 = vsel %vm412, %v8289, 0
        %8298 = vmatprep.subr.mxu0 0.0
        %8299 = vmatpush1.msra.mxu0 0.0
        %8300 = vmatprep.subr.mxu0 0.0
        %8301 = vmatpush1.msra.mxu0 0.0
        %8302 = vmatprep.subr.mxu0 0.0
        %8303 = vmatpush1.msra.mxu0 0.0
        %8304 = vmatprep.subr.mxu0 0.0
        %8305 = vmatpush1.msra.mxu0 0.0
        %8306 = vmatprep.subr.mxu0 0.0
        %8307 = vmatpush1.msra.mxu0 0.0
        %8308 = vmatprep.subr.mxu0 0.0
        %8309 = vmatpush1.msra.mxu0 0.0
        %8310 = vmatprep.subr.mxu0 0.0
        %8311 = vmatpush1.msra.mxu0 0.0
        %8312 = vmatprep.subr.mxu0 0.0
        %8313 = vmatpush1.msra.mxu0 0.0
        %8314 = vmatprep.subr.mxu0 0.0
        %8315 = vmatpush1.msra.mxu0 0.0
        %8316 = vmatprep.subr.mxu0 0.0
        %8317 = vmatpush1.msra.mxu0 0.0
        %8318 = vmatprep.subr.mxu0 0.0
        %8319 = vmatpush1.msra.mxu0 0.0
        %8320 = vmatprep.subr.mxu0 0.0
        %8321 = vmatpush1.msra.mxu0 0.0
        %8322 = vmatprep.subr.mxu0 0.0
        %8323 = vmatpush1.msra.mxu0 %v8294
        %8324 = vmatprep.subr.mxu0 0.0
        %8325 = vmatpush1.msra.mxu0 %v8293
        %8326 = vmatprep.subr.mxu0 0.0
        %8327 = vmatpush1.msra.mxu0 %v8292
        %8328 = vmatprep.subr.mxu0 0.0
        %8329 = vmatpush1.msra.mxu0 %v8291
        %8330 = vmatprep.subr.mxu0 0.0
        %8331 = vmatpush2.msra.mxu0 0.0
        %8332 = vmatprep.subr.mxu0 0.0
        %8333 = vmatpush2.msra.mxu0 0.0
        %8334 = vmatprep.subr.mxu0 0.0
        %8335 = vmatpush2.msra.mxu0 0.0
        %8336 = vmatprep.subr.mxu0 0.0
        %8337 = vmatpush2.msra.mxu0 0.0
        %8338 = vmatprep.subr.mxu0 0.0
        %8339 = vmatpush2.msra.mxu0 0.0
        %8340 = vmatprep.subr.mxu0 0.0
        %8341 = vmatpush2.msra.mxu0 0.0
        %8342 = vmatprep.subr.mxu0 0.0
        %8343 = vmatpush2.msra.mxu0 0.0
        %8344 = vmatprep.subr.mxu0 0.0
        %8345 = vmatpush2.msra.mxu0 0.0
        %8346 = vmatprep.subr.mxu0 0.0
        %8347 = vmatpush2.msra.mxu0 0.0
        %8348 = vmatprep.subr.mxu0 0.0
        %8349 = vmatpush2.msra.mxu0 0.0
        %8350 = vmatprep.subr.mxu0 0.0
        %8351 = vmatpush2.msra.mxu0 0.0
        %8352 = vmatprep.subr.mxu0 0.0
        %8353 = vmatpush2.msra.mxu0 0.0
        %8354 = vmatprep.subr.mxu0 0.0
        %8355 = vmatpush2.msra.mxu0 0.0
        %8356 = vmatprep.subr.mxu0 0.0
        %8357 = vmatpush2.msra.mxu0 0.0
        %8358 = vmatprep.subr.mxu0 0.0
        %8359 = vmatpush2.msra.mxu0 0.0
        %8360 = vmatprep.subr.mxu0 0.0
        %8361 = vmatpush2.msra.mxu0 0.0
        %8362 = vmatprep.mubr.f32.mxu0 0.0
        %8363 = vmatmul.mubr.f32.gmra.mxu0 %v8296
        %v8364 = vpop.f32.mrf.mxu0
        %v8365 = vadd.f32 0.0, %v8364
        %v8366 = vpop.f32.mrf.mxu0
        %8367 = vdwg.mxu0
        %v8368 = vld [vmem:[#allocation9] sm:$0x3f]
        %v8369 = vadd.f32 %v8368, %v8365
        %8370 = vst.msk [vmem:[#allocation9] sm:$0x3f] %vm856, %v8369
        %v8371 = vld [vmem:[#allocation5 + $0x6] sm:$0x3f]
        %s8372 = scalar_lea.vmem [#allocation10], 160
        %v8373 = vld [vmem:[%s8372] sm:$0xff]
        %v8374 = vld [vmem:[%s8372 + $0x8] sm:$0xff]
        %v8375 = vld [vmem:[%s8372 + $0x10] sm:$0xff]
        %v8376 = vld [vmem:[%s8372 + $0x18] sm:$0xff]
        %v8378 = vsel %vm412, %v8371, 0
        %8380 = vmatprep.subr.mxu0 0.0
        %8381 = vmatpush1.msra.mxu0 0.0
        %8382 = vmatprep.subr.mxu0 0.0
        %8383 = vmatpush1.msra.mxu0 0.0
        %8384 = vmatprep.subr.mxu0 0.0
        %8385 = vmatpush1.msra.mxu0 0.0
        %8386 = vmatprep.subr.mxu0 0.0
        %8387 = vmatpush1.msra.mxu0 0.0
        %8388 = vmatprep.subr.mxu0 0.0
        %8389 = vmatpush1.msra.mxu0 0.0
        %8390 = vmatprep.subr.mxu0 0.0
        %8391 = vmatpush1.msra.mxu0 0.0
        %8392 = vmatprep.subr.mxu0 0.0
        %8393 = vmatpush1.msra.mxu0 0.0
        %8394 = vmatprep.subr.mxu0 0.0
        %8395 = vmatpush1.msra.mxu0 0.0
        %8396 = vmatprep.subr.mxu0 0.0
        %8397 = vmatpush1.msra.mxu0 0.0
        %8398 = vmatprep.subr.mxu0 0.0
        %8399 = vmatpush1.msra.mxu0 0.0
        %8400 = vmatprep.subr.mxu0 0.0
        %8401 = vmatpush1.msra.mxu0 0.0
        %8402 = vmatprep.subr.mxu0 0.0
        %8403 = vmatpush1.msra.mxu0 0.0
        %8404 = vmatprep.subr.mxu0 0.0
        %8405 = vmatpush1.msra.mxu0 %v8376
        %8406 = vmatprep.subr.mxu0 0.0
        %8407 = vmatpush1.msra.mxu0 %v8375
        %8408 = vmatprep.subr.mxu0 0.0
        %8409 = vmatpush1.msra.mxu0 %v8374
        %8410 = vmatprep.subr.mxu0 0.0
        %8411 = vmatpush1.msra.mxu0 %v8373
        %8412 = vmatprep.subr.mxu0 0.0
        %8413 = vmatpush2.msra.mxu0 0.0
        %8414 = vmatprep.subr.mxu0 0.0
        %8415 = vmatpush2.msra.mxu0 0.0
        %8416 = vmatprep.subr.mxu0 0.0
        %8417 = vmatpush2.msra.mxu0 0.0
        %8418 = vmatprep.subr.mxu0 0.0
        %8419 = vmatpush2.msra.mxu0 0.0
        %8420 = vmatprep.subr.mxu0 0.0
        %8421 = vmatpush2.msra.mxu0 0.0
        %8422 = vmatprep.subr.mxu0 0.0
        %8423 = vmatpush2.msra.mxu0 0.0
        %8424 = vmatprep.subr.mxu0 0.0
        %8425 = vmatpush2.msra.mxu0 0.0
        %8426 = vmatprep.subr.mxu0 0.0
        %8427 = vmatpush2.msra.mxu0 0.0
        %8428 = vmatprep.subr.mxu0 0.0
        %8429 = vmatpush2.msra.mxu0 0.0
        %8430 = vmatprep.subr.mxu0 0.0
        %8431 = vmatpush2.msra.mxu0 0.0
        %8432 = vmatprep.subr.mxu0 0.0
        %8433 = vmatpush2.msra.mxu0 0.0
        %8434 = vmatprep.subr.mxu0 0.0
        %8435 = vmatpush2.msra.mxu0 0.0
        %8436 = vmatprep.subr.mxu0 0.0
        %8437 = vmatpush2.msra.mxu0 0.0
        %8438 = vmatprep.subr.mxu0 0.0
        %8439 = vmatpush2.msra.mxu0 0.0
        %8440 = vmatprep.subr.mxu0 0.0
        %8441 = vmatpush2.msra.mxu0 0.0
        %8442 = vmatprep.subr.mxu0 0.0
        %8443 = vmatpush2.msra.mxu0 0.0
        %8444 = vmatprep.mubr.f32.mxu0 0.0
        %8445 = vmatmul.mubr.f32.gmra.mxu0 %v8378
        %v8446 = vpop.f32.mrf.mxu0
        %v8447 = vadd.f32 0.0, %v8446
        %v8448 = vpop.f32.mrf.mxu0
        %8449 = vdwg.mxu0
        %v8450 = vld [vmem:[#allocation9] sm:$0x3f]
        %v8451 = vadd.f32 %v8450, %v8447
        %8452 = vst.msk [vmem:[#allocation9] sm:$0x3f] %vm856, %v8451
        %v8453 = vld [vmem:[#allocation5 + $0x8] sm:$0x3f]
        %s8454 = scalar_lea.vmem [#allocation10], 192
        %v8455 = vld [vmem:[%s8454] sm:$0xff]
        %v8456 = vld [vmem:[%s8454 + $0x8] sm:$0xff]
        %v8457 = vld [vmem:[%s8454 + $0x10] sm:$0xff]
        %v8458 = vld [vmem:[%s8454 + $0x18] sm:$0xff]
        %v8460 = vsel %vm412, %v8453, 0
        %8462 = vmatprep.subr.mxu0 0.0
        %8463 = vmatpush1.msra.mxu0 0.0
        %8464 = vmatprep.subr.mxu0 0.0
        %8465 = vmatpush1.msra.mxu0 0.0
        %8466 = vmatprep.subr.mxu0 0.0
        %8467 = vmatpush1.msra.mxu0 0.0
        %8468 = vmatprep.subr.mxu0 0.0
        %8469 = vmatpush1.msra.mxu0 0.0
        %8470 = vmatprep.subr.mxu0 0.0
        %8471 = vmatpush1.msra.mxu0 0.0
        %8472 = vmatprep.subr.mxu0 0.0
        %8473 = vmatpush1.msra.mxu0 0.0
        %8474 = vmatprep.subr.mxu0 0.0
        %8475 = vmatpush1.msra.mxu0 0.0
        %8476 = vmatprep.subr.mxu0 0.0
        %8477 = vmatpush1.msra.mxu0 0.0
        %8478 = vmatprep.subr.mxu0 0.0
        %8479 = vmatpush1.msra.mxu0 0.0
        %8480 = vmatprep.subr.mxu0 0.0
        %8481 = vmatpush1.msra.mxu0 0.0
        %8482 = vmatprep.subr.mxu0 0.0
        %8483 = vmatpush1.msra.mxu0 0.0
        %8484 = vmatprep.subr.mxu0 0.0
        %8485 = vmatpush1.msra.mxu0 0.0
        %8486 = vmatprep.subr.mxu0 0.0
        %8487 = vmatpush1.msra.mxu0 %v8458
        %8488 = vmatprep.subr.mxu0 0.0
        %8489 = vmatpush1.msra.mxu0 %v8457
        %8490 = vmatprep.subr.mxu0 0.0
        %8491 = vmatpush1.msra.mxu0 %v8456
        %8492 = vmatprep.subr.mxu0 0.0
        %8493 = vmatpush1.msra.mxu0 %v8455
        %8494 = vmatprep.subr.mxu0 0.0
        %8495 = vmatpush2.msra.mxu0 0.0
        %8496 = vmatprep.subr.mxu0 0.0
        %8497 = vmatpush2.msra.mxu0 0.0
        %8498 = vmatprep.subr.mxu0 0.0
        %8499 = vmatpush2.msra.mxu0 0.0
        %8500 = vmatprep.subr.mxu0 0.0
        %8501 = vmatpush2.msra.mxu0 0.0
        %8502 = vmatprep.subr.mxu0 0.0
        %8503 = vmatpush2.msra.mxu0 0.0
        %8504 = vmatprep.subr.mxu0 0.0
        %8505 = vmatpush2.msra.mxu0 0.0
        %8506 = vmatprep.subr.mxu0 0.0
        %8507 = vmatpush2.msra.mxu0 0.0
        %8508 = vmatprep.subr.mxu0 0.0
        %8509 = vmatpush2.msra.mxu0 0.0
        %8510 = vmatprep.subr.mxu0 0.0
        %8511 = vmatpush2.msra.mxu0 0.0
        %8512 = vmatprep.subr.mxu0 0.0
        %8513 = vmatpush2.msra.mxu0 0.0
        %8514 = vmatprep.subr.mxu0 0.0
        %8515 = vmatpush2.msra.mxu0 0.0
        %8516 = vmatprep.subr.mxu0 0.0
        %8517 = vmatpush2.msra.mxu0 0.0
        %8518 = vmatprep.subr.mxu0 0.0
        %8519 = vmatpush2.msra.mxu0 0.0
        %8520 = vmatprep.subr.mxu0 0.0
        %8521 = vmatpush2.msra.mxu0 0.0
        %8522 = vmatprep.subr.mxu0 0.0
        %8523 = vmatpush2.msra.mxu0 0.0
        %8524 = vmatprep.subr.mxu0 0.0
        %8525 = vmatpush2.msra.mxu0 0.0
        %8526 = vmatprep.mubr.f32.mxu0 0.0
        %8527 = vmatmul.mubr.f32.gmra.mxu0 %v8460
        %v8528 = vpop.f32.mrf.mxu0
        %v8529 = vadd.f32 0.0, %v8528
        %v8530 = vpop.f32.mrf.mxu0
        %8531 = vdwg.mxu0
        %v8532 = vld [vmem:[#allocation9] sm:$0x3f]
        %v8533 = vadd.f32 %v8532, %v8529
        %8534 = vst.msk [vmem:[#allocation9] sm:$0x3f] %vm856, %v8533
        %v8535 = vld [vmem:[#allocation5 + $0x9] sm:$0x3f]
        %s8536 = scalar_lea.vmem [#allocation10], 224
        %v8537 = vld [vmem:[%s8536] sm:$0xff]
        %v8538 = vld [vmem:[%s8536 + $0x8] sm:$0xff]
        %v8539 = vld [vmem:[%s8536 + $0x10] sm:$0xff]
        %v8540 = vld [vmem:[%s8536 + $0x18] sm:$0xff]
        %v8542 = vsel %vm412, %v8535, 0
        %8544 = vmatprep.subr.mxu0 0.0
        %8545 = vmatpush1.msra.mxu0 0.0
        %8546 = vmatprep.subr.mxu0 0.0
        %8547 = vmatpush1.msra.mxu0 0.0
        %8548 = vmatprep.subr.mxu0 0.0
        %8549 = vmatpush1.msra.mxu0 0.0
        %8550 = vmatprep.subr.mxu0 0.0
        %8551 = vmatpush1.msra.mxu0 0.0
        %8552 = vmatprep.subr.mxu0 0.0
        %8553 = vmatpush1.msra.mxu0 0.0
        %8554 = vmatprep.subr.mxu0 0.0
        %8555 = vmatpush1.msra.mxu0 0.0
        %8556 = vmatprep.subr.mxu0 0.0
        %8557 = vmatpush1.msra.mxu0 0.0
        %8558 = vmatprep.subr.mxu0 0.0
        %8559 = vmatpush1.msra.mxu0 0.0
        %8560 = vmatprep.subr.mxu0 0.0
        %8561 = vmatpush1.msra.mxu0 0.0
        %8562 = vmatprep.subr.mxu0 0.0
        %8563 = vmatpush1.msra.mxu0 0.0
        %8564 = vmatprep.subr.mxu0 0.0
        %8565 = vmatpush1.msra.mxu0 0.0
        %8566 = vmatprep.subr.mxu0 0.0
        %8567 = vmatpush1.msra.mxu0 0.0
        %8568 = vmatprep.subr.mxu0 0.0
        %8569 = vmatpush1.msra.mxu0 %v8540
        %8570 = vmatprep.subr.mxu0 0.0
        %8571 = vmatpush1.msra.mxu0 %v8539
        %8572 = vmatprep.subr.mxu0 0.0
        %8573 = vmatpush1.msra.mxu0 %v8538
        %8574 = vmatprep.subr.mxu0 0.0
        %8575 = vmatpush1.msra.mxu0 %v8537
        %8576 = vmatprep.subr.mxu0 0.0
        %8577 = vmatpush2.msra.mxu0 0.0
        %8578 = vmatprep.subr.mxu0 0.0
        %8579 = vmatpush2.msra.mxu0 0.0
        %8580 = vmatprep.subr.mxu0 0.0
        %8581 = vmatpush2.msra.mxu0 0.0
        %8582 = vmatprep.subr.mxu0 0.0
        %8583 = vmatpush2.msra.mxu0 0.0
        %8584 = vmatprep.subr.mxu0 0.0
        %8585 = vmatpush2.msra.mxu0 0.0
        %8586 = vmatprep.subr.mxu0 0.0
        %8587 = vmatpush2.msra.mxu0 0.0
        %8588 = vmatprep.subr.mxu0 0.0
        %8589 = vmatpush2.msra.mxu0 0.0
        %8590 = vmatprep.subr.mxu0 0.0
        %8591 = vmatpush2.msra.mxu0 0.0
        %8592 = vmatprep.subr.mxu0 0.0
        %8593 = vmatpush2.msra.mxu0 0.0
        %8594 = vmatprep.subr.mxu0 0.0
        %8595 = vmatpush2.msra.mxu0 0.0
        %8596 = vmatprep.subr.mxu0 0.0
        %8597 = vmatpush2.msra.mxu0 0.0
        %8598 = vmatprep.subr.mxu0 0.0
        %8599 = vmatpush2.msra.mxu0 0.0
        %8600 = vmatprep.subr.mxu0 0.0
        %8601 = vmatpush2.msra.mxu0 0.0
        %8602 = vmatprep.subr.mxu0 0.0
        %8603 = vmatpush2.msra.mxu0 0.0
        %8604 = vmatprep.subr.mxu0 0.0
        %8605 = vmatpush2.msra.mxu0 0.0
        %8606 = vmatprep.subr.mxu0 0.0
        %8607 = vmatpush2.msra.mxu0 0.0
        %8608 = vmatprep.mubr.f32.mxu0 0.0
        %8609 = vmatmul.mubr.f32.gmra.mxu0 %v8542
        %v8610 = vpop.f32.mrf.mxu0
        %v8611 = vadd.f32 0.0, %v8610
        %v8612 = vpop.f32.mrf.mxu0
        %8613 = vdwg.mxu0
        %v8614 = vld [vmem:[#allocation9] sm:$0x3f]
        %v8615 = vadd.f32 %v8614, %v8611
        %8616 = vst.msk [vmem:[#allocation9] sm:$0x3f] %vm856, %v8615
        %v8617 = vld [vmem:[#allocation5 + $0xa] sm:$0x3f]
        %s8618 = scalar_lea.vmem [#allocation10], 256
        %v8619 = vld [vmem:[%s8618] sm:$0xff]
        %v8620 = vld [vmem:[%s8618 + $0x8] sm:$0xff]
        %v8621 = vld [vmem:[%s8618 + $0x10] sm:$0xff]
        %v8622 = vld [vmem:[%s8618 + $0x18] sm:$0xff]
        %v8624 = vsel %vm412, %v8617, 0
        %8626 = vmatprep.subr.mxu0 0.0
        %8627 = vmatpush1.msra.mxu0 0.0
        %8628 = vmatprep.subr.mxu0 0.0
        %8629 = vmatpush1.msra.mxu0 0.0
        %8630 = vmatprep.subr.mxu0 0.0
        %8631 = vmatpush1.msra.mxu0 0.0
        %8632 = vmatprep.subr.mxu0 0.0
        %8633 = vmatpush1.msra.mxu0 0.0
        %8634 = vmatprep.subr.mxu0 0.0
        %8635 = vmatpush1.msra.mxu0 0.0
        %8636 = vmatprep.subr.mxu0 0.0
        %8637 = vmatpush1.msra.mxu0 0.0
        %8638 = vmatprep.subr.mxu0 0.0
        %8639 = vmatpush1.msra.mxu0 0.0
        %8640 = vmatprep.subr.mxu0 0.0
        %8641 = vmatpush1.msra.mxu0 0.0
        %8642 = vmatprep.subr.mxu0 0.0
        %8643 = vmatpush1.msra.mxu0 0.0
        %8644 = vmatprep.subr.mxu0 0.0
        %8645 = vmatpush1.msra.mxu0 0.0
        %8646 = vmatprep.subr.mxu0 0.0
        %8647 = vmatpush1.msra.mxu0 0.0
        %8648 = vmatprep.subr.mxu0 0.0
        %8649 = vmatpush1.msra.mxu0 0.0
        %8650 = vmatprep.subr.mxu0 0.0
        %8651 = vmatpush1.msra.mxu0 %v8622
        %8652 = vmatprep.subr.mxu0 0.0
        %8653 = vmatpush1.msra.mxu0 %v8621
        %8654 = vmatprep.subr.mxu0 0.0
        %8655 = vmatpush1.msra.mxu0 %v8620
        %8656 = vmatprep.subr.mxu0 0.0
        %8657 = vmatpush1.msra.mxu0 %v8619
        %8658 = vmatprep.subr.mxu0 0.0
        %8659 = vmatpush2.msra.mxu0 0.0
        %8660 = vmatprep.subr.mxu0 0.0
        %8661 = vmatpush2.msra.mxu0 0.0
        %8662 = vmatprep.subr.mxu0 0.0
        %8663 = vmatpush2.msra.mxu0 0.0
        %8664 = vmatprep.subr.mxu0 0.0
        %8665 = vmatpush2.msra.mxu0 0.0
        %8666 = vmatprep.subr.mxu0 0.0
        %8667 = vmatpush2.msra.mxu0 0.0
        %8668 = vmatprep.subr.mxu0 0.0
        %8669 = vmatpush2.msra.mxu0 0.0
        %8670 = vmatprep.subr.mxu0 0.0
        %8671 = vmatpush2.msra.mxu0 0.0
        %8672 = vmatprep.subr.mxu0 0.0
        %8673 = vmatpush2.msra.mxu0 0.0
        %8674 = vmatprep.subr.mxu0 0.0
        %8675 = vmatpush2.msra.mxu0 0.0
        %8676 = vmatprep.subr.mxu0 0.0
        %8677 = vmatpush2.msra.mxu0 0.0
        %8678 = vmatprep.subr.mxu0 0.0
        %8679 = vmatpush2.msra.mxu0 0.0
        %8680 = vmatprep.subr.mxu0 0.0
        %8681 = vmatpush2.msra.mxu0 0.0
        %8682 = vmatprep.subr.mxu0 0.0
        %8683 = vmatpush2.msra.mxu0 0.0
        %8684 = vmatprep.subr.mxu0 0.0
        %8685 = vmatpush2.msra.mxu0 0.0
        %8686 = vmatprep.subr.mxu0 0.0
        %8687 = vmatpush2.msra.mxu0 0.0
        %8688 = vmatprep.subr.mxu0 0.0
        %8689 = vmatpush2.msra.mxu0 0.0
        %8690 = vmatprep.mubr.f32.mxu0 0.0
        %8691 = vmatmul.mubr.f32.gmra.mxu0 %v8624
        %v8692 = vpop.f32.mrf.mxu0
        %v8693 = vadd.f32 0.0, %v8692
        %v8694 = vpop.f32.mrf.mxu0
        %8695 = vdwg.mxu0
        %v8696 = vld [vmem:[#allocation9] sm:$0x3f]
        %v8697 = vadd.f32 %v8696, %v8693
        %8698 = vst.msk [vmem:[#allocation9] sm:$0x3f] %vm856, %v8697
        %v8699 = vld [vmem:[#allocation9] sm:$0x3f]
        %v8701 = vlaneseq
        %v8702 = vshrl.u32 %v8701, 7
        %v8703 = vsub.s32 0, %v8702
        %v8704 = vrot.slane %v404, %v8703
        %v8706 = vmul.f32 %v8699, %v8704
        %v8708 = vlaneseq
        %v8709 = vshrl.u32 %v8708, 7
        %v8710 = vsub.s32 0, %v8709
        %v8711 = vrot.slane %v411, %v8710
        %v8713 = vadd.f32 %v8706, %v8711
        %v8714 = vmax.f32 %v8713, 0.0
        %8715 = vst.msk [vmem:[#allocation9] sm:$0x3f] %vm856, %v8714
        %v8716 = vld [vmem:[#allocation9] sm:$0x1]
        %v8717 = vld [vmem:[#allocation9 + $0x1] sm:$0x1]
        %v8718 = vmax.f32 %v8716, %v8717
        %v8719 = vld [vmem:[#allocation9 + $0x4] sm:$0x1]
        %v8720 = vld [vmem:[#allocation9 + $0x5] sm:$0x1]
        %v8721 = vmax.f32 %v8719, %v8720
        %v8722 = vmax.f32 %v8718, %v8721
        %vm8723 = vcmask 253952
        %8724 = vst.msk [vmem:[%s285] sm:$0x1] %vm8723, %v8722
        %s8725 = sand.u32 %s182, 1
        %s8726 = scalar_lea.sflag [#allocation12], %s8725
        %s8727 = sand.u32 %s182, 1
        %s8728 = scalar_lea.vmem [#allocation13], %s8727
        // Predicated region
        $region53: #{protonet_forward_pallas.1} parent=47 // pred_check
          %p8729 = pneg %p192
        $region54: #{protonet_forward_pallas.1} parent=47 // pred_check_branch
          %8731 = sbr.rel (%p8729) target = $region56
        $region55: #{protonet_forward_pallas.1} parent=47 // pred_region
          %s8733 = ssub.s32 16, 16
          %8734 = vsyncadd %s8726, %s8733
          %s8735 = smul.addr %s22, 16
          %s8736 = scalar_lea.hbm %s7, %s8735
          %s8738 = sshll.u32 %s8728, 4
          %s8739 = int_to_ptr.vmem [resolvable:$true] %s8738
          %8741 = dma.vmem_to_hbm [thread:$0]  %s8739, 16, %s8736, %s8726
        $region56: #{protonet_forward_pallas.1} parent=47 // pred_fallthru
          _
      $region48: #{protonet_forward_pallas.1} parent=5 // pred_fallthru
        _
      %p8742 = scmp.le.s32.totalorder 2, %s17
      // Predicated region
      $region57: #{protonet_forward_pallas.1} parent=5 // pred_check
        %p8743 = pneg %p8742
      $region58: #{protonet_forward_pallas.1} parent=5 // pred_check_branch
        %8745 = sbr.rel (%p8743) target = $region60
      $region59: #{protonet_forward_pallas.1} parent=5 // pred_region
        %s8746 = ssub.s32 %s17, 2
        // Predicated region
        $region61: #{protonet_forward_pallas.1} parent=59 // pred_check
          %p8747 = pneg %p198
        $region62: #{protonet_forward_pallas.1} parent=59 // pred_check_branch
          %8749 = sbr.rel (%p8747) target = $region64
        $region63: #{protonet_forward_pallas.1} parent=59 // pred_region
          %s8750 = sand.u32 %s183, 1
          %s8751 = scalar_lea.sflag [#allocation12], %s8750
          %s8752 = sand.u32 %s183, 1
          %s8753 = scalar_lea.vmem [#allocation13], %s8752
          %8754 = dma.done %s8751, 16
        $region64: #{protonet_forward_pallas.1} parent=59 // pred_fallthru
          _
      $region60: #{protonet_forward_pallas.1} parent=5 // pred_fallthru
        _
    $region6: #{protonet_forward_pallas.1} parent=1 // loop_footer
      %s21 = sadd.s32 1, %s17
    $region7: #{protonet_forward_pallas.1} parent=1 // loop_footer_branch
      %16 = sbr.rel target = $region3
    $region8: #{protonet_forward_pallas.1} parent=1 // loop_exit
      _
    %8755 = vsyncpa [#allocation11], 1
    %s8756 = scalar_lea.sflag [#allocation11], 1
    %8757 = vsyncpa %s8756, 1
    %8758 = vsyncpa [#allocation12], 1
    %s8759 = scalar_lea.sflag [#allocation12], 1
    %8760 = vsyncpa %s8759, 1

</llo_original>
